<compile_context>
chip_gen: v7x
topology: tpu7x:2x2x1
jax: 0.10.0
libtpu: 0.0.40
codegen_flags: <defaults>
</compile_context>

<pallas_src>
import jax
import jax.numpy as jnp
import numpy as np
from jax.experimental import pallas as pl
from jax.experimental.pallas import tpu as pltpu

# ---- small, deterministic config (stand-ins for Config.char_dim / glove_dim) ----
D_CHAR = 16            # char embedding dim
D_WORD = 32            # word (glove) embedding dim
D_MODEL = D_CHAR + D_WORD   # 48
DP = 128               # lane-padded highway width (full 128-lane vregs / dense stores)
K = 5                  # depthwise conv kernel size
PAD = K // 2
B = 2                  # batch
L = 8                  # sequence length (words)
Wc = 16                # chars per word

# Production on v6e/v7x: set to jnp.bfloat16 (MXU-native), pre-cast folded
# weights in fold_params, keep f32 accumulation, use a bf16-aware tolerance.
MATMUL_DTYPE = jnp.float32


# ---------------------------------------------------------------------------
# Fused kernel (one grid step = one batch row):
#   halo-pad -> 25 per-tap accumulating MXU matmuls -> ReLU -> max over chars ->
#   lane-range stores into padded highway buffer -> 2-layer highway -> dense store
# ---------------------------------------------------------------------------
def embedding_kernel(ch_ref, wd_ref, wconv_ref, bconv_ref,
                     wg0_ref, bg0_ref, wl0_ref, bl0_ref,
                     wg1_ref, bg1_ref, wl1_ref, bl1_ref,
                     o_ref, xpad_ref, xbuf_ref):
    # ch_ref   : (L, Wc, C)        char embeddings (channels-last), one batch row
    # wd_ref   : (L, Dw)           word embeddings, one batch row
    # wconv_ref: (K*K, C, C)       folded depthwise*pointwise weight, per 5x5 tap
    # bconv_ref: (1, C)            folded conv bias (b_dw @ pw + b_pw)
    # w{g,l}*  : (DP, DP)          highway gate / linear weights, zero-padded K=N=128
    # b{g,l}*  : (1, DP)           highway biases, zero-padded
    # o_ref    : (L, DP)           lane-dense padded output (caller slices :D)
    # xpad_ref : (L+2P, Wc+2P, C)  VMEM scratch (halo zero-padded)
    # xbuf_ref : (L, DP)           VMEM working buffer for the highway input
    Lq, Wq, C = ch_ref.shape
    Dw = wd_ref.shape[-1]
    D = C + Dw
    DPk = o_ref.shape[-1]

    # ---- zero only the halo; interior is fully overwritten every grid step ----
    zrow = jnp.zeros((PAD, Wq + 2 * PAD, C), jnp.float32)
    xpad_ref[0:PAD, :, :] = zrow
    xpad_ref[PAD + Lq:PAD + Lq + PAD, :, :] = zrow
    zcol = jnp.zeros((Lq, PAD, C), jnp.float32)
    xpad_ref[PAD:PAD + Lq, 0:PAD, :] = zcol
    xpad_ref[PAD:PAD + Lq, PAD + Wq:PAD + Wq + PAD, :] = zcol
    xpad_ref[PAD:PAD + Lq, PAD:PAD + Wq, :] = ch_ref[...]
    xp = xpad_ref[...]                                   # (L+2P, Wc+2P, C)

    # ---- depthwise-separable conv: 25 accumulating MXU matmuls (no im2col concat) ----
    acc = jnp.zeros((Lq * Wq, C), jnp.float32)
    for dy in range(K):                                  # fully unrolled 5x5 window
        for dx in range(K):
            tap = xp[dy:dy + Lq, dx:dx + Wq, :].reshape(Lq * Wq, C)
            acc = acc + jnp.dot(tap.astype(MATMUL_DTYPE),
                                wconv_ref[dy * K + dx].astype(MATMUL_DTYPE),
                                preferred_element_type=jnp.float32)
    y = jnp.maximum(acc + bconv_ref[...], 0.0)           # fused bias + ReLU
    ch_feat = jnp.max(y.reshape(Lq, Wq, C), axis=1)      # max over char positions -> (L, C)

    # ---- highway input: lane-range stores into one padded buffer (no lane concat) ----
    xbuf_ref[:, D:DPk] = jnp.zeros((Lq, DPk - D), jnp.float32)   # keep pad lanes exactly 0
    xbuf_ref[:, 0:C] = ch_feat
    xbuf_ref[:, C:D] = wd_ref[...]
    x = xbuf_ref[...]                                    # (L, 128), lanes D: are 0

    # ---- 2-layer highway; K and N zero-padded to 128 -> full-vreg elementwise ----
    # Padded lanes stay exactly 0: g_pad = sigmoid(0) = 0.5, nl_pad = 0, x_pad = 0.
    for wg, bg, wl, bl in ((wg0_ref, bg0_ref, wl0_ref, bl0_ref),
                           (wg1_ref, bg1_ref, wl1_ref, bl1_ref)):
        xm = x.astype(MATMUL_DTYPE)
        g = jax.nn.sigmoid(
            jnp.dot(xm, wg[...].astype(MATMUL_DTYPE),
                    preferred_element_type=jnp.float32) + bg[...])
        nl = jnp.maximum(
            jnp.dot(xm, wl[...].astype(MATMUL_DTYPE),
                    preferred_element_type=jnp.float32) + bl[...], 0.0)
        x = g * nl + (1.0 - g) * x

    o_ref[...] = x                                       # dense (L, 128) store


# ---------------------------------------------------------------------------
# Wrapper: batch-parallel grid, weights VMEM-resident, then the module's
# (B, D, L) permute (slice off lane padding first).
# ---------------------------------------------------------------------------
def embedding_forward(ch_emb, wd_emb, folded):
    B_, L_, Wc_, C = ch_emb.shape
    Dw = wd_emb.shape[-1]
    D = C + Dw

    w_spec = pl.BlockSpec((DP, DP), lambda b: (0, 0))    # constant maps -> resident
    b_spec = pl.BlockSpec((1, DP), lambda b: (0, 0))

    out = pl.pallas_call(
        embedding_kernel,
        out_shape=jax.ShapeDtypeStruct((B_, L_, DP), jnp.float32),
        grid_spec=pltpu.PrefetchScalarGridSpec(
            num_scalar_prefetch=0,
            grid=(B_,),
            in_specs=[
                pl.BlockSpec((None, L_, Wc_, C), lambda b: (b, 0, 0, 0)),
                pl.BlockSpec((None, L_, Dw), lambda b: (b, 0, 0)),
                pl.BlockSpec((K * K, C, C), lambda b: (0, 0, 0)),
                pl.BlockSpec((1, C), lambda b: (0, 0)),
                w_spec, b_spec, w_spec, b_spec,
                w_spec, b_spec, w_spec, b_spec,
            ],
            out_specs=pl.BlockSpec((None, L_, DP), lambda b: (b, 0, 0)),
            scratch_shapes=[
                pltpu.VMEM((L_ + 2 * PAD, Wc_ + 2 * PAD, C), jnp.float32),
                pltpu.VMEM((L_, DP), jnp.float32),
            ]),
        # batch axis is independent -> megacore sharding on v7x + DMA pipelining.
        # At production L, also set vmem_limit_bytes for v7x's 64 MiB VMEM.
        compiler_params=pltpu.CompilerParams(
            dimension_semantics=("parallel",)),
    )(ch_emb, wd_emb, *folded)

    # PyTorch module returns [B, D, L]: drop the lane padding and permute.
    # At production sizes, prefer consuming the kernel's lane-dense (B, L, D)
    # directly — this transpose is a pure extra HBM round trip.
    return jnp.transpose(out[:, :, :D], (0, 2, 1))


# ---------------------------------------------------------------------------
# Deterministic parameter init (synthetic; no checkpoint loading)
# ---------------------------------------------------------------------------
def init_params(key):
    ks = jax.random.split(key, 8)
    # depthwise Conv2d weight [C, K, K] (groups=C), bias = 0
    w_dw = jax.random.normal(ks[0], (D_CHAR, K, K), jnp.float32) * (2.0 / (K * K)) ** 0.5
    b_dw = jnp.zeros((D_CHAR,), jnp.float32)
    # pointwise Conv2d weight stored pre-transposed as [C_in, C_out], bias = 0
    w_pw = (jax.random.normal(ks[1], (D_CHAR, D_CHAR), jnp.float32) * (2.0 / D_CHAR) ** 0.5).T
    b_pw = jnp.zeros((D_CHAR,), jnp.float32)
    D = D_MODEL
    wl, bl, wg, bg = [], [], [], []
    for i in range(2):
        wl.append(jax.random.normal(ks[2 + 2 * i], (D, D), jnp.float32) * (1.0 / D) ** 0.5)
        bl.append(jnp.zeros((D,), jnp.float32))
        wg.append(jax.random.normal(ks[3 + 2 * i], (D, D), jnp.float32) * (1.0 / D) ** 0.5)
        bg.append(jnp.zeros((D,), jnp.float32))
    return {"w_dw": w_dw, "b_dw": b_dw, "w_pw": w_pw, "b_pw": b_pw,
            "wl": wl, "bl": bl, "wg": wg, "bg": bg}


def fold_params(params):
    """One-time weight prep:
       * fold depthwise into pointwise, stored per-tap as (K*K, C_in, C_out)
       * zero-pad each highway gate/linear weight to (128, 128) and bias to (1, 128)
         (padded rows/cols exactly 0 so padded lanes never leak)."""
    C, D = D_CHAR, D_MODEL
    dw = jnp.transpose(params["w_dw"], (1, 2, 0))             # (K, K, C): dw[dy,dx,cin]
    pw = params["w_pw"]                                        # (C_in, C_out)
    w_conv = (dw[:, :, :, None] * pw[None, None, :, :]).reshape(K * K, C, C)
    b_conv = (params["b_dw"] @ pw + params["b_pw"]).reshape(1, C)
    hw = []
    for i in range(2):
        for w, b in ((params["wg"][i], params["bg"][i]),
                     (params["wl"][i], params["bl"][i])):
            wp = jnp.zeros((DP, DP), jnp.float32).at[:D, :D].set(w)
            bp = jnp.zeros((1, DP), jnp.float32).at[0, :D].set(b)
            hw += [wp, bp]
    return (w_conv, b_conv, *hw)


# ---------------------------------------------------------------------------
# Pure-JAX reference (lax.conv path, unfused weights) for an independent check
# ---------------------------------------------------------------------------
def reference(ch_emb, wd_emb, params):
    C = D_CHAR
    x = jnp.transpose(ch_emb, (0, 3, 1, 2)).astype(jnp.float32)        # NCHW
    w_dw = params["w_dw"][:, None, :, :]                                # [C,1,K,K]
    y = jax.lax.conv_general_dilated(
        x, w_dw, (1, 1), ((PAD, PAD), (PAD, PAD)),
        dimension_numbers=("NCHW", "OIHW", "NCHW"), feature_group_count=C)
    y = y + params["b_dw"][None, :, None, None]
    w_pw = params["w_pw"].T[:, :, None, None]                           # [C_out,C_in,1,1]
    y = jax.lax.conv_general_dilated(
        y, w_pw, (1, 1), "VALID", dimension_numbers=("NCHW", "OIHW", "NCHW"))
    y = y + params["b_pw"][None, :, None, None]
    y = jnp.maximum(y, 0.0)
    ch_feat = jnp.max(y, axis=3)                                        # [B, C, L]
    wd = jnp.transpose(wd_emb, (0, 2, 1)).astype(jnp.float32)           # [B, Dw, L]
    emb = jnp.concatenate([ch_feat, wd], axis=1)                        # [B, D, L]
    xh = jnp.transpose(emb, (0, 2, 1))                                  # [B, L, D]
    for i in range(2):
        g = jax.nn.sigmoid(xh @ params["wg"][i] + params["bg"][i])
        nl = jax.nn.relu(xh @ params["wl"][i] + params["bl"][i])
        xh = g * nl + (1.0 - g) * xh
    return jnp.transpose(xh, (0, 2, 1))                                 # [B, D, L]


if __name__ == "__main__":
    key = jax.random.PRNGKey(0)
    kp, kc, kw = jax.random.split(key, 3)
    params = init_params(kp)
    folded = fold_params(params)

    ch_emb = jax.random.normal(kc, (B, L, Wc, D_CHAR), jnp.float32)     # like Qc [2,50,16,64]
    wd_emb = jax.random.normal(kw, (B, L, D_WORD), jnp.float32)         # like Qw [2,50,300]

    fwd = jax.jit(embedding_forward)
    out = jax.block_until_ready(fwd(ch_emb, wd_emb, folded))

    ref = reference(ch_emb, wd_emb, params)
    assert out.shape == (B, D_MODEL, L)
    np.testing.assert_allclose(np.asarray(out), np.asarray(ref), rtol=1e-4, atol=1e-4)
    print("KERNEL_OK")
</pallas_src>

<mosaic_0001>
module attributes {stable_mosaic.version = 11 : i64} {
  func.func @embedding_kernel(%arg0: i32, %arg1: memref<1x8x16x16xf32, #tpu.memory_space<vmem>>, %arg2: memref<1x8x32xf32, #tpu.memory_space<vmem>>, %arg3: memref<25x16x16xf32, #tpu.memory_space<vmem>>, %arg4: memref<1x16xf32, #tpu.memory_space<vmem>>, %arg5: memref<128x128xf32, #tpu.memory_space<vmem>>, %arg6: memref<1x128xf32, #tpu.memory_space<vmem>>, %arg7: memref<128x128xf32, #tpu.memory_space<vmem>>, %arg8: memref<1x128xf32, #tpu.memory_space<vmem>>, %arg9: memref<128x128xf32, #tpu.memory_space<vmem>>, %arg10: memref<1x128xf32, #tpu.memory_space<vmem>>, %arg11: memref<128x128xf32, #tpu.memory_space<vmem>>, %arg12: memref<1x128xf32, #tpu.memory_space<vmem>>, %arg13: memref<1x8x128xf32, #tpu.memory_space<vmem>>, %arg14: memref<12x20x16xf32, #tpu.memory_space<vmem>>, %arg15: memref<8x128xf32, #tpu.memory_space<vmem>>) attributes {dimension_semantics = [#tpu.dimension_semantics<parallel>], iteration_bounds = array<i64: 2>, scalar_prefetch = 0 : i64, scratch_operands = 2 : i64, tpu.core_type = #tpu.core_type<tc>, window_params = [{transform_indices = @transform_0, window_bounds = array<i64: 1, 8, 16, 16>}, {transform_indices = @transform_1, window_bounds = array<i64: 1, 8, 32>}, {pipeline_mode = #tpu.pipeline_mode<synchronous>, transform_indices = @transform_2, window_bounds = array<i64: 25, 16, 16>}, {pipeline_mode = #tpu.pipeline_mode<synchronous>, transform_indices = @transform_3, window_bounds = array<i64: 1, 16>}, {pipeline_mode = #tpu.pipeline_mode<synchronous>, transform_indices = @transform_4, window_bounds = array<i64: 128, 128>}, {pipeline_mode = #tpu.pipeline_mode<synchronous>, transform_indices = @transform_5, window_bounds = array<i64: 1, 128>}, {pipeline_mode = #tpu.pipeline_mode<synchronous>, transform_indices = @transform_6, window_bounds = array<i64: 128, 128>}, {pipeline_mode = #tpu.pipeline_mode<synchronous>, transform_indices = @transform_7, window_bounds = array<i64: 1, 128>}, {pipeline_mode = #tpu.pipeline_mode<synchronous>, transform_indices = @transform_8, window_bounds = array<i64: 128, 128>}, {pipeline_mode = #tpu.pipeline_mode<synchronous>, transform_indices = @transform_9, window_bounds = array<i64: 1, 128>}, {pipeline_mode = #tpu.pipeline_mode<synchronous>, transform_indices = @transform_10, window_bounds = array<i64: 128, 128>}, {pipeline_mode = #tpu.pipeline_mode<synchronous>, transform_indices = @transform_11, window_bounds = array<i64: 1, 128>}, {transform_indices = @transform_12, window_bounds = array<i64: 1, 8, 128>}]} {
    %cst = arith.constant 0.000000e+00 : f32
    %0 = vector.broadcast %cst : f32 to vector<2x20x16xf32>
    %c0 = arith.constant 0 : index
    %c0_0 = arith.constant 0 : index
    %c0_1 = arith.constant 0 : index
    %1 = vector.load %arg14[%c0, %c0_0, %c0_1] : memref<12x20x16xf32, #tpu.memory_space<vmem>>, vector<2x20x16xf32>
    tpu.vector_store %arg14[%c0, %c0_0, %c0_1], %0 {strides = array<i32>} : memref<12x20x16xf32, #tpu.memory_space<vmem>>, vector<2x20x16xf32>,
    %c10 = arith.constant 10 : index
    %c0_2 = arith.constant 0 : index
    %c0_3 = arith.constant 0 : index
    %2 = vector.load %arg14[%c10, %c0_2, %c0_3] : memref<12x20x16xf32, #tpu.memory_space<vmem>>, vector<2x20x16xf32>
    tpu.vector_store %arg14[%c10, %c0_2, %c0_3], %0 {strides = array<i32>} : memref<12x20x16xf32, #tpu.memory_space<vmem>>, vector<2x20x16xf32>,
    %cst_4 = arith.constant 0.000000e+00 : f32
    %3 = vector.broadcast %cst_4 : f32 to vector<8x2x16xf32>
    %c2 = arith.constant 2 : index
    %c0_5 = arith.constant 0 : index
    %c0_6 = arith.constant 0 : index
    %4 = vector.load %arg14[%c2, %c0_5, %c0_6] : memref<12x20x16xf32, #tpu.memory_space<vmem>>, vector<8x2x16xf32>
    tpu.vector_store %arg14[%c2, %c0_5, %c0_6], %3 {strides = array<i32>} : memref<12x20x16xf32, #tpu.memory_space<vmem>>, vector<8x2x16xf32>,
    %c2_7 = arith.constant 2 : index
    %c18 = arith.constant 18 : index
    %c0_8 = arith.constant 0 : index
    %5 = vector.load %arg14[%c2_7, %c18, %c0_8] : memref<12x20x16xf32, #tpu.memory_space<vmem>>, vector<8x2x16xf32>
    tpu.vector_store %arg14[%c2_7, %c18, %c0_8], %3 {strides = array<i32>} : memref<12x20x16xf32, #tpu.memory_space<vmem>>, vector<8x2x16xf32>,
    %c0_9 = arith.constant 0 : index
    %c0_10 = arith.constant 0 : index
    %c0_11 = arith.constant 0 : index
    %c0_12 = arith.constant 0 : index
    %6 = vector.load %arg1[%c0_9, %c0_10, %c0_11, %c0_12] : memref<1x8x16x16xf32, #tpu.memory_space<vmem>>, vector<1x8x16x16xf32>
    %7 = vector.shape_cast %6 : vector<1x8x16x16xf32> to vector<8x16x16xf32>
    %c2_13 = arith.constant 2 : index
    %c2_14 = arith.constant 2 : index
    %c0_15 = arith.constant 0 : index
    %8 = vector.load %arg14[%c2_13, %c2_14, %c0_15] : memref<12x20x16xf32, #tpu.memory_space<vmem>>, vector<8x16x16xf32>
    tpu.vector_store %arg14[%c2_13, %c2_14, %c0_15], %7 {strides = array<i32>} : memref<12x20x16xf32, #tpu.memory_space<vmem>>, vector<8x16x16xf32>,
    %c0_16 = arith.constant 0 : index
    %c0_17 = arith.constant 0 : index
    %c0_18 = arith.constant 0 : index
    %9 = vector.load %arg14[%c0_16, %c0_17, %c0_18] : memref<12x20x16xf32, #tpu.memory_space<vmem>>, vector<12x20x16xf32>
    %cst_19 = arith.constant 0.000000e+00 : f32
    %10 = vector.broadcast %cst_19 : f32 to vector<128x16xf32>
    %11 = vector.extract_strided_slice %9 {offsets = [0, 0, 0], sizes = [8, 16, 16], strides = [1, 1, 1]} : vector<12x20x16xf32> to vector<8x16x16xf32>
    %12 = vector.shape_cast %11 : vector<8x16x16xf32> to vector<128x16xf32>
    %c0_20 = arith.constant 0 : index
    %c0_21 = arith.constant 0 : index
    %c0_22 = arith.constant 0 : index
    %13 = vector.load %arg3[%c0_20, %c0_21, %c0_22] : memref<25x16x16xf32, #tpu.memory_space<vmem>>, vector<1x16x16xf32>
    %14 = vector.shape_cast %13 : vector<1x16x16xf32> to vector<16x16xf32>
    %cst_23 = arith.constant dense<0.000000e+00> : vector<128x16xf32>
    %15 = tpu.matmul %12, %14, %cst_23 {dimension_numbers = #tpu.dot_dimension_numbers<[1], [0], [0], [1], [0, 0, 1, 1], [], []>} : vector<128x16xf32>, vector<16x16xf32>, vector<128x16xf32> -> vector<128x16xf32>
    %16 = arith.addf %10, %15 : vector<128x16xf32>
    %17 = vector.extract_strided_slice %9 {offsets = [0, 1, 0], sizes = [8, 16, 16], strides = [1, 1, 1]} : vector<12x20x16xf32> to vector<8x16x16xf32>
    %18 = vector.shape_cast %17 : vector<8x16x16xf32> to vector<128x16xf32>
    %c1 = arith.constant 1 : index
    %c0_24 = arith.constant 0 : index
    %c0_25 = arith.constant 0 : index
    %19 = vector.load %arg3[%c1, %c0_24, %c0_25] : memref<25x16x16xf32, #tpu.memory_space<vmem>>, vector<1x16x16xf32>
    %20 = vector.shape_cast %19 : vector<1x16x16xf32> to vector<16x16xf32>
    %cst_26 = arith.constant dense<0.000000e+00> : vector<128x16xf32>
    %21 = tpu.matmul %18, %20, %cst_26 {dimension_numbers = #tpu.dot_dimension_numbers<[1], [0], [0], [1], [0, 0, 1, 1], [], []>} : vector<128x16xf32>, vector<16x16xf32>, vector<128x16xf32> -> vector<128x16xf32>
    %22 = arith.addf %16, %21 : vector<128x16xf32>
    %23 = vector.extract_strided_slice %9 {offsets = [0, 2, 0], sizes = [8, 16, 16], strides = [1, 1, 1]} : vector<12x20x16xf32> to vector<8x16x16xf32>
    %24 = vector.shape_cast %23 : vector<8x16x16xf32> to vector<128x16xf32>
    %c2_27 = arith.constant 2 : index
    %c0_28 = arith.constant 0 : index
    %c0_29 = arith.constant 0 : index
    %25 = vector.load %arg3[%c2_27, %c0_28, %c0_29] : memref<25x16x16xf32, #tpu.memory_space<vmem>>, vector<1x16x16xf32>
    %26 = vector.shape_cast %25 : vector<1x16x16xf32> to vector<16x16xf32>
    %cst_30 = arith.constant dense<0.000000e+00> : vector<128x16xf32>
    %27 = tpu.matmul %24, %26, %cst_30 {dimension_numbers = #tpu.dot_dimension_numbers<[1], [0], [0], [1], [0, 0, 1, 1], [], []>} : vector<128x16xf32>, vector<16x16xf32>, vector<128x16xf32> -> vector<128x16xf32>
    %28 = arith.addf %22, %27 : vector<128x16xf32>
    %29 = vector.extract_strided_slice %9 {offsets = [0, 3, 0], sizes = [8, 16, 16], strides = [1, 1, 1]} : vector<12x20x16xf32> to vector<8x16x16xf32>
    %30 = vector.shape_cast %29 : vector<8x16x16xf32> to vector<128x16xf32>
    %c3 = arith.constant 3 : index
    %c0_31 = arith.constant 0 : index
    %c0_32 = arith.constant 0 : index
    %31 = vector.load %arg3[%c3, %c0_31, %c0_32] : memref<25x16x16xf32, #tpu.memory_space<vmem>>, vector<1x16x16xf32>
    %32 = vector.shape_cast %31 : vector<1x16x16xf32> to vector<16x16xf32>
    %cst_33 = arith.constant dense<0.000000e+00> : vector<128x16xf32>
    %33 = tpu.matmul %30, %32, %cst_33 {dimension_numbers = #tpu.dot_dimension_numbers<[1], [0], [0], [1], [0, 0, 1, 1], [], []>} : vector<128x16xf32>, vector<16x16xf32>, vector<128x16xf32> -> vector<128x16xf32>
    %34 = arith.addf %28, %33 : vector<128x16xf32>
    %35 = vector.extract_strided_slice %9 {offsets = [0, 4, 0], sizes = [8, 16, 16], strides = [1, 1, 1]} : vector<12x20x16xf32> to vector<8x16x16xf32>
    %36 = vector.shape_cast %35 : vector<8x16x16xf32> to vector<128x16xf32>
    %c4 = arith.constant 4 : index
    %c0_34 = arith.constant 0 : index
    %c0_35 = arith.constant 0 : index
    %37 = vector.load %arg3[%c4, %c0_34, %c0_35] : memref<25x16x16xf32, #tpu.memory_space<vmem>>, vector<1x16x16xf32>
    %38 = vector.shape_cast %37 : vector<1x16x16xf32> to vector<16x16xf32>
    %cst_36 = arith.constant dense<0.000000e+00> : vector<128x16xf32>
    %39 = tpu.matmul %36, %38, %cst_36 {dimension_numbers = #tpu.dot_dimension_numbers<[1], [0], [0], [1], [0, 0, 1, 1], [], []>} : vector<128x16xf32>, vector<16x16xf32>, vector<128x16xf32> -> vector<128x16xf32>
    %40 = arith.addf %34, %39 : vector<128x16xf32>
    %41 = vector.extract_strided_slice %9 {offsets = [1, 0, 0], sizes = [8, 16, 16], strides = [1, 1, 1]} : vector<12x20x16xf32> to vector<8x16x16xf32>
    %42 = vector.shape_cast %41 : vector<8x16x16xf32> to vector<128x16xf32>
    %c5 = arith.constant 5 : index
    %c0_37 = arith.constant 0 : index
    %c0_38 = arith.constant 0 : index
    %43 = vector.load %arg3[%c5, %c0_37, %c0_38] : memref<25x16x16xf32, #tpu.memory_space<vmem>>, vector<1x16x16xf32>
    %44 = vector.shape_cast %43 : vector<1x16x16xf32> to vector<16x16xf32>
    %cst_39 = arith.constant dense<0.000000e+00> : vector<128x16xf32>
    %45 = tpu.matmul %42, %44, %cst_39 {dimension_numbers = #tpu.dot_dimension_numbers<[1], [0], [0], [1], [0, 0, 1, 1], [], []>} : vector<128x16xf32>, vector<16x16xf32>, vector<128x16xf32> -> vector<128x16xf32>
    %46 = arith.addf %40, %45 : vector<128x16xf32>
    %47 = vector.extract_strided_slice %9 {offsets = [1, 1, 0], sizes = [8, 16, 16], strides = [1, 1, 1]} : vector<12x20x16xf32> to vector<8x16x16xf32>
    %48 = vector.shape_cast %47 : vector<8x16x16xf32> to vector<128x16xf32>
    %c6 = arith.constant 6 : index
    %c0_40 = arith.constant 0 : index
    %c0_41 = arith.constant 0 : index
    %49 = vector.load %arg3[%c6, %c0_40, %c0_41] : memref<25x16x16xf32, #tpu.memory_space<vmem>>, vector<1x16x16xf32>
    %50 = vector.shape_cast %49 : vector<1x16x16xf32> to vector<16x16xf32>
    %cst_42 = arith.constant dense<0.000000e+00> : vector<128x16xf32>
    %51 = tpu.matmul %48, %50, %cst_42 {dimension_numbers = #tpu.dot_dimension_numbers<[1], [0], [0], [1], [0, 0, 1, 1], [], []>} : vector<128x16xf32>, vector<16x16xf32>, vector<128x16xf32> -> vector<128x16xf32>
    %52 = arith.addf %46, %51 : vector<128x16xf32>
    %53 = vector.extract_strided_slice %9 {offsets = [1, 2, 0], sizes = [8, 16, 16], strides = [1, 1, 1]} : vector<12x20x16xf32> to vector<8x16x16xf32>
    %54 = vector.shape_cast %53 : vector<8x16x16xf32> to vector<128x16xf32>
    %c7 = arith.constant 7 : index
    %c0_43 = arith.constant 0 : index
    %c0_44 = arith.constant 0 : index
    %55 = vector.load %arg3[%c7, %c0_43, %c0_44] : memref<25x16x16xf32, #tpu.memory_space<vmem>>, vector<1x16x16xf32>
    %56 = vector.shape_cast %55 : vector<1x16x16xf32> to vector<16x16xf32>
    %cst_45 = arith.constant dense<0.000000e+00> : vector<128x16xf32>
    %57 = tpu.matmul %54, %56, %cst_45 {dimension_numbers = #tpu.dot_dimension_numbers<[1], [0], [0], [1], [0, 0, 1, 1], [], []>} : vector<128x16xf32>, vector<16x16xf32>, vector<128x16xf32> -> vector<128x16xf32>
    %58 = arith.addf %52, %57 : vector<128x16xf32>
    %59 = vector.extract_strided_slice %9 {offsets = [1, 3, 0], sizes = [8, 16, 16], strides = [1, 1, 1]} : vector<12x20x16xf32> to vector<8x16x16xf32>
    %60 = vector.shape_cast %59 : vector<8x16x16xf32> to vector<128x16xf32>
    %c8 = arith.constant 8 : index
    %c0_46 = arith.constant 0 : index
    %c0_47 = arith.constant 0 : index
    %61 = vector.load %arg3[%c8, %c0_46, %c0_47] : memref<25x16x16xf32, #tpu.memory_space<vmem>>, vector<1x16x16xf32>
    %62 = vector.shape_cast %61 : vector<1x16x16xf32> to vector<16x16xf32>
    %cst_48 = arith.constant dense<0.000000e+00> : vector<128x16xf32>
    %63 = tpu.matmul %60, %62, %cst_48 {dimension_numbers = #tpu.dot_dimension_numbers<[1], [0], [0], [1], [0, 0, 1, 1], [], []>} : vector<128x16xf32>, vector<16x16xf32>, vector<128x16xf32> -> vector<128x16xf32>
    %64 = arith.addf %58, %63 : vector<128x16xf32>
    %65 = vector.extract_strided_slice %9 {offsets = [1, 4, 0], sizes = [8, 16, 16], strides = [1, 1, 1]} : vector<12x20x16xf32> to vector<8x16x16xf32>
    %66 = vector.shape_cast %65 : vector<8x16x16xf32> to vector<128x16xf32>
    %c9 = arith.constant 9 : index
    %c0_49 = arith.constant 0 : index
    %c0_50 = arith.constant 0 : index
    %67 = vector.load %arg3[%c9, %c0_49, %c0_50] : memref<25x16x16xf32, #tpu.memory_space<vmem>>, vector<1x16x16xf32>
    %68 = vector.shape_cast %67 : vector<1x16x16xf32> to vector<16x16xf32>
    %cst_51 = arith.constant dense<0.000000e+00> : vector<128x16xf32>
    %69 = tpu.matmul %66, %68, %cst_51 {dimension_numbers = #tpu.dot_dimension_numbers<[1], [0], [0], [1], [0, 0, 1, 1], [], []>} : vector<128x16xf32>, vector<16x16xf32>, vector<128x16xf32> -> vector<128x16xf32>
    %70 = arith.addf %64, %69 : vector<128x16xf32>
    %71 = vector.extract_strided_slice %9 {offsets = [2, 0, 0], sizes = [8, 16, 16], strides = [1, 1, 1]} : vector<12x20x16xf32> to vector<8x16x16xf32>
    %72 = vector.shape_cast %71 : vector<8x16x16xf32> to vector<128x16xf32>
    %c10_52 = arith.constant 10 : index
    %c0_53 = arith.constant 0 : index
    %c0_54 = arith.constant 0 : index
    %73 = vector.load %arg3[%c10_52, %c0_53, %c0_54] : memref<25x16x16xf32, #tpu.memory_space<vmem>>, vector<1x16x16xf32>
    %74 = vector.shape_cast %73 : vector<1x16x16xf32> to vector<16x16xf32>
    %cst_55 = arith.constant dense<0.000000e+00> : vector<128x16xf32>
    %75 = tpu.matmul %72, %74, %cst_55 {dimension_numbers = #tpu.dot_dimension_numbers<[1], [0], [0], [1], [0, 0, 1, 1], [], []>} : vector<128x16xf32>, vector<16x16xf32>, vector<128x16xf32> -> vector<128x16xf32>
    %76 = arith.addf %70, %75 : vector<128x16xf32>
    %77 = vector.extract_strided_slice %9 {offsets = [2, 1, 0], sizes = [8, 16, 16], strides = [1, 1, 1]} : vector<12x20x16xf32> to vector<8x16x16xf32>
    %78 = vector.shape_cast %77 : vector<8x16x16xf32> to vector<128x16xf32>
    %c11 = arith.constant 11 : index
    %c0_56 = arith.constant 0 : index
    %c0_57 = arith.constant 0 : index
    %79 = vector.load %arg3[%c11, %c0_56, %c0_57] : memref<25x16x16xf32, #tpu.memory_space<vmem>>, vector<1x16x16xf32>
    %80 = vector.shape_cast %79 : vector<1x16x16xf32> to vector<16x16xf32>
    %cst_58 = arith.constant dense<0.000000e+00> : vector<128x16xf32>
    %81 = tpu.matmul %78, %80, %cst_58 {dimension_numbers = #tpu.dot_dimension_numbers<[1], [0], [0], [1], [0, 0, 1, 1], [], []>} : vector<128x16xf32>, vector<16x16xf32>, vector<128x16xf32> -> vector<128x16xf32>
    %82 = arith.addf %76, %81 : vector<128x16xf32>
    %83 = vector.extract_strided_slice %9 {offsets = [2, 2, 0], sizes = [8, 16, 16], strides = [1, 1, 1]} : vector<12x20x16xf32> to vector<8x16x16xf32>
    %84 = vector.shape_cast %83 : vector<8x16x16xf32> to vector<128x16xf32>
    %c12 = arith.constant 12 : index
    %c0_59 = arith.constant 0 : index
    %c0_60 = arith.constant 0 : index
    %85 = vector.load %arg3[%c12, %c0_59, %c0_60] : memref<25x16x16xf32, #tpu.memory_space<vmem>>, vector<1x16x16xf32>
    %86 = vector.shape_cast %85 : vector<1x16x16xf32> to vector<16x16xf32>
    %cst_61 = arith.constant dense<0.000000e+00> : vector<128x16xf32>
    %87 = tpu.matmul %84, %86, %cst_61 {dimension_numbers = #tpu.dot_dimension_numbers<[1], [0], [0], [1], [0, 0, 1, 1], [], []>} : vector<128x16xf32>, vector<16x16xf32>, vector<128x16xf32> -> vector<128x16xf32>
    %88 = arith.addf %82, %87 : vector<128x16xf32>
    %89 = vector.extract_strided_slice %9 {offsets = [2, 3, 0], sizes = [8, 16, 16], strides = [1, 1, 1]} : vector<12x20x16xf32> to vector<8x16x16xf32>
    %90 = vector.shape_cast %89 : vector<8x16x16xf32> to vector<128x16xf32>
    %c13 = arith.constant 13 : index
    %c0_62 = arith.constant 0 : index
    %c0_63 = arith.constant 0 : index
    %91 = vector.load %arg3[%c13, %c0_62, %c0_63] : memref<25x16x16xf32, #tpu.memory_space<vmem>>, vector<1x16x16xf32>
    %92 = vector.shape_cast %91 : vector<1x16x16xf32> to vector<16x16xf32>
    %cst_64 = arith.constant dense<0.000000e+00> : vector<128x16xf32>
    %93 = tpu.matmul %90, %92, %cst_64 {dimension_numbers = #tpu.dot_dimension_numbers<[1], [0], [0], [1], [0, 0, 1, 1], [], []>} : vector<128x16xf32>, vector<16x16xf32>, vector<128x16xf32> -> vector<128x16xf32>
    %94 = arith.addf %88, %93 : vector<128x16xf32>
    %95 = vector.extract_strided_slice %9 {offsets = [2, 4, 0], sizes = [8, 16, 16], strides = [1, 1, 1]} : vector<12x20x16xf32> to vector<8x16x16xf32>
    %96 = vector.shape_cast %95 : vector<8x16x16xf32> to vector<128x16xf32>
    %c14 = arith.constant 14 : index
    %c0_65 = arith.constant 0 : index
    %c0_66 = arith.constant 0 : index
    %97 = vector.load %arg3[%c14, %c0_65, %c0_66] : memref<25x16x16xf32, #tpu.memory_space<vmem>>, vector<1x16x16xf32>
    %98 = vector.shape_cast %97 : vector<1x16x16xf32> to vector<16x16xf32>
    %cst_67 = arith.constant dense<0.000000e+00> : vector<128x16xf32>
    %99 = tpu.matmul %96, %98, %cst_67 {dimension_numbers = #tpu.dot_dimension_numbers<[1], [0], [0], [1], [0, 0, 1, 1], [], []>} : vector<128x16xf32>, vector<16x16xf32>, vector<128x16xf32> -> vector<128x16xf32>
    %100 = arith.addf %94, %99 : vector<128x16xf32>
    %101 = vector.extract_strided_slice %9 {offsets = [3, 0, 0], sizes = [8, 16, 16], strides = [1, 1, 1]} : vector<12x20x16xf32> to vector<8x16x16xf32>
    %102 = vector.shape_cast %101 : vector<8x16x16xf32> to vector<128x16xf32>
    %c15 = arith.constant 15 : index
    %c0_68 = arith.constant 0 : index
    %c0_69 = arith.constant 0 : index
    %103 = vector.load %arg3[%c15, %c0_68, %c0_69] : memref<25x16x16xf32, #tpu.memory_space<vmem>>, vector<1x16x16xf32>
    %104 = vector.shape_cast %103 : vector<1x16x16xf32> to vector<16x16xf32>
    %cst_70 = arith.constant dense<0.000000e+00> : vector<128x16xf32>
    %105 = tpu.matmul %102, %104, %cst_70 {dimension_numbers = #tpu.dot_dimension_numbers<[1], [0], [0], [1], [0, 0, 1, 1], [], []>} : vector<128x16xf32>, vector<16x16xf32>, vector<128x16xf32> -> vector<128x16xf32>
    %106 = arith.addf %100, %105 : vector<128x16xf32>
    %107 = vector.extract_strided_slice %9 {offsets = [3, 1, 0], sizes = [8, 16, 16], strides = [1, 1, 1]} : vector<12x20x16xf32> to vector<8x16x16xf32>
    %108 = vector.shape_cast %107 : vector<8x16x16xf32> to vector<128x16xf32>
    %c16 = arith.constant 16 : index
    %c0_71 = arith.constant 0 : index
    %c0_72 = arith.constant 0 : index
    %109 = vector.load %arg3[%c16, %c0_71, %c0_72] : memref<25x16x16xf32, #tpu.memory_space<vmem>>, vector<1x16x16xf32>
    %110 = vector.shape_cast %109 : vector<1x16x16xf32> to vector<16x16xf32>
    %cst_73 = arith.constant dense<0.000000e+00> : vector<128x16xf32>
    %111 = tpu.matmul %108, %110, %cst_73 {dimension_numbers = #tpu.dot_dimension_numbers<[1], [0], [0], [1], [0, 0, 1, 1], [], []>} : vector<128x16xf32>, vector<16x16xf32>, vector<128x16xf32> -> vector<128x16xf32>
    %112 = arith.addf %106, %111 : vector<128x16xf32>
    %113 = vector.extract_strided_slice %9 {offsets = [3, 2, 0], sizes = [8, 16, 16], strides = [1, 1, 1]} : vector<12x20x16xf32> to vector<8x16x16xf32>
    %114 = vector.shape_cast %113 : vector<8x16x16xf32> to vector<128x16xf32>
    %c17 = arith.constant 17 : index
    %c0_74 = arith.constant 0 : index
    %c0_75 = arith.constant 0 : index
    %115 = vector.load %arg3[%c17, %c0_74, %c0_75] : memref<25x16x16xf32, #tpu.memory_space<vmem>>, vector<1x16x16xf32>
    %116 = vector.shape_cast %115 : vector<1x16x16xf32> to vector<16x16xf32>
    %cst_76 = arith.constant dense<0.000000e+00> : vector<128x16xf32>
    %117 = tpu.matmul %114, %116, %cst_76 {dimension_numbers = #tpu.dot_dimension_numbers<[1], [0], [0], [1], [0, 0, 1, 1], [], []>} : vector<128x16xf32>, vector<16x16xf32>, vector<128x16xf32> -> vector<128x16xf32>
    %118 = arith.addf %112, %117 : vector<128x16xf32>
    %119 = vector.extract_strided_slice %9 {offsets = [3, 3, 0], sizes = [8, 16, 16], strides = [1, 1, 1]} : vector<12x20x16xf32> to vector<8x16x16xf32>
    %120 = vector.shape_cast %119 : vector<8x16x16xf32> to vector<128x16xf32>
    %c18_77 = arith.constant 18 : index
    %c0_78 = arith.constant 0 : index
    %c0_79 = arith.constant 0 : index
    %121 = vector.load %arg3[%c18_77, %c0_78, %c0_79] : memref<25x16x16xf32, #tpu.memory_space<vmem>>, vector<1x16x16xf32>
    %122 = vector.shape_cast %121 : vector<1x16x16xf32> to vector<16x16xf32>
    %cst_80 = arith.constant dense<0.000000e+00> : vector<128x16xf32>
    %123 = tpu.matmul %120, %122, %cst_80 {dimension_numbers = #tpu.dot_dimension_numbers<[1], [0], [0], [1], [0, 0, 1, 1], [], []>} : vector<128x16xf32>, vector<16x16xf32>, vector<128x16xf32> -> vector<128x16xf32>
    %124 = arith.addf %118, %123 : vector<128x16xf32>
    %125 = vector.extract_strided_slice %9 {offsets = [3, 4, 0], sizes = [8, 16, 16], strides = [1, 1, 1]} : vector<12x20x16xf32> to vector<8x16x16xf32>
    %126 = vector.shape_cast %125 : vector<8x16x16xf32> to vector<128x16xf32>
    %c19 = arith.constant 19 : index
    %c0_81 = arith.constant 0 : index
    %c0_82 = arith.constant 0 : index
    %127 = vector.load %arg3[%c19, %c0_81, %c0_82] : memref<25x16x16xf32, #tpu.memory_space<vmem>>, vector<1x16x16xf32>
    %128 = vector.shape_cast %127 : vector<1x16x16xf32> to vector<16x16xf32>
    %cst_83 = arith.constant dense<0.000000e+00> : vector<128x16xf32>
    %129 = tpu.matmul %126, %128, %cst_83 {dimension_numbers = #tpu.dot_dimension_numbers<[1], [0], [0], [1], [0, 0, 1, 1], [], []>} : vector<128x16xf32>, vector<16x16xf32>, vector<128x16xf32> -> vector<128x16xf32>
    %130 = arith.addf %124, %129 : vector<128x16xf32>
    %131 = vector.extract_strided_slice %9 {offsets = [4, 0, 0], sizes = [8, 16, 16], strides = [1, 1, 1]} : vector<12x20x16xf32> to vector<8x16x16xf32>
    %132 = vector.shape_cast %131 : vector<8x16x16xf32> to vector<128x16xf32>
    %c20 = arith.constant 20 : index
    %c0_84 = arith.constant 0 : index
    %c0_85 = arith.constant 0 : index
    %133 = vector.load %arg3[%c20, %c0_84, %c0_85] : memref<25x16x16xf32, #tpu.memory_space<vmem>>, vector<1x16x16xf32>
    %134 = vector.shape_cast %133 : vector<1x16x16xf32> to vector<16x16xf32>
    %cst_86 = arith.constant dense<0.000000e+00> : vector<128x16xf32>
    %135 = tpu.matmul %132, %134, %cst_86 {dimension_numbers = #tpu.dot_dimension_numbers<[1], [0], [0], [1], [0, 0, 1, 1], [], []>} : vector<128x16xf32>, vector<16x16xf32>, vector<128x16xf32> -> vector<128x16xf32>
    %136 = arith.addf %130, %135 : vector<128x16xf32>
    %137 = vector.extract_strided_slice %9 {offsets = [4, 1, 0], sizes = [8, 16, 16], strides = [1, 1, 1]} : vector<12x20x16xf32> to vector<8x16x16xf32>
    %138 = vector.shape_cast %137 : vector<8x16x16xf32> to vector<128x16xf32>
    %c21 = arith.constant 21 : index
    %c0_87 = arith.constant 0 : index
    %c0_88 = arith.constant 0 : index
    %139 = vector.load %arg3[%c21, %c0_87, %c0_88] : memref<25x16x16xf32, #tpu.memory_space<vmem>>, vector<1x16x16xf32>
    %140 = vector.shape_cast %139 : vector<1x16x16xf32> to vector<16x16xf32>
    %cst_89 = arith.constant dense<0.000000e+00> : vector<128x16xf32>
    %141 = tpu.matmul %138, %140, %cst_89 {dimension_numbers = #tpu.dot_dimension_numbers<[1], [0], [0], [1], [0, 0, 1, 1], [], []>} : vector<128x16xf32>, vector<16x16xf32>, vector<128x16xf32> -> vector<128x16xf32>
    %142 = arith.addf %136, %141 : vector<128x16xf32>
    %143 = vector.extract_strided_slice %9 {offsets = [4, 2, 0], sizes = [8, 16, 16], strides = [1, 1, 1]} : vector<12x20x16xf32> to vector<8x16x16xf32>
    %144 = vector.shape_cast %143 : vector<8x16x16xf32> to vector<128x16xf32>
    %c22 = arith.constant 22 : index
    %c0_90 = arith.constant 0 : index
    %c0_91 = arith.constant 0 : index
    %145 = vector.load %arg3[%c22, %c0_90, %c0_91] : memref<25x16x16xf32, #tpu.memory_space<vmem>>, vector<1x16x16xf32>
    %146 = vector.shape_cast %145 : vector<1x16x16xf32> to vector<16x16xf32>
    %cst_92 = arith.constant dense<0.000000e+00> : vector<128x16xf32>
    %147 = tpu.matmul %144, %146, %cst_92 {dimension_numbers = #tpu.dot_dimension_numbers<[1], [0], [0], [1], [0, 0, 1, 1], [], []>} : vector<128x16xf32>, vector<16x16xf32>, vector<128x16xf32> -> vector<128x16xf32>
    %148 = arith.addf %142, %147 : vector<128x16xf32>
    %149 = vector.extract_strided_slice %9 {offsets = [4, 3, 0], sizes = [8, 16, 16], strides = [1, 1, 1]} : vector<12x20x16xf32> to vector<8x16x16xf32>
    %150 = vector.shape_cast %149 : vector<8x16x16xf32> to vector<128x16xf32>
    %c23 = arith.constant 23 : index
    %c0_93 = arith.constant 0 : index
    %c0_94 = arith.constant 0 : index
    %151 = vector.load %arg3[%c23, %c0_93, %c0_94] : memref<25x16x16xf32, #tpu.memory_space<vmem>>, vector<1x16x16xf32>
    %152 = vector.shape_cast %151 : vector<1x16x16xf32> to vector<16x16xf32>
    %cst_95 = arith.constant dense<0.000000e+00> : vector<128x16xf32>
    %153 = tpu.matmul %150, %152, %cst_95 {dimension_numbers = #tpu.dot_dimension_numbers<[1], [0], [0], [1], [0, 0, 1, 1], [], []>} : vector<128x16xf32>, vector<16x16xf32>, vector<128x16xf32> -> vector<128x16xf32>
    %154 = arith.addf %148, %153 : vector<128x16xf32>
    %155 = vector.extract_strided_slice %9 {offsets = [4, 4, 0], sizes = [8, 16, 16], strides = [1, 1, 1]} : vector<12x20x16xf32> to vector<8x16x16xf32>
    %156 = vector.shape_cast %155 : vector<8x16x16xf32> to vector<128x16xf32>
    %c24 = arith.constant 24 : index
    %c0_96 = arith.constant 0 : index
    %c0_97 = arith.constant 0 : index
    %157 = vector.load %arg3[%c24, %c0_96, %c0_97] : memref<25x16x16xf32, #tpu.memory_space<vmem>>, vector<1x16x16xf32>
    %158 = vector.shape_cast %157 : vector<1x16x16xf32> to vector<16x16xf32>
    %cst_98 = arith.constant dense<0.000000e+00> : vector<128x16xf32>
    %159 = tpu.matmul %156, %158, %cst_98 {dimension_numbers = #tpu.dot_dimension_numbers<[1], [0], [0], [1], [0, 0, 1, 1], [], []>} : vector<128x16xf32>, vector<16x16xf32>, vector<128x16xf32> -> vector<128x16xf32>
    %160 = arith.addf %154, %159 : vector<128x16xf32>
    %c0_99 = arith.constant 0 : index
    %c0_100 = arith.constant 0 : index
    %161 = vector.load %arg4[%c0_99, %c0_100] : memref<1x16xf32, #tpu.memory_space<vmem>>, vector<1x16xf32>
    %162 = vector.broadcast %161 : vector<1x16xf32> to vector<128x16xf32>
    %163 = arith.addf %160, %162 : vector<128x16xf32>
    %cst_101 = arith.constant 0.000000e+00 : f32
    %164 = vector.broadcast %cst_101 : f32 to vector<128x16xf32>
    %165 = arith.maximumf %163, %164 : vector<128x16xf32>
    %166 = vector.shape_cast %165 : vector<128x16xf32> to vector<8x16x16xf32>
    %cst_102 = arith.constant dense<0xFF800000> : vector<8x16xf32>
    %167 = vector.multi_reduction <maximumf>, %166, %cst_102 [1] : vector<8x16x16xf32> to vector<8x16xf32>
    %cst_103 = arith.constant 0.000000e+00 : f32
    %168 = vector.broadcast %cst_103 : f32 to vector<8x80xf32>
    %c0_104 = arith.constant 0 : index
    %c48 = arith.constant 48 : index
    %169 = vector.load %arg15[%c0_104, %c48] : memref<8x128xf32, #tpu.memory_space<vmem>>, vector<8x80xf32>
    tpu.vector_store %arg15[%c0_104, %c48], %168 {strides = array<i32>} : memref<8x128xf32, #tpu.memory_space<vmem>>, vector<8x80xf32>,
    %c0_105 = arith.constant 0 : index
    %c0_106 = arith.constant 0 : index
    %170 = vector.load %arg15[%c0_105, %c0_106] : memref<8x128xf32, #tpu.memory_space<vmem>>, vector<8x16xf32>
    tpu.vector_store %arg15[%c0_105, %c0_106], %167 {strides = array<i32>} : memref<8x128xf32, #tpu.memory_space<vmem>>, vector<8x16xf32>,
    %c0_107 = arith.constant 0 : index
    %c0_108 = arith.constant 0 : index
    %c0_109 = arith.constant 0 : index
    %171 = vector.load %arg2[%c0_107, %c0_108, %c0_109] : memref<1x8x32xf32, #tpu.memory_space<vmem>>, vector<1x8x32xf32>
    %172 = vector.shape_cast %171 : vector<1x8x32xf32> to vector<8x32xf32>
    %c0_110 = arith.constant 0 : index
    %c16_111 = arith.constant 16 : index
    %173 = vector.load %arg15[%c0_110, %c16_111] : memref<8x128xf32, #tpu.memory_space<vmem>>, vector<8x32xf32>
    tpu.vector_store %arg15[%c0_110, %c16_111], %172 {strides = array<i32>} : memref<8x128xf32, #tpu.memory_space<vmem>>, vector<8x32xf32>,
    %c0_112 = arith.constant 0 : index
    %c0_113 = arith.constant 0 : index
    %174 = vector.load %arg15[%c0_112, %c0_113] : memref<8x128xf32, #tpu.memory_space<vmem>>, vector<8x128xf32>
    %c0_114 = arith.constant 0 : index
    %c0_115 = arith.constant 0 : index
    %175 = vector.load %arg5[%c0_114, %c0_115] : memref<128x128xf32, #tpu.memory_space<vmem>>, vector<128x128xf32>
    %cst_116 = arith.constant dense<0.000000e+00> : vector<8x128xf32>
    %176 = tpu.matmul %174, %175, %cst_116 {dimension_numbers = #tpu.dot_dimension_numbers<[1], [0], [0], [1], [0, 0, 1, 1], [], []>} : vector<8x128xf32>, vector<128x128xf32>, vector<8x128xf32> -> vector<8x128xf32>
    %c0_117 = arith.constant 0 : index
    %c0_118 = arith.constant 0 : index
    %177 = vector.load %arg6[%c0_117, %c0_118] : memref<1x128xf32, #tpu.memory_space<vmem>>, vector<1x128xf32>
    %178 = vector.broadcast %177 : vector<1x128xf32> to vector<8x128xf32>
    %179 = arith.addf %176, %178 : vector<8x128xf32>
    %180 = arith.negf %179 : vector<8x128xf32>
    %181 = math.exp %180 : vector<8x128xf32>
    %cst_119 = arith.constant 1.000000e+00 : f32
    %182 = vector.broadcast %cst_119 : f32 to vector<8x128xf32>
    %183 = arith.addf %182, %181 : vector<8x128xf32>
    %184 = arith.divf %182, %183 : vector<8x128xf32>
    %c0_120 = arith.constant 0 : index
    %c0_121 = arith.constant 0 : index
    %185 = vector.load %arg7[%c0_120, %c0_121] : memref<128x128xf32, #tpu.memory_space<vmem>>, vector<128x128xf32>
    %cst_122 = arith.constant dense<0.000000e+00> : vector<8x128xf32>
    %186 = tpu.matmul %174, %185, %cst_122 {dimension_numbers = #tpu.dot_dimension_numbers<[1], [0], [0], [1], [0, 0, 1, 1], [], []>} : vector<8x128xf32>, vector<128x128xf32>, vector<8x128xf32> -> vector<8x128xf32>
    %c0_123 = arith.constant 0 : index
    %c0_124 = arith.constant 0 : index
    %187 = vector.load %arg8[%c0_123, %c0_124] : memref<1x128xf32, #tpu.memory_space<vmem>>, vector<1x128xf32>
    %188 = vector.broadcast %187 : vector<1x128xf32> to vector<8x128xf32>
    %189 = arith.addf %186, %188 : vector<8x128xf32>
    %cst_125 = arith.constant 0.000000e+00 : f32
    %190 = vector.broadcast %cst_125 : f32 to vector<8x128xf32>
    %191 = arith.maximumf %189, %190 : vector<8x128xf32>
    %192 = arith.mulf %184, %191 : vector<8x128xf32>
    %cst_126 = arith.constant 1.000000e+00 : f32
    %193 = vector.broadcast %cst_126 : f32 to vector<8x128xf32>
    %194 = arith.subf %193, %184 : vector<8x128xf32>
    %195 = arith.mulf %194, %174 : vector<8x128xf32>
    %196 = arith.addf %192, %195 : vector<8x128xf32>
    %c0_127 = arith.constant 0 : index
    %c0_128 = arith.constant 0 : index
    %197 = vector.load %arg9[%c0_127, %c0_128] : memref<128x128xf32, #tpu.memory_space<vmem>>, vector<128x128xf32>
    %cst_129 = arith.constant dense<0.000000e+00> : vector<8x128xf32>
    %198 = tpu.matmul %196, %197, %cst_129 {dimension_numbers = #tpu.dot_dimension_numbers<[1], [0], [0], [1], [0, 0, 1, 1], [], []>} : vector<8x128xf32>, vector<128x128xf32>, vector<8x128xf32> -> vector<8x128xf32>
    %c0_130 = arith.constant 0 : index
    %c0_131 = arith.constant 0 : index
    %199 = vector.load %arg10[%c0_130, %c0_131] : memref<1x128xf32, #tpu.memory_space<vmem>>, vector<1x128xf32>
    %200 = vector.broadcast %199 : vector<1x128xf32> to vector<8x128xf32>
    %201 = arith.addf %198, %200 : vector<8x128xf32>
    %202 = arith.negf %201 : vector<8x128xf32>
    %203 = math.exp %202 : vector<8x128xf32>
    %cst_132 = arith.constant 1.000000e+00 : f32
    %204 = vector.broadcast %cst_132 : f32 to vector<8x128xf32>
    %205 = arith.addf %204, %203 : vector<8x128xf32>
    %206 = arith.divf %204, %205 : vector<8x128xf32>
    %c0_133 = arith.constant 0 : index
    %c0_134 = arith.constant 0 : index
    %207 = vector.load %arg11[%c0_133, %c0_134] : memref<128x128xf32, #tpu.memory_space<vmem>>, vector<128x128xf32>
    %cst_135 = arith.constant dense<0.000000e+00> : vector<8x128xf32>
    %208 = tpu.matmul %196, %207, %cst_135 {dimension_numbers = #tpu.dot_dimension_numbers<[1], [0], [0], [1], [0, 0, 1, 1], [], []>} : vector<8x128xf32>, vector<128x128xf32>, vector<8x128xf32> -> vector<8x128xf32>
    %c0_136 = arith.constant 0 : index
    %c0_137 = arith.constant 0 : index
    %209 = vector.load %arg12[%c0_136, %c0_137] : memref<1x128xf32, #tpu.memory_space<vmem>>, vector<1x128xf32>
    %210 = vector.broadcast %209 : vector<1x128xf32> to vector<8x128xf32>
    %211 = arith.addf %208, %210 : vector<8x128xf32>
    %cst_138 = arith.constant 0.000000e+00 : f32
    %212 = vector.broadcast %cst_138 : f32 to vector<8x128xf32>
    %213 = arith.maximumf %211, %212 : vector<8x128xf32>
    %214 = arith.mulf %206, %213 : vector<8x128xf32>
    %cst_139 = arith.constant 1.000000e+00 : f32
    %215 = vector.broadcast %cst_139 : f32 to vector<8x128xf32>
    %216 = arith.subf %215, %206 : vector<8x128xf32>
    %217 = arith.mulf %216, %196 : vector<8x128xf32>
    %218 = arith.addf %214, %217 : vector<8x128xf32>
    %c0_140 = arith.constant 0 : index
    %c0_141 = arith.constant 0 : index
    %c0_142 = arith.constant 0 : index
    %219 = vector.load %arg13[%c0_140, %c0_141, %c0_142] : memref<1x8x128xf32, #tpu.memory_space<vmem>>, vector<1x8x128xf32>
    %220 = vector.shape_cast %219 : vector<1x8x128xf32> to vector<8x128xf32>
    %221 = vector.shape_cast %218 : vector<8x128xf32> to vector<1x8x128xf32>
    tpu.vector_store %arg13[%c0_140, %c0_141, %c0_142], %221 {strides = array<i32>} : memref<1x8x128xf32, #tpu.memory_space<vmem>>, vector<1x8x128xf32>,
    return
  }
  func.func @transform_0(%arg0: i32) -> (i32, i32, i32, i32) {
    %c0_i32 = arith.constant 0 : i32
    %c0_i32_0 = arith.constant 0 : i32
    %c0_i32_1 = arith.constant 0 : i32
    %c0_i32_2 = arith.constant 0 : i32
    return %arg0, %c0_i32, %c0_i32_0, %c0_i32_1 : i32, i32, i32, i32
  }
  func.func @transform_1(%arg0: i32) -> (i32, i32, i32) {
    %c0_i32 = arith.constant 0 : i32
    %c0_i32_0 = arith.constant 0 : i32
    %c0_i32_1 = arith.constant 0 : i32
    return %arg0, %c0_i32, %c0_i32_0 : i32, i32, i32
  }
  func.func @transform_2(%arg0: i32) -> (i32, i32, i32) {
    %c0_i32 = arith.constant 0 : i32
    %c0_i32_0 = arith.constant 0 : i32
    %c0_i32_1 = arith.constant 0 : i32
    %c0_i32_2 = arith.constant 0 : i32
    return %c0_i32, %c0_i32_0, %c0_i32_1 : i32, i32, i32
  }
  func.func @transform_3(%arg0: i32) -> (i32, i32) {
    %c0_i32 = arith.constant 0 : i32
    %c0_i32_0 = arith.constant 0 : i32
    %c0_i32_1 = arith.constant 0 : i32
    return %c0_i32, %c0_i32_0 : i32, i32
  }
  func.func @transform_4(%arg0: i32) -> (i32, i32) {
    %c0_i32 = arith.constant 0 : i32
    %c0_i32_0 = arith.constant 0 : i32
    %c0_i32_1 = arith.constant 0 : i32
    return %c0_i32, %c0_i32_0 : i32, i32
  }
  func.func @transform_5(%arg0: i32) -> (i32, i32) {
    %c0_i32 = arith.constant 0 : i32
    %c0_i32_0 = arith.constant 0 : i32
    %c0_i32_1 = arith.constant 0 : i32
    return %c0_i32, %c0_i32_0 : i32, i32
  }
  func.func @transform_6(%arg0: i32) -> (i32, i32) {
    %c0_i32 = arith.constant 0 : i32
    %c0_i32_0 = arith.constant 0 : i32
    %c0_i32_1 = arith.constant 0 : i32
    return %c0_i32, %c0_i32_0 : i32, i32
  }
  func.func @transform_7(%arg0: i32) -> (i32, i32) {
    %c0_i32 = arith.constant 0 : i32
    %c0_i32_0 = arith.constant 0 : i32
    %c0_i32_1 = arith.constant 0 : i32
    return %c0_i32, %c0_i32_0 : i32, i32
  }
  func.func @transform_8(%arg0: i32) -> (i32, i32) {
    %c0_i32 = arith.constant 0 : i32
    %c0_i32_0 = arith.constant 0 : i32
    %c0_i32_1 = arith.constant 0 : i32
    return %c0_i32, %c0_i32_0 : i32, i32
  }
  func.func @transform_9(%arg0: i32) -> (i32, i32) {
    %c0_i32 = arith.constant 0 : i32
    %c0_i32_0 = arith.constant 0 : i32
    %c0_i32_1 = arith.constant 0 : i32
    return %c0_i32, %c0_i32_0 : i32, i32
  }
  func.func @transform_10(%arg0: i32) -> (i32, i32) {
    %c0_i32 = arith.constant 0 : i32
    %c0_i32_0 = arith.constant 0 : i32
    %c0_i32_1 = arith.constant 0 : i32
    return %c0_i32, %c0_i32_0 : i32, i32
  }
  func.func @transform_11(%arg0: i32) -> (i32, i32) {
    %c0_i32 = arith.constant 0 : i32
    %c0_i32_0 = arith.constant 0 : i32
    %c0_i32_1 = arith.constant 0 : i32
    return %c0_i32, %c0_i32_0 : i32, i32
  }
  func.func @transform_12(%arg0: i32) -> (i32, i32, i32) {
    %c0_i32 = arith.constant 0 : i32
    %c0_i32_0 = arith.constant 0 : i32
    %c0_i32_1 = arith.constant 0 : i32
    return %arg0, %c0_i32, %c0_i32_0 : i32, i32, i32
  }
}

</mosaic_0001>

<llo_original>
// kernel: embedding_forward.1
$region0: #{embedding_forward.1}
  #allocation0 [shape = 'u32[]', space=smem, size = 0x4, offset = 0x4, fixed_abs, tag = 'smem constant byte address 0x4 - core index']
  #allocation1 [shape = 'u32[144,128]{1,0:T(1,128)}', space=vmem, size = 0x12000, scoped, tag = 'internal scratch']
  #allocation2 [shape = 'f32[12,20,16]{2,1,0:T(8,128)}', space=vmem, size = 0x24000, scoped, tag = 'scratch operand']
  #allocation3 [shape = 'f32[8,128]{1,0:T(8,128)}', space=vmem, size = 0x1000, scoped, tag = 'scratch operand']
  %s0 = inlined_call_operand.vmem [shape: f32[2,8,16,16], index: 0, kind: input, shape index: {}]
  %s1 = inlined_call_operand.vmem [shape: f32[2,8,32], index: 1, kind: input, shape index: {}]
  %s2 = inlined_call_operand.vmem [shape: f32[25,16,16], index: 2, kind: input, shape index: {}]
  %s3 = inlined_call_operand.vmem [shape: f32[1,16], index: 3, kind: input, shape index: {}]
  %s4 = inlined_call_operand.vmem [shape: f32[128,128], index: 4, kind: input, shape index: {}]
  %s5 = inlined_call_operand.vmem [shape: f32[1,128], index: 5, kind: input, shape index: {}]
  %s6 = inlined_call_operand.vmem [shape: f32[128,128], index: 6, kind: input, shape index: {}]
  %s7 = inlined_call_operand.vmem [shape: f32[1,128], index: 7, kind: input, shape index: {}]
  %s8 = inlined_call_operand.vmem [shape: f32[128,128], index: 8, kind: input, shape index: {}]
  %s9 = inlined_call_operand.vmem [shape: f32[1,128], index: 9, kind: input, shape index: {}]
  %s10 = inlined_call_operand.hbm [shape: f32[128,128], index: 10, kind: input, shape index: {}]
  %s11 = inlined_call_operand.vmem [shape: f32[1,128], index: 11, kind: input, shape index: {}]
  %s12 = inlined_call_operand.vmem [shape: f32[2,8,128], index: 12, kind: output, shape index: {}]
  %s13 = sld [smem:[#allocation0]]
  $region85: #{embedding_forward.1} parent=0
    _
  %s15 = ssub.s32 1, %s13
  %s16 = scalar_select 0, %s15, %s13
  $region1: #{embedding_forward.1} parent=0
    #allocation4 [shape = 'u8[65536]{0}', space=vmem, size = 0x10000, scoped, tag = 'input window, operand 10, single buffered']
    #allocation5 [shape = 's32[2]{0}', space=sflag, size = 0x8, scoped, tag = 'scoped memory for embedding_forward.1']
    %17 = vsyncpa [#allocation5], 0
    loop: start=0, step=1, limit=4
    $region2: #{embedding_forward.1} parent=1 // loop_pre_header
      _
    $region3: #{embedding_forward.1} parent=1 // loop_header
      %s19 = sphi 0, %s23
      %p20 = scmp.ge.s32.totalorder %s19, 4
      %s29 = sphi 0, %s31
      %s32 = sphi 0, %s29
      %s33 = sphi 0, %s32
      %s49 = sphi 0, %s33
      %s55 = sphi 0, %s57
      %s58 = sphi 0, %s55
      %s59 = sphi 0, %s58
      %s75 = sphi 0, %s59
      %s79 = sphi 0, %s79
      %s81 = sphi 0, %s79
      %s82 = sphi 0, %s81
      %s96 = sphi 0, %s82
      %s100 = sphi 0, %s100
      %s102 = sphi 0, %s100
      %s103 = sphi 0, %s102
      %s117 = sphi 0, %s103
      %s121 = sphi 0, %s121
      %s123 = sphi 0, %s121
      %s124 = sphi 0, %s123
      %s138 = sphi 0, %s124
      %s142 = sphi 0, %s142
      %s144 = sphi 0, %s142
      %s145 = sphi 0, %s144
      %s159 = sphi 0, %s145
      %s163 = sphi 0, %s163
      %s165 = sphi 0, %s163
      %s166 = sphi 0, %s165
      %s180 = sphi 0, %s166
      %s184 = sphi 0, %s184
      %s186 = sphi 0, %s184
      %s187 = sphi 0, %s186
      %s201 = sphi 0, %s187
      %s205 = sphi 0, %s205
      %s207 = sphi 0, %s205
      %s208 = sphi 0, %s207
      %s222 = sphi 0, %s208
      %s226 = sphi 0, %s226
      %s228 = sphi 0, %s226
      %s229 = sphi 0, %s228
      %s243 = sphi 0, %s229
      %s247 = sphi 0, %s247
      %s249 = sphi 0, %s247
      %s250 = sphi 0, %s249
      %s264 = sphi 0, %s250
      %s268 = sphi 0, %s268
      %s270 = sphi 0, %s268
      %s271 = sphi 0, %s270
      %s285 = sphi 0, %s271
      %s291 = sphi 0, %s293
      %s294 = sphi 0, %s291
      %s295 = sphi 0, %s294
      %s311 = sphi 0, %s295
    $region4: #{embedding_forward.1} parent=1 // loop_header_branch
      %22 = sbr.rel (%p20) target = $region8
    $region5: #{embedding_forward.1} parent=1 // loop_body
      %s24 = ssub.s32 %s19, 1
      %s25 = ssub.s32 %s19, 2
      %s26 = sadd.s32 %s19, 1
      %s27 = ssub.s32 %s19, %s26
      %p28 = scmp.eq.s32.totalorder %s27, 0
      %s30 = sadd.s32 %s29, 1
      %s31 = scalar_select %p28, %s29, %s30
      %p34 = pneg %p28
      %p35 = scmp.eq.s32.totalorder %s19, 1
      %p36 = por %p34, %p35
      %p37 = scmp.ne.s32.totalorder %s29, %s32
      %p38 = scmp.eq.s32.totalorder %s19, 0
      %p39 = por %p37, %p38
      %p40 = scmp.ne.s32.totalorder %s29, %s32
      %p41 = scmp.eq.s32.totalorder %s24, 1
      %p42 = por %p40, %p41
      %p43 = scmp.ne.s32.totalorder %s32, %s33
      %p44 = scmp.eq.s32.totalorder %s24, 0
      %p45 = por %p43, %p44
      %p46 = scmp.ne.s32.totalorder %s32, %s33
      %p47 = scmp.eq.s32.totalorder %s25, 1
      %p48 = por %p46, %p47
      %p50 = scmp.ne.s32.totalorder %s33, %s49
      %p51 = scmp.eq.s32.totalorder %s25, 0
      %p52 = por %p50, %p51
      %s53 = ssub.s32 %s19, %s26
      %p54 = scmp.eq.s32.totalorder %s53, 0
      %s56 = sadd.s32 %s55, 1
      %s57 = scalar_select %p54, %s55, %s56
      %p60 = pneg %p54
      %p61 = scmp.eq.s32.totalorder %s19, 1
      %p62 = por %p60, %p61
      %p63 = scmp.ne.s32.totalorder %s55, %s58
      %p64 = scmp.eq.s32.totalorder %s19, 0
      %p65 = por %p63, %p64
      %p66 = scmp.ne.s32.totalorder %s55, %s58
      %p67 = scmp.eq.s32.totalorder %s24, 1
      %p68 = por %p66, %p67
      %p69 = scmp.ne.s32.totalorder %s58, %s59
      %p70 = scmp.eq.s32.totalorder %s24, 0
      %p71 = por %p69, %p70
      %p72 = scmp.ne.s32.totalorder %s58, %s59
      %p73 = scmp.eq.s32.totalorder %s25, 1
      %p74 = por %p72, %p73
      %p76 = scmp.ne.s32.totalorder %s59, %s75
      %p77 = scmp.eq.s32.totalorder %s25, 0
      %p78 = por %p76, %p77
      %s80 = sadd.s32 %s79, 1
      %p83 = scmp.eq.s32.totalorder %s19, 1
      %p84 = scmp.ne.s32.totalorder %s79, %s81
      %p85 = scmp.eq.s32.totalorder %s19, 0
      %p86 = por %p84, %p85
      %p87 = scmp.ne.s32.totalorder %s79, %s81
      %p88 = scmp.eq.s32.totalorder %s24, 1
      %p89 = por %p87, %p88
      %p90 = scmp.ne.s32.totalorder %s81, %s82
      %p91 = scmp.eq.s32.totalorder %s24, 0
      %p92 = por %p90, %p91
      %p93 = scmp.ne.s32.totalorder %s81, %s82
      %p94 = scmp.eq.s32.totalorder %s25, 1
      %p95 = por %p93, %p94
      %p97 = scmp.ne.s32.totalorder %s82, %s96
      %p98 = scmp.eq.s32.totalorder %s25, 0
      %p99 = por %p97, %p98
      %s101 = sadd.s32 %s100, 1
      %p104 = scmp.eq.s32.totalorder %s19, 1
      %p105 = scmp.ne.s32.totalorder %s100, %s102
      %p106 = scmp.eq.s32.totalorder %s19, 0
      %p107 = por %p105, %p106
      %p108 = scmp.ne.s32.totalorder %s100, %s102
      %p109 = scmp.eq.s32.totalorder %s24, 1
      %p110 = por %p108, %p109
      %p111 = scmp.ne.s32.totalorder %s102, %s103
      %p112 = scmp.eq.s32.totalorder %s24, 0
      %p113 = por %p111, %p112
      %p114 = scmp.ne.s32.totalorder %s102, %s103
      %p115 = scmp.eq.s32.totalorder %s25, 1
      %p116 = por %p114, %p115
      %p118 = scmp.ne.s32.totalorder %s103, %s117
      %p119 = scmp.eq.s32.totalorder %s25, 0
      %p120 = por %p118, %p119
      %s122 = sadd.s32 %s121, 1
      %p125 = scmp.eq.s32.totalorder %s19, 1
      %p126 = scmp.ne.s32.totalorder %s121, %s123
      %p127 = scmp.eq.s32.totalorder %s19, 0
      %p128 = por %p126, %p127
      %p129 = scmp.ne.s32.totalorder %s121, %s123
      %p130 = scmp.eq.s32.totalorder %s24, 1
      %p131 = por %p129, %p130
      %p132 = scmp.ne.s32.totalorder %s123, %s124
      %p133 = scmp.eq.s32.totalorder %s24, 0
      %p134 = por %p132, %p133
      %p135 = scmp.ne.s32.totalorder %s123, %s124
      %p136 = scmp.eq.s32.totalorder %s25, 1
      %p137 = por %p135, %p136
      %p139 = scmp.ne.s32.totalorder %s124, %s138
      %p140 = scmp.eq.s32.totalorder %s25, 0
      %p141 = por %p139, %p140
      %s143 = sadd.s32 %s142, 1
      %p146 = scmp.eq.s32.totalorder %s19, 1
      %p147 = scmp.ne.s32.totalorder %s142, %s144
      %p148 = scmp.eq.s32.totalorder %s19, 0
      %p149 = por %p147, %p148
      %p150 = scmp.ne.s32.totalorder %s142, %s144
      %p151 = scmp.eq.s32.totalorder %s24, 1
      %p152 = por %p150, %p151
      %p153 = scmp.ne.s32.totalorder %s144, %s145
      %p154 = scmp.eq.s32.totalorder %s24, 0
      %p155 = por %p153, %p154
      %p156 = scmp.ne.s32.totalorder %s144, %s145
      %p157 = scmp.eq.s32.totalorder %s25, 1
      %p158 = por %p156, %p157
      %p160 = scmp.ne.s32.totalorder %s145, %s159
      %p161 = scmp.eq.s32.totalorder %s25, 0
      %p162 = por %p160, %p161
      %s164 = sadd.s32 %s163, 1
      %p167 = scmp.eq.s32.totalorder %s19, 1
      %p168 = scmp.ne.s32.totalorder %s163, %s165
      %p169 = scmp.eq.s32.totalorder %s19, 0
      %p170 = por %p168, %p169
      %p171 = scmp.ne.s32.totalorder %s163, %s165
      %p172 = scmp.eq.s32.totalorder %s24, 1
      %p173 = por %p171, %p172
      %p174 = scmp.ne.s32.totalorder %s165, %s166
      %p175 = scmp.eq.s32.totalorder %s24, 0
      %p176 = por %p174, %p175
      %p177 = scmp.ne.s32.totalorder %s165, %s166
      %p178 = scmp.eq.s32.totalorder %s25, 1
      %p179 = por %p177, %p178
      %p181 = scmp.ne.s32.totalorder %s166, %s180
      %p182 = scmp.eq.s32.totalorder %s25, 0
      %p183 = por %p181, %p182
      %s185 = sadd.s32 %s184, 1
      %p188 = scmp.eq.s32.totalorder %s19, 1
      %p189 = scmp.ne.s32.totalorder %s184, %s186
      %p190 = scmp.eq.s32.totalorder %s19, 0
      %p191 = por %p189, %p190
      %p192 = scmp.ne.s32.totalorder %s184, %s186
      %p193 = scmp.eq.s32.totalorder %s24, 1
      %p194 = por %p192, %p193
      %p195 = scmp.ne.s32.totalorder %s186, %s187
      %p196 = scmp.eq.s32.totalorder %s24, 0
      %p197 = por %p195, %p196
      %p198 = scmp.ne.s32.totalorder %s186, %s187
      %p199 = scmp.eq.s32.totalorder %s25, 1
      %p200 = por %p198, %p199
      %p202 = scmp.ne.s32.totalorder %s187, %s201
      %p203 = scmp.eq.s32.totalorder %s25, 0
      %p204 = por %p202, %p203
      %s206 = sadd.s32 %s205, 1
      %p209 = scmp.eq.s32.totalorder %s19, 1
      %p210 = scmp.ne.s32.totalorder %s205, %s207
      %p211 = scmp.eq.s32.totalorder %s19, 0
      %p212 = por %p210, %p211
      %p213 = scmp.ne.s32.totalorder %s205, %s207
      %p214 = scmp.eq.s32.totalorder %s24, 1
      %p215 = por %p213, %p214
      %p216 = scmp.ne.s32.totalorder %s207, %s208
      %p217 = scmp.eq.s32.totalorder %s24, 0
      %p218 = por %p216, %p217
      %p219 = scmp.ne.s32.totalorder %s207, %s208
      %p220 = scmp.eq.s32.totalorder %s25, 1
      %p221 = por %p219, %p220
      %p223 = scmp.ne.s32.totalorder %s208, %s222
      %p224 = scmp.eq.s32.totalorder %s25, 0
      %p225 = por %p223, %p224
      %s227 = sadd.s32 %s226, 1
      %p230 = scmp.eq.s32.totalorder %s19, 1
      %p231 = scmp.ne.s32.totalorder %s226, %s228
      %p232 = scmp.eq.s32.totalorder %s19, 0
      %p233 = por %p231, %p232
      %p234 = scmp.ne.s32.totalorder %s226, %s228
      %p235 = scmp.eq.s32.totalorder %s24, 1
      %p236 = por %p234, %p235
      %p237 = scmp.ne.s32.totalorder %s228, %s229
      %p238 = scmp.eq.s32.totalorder %s24, 0
      %p239 = por %p237, %p238
      %p240 = scmp.ne.s32.totalorder %s228, %s229
      %p241 = scmp.eq.s32.totalorder %s25, 1
      %p242 = por %p240, %p241
      %p244 = scmp.ne.s32.totalorder %s229, %s243
      %p245 = scmp.eq.s32.totalorder %s25, 0
      %p246 = por %p244, %p245
      %s248 = sadd.s32 %s247, 1
      %p251 = scmp.eq.s32.totalorder %s19, 1
      %p252 = scmp.ne.s32.totalorder %s247, %s249
      %p253 = scmp.eq.s32.totalorder %s19, 0
      %p254 = por %p252, %p253
      %p255 = scmp.ne.s32.totalorder %s247, %s249
      %p256 = scmp.eq.s32.totalorder %s24, 1
      %p257 = por %p255, %p256
      %p258 = scmp.ne.s32.totalorder %s249, %s250
      %p259 = scmp.eq.s32.totalorder %s24, 0
      %p260 = por %p258, %p259
      %p261 = scmp.ne.s32.totalorder %s249, %s250
      %p262 = scmp.eq.s32.totalorder %s25, 1
      %p263 = por %p261, %p262
      %p265 = scmp.ne.s32.totalorder %s250, %s264
      %p266 = scmp.eq.s32.totalorder %s25, 0
      %p267 = por %p265, %p266
      %s269 = sadd.s32 %s268, 1
      %p272 = scmp.eq.s32.totalorder %s19, 1
      %p273 = scmp.ne.s32.totalorder %s268, %s270
      %p274 = scmp.eq.s32.totalorder %s19, 0
      %p275 = por %p273, %p274
      %p276 = scmp.ne.s32.totalorder %s268, %s270
      %p277 = scmp.eq.s32.totalorder %s24, 1
      %p278 = por %p276, %p277
      %p279 = scmp.ne.s32.totalorder %s270, %s271
      %p280 = scmp.eq.s32.totalorder %s24, 0
      %p281 = por %p279, %p280
      %p282 = scmp.ne.s32.totalorder %s270, %s271
      %p283 = scmp.eq.s32.totalorder %s25, 1
      %p284 = por %p282, %p283
      %p286 = scmp.ne.s32.totalorder %s271, %s285
      %p287 = scmp.eq.s32.totalorder %s25, 0
      %p288 = por %p286, %p287
      %s289 = ssub.s32 %s19, %s26
      %p290 = scmp.eq.s32.totalorder %s289, 0
      %s292 = sadd.s32 %s291, 1
      %s293 = scalar_select %p290, %s291, %s292
      %p296 = pneg %p290
      %p297 = scmp.eq.s32.totalorder %s19, 1
      %p298 = por %p296, %p297
      %p299 = scmp.ne.s32.totalorder %s291, %s294
      %p300 = scmp.eq.s32.totalorder %s19, 0
      %p301 = por %p299, %p300
      %p302 = scmp.ne.s32.totalorder %s291, %s294
      %p303 = scmp.eq.s32.totalorder %s24, 1
      %p304 = por %p302, %p303
      %p305 = scmp.ne.s32.totalorder %s294, %s295
      %p306 = scmp.eq.s32.totalorder %s24, 0
      %p307 = por %p305, %p306
      %p308 = scmp.ne.s32.totalorder %s294, %s295
      %p309 = scmp.eq.s32.totalorder %s25, 1
      %p310 = por %p308, %p309
      %p312 = scmp.ne.s32.totalorder %s295, %s311
      %p313 = scmp.eq.s32.totalorder %s25, 0
      %p314 = por %p312, %p313
      %p315 = scmp.le.s32.totalorder 1, %s19
      %p316 = scmp.lt.s32.totalorder %s19, 3
      %p317 = pnand %p315, %p316
      %p318 = pneg %p317
      // Predicated region
      $region9: #{embedding_forward.1} parent=5 // pred_check
        _
      $region10: #{embedding_forward.1} parent=5 // pred_check_branch
        %320 = sbr.rel (%p317) target = $region12
      $region11: #{embedding_forward.1} parent=5 // pred_region
        %s321 = ssub.s32 %s19, 1
        // Predicated region
        $region13: #{embedding_forward.1} parent=11 // pred_check
          %p322 = pneg %p92
        $region14: #{embedding_forward.1} parent=11 // pred_check_branch
          %324 = sbr.rel (%p322) target = $region16
        $region15: #{embedding_forward.1} parent=11 // pred_region
          _
        $region16: #{embedding_forward.1} parent=11 // pred_fallthru
          _
        // Predicated region
        $region17: #{embedding_forward.1} parent=11 // pred_check
          %p325 = pneg %p113
        $region18: #{embedding_forward.1} parent=11 // pred_check_branch
          %327 = sbr.rel (%p325) target = $region20
        $region19: #{embedding_forward.1} parent=11 // pred_region
          _
        $region20: #{embedding_forward.1} parent=11 // pred_fallthru
          _
        // Predicated region
        $region21: #{embedding_forward.1} parent=11 // pred_check
          %p328 = pneg %p134
        $region22: #{embedding_forward.1} parent=11 // pred_check_branch
          %330 = sbr.rel (%p328) target = $region24
        $region23: #{embedding_forward.1} parent=11 // pred_region
          _
        $region24: #{embedding_forward.1} parent=11 // pred_fallthru
          _
        // Predicated region
        $region25: #{embedding_forward.1} parent=11 // pred_check
          %p331 = pneg %p155
        $region26: #{embedding_forward.1} parent=11 // pred_check_branch
          %333 = sbr.rel (%p331) target = $region28
        $region27: #{embedding_forward.1} parent=11 // pred_region
          _
        $region28: #{embedding_forward.1} parent=11 // pred_fallthru
          _
        // Predicated region
        $region29: #{embedding_forward.1} parent=11 // pred_check
          %p334 = pneg %p176
        $region30: #{embedding_forward.1} parent=11 // pred_check_branch
          %336 = sbr.rel (%p334) target = $region32
        $region31: #{embedding_forward.1} parent=11 // pred_region
          _
        $region32: #{embedding_forward.1} parent=11 // pred_fallthru
          _
        // Predicated region
        $region33: #{embedding_forward.1} parent=11 // pred_check
          %p337 = pneg %p197
        $region34: #{embedding_forward.1} parent=11 // pred_check_branch
          %339 = sbr.rel (%p337) target = $region36
        $region35: #{embedding_forward.1} parent=11 // pred_region
          _
        $region36: #{embedding_forward.1} parent=11 // pred_fallthru
          _
        // Predicated region
        $region37: #{embedding_forward.1} parent=11 // pred_check
          %p340 = pneg %p218
        $region38: #{embedding_forward.1} parent=11 // pred_check_branch
          %342 = sbr.rel (%p340) target = $region40
        $region39: #{embedding_forward.1} parent=11 // pred_region
          _
        $region40: #{embedding_forward.1} parent=11 // pred_fallthru
          _
        // Predicated region
        $region41: #{embedding_forward.1} parent=11 // pred_check
          %p343 = pneg %p239
        $region42: #{embedding_forward.1} parent=11 // pred_check_branch
          %345 = sbr.rel (%p343) target = $region44
        $region43: #{embedding_forward.1} parent=11 // pred_region
          _
        $region44: #{embedding_forward.1} parent=11 // pred_fallthru
          _
        // Predicated region
        $region45: #{embedding_forward.1} parent=11 // pred_check
          %p346 = pneg %p260
        $region46: #{embedding_forward.1} parent=11 // pred_check_branch
          %348 = sbr.rel (%p346) target = $region48
        $region47: #{embedding_forward.1} parent=11 // pred_region
          %s350 = ssub.s32 2048, 2048
          %351 = vsyncadd [#allocation5], %s350
          %s352 = sshll.u32 [#allocation4], 4
          %s353 = int_to_ptr.vmem [resolvable:$true] %s352
          %358 = dma.hbm_to_vmem [thread:$0]  %s10, 2048, %s353, [#allocation5], 128, 128, 8
        $region48: #{embedding_forward.1} parent=11 // pred_fallthru
          _
        // Predicated region
        $region49: #{embedding_forward.1} parent=11 // pred_check
          %p359 = pneg %p281
        $region50: #{embedding_forward.1} parent=11 // pred_check_branch
          %361 = sbr.rel (%p359) target = $region52
        $region51: #{embedding_forward.1} parent=11 // pred_region
          _
        $region52: #{embedding_forward.1} parent=11 // pred_fallthru
          _
      $region12: #{embedding_forward.1} parent=5 // pred_fallthru
        _
      %p362 = scmp.lt.s32.totalorder %s19, 2
      // Predicated region
      $region53: #{embedding_forward.1} parent=5 // pred_check
        %p363 = pneg %p362
      $region54: #{embedding_forward.1} parent=5 // pred_check_branch
        %365 = sbr.rel (%p363) target = $region56
      $region55: #{embedding_forward.1} parent=5 // pred_region
        // Predicated region
        $region57: #{embedding_forward.1} parent=55 // pred_check
          %p366 = pneg %p39
        $region58: #{embedding_forward.1} parent=55 // pred_check_branch
          %368 = sbr.rel (%p366) target = $region60
        $region59: #{embedding_forward.1} parent=55 // pred_region
          %p369 = scmp.lt.s32.totalorder %s19, 1
          %s370 = scalar_select %p369, %s19, 1
          %s371 = smul.addr %s370, 16
          %s372 = smul.addr %s371, 8
          %s373 = scalar_lea.vmem %s0, %s372
        $region60: #{embedding_forward.1} parent=55 // pred_fallthru
          _
        // Predicated region
        $region61: #{embedding_forward.1} parent=55 // pred_check
          %p374 = pneg %p65
        $region62: #{embedding_forward.1} parent=55 // pred_check_branch
          %376 = sbr.rel (%p374) target = $region64
        $region63: #{embedding_forward.1} parent=55 // pred_region
          %p377 = scmp.lt.s32.totalorder %s19, 1
          %s378 = scalar_select %p377, %s19, 1
          %s379 = smul.addr %s378, 8
          %s380 = scalar_lea.vmem %s1, %s379
        $region64: #{embedding_forward.1} parent=55 // pred_fallthru
          _
      $region56: #{embedding_forward.1} parent=5 // pred_fallthru
        _
      %p381 = scmp.le.s32.totalorder 1, %s19
      %p382 = scmp.lt.s32.totalorder %s19, 3
      %p383 = pnand %p381, %p382
      %p384 = pneg %p383
      // Predicated region
      $region65: #{embedding_forward.1} parent=5 // pred_check
        _
      $region66: #{embedding_forward.1} parent=5 // pred_check_branch
        %386 = sbr.rel (%p383) target = $region68
      $region67: #{embedding_forward.1} parent=5 // pred_region
        %s387 = ssub.s32 %s19, 1
        // Predicated region
        $region69: #{embedding_forward.1} parent=67 // pred_check
          %p388 = pneg %p260
        $region70: #{embedding_forward.1} parent=67 // pred_check_branch
          %390 = sbr.rel (%p388) target = $region72
        $region71: #{embedding_forward.1} parent=67 // pred_region
          %391 = dma.done [#allocation5], 2048
        $region72: #{embedding_forward.1} parent=67 // pred_fallthru
          _
        %p392 = scmp.lt.s32.totalorder %s24, 1
        %s393 = scalar_select %p392, %s24, 1
        %s394 = smul.addr %s393, 16
        %s395 = smul.addr %s394, 8
        %s396 = scalar_lea.vmem %s0, %s395
        %p397 = pneg %p45
        %p398 = pneg %p42
        %p399 = scmp.lt.s32.totalorder %s24, 1
        %s400 = scalar_select %p399, %s24, 1
        %s401 = smul.addr %s400, 8
        %s402 = scalar_lea.vmem %s1, %s401
        %p403 = pneg %p71
        %p404 = pneg %p68
        %p405 = pneg %p92
        %p406 = pneg %p89
        %p407 = pneg %p113
        %p408 = pneg %p110
        %p409 = pneg %p134
        %p410 = pneg %p131
        %p411 = pneg %p155
        %p412 = pneg %p152
        %p413 = pneg %p176
        %p414 = pneg %p173
        %p415 = pneg %p197
        %p416 = pneg %p194
        %p417 = pneg %p218
        %p418 = pneg %p215
        %p419 = pneg %p239
        %p420 = pneg %p236
        %p421 = pneg %p260
        %p422 = pneg %p257
        %p423 = pneg %p281
        %p424 = pneg %p278
        %p425 = pneg %p307
        %p426 = pneg %p304
        %p427 = scmp.lt.s32.totalorder %s24, 1
        %s428 = scalar_select %p427, %s24, 1
        %s429 = smul.addr %s428, 8
        %s430 = scalar_lea.vmem %s12, %s429
        %p431 = scmp.lt.s32.totalorder %s24, 1
        %s432 = scalar_select %p431, %s24, 1
        %s433 = smul.addr %s432, 16
        %s434 = smul.addr %s433, 8
        %s435 = scalar_lea.vmem %s0, %s434
        %p436 = scmp.lt.s32.totalorder %s24, 1
        %s437 = scalar_select %p436, %s24, 1
        %s438 = smul.addr %s437, 8
        %s439 = scalar_lea.vmem %s1, %s438
        %p440 = scmp.lt.s32.totalorder %s24, 1
        %s441 = scalar_select %p440, %s24, 1
        %s442 = smul.addr %s441, 8
        %s443 = scalar_lea.vmem %s12, %s442
        %vm444 = vcmask 130048
        %445 = vst.msk [vmem:[#allocation2] sm:$0xff] %vm444, 0.0
        %446 = vst.msk [vmem:[#allocation2 + $0x8] sm:$0xff] %vm444, 0.0
        %vm447 = vcmask 125952
        %448 = vst.msk [vmem:[#allocation2 + $0x10] sm:$0xf] %vm447, 0.0
        %449 = vst.msk [vmem:[#allocation2 + $0x18] sm:$0xff] %vm444, 0.0
        %450 = vst.msk [vmem:[#allocation2 + $0x20] sm:$0xff] %vm444, 0.0
        %451 = vst.msk [vmem:[#allocation2 + $0x28] sm:$0xf] %vm447, 0.0
        %s452 = scalar_lea.vmem [#allocation2], 240
        %453 = vst.msk [vmem:[%s452] sm:$0xff] %vm444, 0.0
        %454 = vst.msk [vmem:[%s452 + $0x8] sm:$0xff] %vm444, 0.0
        %455 = vst.msk [vmem:[%s452 + $0x10] sm:$0xf] %vm447, 0.0
        %456 = vst.msk [vmem:[%s452 + $0x18] sm:$0xff] %vm444, 0.0
        %457 = vst.msk [vmem:[%s452 + $0x20] sm:$0xff] %vm444, 0.0
        %458 = vst.msk [vmem:[%s452 + $0x28] sm:$0xf] %vm447, 0.0
        %s459 = scalar_lea.vmem [#allocation2], 48
        %vm460 = vcmask 123904
        %461 = vst.msk [vmem:[%s459] sm:$0x3] %vm460, 0.0
        %462 = vst.msk [vmem:[%s459 + $0x18] sm:$0x3] %vm460, 0.0
        %463 = vst.msk [vmem:[%s459 + $0x30] sm:$0x3] %vm460, 0.0
        %464 = vst.msk [vmem:[%s459 + $0x48] sm:$0x3] %vm460, 0.0
        %465 = vst.msk [vmem:[%s459 + $0x60] sm:$0x3] %vm460, 0.0
        %466 = vst.msk [vmem:[%s459 + $0x78] sm:$0x3] %vm460, 0.0
        %467 = vst.msk [vmem:[%s459 + $0x90] sm:$0x3] %vm460, 0.0
        %468 = vst.msk [vmem:[%s459 + $0xa8] sm:$0x3] %vm460, 0.0
        %469 = vst.msk [vmem:[%s459 + $0x12] sm:$0x3] %vm460, 0.0
        %470 = vst.msk [vmem:[%s459 + $0x2a] sm:$0x3] %vm460, 0.0
        %471 = vst.msk [vmem:[%s459 + $0x42] sm:$0x3] %vm460, 0.0
        %472 = vst.msk [vmem:[%s459 + $0x5a] sm:$0x3] %vm460, 0.0
        %473 = vst.msk [vmem:[%s459 + $0x72] sm:$0x3] %vm460, 0.0
        %474 = vst.msk [vmem:[%s459 + $0x8a] sm:$0x3] %vm460, 0.0
        %475 = vst.msk [vmem:[%s459 + $0xa2] sm:$0x3] %vm460, 0.0
        %476 = vst.msk [vmem:[%s459 + $0xba] sm:$0x3] %vm460, 0.0
        %v477 = vld [vmem:[%s435] sm:$0xff]
        %v478 = vld [vmem:[%s435 + $0x8] sm:$0xff]
        %v479 = vld [vmem:[%s435 + $0x10] sm:$0xff]
        %v480 = vld [vmem:[%s435 + $0x18] sm:$0xff]
        %v481 = vld [vmem:[%s435 + $0x20] sm:$0xff]
        %v482 = vld [vmem:[%s435 + $0x28] sm:$0xff]
        %v483 = vld [vmem:[%s435 + $0x30] sm:$0xff]
        %v484 = vld [vmem:[%s435 + $0x38] sm:$0xff]
        %v485 = vld [vmem:[%s435 + $0x40] sm:$0xff]
        %v486 = vld [vmem:[%s435 + $0x48] sm:$0xff]
        %v487 = vld [vmem:[%s435 + $0x50] sm:$0xff]
        %v488 = vld [vmem:[%s435 + $0x58] sm:$0xff]
        %v489 = vld [vmem:[%s435 + $0x60] sm:$0xff]
        %v490 = vld [vmem:[%s435 + $0x68] sm:$0xff]
        %v491 = vld [vmem:[%s435 + $0x70] sm:$0xff]
        %v492 = vld [vmem:[%s435 + $0x78] sm:$0xff]
        %493 = vst.msk [vmem:[%s459 + $0x2] sm:$0xff] %vm444, %v477
        %494 = vst.msk [vmem:[%s459 + $0xa] sm:$0xff] %vm444, %v478
        %495 = vst.msk [vmem:[%s459 + $0x1a] sm:$0xff] %vm444, %v479
        %496 = vst.msk [vmem:[%s459 + $0x22] sm:$0xff] %vm444, %v480
        %497 = vst.msk [vmem:[%s459 + $0x32] sm:$0xff] %vm444, %v481
        %498 = vst.msk [vmem:[%s459 + $0x3a] sm:$0xff] %vm444, %v482
        %499 = vst.msk [vmem:[%s459 + $0x4a] sm:$0xff] %vm444, %v483
        %500 = vst.msk [vmem:[%s459 + $0x52] sm:$0xff] %vm444, %v484
        %501 = vst.msk [vmem:[%s459 + $0x62] sm:$0xff] %vm444, %v485
        %502 = vst.msk [vmem:[%s459 + $0x6a] sm:$0xff] %vm444, %v486
        %503 = vst.msk [vmem:[%s459 + $0x7a] sm:$0xff] %vm444, %v487
        %504 = vst.msk [vmem:[%s459 + $0x82] sm:$0xff] %vm444, %v488
        %505 = vst.msk [vmem:[%s459 + $0x92] sm:$0xff] %vm444, %v489
        %506 = vst.msk [vmem:[%s459 + $0x9a] sm:$0xff] %vm444, %v490
        %507 = vst.msk [vmem:[%s459 + $0xaa] sm:$0xff] %vm444, %v491
        %508 = vst.msk [vmem:[%s459 + $0xb2] sm:$0xff] %vm444, %v492
        %v509 = vld [vmem:[#allocation2] sm:$0xff]
        %v510 = vld [vmem:[#allocation2 + $0x8] sm:$0xff]
        %v511 = vld [vmem:[#allocation2 + $0x10] sm:$0xf]
        %v512 = vld [vmem:[#allocation2 + $0x18] sm:$0xff]
        %v513 = vld [vmem:[#allocation2 + $0x20] sm:$0xff]
        %v514 = vld [vmem:[#allocation2 + $0x28] sm:$0xf]
        %v515 = vld [vmem:[#allocation2 + $0x30] sm:$0xff]
        %v516 = vld [vmem:[#allocation2 + $0x38] sm:$0xff]
        %v517 = vld [vmem:[#allocation2 + $0x40] sm:$0xf]
        %v518 = vld [vmem:[#allocation2 + $0x48] sm:$0xff]
        %v519 = vld [vmem:[#allocation2 + $0x50] sm:$0xff]
        %v520 = vld [vmem:[#allocation2 + $0x58] sm:$0xf]
        %v521 = vld [vmem:[#allocation2 + $0x60] sm:$0xff]
        %v522 = vld [vmem:[#allocation2 + $0x68] sm:$0xff]
        %v523 = vld [vmem:[#allocation2 + $0x70] sm:$0xf]
        %v524 = vld [vmem:[#allocation2 + $0x78] sm:$0xff]
        %v525 = vld [vmem:[#allocation2 + $0x80] sm:$0xff]
        %v526 = vld [vmem:[#allocation2 + $0x88] sm:$0xf]
        %v527 = vld [vmem:[#allocation2 + $0x90] sm:$0xff]
        %v528 = vld [vmem:[#allocation2 + $0x98] sm:$0xff]
        %v529 = vld [vmem:[#allocation2 + $0xa0] sm:$0xf]
        %v530 = vld [vmem:[#allocation2 + $0xa8] sm:$0xff]
        %v531 = vld [vmem:[#allocation2 + $0xb0] sm:$0xff]
        %v532 = vld [vmem:[#allocation2 + $0xb8] sm:$0xf]
        %v533 = vld [vmem:[#allocation2 + $0xc0] sm:$0xff]
        %v534 = vld [vmem:[#allocation2 + $0xc8] sm:$0xff]
        %v535 = vld [vmem:[#allocation2 + $0xd0] sm:$0xf]
        %v536 = vld [vmem:[#allocation2 + $0xd8] sm:$0xff]
        %v537 = vld [vmem:[#allocation2 + $0xe0] sm:$0xff]
        %v538 = vld [vmem:[#allocation2 + $0xe8] sm:$0xf]
        %v539 = vld [vmem:[#allocation2 + $0xf0] sm:$0xff]
        %v540 = vld [vmem:[#allocation2 + $0xf8] sm:$0xff]
        %v541 = vld [vmem:[#allocation2 + $0x100] sm:$0xf]
        %v542 = vld [vmem:[#allocation2 + $0x108] sm:$0xff]
        %v543 = vld [vmem:[#allocation2 + $0x110] sm:$0xff]
        %v544 = vld [vmem:[#allocation2 + $0x118] sm:$0xf]
        %v545 = vld [vmem:[%s2] sm:$0xff]
        %v546 = vld [vmem:[%s2 + $0x8] sm:$0xff]
        %vm571 = vcmask 1046528
        %v572 = vrot.slane %v509, 1
        %v573 = vrot.slane %v510, 1
        %v574 = vsel %vm571, %v572, %v573
        %v575 = vrot.slane %v511, 1
        %v576 = vsel %vm571, %v573, %v575
        %v577 = vrot.slane %v512, 1
        %v578 = vrot.slane %v513, 1
        %v579 = vsel %vm571, %v577, %v578
        %v580 = vrot.slane %v514, 1
        %v581 = vsel %vm571, %v578, %v580
        %v582 = vrot.slane %v515, 1
        %v583 = vrot.slane %v516, 1
        %v584 = vsel %vm571, %v582, %v583
        %v585 = vrot.slane %v517, 1
        %v586 = vsel %vm571, %v583, %v585
        %v587 = vrot.slane %v518, 1
        %v588 = vrot.slane %v519, 1
        %v589 = vsel %vm571, %v587, %v588
        %v590 = vrot.slane %v520, 1
        %v591 = vsel %vm571, %v588, %v590
        %v592 = vrot.slane %v521, 1
        %v593 = vrot.slane %v522, 1
        %v594 = vsel %vm571, %v592, %v593
        %v595 = vrot.slane %v523, 1
        %v596 = vsel %vm571, %v593, %v595
        %v597 = vrot.slane %v524, 1
        %v598 = vrot.slane %v525, 1
        %v599 = vsel %vm571, %v597, %v598
        %v600 = vrot.slane %v526, 1
        %v601 = vsel %vm571, %v598, %v600
        %v602 = vrot.slane %v527, 1
        %v603 = vrot.slane %v528, 1
        %v604 = vsel %vm571, %v602, %v603
        %v605 = vrot.slane %v529, 1
        %v606 = vsel %vm571, %v603, %v605
        %v607 = vrot.slane %v530, 1
        %v608 = vrot.slane %v531, 1
        %v609 = vsel %vm571, %v607, %v608
        %v610 = vrot.slane %v532, 1
        %v611 = vsel %vm571, %v608, %v610
        %s612 = scalar_lea.vmem %s2, 16
        %v613 = vld [vmem:[%s612] sm:$0xff]
        %v614 = vld [vmem:[%s612 + $0x8] sm:$0xff]
        %v615 = vsel %vm444, %v574, 0
        %v617 = vsel %vm444, %v576, 0
        %v619 = vsel %vm444, %v579, 0
        %v621 = vsel %vm444, %v581, 0
        %v623 = vsel %vm444, %v584, 0
        %v625 = vsel %vm444, %v586, 0
        %v627 = vsel %vm444, %v589, 0
        %v629 = vsel %vm444, %v591, 0
        %v631 = vsel %vm444, %v594, 0
        %v633 = vsel %vm444, %v596, 0
        %v635 = vsel %vm444, %v599, 0
        %v637 = vsel %vm444, %v601, 0
        %v639 = vsel %vm444, %v604, 0
        %v641 = vsel %vm444, %v606, 0
        %v643 = vsel %vm444, %v609, 0
        %v645 = vsel %vm444, %v611, 0
        %647 = vmatprep.subr.mxu0 0.0
        %648 = vmatpush1.msra.mxu0 %v613
        %649 = vmatprep.subr.mxu0 0.0
        %650 = vmatpush1.msra.mxu0 %v614
        %651 = vmatprep.subr.mxu0 0.0
        %652 = vmatpush1.msra.mxu0 0.0
        %653 = vmatprep.subr.mxu0 0.0
        %654 = vmatpush1.msra.mxu0 0.0
        %655 = vmatprep.subr.mxu0 0.0
        %656 = vmatpush1.msra.mxu0 0.0
        %657 = vmatprep.subr.mxu0 0.0
        %658 = vmatpush1.msra.mxu0 0.0
        %659 = vmatprep.subr.mxu0 0.0
        %660 = vmatpush1.msra.mxu0 0.0
        %661 = vmatprep.subr.mxu0 0.0
        %662 = vmatpush1.msra.mxu0 0.0
        %663 = vmatprep.subr.mxu0 0.0
        %664 = vmatpush1.msra.mxu0 0.0
        %665 = vmatprep.subr.mxu0 0.0
        %666 = vmatpush1.msra.mxu0 0.0
        %667 = vmatprep.subr.mxu0 0.0
        %668 = vmatpush1.msra.mxu0 0.0
        %669 = vmatprep.subr.mxu0 0.0
        %670 = vmatpush1.msra.mxu0 0.0
        %671 = vmatprep.subr.mxu0 0.0
        %672 = vmatpush1.msra.mxu0 0.0
        %673 = vmatprep.subr.mxu0 0.0
        %674 = vmatpush1.msra.mxu0 0.0
        %675 = vmatprep.subr.mxu0 0.0
        %676 = vmatpush1.msra.mxu0 0.0
        %677 = vmatprep.subr.mxu0 0.0
        %678 = vmatpush1.msra.mxu0 0.0
        %679 = vmatprep.subr.mxu0 0.0
        %680 = vmatpush1.msra.mxu0 0.0
        %681 = vmatprep.subr.mxu0 0.0
        %682 = vmatpush1.msra.mxu0 0.0
        %683 = vmatprep.subr.mxu0 0.0
        %684 = vmatpush1.msra.mxu0 0.0
        %685 = vmatprep.subr.mxu0 0.0
        %686 = vmatpush1.msra.mxu0 0.0
        %687 = vmatprep.subr.mxu0 0.0
        %688 = vmatpush1.msra.mxu0 0.0
        %689 = vmatprep.subr.mxu0 0.0
        %690 = vmatpush1.msra.mxu0 0.0
        %691 = vmatprep.subr.mxu0 0.0
        %692 = vmatpush1.msra.mxu0 0.0
        %693 = vmatprep.subr.mxu0 0.0
        %694 = vmatpush1.msra.mxu0 0.0
        %695 = vmatprep.subr.mxu0 0.0
        %696 = vmatpush1.msra.mxu0 0.0
        %697 = vmatprep.subr.mxu0 0.0
        %698 = vmatpush1.msra.mxu0 0.0
        %699 = vmatprep.subr.mxu0 0.0
        %700 = vmatpush1.msra.mxu0 0.0
        %701 = vmatprep.subr.mxu0 0.0
        %702 = vmatpush1.msra.mxu0 0.0
        %703 = vmatprep.subr.mxu0 0.0
        %704 = vmatpush1.msra.mxu0 0.0
        %705 = vmatprep.subr.mxu0 0.0
        %706 = vmatpush1.msra.mxu0 0.0
        %707 = vmatprep.subr.mxu0 0.0
        %708 = vmatpush1.msra.mxu0 0.0
        %709 = vmatprep.subr.mxu0 0.0
        %710 = vmatpush1.msra.mxu0 0.0
        %711 = vmatprep.mubr.f32.mxu0 0.0
        %712 = vmatmul.mubr.f32.gmra.mrb[0].mxu0 %v615
        %v713 = vpop.f32.mrb[0].mxu0
        %v714 = vadd.f32 0.0, %v713
        %v715 = vpop.f32.mrb[0].mxu0
        %716 = vmatprep.mubr.f32.mxu0 0.0
        %717 = vmatmul.mubr.f32.gmra.mrb[0].mxu0 %v617
        %v718 = vpop.f32.mrb[0].mxu0
        %v719 = vadd.f32 0.0, %v718
        %v720 = vpop.f32.mrb[0].mxu0
        %721 = vmatprep.mubr.f32.mxu0 0.0
        %722 = vmatmul.mubr.f32.gmra.mrb[0].mxu0 %v619
        %v723 = vpop.f32.mrb[0].mxu0
        %v724 = vadd.f32 0.0, %v723
        %v725 = vpop.f32.mrb[0].mxu0
        %726 = vmatprep.mubr.f32.mxu0 0.0
        %727 = vmatmul.mubr.f32.gmra.mrb[0].mxu0 %v621
        %v728 = vpop.f32.mrb[0].mxu0
        %v729 = vadd.f32 0.0, %v728
        %v730 = vpop.f32.mrb[0].mxu0
        %731 = vmatprep.mubr.f32.mxu0 0.0
        %732 = vmatmul.mubr.f32.gmra.mrb[0].mxu0 %v623
        %v733 = vpop.f32.mrb[0].mxu0
        %v734 = vadd.f32 0.0, %v733
        %v735 = vpop.f32.mrb[0].mxu0
        %736 = vmatprep.mubr.f32.mxu0 0.0
        %737 = vmatmul.mubr.f32.gmra.mrb[0].mxu0 %v625
        %v738 = vpop.f32.mrb[0].mxu0
        %v739 = vadd.f32 0.0, %v738
        %v740 = vpop.f32.mrb[0].mxu0
        %741 = vmatprep.mubr.f32.mxu0 0.0
        %742 = vmatmul.mubr.f32.gmra.mrb[0].mxu0 %v627
        %v743 = vpop.f32.mrb[0].mxu0
        %v744 = vadd.f32 0.0, %v743
        %v745 = vpop.f32.mrb[0].mxu0
        %746 = vmatprep.mubr.f32.mxu0 0.0
        %747 = vmatmul.mubr.f32.gmra.mrb[0].mxu0 %v629
        %v748 = vpop.f32.mrb[0].mxu0
        %v749 = vadd.f32 0.0, %v748
        %v750 = vpop.f32.mrb[0].mxu0
        %751 = vmatprep.mubr.f32.mxu0 0.0
        %752 = vmatmul.mubr.f32.gmra.mrb[0].mxu0 %v631
        %v753 = vpop.f32.mrb[0].mxu0
        %v754 = vadd.f32 0.0, %v753
        %v755 = vpop.f32.mrb[0].mxu0
        %756 = vmatprep.mubr.f32.mxu0 0.0
        %757 = vmatmul.mubr.f32.gmra.mrb[0].mxu0 %v633
        %v758 = vpop.f32.mrb[0].mxu0
        %v759 = vadd.f32 0.0, %v758
        %v760 = vpop.f32.mrb[0].mxu0
        %761 = vmatprep.mubr.f32.mxu0 0.0
        %762 = vmatmul.mubr.f32.gmra.mrb[0].mxu0 %v635
        %v763 = vpop.f32.mrb[0].mxu0
        %v764 = vadd.f32 0.0, %v763
        %v765 = vpop.f32.mrb[0].mxu0
        %766 = vmatprep.mubr.f32.mxu0 0.0
        %767 = vmatmul.mubr.f32.gmra.mrb[0].mxu0 %v637
        %v768 = vpop.f32.mrb[0].mxu0
        %v769 = vadd.f32 0.0, %v768
        %v770 = vpop.f32.mrb[0].mxu0
        %771 = vmatprep.mubr.f32.mxu0 0.0
        %772 = vmatmul.mubr.f32.gmra.mrb[0].mxu0 %v639
        %v773 = vpop.f32.mrb[0].mxu0
        %v774 = vadd.f32 0.0, %v773
        %v775 = vpop.f32.mrb[0].mxu0
        %776 = vmatprep.mubr.f32.mxu0 0.0
        %777 = vmatmul.mubr.f32.gmra.mrb[0].mxu0 %v641
        %v778 = vpop.f32.mrb[0].mxu0
        %v779 = vadd.f32 0.0, %v778
        %v780 = vpop.f32.mrb[0].mxu0
        %781 = vmatprep.mubr.f32.mxu0 0.0
        %782 = vmatmul.mubr.f32.gmra.mrb[0].mxu0 %v643
        %v783 = vpop.f32.mrb[0].mxu0
        %v784 = vadd.f32 0.0, %v783
        %v785 = vpop.f32.mrb[0].mxu0
        %786 = vmatprep.mubr.f32.mxu0 0.0
        %787 = vmatmul.mubr.f32.gmra.mrb[0].mxu0 %v645
        %v788 = vpop.f32.mrb[0].mxu0
        %v789 = vadd.f32 0.0, %v788
        %v790 = vpop.f32.mrb[0].mxu0
        %791 = vdwg.mxu0
        %v792 = vsel %vm444, %v509, 0
        %v794 = vsel %vm444, %v510, 0
        %v796 = vsel %vm444, %v512, 0
        %v798 = vsel %vm444, %v513, 0
        %v800 = vsel %vm444, %v515, 0
        %v802 = vsel %vm444, %v516, 0
        %v804 = vsel %vm444, %v518, 0
        %v806 = vsel %vm444, %v519, 0
        %v808 = vsel %vm444, %v521, 0
        %v810 = vsel %vm444, %v522, 0
        %v812 = vsel %vm444, %v524, 0
        %v814 = vsel %vm444, %v525, 0
        %v816 = vsel %vm444, %v527, 0
        %v818 = vsel %vm444, %v528, 0
        %v820 = vsel %vm444, %v530, 0
        %v822 = vsel %vm444, %v531, 0
        %824 = vmatprep.subr.mxu0 0.0
        %825 = vmatpush1.msra.mxu0 %v545
        %826 = vmatprep.subr.mxu0 0.0
        %827 = vmatpush1.msra.mxu0 %v546
        %828 = vmatprep.subr.mxu0 0.0
        %829 = vmatpush1.msra.mxu0 0.0
        %830 = vmatprep.subr.mxu0 0.0
        %831 = vmatpush1.msra.mxu0 0.0
        %832 = vmatprep.subr.mxu0 0.0
        %833 = vmatpush1.msra.mxu0 0.0
        %834 = vmatprep.subr.mxu0 0.0
        %835 = vmatpush1.msra.mxu0 0.0
        %836 = vmatprep.subr.mxu0 0.0
        %837 = vmatpush1.msra.mxu0 0.0
        %838 = vmatprep.subr.mxu0 0.0
        %839 = vmatpush1.msra.mxu0 0.0
        %840 = vmatprep.subr.mxu0 0.0
        %841 = vmatpush1.msra.mxu0 0.0
        %842 = vmatprep.subr.mxu0 0.0
        %843 = vmatpush1.msra.mxu0 0.0
        %844 = vmatprep.subr.mxu0 0.0
        %845 = vmatpush1.msra.mxu0 0.0
        %846 = vmatprep.subr.mxu0 0.0
        %847 = vmatpush1.msra.mxu0 0.0
        %848 = vmatprep.subr.mxu0 0.0
        %849 = vmatpush1.msra.mxu0 0.0
        %850 = vmatprep.subr.mxu0 0.0
        %851 = vmatpush1.msra.mxu0 0.0
        %852 = vmatprep.subr.mxu0 0.0
        %853 = vmatpush1.msra.mxu0 0.0
        %854 = vmatprep.subr.mxu0 0.0
        %855 = vmatpush1.msra.mxu0 0.0
        %856 = vmatprep.subr.mxu0 0.0
        %857 = vmatpush1.msra.mxu0 0.0
        %858 = vmatprep.subr.mxu0 0.0
        %859 = vmatpush1.msra.mxu0 0.0
        %860 = vmatprep.subr.mxu0 0.0
        %861 = vmatpush1.msra.mxu0 0.0
        %862 = vmatprep.subr.mxu0 0.0
        %863 = vmatpush1.msra.mxu0 0.0
        %864 = vmatprep.subr.mxu0 0.0
        %865 = vmatpush1.msra.mxu0 0.0
        %866 = vmatprep.subr.mxu0 0.0
        %867 = vmatpush1.msra.mxu0 0.0
        %868 = vmatprep.subr.mxu0 0.0
        %869 = vmatpush1.msra.mxu0 0.0
        %870 = vmatprep.subr.mxu0 0.0
        %871 = vmatpush1.msra.mxu0 0.0
        %872 = vmatprep.subr.mxu0 0.0
        %873 = vmatpush1.msra.mxu0 0.0
        %874 = vmatprep.subr.mxu0 0.0
        %875 = vmatpush1.msra.mxu0 0.0
        %876 = vmatprep.subr.mxu0 0.0
        %877 = vmatpush1.msra.mxu0 0.0
        %878 = vmatprep.subr.mxu0 0.0
        %879 = vmatpush1.msra.mxu0 0.0
        %880 = vmatprep.subr.mxu0 0.0
        %881 = vmatpush1.msra.mxu0 0.0
        %882 = vmatprep.subr.mxu0 0.0
        %883 = vmatpush1.msra.mxu0 0.0
        %884 = vmatprep.subr.mxu0 0.0
        %885 = vmatpush1.msra.mxu0 0.0
        %886 = vmatprep.subr.mxu0 0.0
        %887 = vmatpush1.msra.mxu0 0.0
        %888 = vmatprep.mubr.f32.mxu0 0.0
        %889 = vmatmul.mubr.f32.gmra.mrb[0].mxu0 %v792
        %v890 = vpop.f32.mrb[0].mxu0
        %v891 = vadd.f32 %v714, %v890
        %v892 = vpop.f32.mrb[0].mxu0
        %893 = vmatprep.mubr.f32.mxu0 0.0
        %894 = vmatmul.mubr.f32.gmra.mrb[0].mxu0 %v794
        %v895 = vpop.f32.mrb[0].mxu0
        %v896 = vadd.f32 %v719, %v895
        %v897 = vpop.f32.mrb[0].mxu0
        %898 = vmatprep.mubr.f32.mxu0 0.0
        %899 = vmatmul.mubr.f32.gmra.mrb[0].mxu0 %v796
        %v900 = vpop.f32.mrb[0].mxu0
        %v901 = vadd.f32 %v724, %v900
        %v902 = vpop.f32.mrb[0].mxu0
        %903 = vmatprep.mubr.f32.mxu0 0.0
        %904 = vmatmul.mubr.f32.gmra.mrb[0].mxu0 %v798
        %v905 = vpop.f32.mrb[0].mxu0
        %v906 = vadd.f32 %v729, %v905
        %v907 = vpop.f32.mrb[0].mxu0
        %908 = vmatprep.mubr.f32.mxu0 0.0
        %909 = vmatmul.mubr.f32.gmra.mrb[0].mxu0 %v800
        %v910 = vpop.f32.mrb[0].mxu0
        %v911 = vadd.f32 %v734, %v910
        %v912 = vpop.f32.mrb[0].mxu0
        %913 = vmatprep.mubr.f32.mxu0 0.0
        %914 = vmatmul.mubr.f32.gmra.mrb[0].mxu0 %v802
        %v915 = vpop.f32.mrb[0].mxu0
        %v916 = vadd.f32 %v739, %v915
        %v917 = vpop.f32.mrb[0].mxu0
        %918 = vmatprep.mubr.f32.mxu0 0.0
        %919 = vmatmul.mubr.f32.gmra.mrb[0].mxu0 %v804
        %v920 = vpop.f32.mrb[0].mxu0
        %v921 = vadd.f32 %v744, %v920
        %v922 = vpop.f32.mrb[0].mxu0
        %923 = vmatprep.mubr.f32.mxu0 0.0
        %924 = vmatmul.mubr.f32.gmra.mrb[0].mxu0 %v806
        %v925 = vpop.f32.mrb[0].mxu0
        %v926 = vadd.f32 %v749, %v925
        %v927 = vpop.f32.mrb[0].mxu0
        %928 = vmatprep.mubr.f32.mxu0 0.0
        %929 = vmatmul.mubr.f32.gmra.mrb[0].mxu0 %v808
        %v930 = vpop.f32.mrb[0].mxu0
        %v931 = vadd.f32 %v754, %v930
        %v932 = vpop.f32.mrb[0].mxu0
        %933 = vmatprep.mubr.f32.mxu0 0.0
        %934 = vmatmul.mubr.f32.gmra.mrb[0].mxu0 %v810
        %v935 = vpop.f32.mrb[0].mxu0
        %v936 = vadd.f32 %v759, %v935
        %v937 = vpop.f32.mrb[0].mxu0
        %938 = vmatprep.mubr.f32.mxu0 0.0
        %939 = vmatmul.mubr.f32.gmra.mrb[0].mxu0 %v812
        %v940 = vpop.f32.mrb[0].mxu0
        %v941 = vadd.f32 %v764, %v940
        %v942 = vpop.f32.mrb[0].mxu0
        %943 = vmatprep.mubr.f32.mxu0 0.0
        %944 = vmatmul.mubr.f32.gmra.mrb[0].mxu0 %v814
        %v945 = vpop.f32.mrb[0].mxu0
        %v946 = vadd.f32 %v769, %v945
        %v947 = vpop.f32.mrb[0].mxu0
        %948 = vmatprep.mubr.f32.mxu0 0.0
        %949 = vmatmul.mubr.f32.gmra.mrb[0].mxu0 %v816
        %v950 = vpop.f32.mrb[0].mxu0
        %v951 = vadd.f32 %v774, %v950
        %v952 = vpop.f32.mrb[0].mxu0
        %953 = vmatprep.mubr.f32.mxu0 0.0
        %954 = vmatmul.mubr.f32.gmra.mrb[0].mxu0 %v818
        %v955 = vpop.f32.mrb[0].mxu0
        %v956 = vadd.f32 %v779, %v955
        %v957 = vpop.f32.mrb[0].mxu0
        %958 = vmatprep.mubr.f32.mxu0 0.0
        %959 = vmatmul.mubr.f32.gmra.mrb[0].mxu0 %v820
        %v960 = vpop.f32.mrb[0].mxu0
        %v961 = vadd.f32 %v784, %v960
        %v962 = vpop.f32.mrb[0].mxu0
        %963 = vmatprep.mubr.f32.mxu0 0.0
        %964 = vmatmul.mubr.f32.gmra.mrb[0].mxu0 %v822
        %v965 = vpop.f32.mrb[0].mxu0
        %v966 = vadd.f32 %v789, %v965
        %v967 = vpop.f32.mrb[0].mxu0
        %968 = vdwg.mxu0
        %vm969 = vcmask 1045504
        %v970 = vrot.slane %v509, 2
        %v971 = vrot.slane %v510, 2
        %v972 = vsel %vm969, %v970, %v971
        %v973 = vrot.slane %v511, 2
        %v974 = vsel %vm969, %v971, %v973
        %v975 = vrot.slane %v512, 2
        %v976 = vrot.slane %v513, 2
        %v977 = vsel %vm969, %v975, %v976
        %v978 = vrot.slane %v514, 2
        %v979 = vsel %vm969, %v976, %v978
        %v980 = vrot.slane %v515, 2
        %v981 = vrot.slane %v516, 2
        %v982 = vsel %vm969, %v980, %v981
        %v983 = vrot.slane %v517, 2
        %v984 = vsel %vm969, %v981, %v983
        %v985 = vrot.slane %v518, 2
        %v986 = vrot.slane %v519, 2
        %v987 = vsel %vm969, %v985, %v986
        %v988 = vrot.slane %v520, 2
        %v989 = vsel %vm969, %v986, %v988
        %v990 = vrot.slane %v521, 2
        %v991 = vrot.slane %v522, 2
        %v992 = vsel %vm969, %v990, %v991
        %v993 = vrot.slane %v523, 2
        %v994 = vsel %vm969, %v991, %v993
        %v995 = vrot.slane %v524, 2
        %v996 = vrot.slane %v525, 2
        %v997 = vsel %vm969, %v995, %v996
        %v998 = vrot.slane %v526, 2
        %v999 = vsel %vm969, %v996, %v998
        %v1000 = vrot.slane %v527, 2
        %v1001 = vrot.slane %v528, 2
        %v1002 = vsel %vm969, %v1000, %v1001
        %v1003 = vrot.slane %v529, 2
        %v1004 = vsel %vm969, %v1001, %v1003
        %v1005 = vrot.slane %v530, 2
        %v1006 = vrot.slane %v531, 2
        %v1007 = vsel %vm969, %v1005, %v1006
        %v1008 = vrot.slane %v532, 2
        %v1009 = vsel %vm969, %v1006, %v1008
        %s1010 = scalar_lea.vmem %s2, 32
        %v1011 = vld [vmem:[%s1010] sm:$0xff]
        %v1012 = vld [vmem:[%s1010 + $0x8] sm:$0xff]
        %v1013 = vsel %vm444, %v972, 0
        %v1015 = vsel %vm444, %v974, 0
        %v1017 = vsel %vm444, %v977, 0
        %v1019 = vsel %vm444, %v979, 0
        %v1021 = vsel %vm444, %v982, 0
        %v1023 = vsel %vm444, %v984, 0
        %v1025 = vsel %vm444, %v987, 0
        %v1027 = vsel %vm444, %v989, 0
        %v1029 = vsel %vm444, %v992, 0
        %v1031 = vsel %vm444, %v994, 0
        %v1033 = vsel %vm444, %v997, 0
        %v1035 = vsel %vm444, %v999, 0
        %v1037 = vsel %vm444, %v1002, 0
        %v1039 = vsel %vm444, %v1004, 0
        %v1041 = vsel %vm444, %v1007, 0
        %v1043 = vsel %vm444, %v1009, 0
        %1045 = vmatprep.subr.mxu0 0.0
        %1046 = vmatpush1.msra.mxu0 %v1011
        %1047 = vmatprep.subr.mxu0 0.0
        %1048 = vmatpush1.msra.mxu0 %v1012
        %1049 = vmatprep.subr.mxu0 0.0
        %1050 = vmatpush1.msra.mxu0 0.0
        %1051 = vmatprep.subr.mxu0 0.0
        %1052 = vmatpush1.msra.mxu0 0.0
        %1053 = vmatprep.subr.mxu0 0.0
        %1054 = vmatpush1.msra.mxu0 0.0
        %1055 = vmatprep.subr.mxu0 0.0
        %1056 = vmatpush1.msra.mxu0 0.0
        %1057 = vmatprep.subr.mxu0 0.0
        %1058 = vmatpush1.msra.mxu0 0.0
        %1059 = vmatprep.subr.mxu0 0.0
        %1060 = vmatpush1.msra.mxu0 0.0
        %1061 = vmatprep.subr.mxu0 0.0
        %1062 = vmatpush1.msra.mxu0 0.0
        %1063 = vmatprep.subr.mxu0 0.0
        %1064 = vmatpush1.msra.mxu0 0.0
        %1065 = vmatprep.subr.mxu0 0.0
        %1066 = vmatpush1.msra.mxu0 0.0
        %1067 = vmatprep.subr.mxu0 0.0
        %1068 = vmatpush1.msra.mxu0 0.0
        %1069 = vmatprep.subr.mxu0 0.0
        %1070 = vmatpush1.msra.mxu0 0.0
        %1071 = vmatprep.subr.mxu0 0.0
        %1072 = vmatpush1.msra.mxu0 0.0
        %1073 = vmatprep.subr.mxu0 0.0
        %1074 = vmatpush1.msra.mxu0 0.0
        %1075 = vmatprep.subr.mxu0 0.0
        %1076 = vmatpush1.msra.mxu0 0.0
        %1077 = vmatprep.subr.mxu0 0.0
        %1078 = vmatpush1.msra.mxu0 0.0
        %1079 = vmatprep.subr.mxu0 0.0
        %1080 = vmatpush1.msra.mxu0 0.0
        %1081 = vmatprep.subr.mxu0 0.0
        %1082 = vmatpush1.msra.mxu0 0.0
        %1083 = vmatprep.subr.mxu0 0.0
        %1084 = vmatpush1.msra.mxu0 0.0
        %1085 = vmatprep.subr.mxu0 0.0
        %1086 = vmatpush1.msra.mxu0 0.0
        %1087 = vmatprep.subr.mxu0 0.0
        %1088 = vmatpush1.msra.mxu0 0.0
        %1089 = vmatprep.subr.mxu0 0.0
        %1090 = vmatpush1.msra.mxu0 0.0
        %1091 = vmatprep.subr.mxu0 0.0
        %1092 = vmatpush1.msra.mxu0 0.0
        %1093 = vmatprep.subr.mxu0 0.0
        %1094 = vmatpush1.msra.mxu0 0.0
        %1095 = vmatprep.subr.mxu0 0.0
        %1096 = vmatpush1.msra.mxu0 0.0
        %1097 = vmatprep.subr.mxu0 0.0
        %1098 = vmatpush1.msra.mxu0 0.0
        %1099 = vmatprep.subr.mxu0 0.0
        %1100 = vmatpush1.msra.mxu0 0.0
        %1101 = vmatprep.subr.mxu0 0.0
        %1102 = vmatpush1.msra.mxu0 0.0
        %1103 = vmatprep.subr.mxu0 0.0
        %1104 = vmatpush1.msra.mxu0 0.0
        %1105 = vmatprep.subr.mxu0 0.0
        %1106 = vmatpush1.msra.mxu0 0.0
        %1107 = vmatprep.subr.mxu0 0.0
        %1108 = vmatpush1.msra.mxu0 0.0
        %1109 = vmatprep.mubr.f32.mxu0 0.0
        %1110 = vmatmul.mubr.f32.gmra.mrb[0].mxu0 %v1013
        %v1111 = vpop.f32.mrb[0].mxu0
        %v1112 = vadd.f32 0.0, %v1111
        %v1113 = vpop.f32.mrb[0].mxu0
        %1114 = vmatprep.mubr.f32.mxu0 0.0
        %1115 = vmatmul.mubr.f32.gmra.mrb[0].mxu0 %v1015
        %v1116 = vpop.f32.mrb[0].mxu0
        %v1117 = vadd.f32 0.0, %v1116
        %v1118 = vpop.f32.mrb[0].mxu0
        %1119 = vmatprep.mubr.f32.mxu0 0.0
        %1120 = vmatmul.mubr.f32.gmra.mrb[0].mxu0 %v1017
        %v1121 = vpop.f32.mrb[0].mxu0
        %v1122 = vadd.f32 0.0, %v1121
        %v1123 = vpop.f32.mrb[0].mxu0
        %1124 = vmatprep.mubr.f32.mxu0 0.0
        %1125 = vmatmul.mubr.f32.gmra.mrb[0].mxu0 %v1019
        %v1126 = vpop.f32.mrb[0].mxu0
        %v1127 = vadd.f32 0.0, %v1126
        %v1128 = vpop.f32.mrb[0].mxu0
        %1129 = vmatprep.mubr.f32.mxu0 0.0
        %1130 = vmatmul.mubr.f32.gmra.mrb[0].mxu0 %v1021
        %v1131 = vpop.f32.mrb[0].mxu0
        %v1132 = vadd.f32 0.0, %v1131
        %v1133 = vpop.f32.mrb[0].mxu0
        %1134 = vmatprep.mubr.f32.mxu0 0.0
        %1135 = vmatmul.mubr.f32.gmra.mrb[0].mxu0 %v1023
        %v1136 = vpop.f32.mrb[0].mxu0
        %v1137 = vadd.f32 0.0, %v1136
        %v1138 = vpop.f32.mrb[0].mxu0
        %1139 = vmatprep.mubr.f32.mxu0 0.0
        %1140 = vmatmul.mubr.f32.gmra.mrb[0].mxu0 %v1025
        %v1141 = vpop.f32.mrb[0].mxu0
        %v1142 = vadd.f32 0.0, %v1141
        %v1143 = vpop.f32.mrb[0].mxu0
        %1144 = vmatprep.mubr.f32.mxu0 0.0
        %1145 = vmatmul.mubr.f32.gmra.mrb[0].mxu0 %v1027
        %v1146 = vpop.f32.mrb[0].mxu0
        %v1147 = vadd.f32 0.0, %v1146
        %v1148 = vpop.f32.mrb[0].mxu0
        %1149 = vmatprep.mubr.f32.mxu0 0.0
        %1150 = vmatmul.mubr.f32.gmra.mrb[0].mxu0 %v1029
        %v1151 = vpop.f32.mrb[0].mxu0
        %v1152 = vadd.f32 0.0, %v1151
        %v1153 = vpop.f32.mrb[0].mxu0
        %1154 = vmatprep.mubr.f32.mxu0 0.0
        %1155 = vmatmul.mubr.f32.gmra.mrb[0].mxu0 %v1031
        %v1156 = vpop.f32.mrb[0].mxu0
        %v1157 = vadd.f32 0.0, %v1156
        %v1158 = vpop.f32.mrb[0].mxu0
        %1159 = vmatprep.mubr.f32.mxu0 0.0
        %1160 = vmatmul.mubr.f32.gmra.mrb[0].mxu0 %v1033
        %v1161 = vpop.f32.mrb[0].mxu0
        %v1162 = vadd.f32 0.0, %v1161
        %v1163 = vpop.f32.mrb[0].mxu0
        %1164 = vmatprep.mubr.f32.mxu0 0.0
        %1165 = vmatmul.mubr.f32.gmra.mrb[0].mxu0 %v1035
        %v1166 = vpop.f32.mrb[0].mxu0
        %v1167 = vadd.f32 0.0, %v1166
        %v1168 = vpop.f32.mrb[0].mxu0
        %1169 = vmatprep.mubr.f32.mxu0 0.0
        %1170 = vmatmul.mubr.f32.gmra.mrb[0].mxu0 %v1037
        %v1171 = vpop.f32.mrb[0].mxu0
        %v1172 = vadd.f32 0.0, %v1171
        %v1173 = vpop.f32.mrb[0].mxu0
        %1174 = vmatprep.mubr.f32.mxu0 0.0
        %1175 = vmatmul.mubr.f32.gmra.mrb[0].mxu0 %v1039
        %v1176 = vpop.f32.mrb[0].mxu0
        %v1177 = vadd.f32 0.0, %v1176
        %v1178 = vpop.f32.mrb[0].mxu0
        %1179 = vmatprep.mubr.f32.mxu0 0.0
        %1180 = vmatmul.mubr.f32.gmra.mrb[0].mxu0 %v1041
        %v1181 = vpop.f32.mrb[0].mxu0
        %v1182 = vadd.f32 0.0, %v1181
        %v1183 = vpop.f32.mrb[0].mxu0
        %1184 = vmatprep.mubr.f32.mxu0 0.0
        %1185 = vmatmul.mubr.f32.gmra.mrb[0].mxu0 %v1043
        %v1186 = vpop.f32.mrb[0].mxu0
        %v1187 = vadd.f32 0.0, %v1186
        %v1188 = vpop.f32.mrb[0].mxu0
        %1189 = vdwg.mxu0
        %v1190 = vadd.f32 %v891, %v1112
        %v1191 = vadd.f32 %v896, %v1117
        %v1192 = vadd.f32 %v901, %v1122
        %v1193 = vadd.f32 %v906, %v1127
        %v1194 = vadd.f32 %v911, %v1132
        %v1195 = vadd.f32 %v916, %v1137
        %v1196 = vadd.f32 %v921, %v1142
        %v1197 = vadd.f32 %v926, %v1147
        %v1198 = vadd.f32 %v931, %v1152
        %v1199 = vadd.f32 %v936, %v1157
        %v1200 = vadd.f32 %v941, %v1162
        %v1201 = vadd.f32 %v946, %v1167
        %v1202 = vadd.f32 %v951, %v1172
        %v1203 = vadd.f32 %v956, %v1177
        %v1204 = vadd.f32 %v961, %v1182
        %v1205 = vadd.f32 %v966, %v1187
        %vm1206 = vcmask 1044480
        %v1207 = vrot.slane %v509, 3
        %v1208 = vrot.slane %v510, 3
        %v1209 = vsel %vm1206, %v1207, %v1208
        %v1210 = vrot.slane %v511, 3
        %v1211 = vsel %vm1206, %v1208, %v1210
        %v1212 = vrot.slane %v512, 3
        %v1213 = vrot.slane %v513, 3
        %v1214 = vsel %vm1206, %v1212, %v1213
        %v1215 = vrot.slane %v514, 3
        %v1216 = vsel %vm1206, %v1213, %v1215
        %v1217 = vrot.slane %v515, 3
        %v1218 = vrot.slane %v516, 3
        %v1219 = vsel %vm1206, %v1217, %v1218
        %v1220 = vrot.slane %v517, 3
        %v1221 = vsel %vm1206, %v1218, %v1220
        %v1222 = vrot.slane %v518, 3
        %v1223 = vrot.slane %v519, 3
        %v1224 = vsel %vm1206, %v1222, %v1223
        %v1225 = vrot.slane %v520, 3
        %v1226 = vsel %vm1206, %v1223, %v1225
        %v1227 = vrot.slane %v521, 3
        %v1228 = vrot.slane %v522, 3
        %v1229 = vsel %vm1206, %v1227, %v1228
        %v1230 = vrot.slane %v523, 3
        %v1231 = vsel %vm1206, %v1228, %v1230
        %v1232 = vrot.slane %v524, 3
        %v1233 = vrot.slane %v525, 3
        %v1234 = vsel %vm1206, %v1232, %v1233
        %v1235 = vrot.slane %v526, 3
        %v1236 = vsel %vm1206, %v1233, %v1235
        %v1237 = vrot.slane %v527, 3
        %v1238 = vrot.slane %v528, 3
        %v1239 = vsel %vm1206, %v1237, %v1238
        %v1240 = vrot.slane %v529, 3
        %v1241 = vsel %vm1206, %v1238, %v1240
        %v1242 = vrot.slane %v530, 3
        %v1243 = vrot.slane %v531, 3
        %v1244 = vsel %vm1206, %v1242, %v1243
        %v1245 = vrot.slane %v532, 3
        %v1246 = vsel %vm1206, %v1243, %v1245
        %s1247 = scalar_lea.vmem %s2, 48
        %v1248 = vld [vmem:[%s1247] sm:$0xff]
        %v1249 = vld [vmem:[%s1247 + $0x8] sm:$0xff]
        %v1250 = vsel %vm444, %v1209, 0
        %v1252 = vsel %vm444, %v1211, 0
        %v1254 = vsel %vm444, %v1214, 0
        %v1256 = vsel %vm444, %v1216, 0
        %v1258 = vsel %vm444, %v1219, 0
        %v1260 = vsel %vm444, %v1221, 0
        %v1262 = vsel %vm444, %v1224, 0
        %v1264 = vsel %vm444, %v1226, 0
        %v1266 = vsel %vm444, %v1229, 0
        %v1268 = vsel %vm444, %v1231, 0
        %v1270 = vsel %vm444, %v1234, 0
        %v1272 = vsel %vm444, %v1236, 0
        %v1274 = vsel %vm444, %v1239, 0
        %v1276 = vsel %vm444, %v1241, 0
        %v1278 = vsel %vm444, %v1244, 0
        %v1280 = vsel %vm444, %v1246, 0
        %1282 = vmatprep.subr.mxu0 0.0
        %1283 = vmatpush1.msra.mxu0 %v1248
        %1284 = vmatprep.subr.mxu0 0.0
        %1285 = vmatpush1.msra.mxu0 %v1249
        %1286 = vmatprep.subr.mxu0 0.0
        %1287 = vmatpush1.msra.mxu0 0.0
        %1288 = vmatprep.subr.mxu0 0.0
        %1289 = vmatpush1.msra.mxu0 0.0
        %1290 = vmatprep.subr.mxu0 0.0
        %1291 = vmatpush1.msra.mxu0 0.0
        %1292 = vmatprep.subr.mxu0 0.0
        %1293 = vmatpush1.msra.mxu0 0.0
        %1294 = vmatprep.subr.mxu0 0.0
        %1295 = vmatpush1.msra.mxu0 0.0
        %1296 = vmatprep.subr.mxu0 0.0
        %1297 = vmatpush1.msra.mxu0 0.0
        %1298 = vmatprep.subr.mxu0 0.0
        %1299 = vmatpush1.msra.mxu0 0.0
        %1300 = vmatprep.subr.mxu0 0.0
        %1301 = vmatpush1.msra.mxu0 0.0
        %1302 = vmatprep.subr.mxu0 0.0
        %1303 = vmatpush1.msra.mxu0 0.0
        %1304 = vmatprep.subr.mxu0 0.0
        %1305 = vmatpush1.msra.mxu0 0.0
        %1306 = vmatprep.subr.mxu0 0.0
        %1307 = vmatpush1.msra.mxu0 0.0
        %1308 = vmatprep.subr.mxu0 0.0
        %1309 = vmatpush1.msra.mxu0 0.0
        %1310 = vmatprep.subr.mxu0 0.0
        %1311 = vmatpush1.msra.mxu0 0.0
        %1312 = vmatprep.subr.mxu0 0.0
        %1313 = vmatpush1.msra.mxu0 0.0
        %1314 = vmatprep.subr.mxu0 0.0
        %1315 = vmatpush1.msra.mxu0 0.0
        %1316 = vmatprep.subr.mxu0 0.0
        %1317 = vmatpush1.msra.mxu0 0.0
        %1318 = vmatprep.subr.mxu0 0.0
        %1319 = vmatpush1.msra.mxu0 0.0
        %1320 = vmatprep.subr.mxu0 0.0
        %1321 = vmatpush1.msra.mxu0 0.0
        %1322 = vmatprep.subr.mxu0 0.0
        %1323 = vmatpush1.msra.mxu0 0.0
        %1324 = vmatprep.subr.mxu0 0.0
        %1325 = vmatpush1.msra.mxu0 0.0
        %1326 = vmatprep.subr.mxu0 0.0
        %1327 = vmatpush1.msra.mxu0 0.0
        %1328 = vmatprep.subr.mxu0 0.0
        %1329 = vmatpush1.msra.mxu0 0.0
        %1330 = vmatprep.subr.mxu0 0.0
        %1331 = vmatpush1.msra.mxu0 0.0
        %1332 = vmatprep.subr.mxu0 0.0
        %1333 = vmatpush1.msra.mxu0 0.0
        %1334 = vmatprep.subr.mxu0 0.0
        %1335 = vmatpush1.msra.mxu0 0.0
        %1336 = vmatprep.subr.mxu0 0.0
        %1337 = vmatpush1.msra.mxu0 0.0
        %1338 = vmatprep.subr.mxu0 0.0
        %1339 = vmatpush1.msra.mxu0 0.0
        %1340 = vmatprep.subr.mxu0 0.0
        %1341 = vmatpush1.msra.mxu0 0.0
        %1342 = vmatprep.subr.mxu0 0.0
        %1343 = vmatpush1.msra.mxu0 0.0
        %1344 = vmatprep.subr.mxu0 0.0
        %1345 = vmatpush1.msra.mxu0 0.0
        %1346 = vmatprep.mubr.f32.mxu0 0.0
        %1347 = vmatmul.mubr.f32.gmra.mrb[0].mxu0 %v1250
        %v1348 = vpop.f32.mrb[0].mxu0
        %v1349 = vadd.f32 0.0, %v1348
        %v1350 = vpop.f32.mrb[0].mxu0
        %1351 = vmatprep.mubr.f32.mxu0 0.0
        %1352 = vmatmul.mubr.f32.gmra.mrb[0].mxu0 %v1252
        %v1353 = vpop.f32.mrb[0].mxu0
        %v1354 = vadd.f32 0.0, %v1353
        %v1355 = vpop.f32.mrb[0].mxu0
        %1356 = vmatprep.mubr.f32.mxu0 0.0
        %1357 = vmatmul.mubr.f32.gmra.mrb[0].mxu0 %v1254
        %v1358 = vpop.f32.mrb[0].mxu0
        %v1359 = vadd.f32 0.0, %v1358
        %v1360 = vpop.f32.mrb[0].mxu0
        %1361 = vmatprep.mubr.f32.mxu0 0.0
        %1362 = vmatmul.mubr.f32.gmra.mrb[0].mxu0 %v1256
        %v1363 = vpop.f32.mrb[0].mxu0
        %v1364 = vadd.f32 0.0, %v1363
        %v1365 = vpop.f32.mrb[0].mxu0
        %1366 = vmatprep.mubr.f32.mxu0 0.0
        %1367 = vmatmul.mubr.f32.gmra.mrb[0].mxu0 %v1258
        %v1368 = vpop.f32.mrb[0].mxu0
        %v1369 = vadd.f32 0.0, %v1368
        %v1370 = vpop.f32.mrb[0].mxu0
        %1371 = vmatprep.mubr.f32.mxu0 0.0
        %1372 = vmatmul.mubr.f32.gmra.mrb[0].mxu0 %v1260
        %v1373 = vpop.f32.mrb[0].mxu0
        %v1374 = vadd.f32 0.0, %v1373
        %v1375 = vpop.f32.mrb[0].mxu0
        %1376 = vmatprep.mubr.f32.mxu0 0.0
        %1377 = vmatmul.mubr.f32.gmra.mrb[0].mxu0 %v1262
        %v1378 = vpop.f32.mrb[0].mxu0
        %v1379 = vadd.f32 0.0, %v1378
        %v1380 = vpop.f32.mrb[0].mxu0
        %1381 = vmatprep.mubr.f32.mxu0 0.0
        %1382 = vmatmul.mubr.f32.gmra.mrb[0].mxu0 %v1264
        %v1383 = vpop.f32.mrb[0].mxu0
        %v1384 = vadd.f32 0.0, %v1383
        %v1385 = vpop.f32.mrb[0].mxu0
        %1386 = vmatprep.mubr.f32.mxu0 0.0
        %1387 = vmatmul.mubr.f32.gmra.mrb[0].mxu0 %v1266
        %v1388 = vpop.f32.mrb[0].mxu0
        %v1389 = vadd.f32 0.0, %v1388
        %v1390 = vpop.f32.mrb[0].mxu0
        %1391 = vmatprep.mubr.f32.mxu0 0.0
        %1392 = vmatmul.mubr.f32.gmra.mrb[0].mxu0 %v1268
        %v1393 = vpop.f32.mrb[0].mxu0
        %v1394 = vadd.f32 0.0, %v1393
        %v1395 = vpop.f32.mrb[0].mxu0
        %1396 = vmatprep.mubr.f32.mxu0 0.0
        %1397 = vmatmul.mubr.f32.gmra.mrb[0].mxu0 %v1270
        %v1398 = vpop.f32.mrb[0].mxu0
        %v1399 = vadd.f32 0.0, %v1398
        %v1400 = vpop.f32.mrb[0].mxu0
        %1401 = vmatprep.mubr.f32.mxu0 0.0
        %1402 = vmatmul.mubr.f32.gmra.mrb[0].mxu0 %v1272
        %v1403 = vpop.f32.mrb[0].mxu0
        %v1404 = vadd.f32 0.0, %v1403
        %v1405 = vpop.f32.mrb[0].mxu0
        %1406 = vmatprep.mubr.f32.mxu0 0.0
        %1407 = vmatmul.mubr.f32.gmra.mrb[0].mxu0 %v1274
        %v1408 = vpop.f32.mrb[0].mxu0
        %v1409 = vadd.f32 0.0, %v1408
        %v1410 = vpop.f32.mrb[0].mxu0
        %1411 = vmatprep.mubr.f32.mxu0 0.0
        %1412 = vmatmul.mubr.f32.gmra.mrb[0].mxu0 %v1276
        %v1413 = vpop.f32.mrb[0].mxu0
        %v1414 = vadd.f32 0.0, %v1413
        %v1415 = vpop.f32.mrb[0].mxu0
        %1416 = vmatprep.mubr.f32.mxu0 0.0
        %1417 = vmatmul.mubr.f32.gmra.mrb[0].mxu0 %v1278
        %v1418 = vpop.f32.mrb[0].mxu0
        %v1419 = vadd.f32 0.0, %v1418
        %v1420 = vpop.f32.mrb[0].mxu0
        %1421 = vmatprep.mubr.f32.mxu0 0.0
        %1422 = vmatmul.mubr.f32.gmra.mrb[0].mxu0 %v1280
        %v1423 = vpop.f32.mrb[0].mxu0
        %v1424 = vadd.f32 0.0, %v1423
        %v1425 = vpop.f32.mrb[0].mxu0
        %1426 = vdwg.mxu0
        %v1427 = vadd.f32 %v1190, %v1349
        %v1428 = vadd.f32 %v1191, %v1354
        %v1429 = vadd.f32 %v1192, %v1359
        %v1430 = vadd.f32 %v1193, %v1364
        %v1431 = vadd.f32 %v1194, %v1369
        %v1432 = vadd.f32 %v1195, %v1374
        %v1433 = vadd.f32 %v1196, %v1379
        %v1434 = vadd.f32 %v1197, %v1384
        %v1435 = vadd.f32 %v1198, %v1389
        %v1436 = vadd.f32 %v1199, %v1394
        %v1437 = vadd.f32 %v1200, %v1399
        %v1438 = vadd.f32 %v1201, %v1404
        %v1439 = vadd.f32 %v1202, %v1409
        %v1440 = vadd.f32 %v1203, %v1414
        %v1441 = vadd.f32 %v1204, %v1419
        %v1442 = vadd.f32 %v1205, %v1424
        %vm1443 = vcmask 1043456
        %v1444 = vrot.slane %v509, 4
        %v1445 = vrot.slane %v510, 4
        %v1446 = vsel %vm1443, %v1444, %v1445
        %v1447 = vrot.slane %v511, 4
        %v1448 = vsel %vm1443, %v1445, %v1447
        %v1449 = vrot.slane %v512, 4
        %v1450 = vrot.slane %v513, 4
        %v1451 = vsel %vm1443, %v1449, %v1450
        %v1452 = vrot.slane %v514, 4
        %v1453 = vsel %vm1443, %v1450, %v1452
        %v1454 = vrot.slane %v515, 4
        %v1455 = vrot.slane %v516, 4
        %v1456 = vsel %vm1443, %v1454, %v1455
        %v1457 = vrot.slane %v517, 4
        %v1458 = vsel %vm1443, %v1455, %v1457
        %v1459 = vrot.slane %v518, 4
        %v1460 = vrot.slane %v519, 4
        %v1461 = vsel %vm1443, %v1459, %v1460
        %v1462 = vrot.slane %v520, 4
        %v1463 = vsel %vm1443, %v1460, %v1462
        %v1464 = vrot.slane %v521, 4
        %v1465 = vrot.slane %v522, 4
        %v1466 = vsel %vm1443, %v1464, %v1465
        %v1467 = vrot.slane %v523, 4
        %v1468 = vsel %vm1443, %v1465, %v1467
        %v1469 = vrot.slane %v524, 4
        %v1470 = vrot.slane %v525, 4
        %v1471 = vsel %vm1443, %v1469, %v1470
        %v1472 = vrot.slane %v526, 4
        %v1473 = vsel %vm1443, %v1470, %v1472
        %v1474 = vrot.slane %v527, 4
        %v1475 = vrot.slane %v528, 4
        %v1476 = vsel %vm1443, %v1474, %v1475
        %v1477 = vrot.slane %v529, 4
        %v1478 = vsel %vm1443, %v1475, %v1477
        %v1479 = vrot.slane %v530, 4
        %v1480 = vrot.slane %v531, 4
        %v1481 = vsel %vm1443, %v1479, %v1480
        %v1482 = vrot.slane %v532, 4
        %v1483 = vsel %vm1443, %v1480, %v1482
        %s1484 = scalar_lea.vmem %s2, 64
        %v1485 = vld [vmem:[%s1484] sm:$0xff]
        %v1486 = vld [vmem:[%s1484 + $0x8] sm:$0xff]
        %v1487 = vsel %vm444, %v1446, 0
        %v1489 = vsel %vm444, %v1448, 0
        %v1491 = vsel %vm444, %v1451, 0
        %v1493 = vsel %vm444, %v1453, 0
        %v1495 = vsel %vm444, %v1456, 0
        %v1497 = vsel %vm444, %v1458, 0
        %v1499 = vsel %vm444, %v1461, 0
        %v1501 = vsel %vm444, %v1463, 0
        %v1503 = vsel %vm444, %v1466, 0
        %v1505 = vsel %vm444, %v1468, 0
        %v1507 = vsel %vm444, %v1471, 0
        %v1509 = vsel %vm444, %v1473, 0
        %v1511 = vsel %vm444, %v1476, 0
        %v1513 = vsel %vm444, %v1478, 0
        %v1515 = vsel %vm444, %v1481, 0
        %v1517 = vsel %vm444, %v1483, 0
        %1519 = vmatprep.subr.mxu0 0.0
        %1520 = vmatpush1.msra.mxu0 %v1485
        %1521 = vmatprep.subr.mxu0 0.0
        %1522 = vmatpush1.msra.mxu0 %v1486
        %1523 = vmatprep.subr.mxu0 0.0
        %1524 = vmatpush1.msra.mxu0 0.0
        %1525 = vmatprep.subr.mxu0 0.0
        %1526 = vmatpush1.msra.mxu0 0.0
        %1527 = vmatprep.subr.mxu0 0.0
        %1528 = vmatpush1.msra.mxu0 0.0
        %1529 = vmatprep.subr.mxu0 0.0
        %1530 = vmatpush1.msra.mxu0 0.0
        %1531 = vmatprep.subr.mxu0 0.0
        %1532 = vmatpush1.msra.mxu0 0.0
        %1533 = vmatprep.subr.mxu0 0.0
        %1534 = vmatpush1.msra.mxu0 0.0
        %1535 = vmatprep.subr.mxu0 0.0
        %1536 = vmatpush1.msra.mxu0 0.0
        %1537 = vmatprep.subr.mxu0 0.0
        %1538 = vmatpush1.msra.mxu0 0.0
        %1539 = vmatprep.subr.mxu0 0.0
        %1540 = vmatpush1.msra.mxu0 0.0
        %1541 = vmatprep.subr.mxu0 0.0
        %1542 = vmatpush1.msra.mxu0 0.0
        %1543 = vmatprep.subr.mxu0 0.0
        %1544 = vmatpush1.msra.mxu0 0.0
        %1545 = vmatprep.subr.mxu0 0.0
        %1546 = vmatpush1.msra.mxu0 0.0
        %1547 = vmatprep.subr.mxu0 0.0
        %1548 = vmatpush1.msra.mxu0 0.0
        %1549 = vmatprep.subr.mxu0 0.0
        %1550 = vmatpush1.msra.mxu0 0.0
        %1551 = vmatprep.subr.mxu0 0.0
        %1552 = vmatpush1.msra.mxu0 0.0
        %1553 = vmatprep.subr.mxu0 0.0
        %1554 = vmatpush1.msra.mxu0 0.0
        %1555 = vmatprep.subr.mxu0 0.0
        %1556 = vmatpush1.msra.mxu0 0.0
        %1557 = vmatprep.subr.mxu0 0.0
        %1558 = vmatpush1.msra.mxu0 0.0
        %1559 = vmatprep.subr.mxu0 0.0
        %1560 = vmatpush1.msra.mxu0 0.0
        %1561 = vmatprep.subr.mxu0 0.0
        %1562 = vmatpush1.msra.mxu0 0.0
        %1563 = vmatprep.subr.mxu0 0.0
        %1564 = vmatpush1.msra.mxu0 0.0
        %1565 = vmatprep.subr.mxu0 0.0
        %1566 = vmatpush1.msra.mxu0 0.0
        %1567 = vmatprep.subr.mxu0 0.0
        %1568 = vmatpush1.msra.mxu0 0.0
        %1569 = vmatprep.subr.mxu0 0.0
        %1570 = vmatpush1.msra.mxu0 0.0
        %1571 = vmatprep.subr.mxu0 0.0
        %1572 = vmatpush1.msra.mxu0 0.0
        %1573 = vmatprep.subr.mxu0 0.0
        %1574 = vmatpush1.msra.mxu0 0.0
        %1575 = vmatprep.subr.mxu0 0.0
        %1576 = vmatpush1.msra.mxu0 0.0
        %1577 = vmatprep.subr.mxu0 0.0
        %1578 = vmatpush1.msra.mxu0 0.0
        %1579 = vmatprep.subr.mxu0 0.0
        %1580 = vmatpush1.msra.mxu0 0.0
        %1581 = vmatprep.subr.mxu0 0.0
        %1582 = vmatpush1.msra.mxu0 0.0
        %1583 = vmatprep.mubr.f32.mxu0 0.0
        %1584 = vmatmul.mubr.f32.gmra.mrb[0].mxu0 %v1487
        %v1585 = vpop.f32.mrb[0].mxu0
        %v1586 = vadd.f32 0.0, %v1585
        %v1587 = vpop.f32.mrb[0].mxu0
        %1588 = vmatprep.mubr.f32.mxu0 0.0
        %1589 = vmatmul.mubr.f32.gmra.mrb[0].mxu0 %v1489
        %v1590 = vpop.f32.mrb[0].mxu0
        %v1591 = vadd.f32 0.0, %v1590
        %v1592 = vpop.f32.mrb[0].mxu0
        %1593 = vmatprep.mubr.f32.mxu0 0.0
        %1594 = vmatmul.mubr.f32.gmra.mrb[0].mxu0 %v1491
        %v1595 = vpop.f32.mrb[0].mxu0
        %v1596 = vadd.f32 0.0, %v1595
        %v1597 = vpop.f32.mrb[0].mxu0
        %1598 = vmatprep.mubr.f32.mxu0 0.0
        %1599 = vmatmul.mubr.f32.gmra.mrb[0].mxu0 %v1493
        %v1600 = vpop.f32.mrb[0].mxu0
        %v1601 = vadd.f32 0.0, %v1600
        %v1602 = vpop.f32.mrb[0].mxu0
        %1603 = vmatprep.mubr.f32.mxu0 0.0
        %1604 = vmatmul.mubr.f32.gmra.mrb[0].mxu0 %v1495
        %v1605 = vpop.f32.mrb[0].mxu0
        %v1606 = vadd.f32 0.0, %v1605
        %v1607 = vpop.f32.mrb[0].mxu0
        %1608 = vmatprep.mubr.f32.mxu0 0.0
        %1609 = vmatmul.mubr.f32.gmra.mrb[0].mxu0 %v1497
        %v1610 = vpop.f32.mrb[0].mxu0
        %v1611 = vadd.f32 0.0, %v1610
        %v1612 = vpop.f32.mrb[0].mxu0
        %1613 = vmatprep.mubr.f32.mxu0 0.0
        %1614 = vmatmul.mubr.f32.gmra.mrb[0].mxu0 %v1499
        %v1615 = vpop.f32.mrb[0].mxu0
        %v1616 = vadd.f32 0.0, %v1615
        %v1617 = vpop.f32.mrb[0].mxu0
        %1618 = vmatprep.mubr.f32.mxu0 0.0
        %1619 = vmatmul.mubr.f32.gmra.mrb[0].mxu0 %v1501
        %v1620 = vpop.f32.mrb[0].mxu0
        %v1621 = vadd.f32 0.0, %v1620
        %v1622 = vpop.f32.mrb[0].mxu0
        %1623 = vmatprep.mubr.f32.mxu0 0.0
        %1624 = vmatmul.mubr.f32.gmra.mrb[0].mxu0 %v1503
        %v1625 = vpop.f32.mrb[0].mxu0
        %v1626 = vadd.f32 0.0, %v1625
        %v1627 = vpop.f32.mrb[0].mxu0
        %1628 = vmatprep.mubr.f32.mxu0 0.0
        %1629 = vmatmul.mubr.f32.gmra.mrb[0].mxu0 %v1505
        %v1630 = vpop.f32.mrb[0].mxu0
        %v1631 = vadd.f32 0.0, %v1630
        %v1632 = vpop.f32.mrb[0].mxu0
        %1633 = vmatprep.mubr.f32.mxu0 0.0
        %1634 = vmatmul.mubr.f32.gmra.mrb[0].mxu0 %v1507
        %v1635 = vpop.f32.mrb[0].mxu0
        %v1636 = vadd.f32 0.0, %v1635
        %v1637 = vpop.f32.mrb[0].mxu0
        %1638 = vmatprep.mubr.f32.mxu0 0.0
        %1639 = vmatmul.mubr.f32.gmra.mrb[0].mxu0 %v1509
        %v1640 = vpop.f32.mrb[0].mxu0
        %v1641 = vadd.f32 0.0, %v1640
        %v1642 = vpop.f32.mrb[0].mxu0
        %1643 = vmatprep.mubr.f32.mxu0 0.0
        %1644 = vmatmul.mubr.f32.gmra.mrb[0].mxu0 %v1511
        %v1645 = vpop.f32.mrb[0].mxu0
        %v1646 = vadd.f32 0.0, %v1645
        %v1647 = vpop.f32.mrb[0].mxu0
        %1648 = vmatprep.mubr.f32.mxu0 0.0
        %1649 = vmatmul.mubr.f32.gmra.mrb[0].mxu0 %v1513
        %v1650 = vpop.f32.mrb[0].mxu0
        %v1651 = vadd.f32 0.0, %v1650
        %v1652 = vpop.f32.mrb[0].mxu0
        %1653 = vmatprep.mubr.f32.mxu0 0.0
        %1654 = vmatmul.mubr.f32.gmra.mrb[0].mxu0 %v1515
        %v1655 = vpop.f32.mrb[0].mxu0
        %v1656 = vadd.f32 0.0, %v1655
        %v1657 = vpop.f32.mrb[0].mxu0
        %1658 = vmatprep.mubr.f32.mxu0 0.0
        %1659 = vmatmul.mubr.f32.gmra.mrb[0].mxu0 %v1517
        %v1660 = vpop.f32.mrb[0].mxu0
        %v1661 = vadd.f32 0.0, %v1660
        %v1662 = vpop.f32.mrb[0].mxu0
        %1663 = vdwg.mxu0
        %v1664 = vadd.f32 %v1427, %v1586
        %v1665 = vadd.f32 %v1428, %v1591
        %v1666 = vadd.f32 %v1429, %v1596
        %v1667 = vadd.f32 %v1430, %v1601
        %v1668 = vadd.f32 %v1431, %v1606
        %v1669 = vadd.f32 %v1432, %v1611
        %v1670 = vadd.f32 %v1433, %v1616
        %v1671 = vadd.f32 %v1434, %v1621
        %v1672 = vadd.f32 %v1435, %v1626
        %v1673 = vadd.f32 %v1436, %v1631
        %v1674 = vadd.f32 %v1437, %v1636
        %v1675 = vadd.f32 %v1438, %v1641
        %v1676 = vadd.f32 %v1439, %v1646
        %v1677 = vadd.f32 %v1440, %v1651
        %v1678 = vadd.f32 %v1441, %v1656
        %v1679 = vadd.f32 %v1442, %v1661
        %s1680 = scalar_lea.vmem %s2, 80
        %v1681 = vld [vmem:[%s1680] sm:$0xff]
        %v1682 = vld [vmem:[%s1680 + $0x8] sm:$0xff]
        %v1684 = vsel %vm444, %v533, 0
        %v1687 = vsel %vm444, %v534, 0
        %1689 = vmatprep.subr.mxu0 0.0
        %1690 = vmatpush1.msra.mxu0 %v1681
        %1691 = vmatprep.subr.mxu0 0.0
        %1692 = vmatpush1.msra.mxu0 %v1682
        %1693 = vmatprep.subr.mxu0 0.0
        %1694 = vmatpush1.msra.mxu0 0.0
        %1695 = vmatprep.subr.mxu0 0.0
        %1696 = vmatpush1.msra.mxu0 0.0
        %1697 = vmatprep.subr.mxu0 0.0
        %1698 = vmatpush1.msra.mxu0 0.0
        %1699 = vmatprep.subr.mxu0 0.0
        %1700 = vmatpush1.msra.mxu0 0.0
        %1701 = vmatprep.subr.mxu0 0.0
        %1702 = vmatpush1.msra.mxu0 0.0
        %1703 = vmatprep.subr.mxu0 0.0
        %1704 = vmatpush1.msra.mxu0 0.0
        %1705 = vmatprep.subr.mxu0 0.0
        %1706 = vmatpush1.msra.mxu0 0.0
        %1707 = vmatprep.subr.mxu0 0.0
        %1708 = vmatpush1.msra.mxu0 0.0
        %1709 = vmatprep.subr.mxu0 0.0
        %1710 = vmatpush1.msra.mxu0 0.0
        %1711 = vmatprep.subr.mxu0 0.0
        %1712 = vmatpush1.msra.mxu0 0.0
        %1713 = vmatprep.subr.mxu0 0.0
        %1714 = vmatpush1.msra.mxu0 0.0
        %1715 = vmatprep.subr.mxu0 0.0
        %1716 = vmatpush1.msra.mxu0 0.0
        %1717 = vmatprep.subr.mxu0 0.0
        %1718 = vmatpush1.msra.mxu0 0.0
        %1719 = vmatprep.subr.mxu0 0.0
        %1720 = vmatpush1.msra.mxu0 0.0
        %1721 = vmatprep.subr.mxu0 0.0
        %1722 = vmatpush1.msra.mxu0 0.0
        %1723 = vmatprep.subr.mxu0 0.0
        %1724 = vmatpush1.msra.mxu0 0.0
        %1725 = vmatprep.subr.mxu0 0.0
        %1726 = vmatpush1.msra.mxu0 0.0
        %1727 = vmatprep.subr.mxu0 0.0
        %1728 = vmatpush1.msra.mxu0 0.0
        %1729 = vmatprep.subr.mxu0 0.0
        %1730 = vmatpush1.msra.mxu0 0.0
        %1731 = vmatprep.subr.mxu0 0.0
        %1732 = vmatpush1.msra.mxu0 0.0
        %1733 = vmatprep.subr.mxu0 0.0
        %1734 = vmatpush1.msra.mxu0 0.0
        %1735 = vmatprep.subr.mxu0 0.0
        %1736 = vmatpush1.msra.mxu0 0.0
        %1737 = vmatprep.subr.mxu0 0.0
        %1738 = vmatpush1.msra.mxu0 0.0
        %1739 = vmatprep.subr.mxu0 0.0
        %1740 = vmatpush1.msra.mxu0 0.0
        %1741 = vmatprep.subr.mxu0 0.0
        %1742 = vmatpush1.msra.mxu0 0.0
        %1743 = vmatprep.subr.mxu0 0.0
        %1744 = vmatpush1.msra.mxu0 0.0
        %1745 = vmatprep.subr.mxu0 0.0
        %1746 = vmatpush1.msra.mxu0 0.0
        %1747 = vmatprep.subr.mxu0 0.0
        %1748 = vmatpush1.msra.mxu0 0.0
        %1749 = vmatprep.subr.mxu0 0.0
        %1750 = vmatpush1.msra.mxu0 0.0
        %1751 = vmatprep.subr.mxu0 0.0
        %1752 = vmatpush1.msra.mxu0 0.0
        %1753 = vmatprep.mubr.f32.mxu0 0.0
        %1754 = vmatmul.mubr.f32.gmra.mrb[0].mxu0 %v796
        %v1755 = vpop.f32.mrb[0].mxu0
        %v1756 = vadd.f32 0.0, %v1755
        %v1757 = vpop.f32.mrb[0].mxu0
        %1758 = vmatprep.mubr.f32.mxu0 0.0
        %1759 = vmatmul.mubr.f32.gmra.mrb[0].mxu0 %v798
        %v1760 = vpop.f32.mrb[0].mxu0
        %v1761 = vadd.f32 0.0, %v1760
        %v1762 = vpop.f32.mrb[0].mxu0
        %1763 = vmatprep.mubr.f32.mxu0 0.0
        %1764 = vmatmul.mubr.f32.gmra.mrb[0].mxu0 %v800
        %v1765 = vpop.f32.mrb[0].mxu0
        %v1766 = vadd.f32 0.0, %v1765
        %v1767 = vpop.f32.mrb[0].mxu0
        %1768 = vmatprep.mubr.f32.mxu0 0.0
        %1769 = vmatmul.mubr.f32.gmra.mrb[0].mxu0 %v802
        %v1770 = vpop.f32.mrb[0].mxu0
        %v1771 = vadd.f32 0.0, %v1770
        %v1772 = vpop.f32.mrb[0].mxu0
        %1773 = vmatprep.mubr.f32.mxu0 0.0
        %1774 = vmatmul.mubr.f32.gmra.mrb[0].mxu0 %v804
        %v1775 = vpop.f32.mrb[0].mxu0
        %v1776 = vadd.f32 0.0, %v1775
        %v1777 = vpop.f32.mrb[0].mxu0
        %1778 = vmatprep.mubr.f32.mxu0 0.0
        %1779 = vmatmul.mubr.f32.gmra.mrb[0].mxu0 %v806
        %v1780 = vpop.f32.mrb[0].mxu0
        %v1781 = vadd.f32 0.0, %v1780
        %v1782 = vpop.f32.mrb[0].mxu0
        %1783 = vmatprep.mubr.f32.mxu0 0.0
        %1784 = vmatmul.mubr.f32.gmra.mrb[0].mxu0 %v808
        %v1785 = vpop.f32.mrb[0].mxu0
        %v1786 = vadd.f32 0.0, %v1785
        %v1787 = vpop.f32.mrb[0].mxu0
        %1788 = vmatprep.mubr.f32.mxu0 0.0
        %1789 = vmatmul.mubr.f32.gmra.mrb[0].mxu0 %v810
        %v1790 = vpop.f32.mrb[0].mxu0
        %v1791 = vadd.f32 0.0, %v1790
        %v1792 = vpop.f32.mrb[0].mxu0
        %1793 = vmatprep.mubr.f32.mxu0 0.0
        %1794 = vmatmul.mubr.f32.gmra.mrb[0].mxu0 %v812
        %v1795 = vpop.f32.mrb[0].mxu0
        %v1796 = vadd.f32 0.0, %v1795
        %v1797 = vpop.f32.mrb[0].mxu0
        %1798 = vmatprep.mubr.f32.mxu0 0.0
        %1799 = vmatmul.mubr.f32.gmra.mrb[0].mxu0 %v814
        %v1800 = vpop.f32.mrb[0].mxu0
        %v1801 = vadd.f32 0.0, %v1800
        %v1802 = vpop.f32.mrb[0].mxu0
        %1803 = vmatprep.mubr.f32.mxu0 0.0
        %1804 = vmatmul.mubr.f32.gmra.mrb[0].mxu0 %v816
        %v1805 = vpop.f32.mrb[0].mxu0
        %v1806 = vadd.f32 0.0, %v1805
        %v1807 = vpop.f32.mrb[0].mxu0
        %1808 = vmatprep.mubr.f32.mxu0 0.0
        %1809 = vmatmul.mubr.f32.gmra.mrb[0].mxu0 %v818
        %v1810 = vpop.f32.mrb[0].mxu0
        %v1811 = vadd.f32 0.0, %v1810
        %v1812 = vpop.f32.mrb[0].mxu0
        %1813 = vmatprep.mubr.f32.mxu0 0.0
        %1814 = vmatmul.mubr.f32.gmra.mrb[0].mxu0 %v820
        %v1815 = vpop.f32.mrb[0].mxu0
        %v1816 = vadd.f32 0.0, %v1815
        %v1817 = vpop.f32.mrb[0].mxu0
        %1818 = vmatprep.mubr.f32.mxu0 0.0
        %1819 = vmatmul.mubr.f32.gmra.mrb[0].mxu0 %v822
        %v1820 = vpop.f32.mrb[0].mxu0
        %v1821 = vadd.f32 0.0, %v1820
        %v1822 = vpop.f32.mrb[0].mxu0
        %1823 = vmatprep.mubr.f32.mxu0 0.0
        %1824 = vmatmul.mubr.f32.gmra.mrb[0].mxu0 %v1684
        %v1825 = vpop.f32.mrb[0].mxu0
        %v1826 = vadd.f32 0.0, %v1825
        %v1827 = vpop.f32.mrb[0].mxu0
        %1828 = vmatprep.mubr.f32.mxu0 0.0
        %1829 = vmatmul.mubr.f32.gmra.mrb[0].mxu0 %v1687
        %v1830 = vpop.f32.mrb[0].mxu0
        %v1831 = vadd.f32 0.0, %v1830
        %v1832 = vpop.f32.mrb[0].mxu0
        %1833 = vdwg.mxu0
        %v1834 = vadd.f32 %v1664, %v1756
        %v1835 = vadd.f32 %v1665, %v1761
        %v1836 = vadd.f32 %v1666, %v1766
        %v1837 = vadd.f32 %v1667, %v1771
        %v1838 = vadd.f32 %v1668, %v1776
        %v1839 = vadd.f32 %v1669, %v1781
        %v1840 = vadd.f32 %v1670, %v1786
        %v1841 = vadd.f32 %v1671, %v1791
        %v1842 = vadd.f32 %v1672, %v1796
        %v1843 = vadd.f32 %v1673, %v1801
        %v1844 = vadd.f32 %v1674, %v1806
        %v1845 = vadd.f32 %v1675, %v1811
        %v1846 = vadd.f32 %v1676, %v1816
        %v1847 = vadd.f32 %v1677, %v1821
        %v1848 = vadd.f32 %v1678, %v1826
        %v1849 = vadd.f32 %v1679, %v1831
        %v1851 = vrot.slane %v533, 1
        %v1852 = vrot.slane %v534, 1
        %v1853 = vsel %vm571, %v1851, %v1852
        %v1854 = vrot.slane %v535, 1
        %v1855 = vsel %vm571, %v1852, %v1854
        %s1856 = scalar_lea.vmem %s2, 96
        %v1857 = vld [vmem:[%s1856] sm:$0xff]
        %v1858 = vld [vmem:[%s1856 + $0x8] sm:$0xff]
        %v1859 = vsel %vm444, %v1853, 0
        %v1861 = vsel %vm444, %v1855, 0
        %1863 = vmatprep.subr.mxu0 0.0
        %1864 = vmatpush1.msra.mxu0 %v1857
        %1865 = vmatprep.subr.mxu0 0.0
        %1866 = vmatpush1.msra.mxu0 %v1858
        %1867 = vmatprep.subr.mxu0 0.0
        %1868 = vmatpush1.msra.mxu0 0.0
        %1869 = vmatprep.subr.mxu0 0.0
        %1870 = vmatpush1.msra.mxu0 0.0
        %1871 = vmatprep.subr.mxu0 0.0
        %1872 = vmatpush1.msra.mxu0 0.0
        %1873 = vmatprep.subr.mxu0 0.0
        %1874 = vmatpush1.msra.mxu0 0.0
        %1875 = vmatprep.subr.mxu0 0.0
        %1876 = vmatpush1.msra.mxu0 0.0
        %1877 = vmatprep.subr.mxu0 0.0
        %1878 = vmatpush1.msra.mxu0 0.0
        %1879 = vmatprep.subr.mxu0 0.0
        %1880 = vmatpush1.msra.mxu0 0.0
        %1881 = vmatprep.subr.mxu0 0.0
        %1882 = vmatpush1.msra.mxu0 0.0
        %1883 = vmatprep.subr.mxu0 0.0
        %1884 = vmatpush1.msra.mxu0 0.0
        %1885 = vmatprep.subr.mxu0 0.0
        %1886 = vmatpush1.msra.mxu0 0.0
        %1887 = vmatprep.subr.mxu0 0.0
        %1888 = vmatpush1.msra.mxu0 0.0
        %1889 = vmatprep.subr.mxu0 0.0
        %1890 = vmatpush1.msra.mxu0 0.0
        %1891 = vmatprep.subr.mxu0 0.0
        %1892 = vmatpush1.msra.mxu0 0.0
        %1893 = vmatprep.subr.mxu0 0.0
        %1894 = vmatpush1.msra.mxu0 0.0
        %1895 = vmatprep.subr.mxu0 0.0
        %1896 = vmatpush1.msra.mxu0 0.0
        %1897 = vmatprep.subr.mxu0 0.0
        %1898 = vmatpush1.msra.mxu0 0.0
        %1899 = vmatprep.subr.mxu0 0.0
        %1900 = vmatpush1.msra.mxu0 0.0
        %1901 = vmatprep.subr.mxu0 0.0
        %1902 = vmatpush1.msra.mxu0 0.0
        %1903 = vmatprep.subr.mxu0 0.0
        %1904 = vmatpush1.msra.mxu0 0.0
        %1905 = vmatprep.subr.mxu0 0.0
        %1906 = vmatpush1.msra.mxu0 0.0
        %1907 = vmatprep.subr.mxu0 0.0
        %1908 = vmatpush1.msra.mxu0 0.0
        %1909 = vmatprep.subr.mxu0 0.0
        %1910 = vmatpush1.msra.mxu0 0.0
        %1911 = vmatprep.subr.mxu0 0.0
        %1912 = vmatpush1.msra.mxu0 0.0
        %1913 = vmatprep.subr.mxu0 0.0
        %1914 = vmatpush1.msra.mxu0 0.0
        %1915 = vmatprep.subr.mxu0 0.0
        %1916 = vmatpush1.msra.mxu0 0.0
        %1917 = vmatprep.subr.mxu0 0.0
        %1918 = vmatpush1.msra.mxu0 0.0
        %1919 = vmatprep.subr.mxu0 0.0
        %1920 = vmatpush1.msra.mxu0 0.0
        %1921 = vmatprep.subr.mxu0 0.0
        %1922 = vmatpush1.msra.mxu0 0.0
        %1923 = vmatprep.subr.mxu0 0.0
        %1924 = vmatpush1.msra.mxu0 0.0
        %1925 = vmatprep.subr.mxu0 0.0
        %1926 = vmatpush1.msra.mxu0 0.0
        %1927 = vmatprep.mubr.f32.mxu0 0.0
        %1928 = vmatmul.mubr.f32.gmra.mrb[0].mxu0 %v619
        %v1929 = vpop.f32.mrb[0].mxu0
        %v1930 = vadd.f32 0.0, %v1929
        %v1931 = vpop.f32.mrb[0].mxu0
        %1932 = vmatprep.mubr.f32.mxu0 0.0
        %1933 = vmatmul.mubr.f32.gmra.mrb[0].mxu0 %v621
        %v1934 = vpop.f32.mrb[0].mxu0
        %v1935 = vadd.f32 0.0, %v1934
        %v1936 = vpop.f32.mrb[0].mxu0
        %1937 = vmatprep.mubr.f32.mxu0 0.0
        %1938 = vmatmul.mubr.f32.gmra.mrb[0].mxu0 %v623
        %v1939 = vpop.f32.mrb[0].mxu0
        %v1940 = vadd.f32 0.0, %v1939
        %v1941 = vpop.f32.mrb[0].mxu0
        %1942 = vmatprep.mubr.f32.mxu0 0.0
        %1943 = vmatmul.mubr.f32.gmra.mrb[0].mxu0 %v625
        %v1944 = vpop.f32.mrb[0].mxu0
        %v1945 = vadd.f32 0.0, %v1944
        %v1946 = vpop.f32.mrb[0].mxu0
        %1947 = vmatprep.mubr.f32.mxu0 0.0
        %1948 = vmatmul.mubr.f32.gmra.mrb[0].mxu0 %v627
        %v1949 = vpop.f32.mrb[0].mxu0
        %v1950 = vadd.f32 0.0, %v1949
        %v1951 = vpop.f32.mrb[0].mxu0
        %1952 = vmatprep.mubr.f32.mxu0 0.0
        %1953 = vmatmul.mubr.f32.gmra.mrb[0].mxu0 %v629
        %v1954 = vpop.f32.mrb[0].mxu0
        %v1955 = vadd.f32 0.0, %v1954
        %v1956 = vpop.f32.mrb[0].mxu0
        %1957 = vmatprep.mubr.f32.mxu0 0.0
        %1958 = vmatmul.mubr.f32.gmra.mrb[0].mxu0 %v631
        %v1959 = vpop.f32.mrb[0].mxu0
        %v1960 = vadd.f32 0.0, %v1959
        %v1961 = vpop.f32.mrb[0].mxu0
        %1962 = vmatprep.mubr.f32.mxu0 0.0
        %1963 = vmatmul.mubr.f32.gmra.mrb[0].mxu0 %v633
        %v1964 = vpop.f32.mrb[0].mxu0
        %v1965 = vadd.f32 0.0, %v1964
        %v1966 = vpop.f32.mrb[0].mxu0
        %1967 = vmatprep.mubr.f32.mxu0 0.0
        %1968 = vmatmul.mubr.f32.gmra.mrb[0].mxu0 %v635
        %v1969 = vpop.f32.mrb[0].mxu0
        %v1970 = vadd.f32 0.0, %v1969
        %v1971 = vpop.f32.mrb[0].mxu0
        %1972 = vmatprep.mubr.f32.mxu0 0.0
        %1973 = vmatmul.mubr.f32.gmra.mrb[0].mxu0 %v637
        %v1974 = vpop.f32.mrb[0].mxu0
        %v1975 = vadd.f32 0.0, %v1974
        %v1976 = vpop.f32.mrb[0].mxu0
        %1977 = vmatprep.mubr.f32.mxu0 0.0
        %1978 = vmatmul.mubr.f32.gmra.mrb[0].mxu0 %v639
        %v1979 = vpop.f32.mrb[0].mxu0
        %v1980 = vadd.f32 0.0, %v1979
        %v1981 = vpop.f32.mrb[0].mxu0
        %1982 = vmatprep.mubr.f32.mxu0 0.0
        %1983 = vmatmul.mubr.f32.gmra.mrb[0].mxu0 %v641
        %v1984 = vpop.f32.mrb[0].mxu0
        %v1985 = vadd.f32 0.0, %v1984
        %v1986 = vpop.f32.mrb[0].mxu0
        %1987 = vmatprep.mubr.f32.mxu0 0.0
        %1988 = vmatmul.mubr.f32.gmra.mrb[0].mxu0 %v643
        %v1989 = vpop.f32.mrb[0].mxu0
        %v1990 = vadd.f32 0.0, %v1989
        %v1991 = vpop.f32.mrb[0].mxu0
        %1992 = vmatprep.mubr.f32.mxu0 0.0
        %1993 = vmatmul.mubr.f32.gmra.mrb[0].mxu0 %v645
        %v1994 = vpop.f32.mrb[0].mxu0
        %v1995 = vadd.f32 0.0, %v1994
        %v1996 = vpop.f32.mrb[0].mxu0
        %1997 = vmatprep.mubr.f32.mxu0 0.0
        %1998 = vmatmul.mubr.f32.gmra.mrb[0].mxu0 %v1859
        %v1999 = vpop.f32.mrb[0].mxu0
        %v2000 = vadd.f32 0.0, %v1999
        %v2001 = vpop.f32.mrb[0].mxu0
        %2002 = vmatprep.mubr.f32.mxu0 0.0
        %2003 = vmatmul.mubr.f32.gmra.mrb[0].mxu0 %v1861
        %v2004 = vpop.f32.mrb[0].mxu0
        %v2005 = vadd.f32 0.0, %v2004
        %v2006 = vpop.f32.mrb[0].mxu0
        %2007 = vdwg.mxu0
        %v2008 = vadd.f32 %v1834, %v1930
        %v2009 = vadd.f32 %v1835, %v1935
        %v2010 = vadd.f32 %v1836, %v1940
        %v2011 = vadd.f32 %v1837, %v1945
        %v2012 = vadd.f32 %v1838, %v1950
        %v2013 = vadd.f32 %v1839, %v1955
        %v2014 = vadd.f32 %v1840, %v1960
        %v2015 = vadd.f32 %v1841, %v1965
        %v2016 = vadd.f32 %v1842, %v1970
        %v2017 = vadd.f32 %v1843, %v1975
        %v2018 = vadd.f32 %v1844, %v1980
        %v2019 = vadd.f32 %v1845, %v1985
        %v2020 = vadd.f32 %v1846, %v1990
        %v2021 = vadd.f32 %v1847, %v1995
        %v2022 = vadd.f32 %v1848, %v2000
        %v2023 = vadd.f32 %v1849, %v2005
        %v2024 = vrot.slane %v533, 2
        %v2025 = vrot.slane %v534, 2
        %v2026 = vsel %vm969, %v2024, %v2025
        %v2027 = vrot.slane %v535, 2
        %v2028 = vsel %vm969, %v2025, %v2027
        %s2029 = scalar_lea.vmem %s2, 112
        %v2030 = vld [vmem:[%s2029] sm:$0xff]
        %v2031 = vld [vmem:[%s2029 + $0x8] sm:$0xff]
        %v2032 = vsel %vm444, %v2026, 0
        %v2034 = vsel %vm444, %v2028, 0
        %2036 = vmatprep.subr.mxu0 0.0
        %2037 = vmatpush1.msra.mxu0 %v2030
        %2038 = vmatprep.subr.mxu0 0.0
        %2039 = vmatpush1.msra.mxu0 %v2031
        %2040 = vmatprep.subr.mxu0 0.0
        %2041 = vmatpush1.msra.mxu0 0.0
        %2042 = vmatprep.subr.mxu0 0.0
        %2043 = vmatpush1.msra.mxu0 0.0
        %2044 = vmatprep.subr.mxu0 0.0
        %2045 = vmatpush1.msra.mxu0 0.0
        %2046 = vmatprep.subr.mxu0 0.0
        %2047 = vmatpush1.msra.mxu0 0.0
        %2048 = vmatprep.subr.mxu0 0.0
        %2049 = vmatpush1.msra.mxu0 0.0
        %2050 = vmatprep.subr.mxu0 0.0
        %2051 = vmatpush1.msra.mxu0 0.0
        %2052 = vmatprep.subr.mxu0 0.0
        %2053 = vmatpush1.msra.mxu0 0.0
        %2054 = vmatprep.subr.mxu0 0.0
        %2055 = vmatpush1.msra.mxu0 0.0
        %2056 = vmatprep.subr.mxu0 0.0
        %2057 = vmatpush1.msra.mxu0 0.0
        %2058 = vmatprep.subr.mxu0 0.0
        %2059 = vmatpush1.msra.mxu0 0.0
        %2060 = vmatprep.subr.mxu0 0.0
        %2061 = vmatpush1.msra.mxu0 0.0
        %2062 = vmatprep.subr.mxu0 0.0
        %2063 = vmatpush1.msra.mxu0 0.0
        %2064 = vmatprep.subr.mxu0 0.0
        %2065 = vmatpush1.msra.mxu0 0.0
        %2066 = vmatprep.subr.mxu0 0.0
        %2067 = vmatpush1.msra.mxu0 0.0
        %2068 = vmatprep.subr.mxu0 0.0
        %2069 = vmatpush1.msra.mxu0 0.0
        %2070 = vmatprep.subr.mxu0 0.0
        %2071 = vmatpush1.msra.mxu0 0.0
        %2072 = vmatprep.subr.mxu0 0.0
        %2073 = vmatpush1.msra.mxu0 0.0
        %2074 = vmatprep.subr.mxu0 0.0
        %2075 = vmatpush1.msra.mxu0 0.0
        %2076 = vmatprep.subr.mxu0 0.0
        %2077 = vmatpush1.msra.mxu0 0.0
        %2078 = vmatprep.subr.mxu0 0.0
        %2079 = vmatpush1.msra.mxu0 0.0
        %2080 = vmatprep.subr.mxu0 0.0
        %2081 = vmatpush1.msra.mxu0 0.0
        %2082 = vmatprep.subr.mxu0 0.0
        %2083 = vmatpush1.msra.mxu0 0.0
        %2084 = vmatprep.subr.mxu0 0.0
        %2085 = vmatpush1.msra.mxu0 0.0
        %2086 = vmatprep.subr.mxu0 0.0
        %2087 = vmatpush1.msra.mxu0 0.0
        %2088 = vmatprep.subr.mxu0 0.0
        %2089 = vmatpush1.msra.mxu0 0.0
        %2090 = vmatprep.subr.mxu0 0.0
        %2091 = vmatpush1.msra.mxu0 0.0
        %2092 = vmatprep.subr.mxu0 0.0
        %2093 = vmatpush1.msra.mxu0 0.0
        %2094 = vmatprep.subr.mxu0 0.0
        %2095 = vmatpush1.msra.mxu0 0.0
        %2096 = vmatprep.subr.mxu0 0.0
        %2097 = vmatpush1.msra.mxu0 0.0
        %2098 = vmatprep.subr.mxu0 0.0
        %2099 = vmatpush1.msra.mxu0 0.0
        %2100 = vmatprep.mubr.f32.mxu0 0.0
        %2101 = vmatmul.mubr.f32.gmra.mrb[0].mxu0 %v1017
        %v2102 = vpop.f32.mrb[0].mxu0
        %v2103 = vadd.f32 0.0, %v2102
        %v2104 = vpop.f32.mrb[0].mxu0
        %2105 = vmatprep.mubr.f32.mxu0 0.0
        %2106 = vmatmul.mubr.f32.gmra.mrb[0].mxu0 %v1019
        %v2107 = vpop.f32.mrb[0].mxu0
        %v2108 = vadd.f32 0.0, %v2107
        %v2109 = vpop.f32.mrb[0].mxu0
        %2110 = vmatprep.mubr.f32.mxu0 0.0
        %2111 = vmatmul.mubr.f32.gmra.mrb[0].mxu0 %v1021
        %v2112 = vpop.f32.mrb[0].mxu0
        %v2113 = vadd.f32 0.0, %v2112
        %v2114 = vpop.f32.mrb[0].mxu0
        %2115 = vmatprep.mubr.f32.mxu0 0.0
        %2116 = vmatmul.mubr.f32.gmra.mrb[0].mxu0 %v1023
        %v2117 = vpop.f32.mrb[0].mxu0
        %v2118 = vadd.f32 0.0, %v2117
        %v2119 = vpop.f32.mrb[0].mxu0
        %2120 = vmatprep.mubr.f32.mxu0 0.0
        %2121 = vmatmul.mubr.f32.gmra.mrb[0].mxu0 %v1025
        %v2122 = vpop.f32.mrb[0].mxu0
        %v2123 = vadd.f32 0.0, %v2122
        %v2124 = vpop.f32.mrb[0].mxu0
        %2125 = vmatprep.mubr.f32.mxu0 0.0
        %2126 = vmatmul.mubr.f32.gmra.mrb[0].mxu0 %v1027
        %v2127 = vpop.f32.mrb[0].mxu0
        %v2128 = vadd.f32 0.0, %v2127
        %v2129 = vpop.f32.mrb[0].mxu0
        %2130 = vmatprep.mubr.f32.mxu0 0.0
        %2131 = vmatmul.mubr.f32.gmra.mrb[0].mxu0 %v1029
        %v2132 = vpop.f32.mrb[0].mxu0
        %v2133 = vadd.f32 0.0, %v2132
        %v2134 = vpop.f32.mrb[0].mxu0
        %2135 = vmatprep.mubr.f32.mxu0 0.0
        %2136 = vmatmul.mubr.f32.gmra.mrb[0].mxu0 %v1031
        %v2137 = vpop.f32.mrb[0].mxu0
        %v2138 = vadd.f32 0.0, %v2137
        %v2139 = vpop.f32.mrb[0].mxu0
        %2140 = vmatprep.mubr.f32.mxu0 0.0
        %2141 = vmatmul.mubr.f32.gmra.mrb[0].mxu0 %v1033
        %v2142 = vpop.f32.mrb[0].mxu0
        %v2143 = vadd.f32 0.0, %v2142
        %v2144 = vpop.f32.mrb[0].mxu0
        %2145 = vmatprep.mubr.f32.mxu0 0.0
        %2146 = vmatmul.mubr.f32.gmra.mrb[0].mxu0 %v1035
        %v2147 = vpop.f32.mrb[0].mxu0
        %v2148 = vadd.f32 0.0, %v2147
        %v2149 = vpop.f32.mrb[0].mxu0
        %2150 = vmatprep.mubr.f32.mxu0 0.0
        %2151 = vmatmul.mubr.f32.gmra.mrb[0].mxu0 %v1037
        %v2152 = vpop.f32.mrb[0].mxu0
        %v2153 = vadd.f32 0.0, %v2152
        %v2154 = vpop.f32.mrb[0].mxu0
        %2155 = vmatprep.mubr.f32.mxu0 0.0
        %2156 = vmatmul.mubr.f32.gmra.mrb[0].mxu0 %v1039
        %v2157 = vpop.f32.mrb[0].mxu0
        %v2158 = vadd.f32 0.0, %v2157
        %v2159 = vpop.f32.mrb[0].mxu0
        %2160 = vmatprep.mubr.f32.mxu0 0.0
        %2161 = vmatmul.mubr.f32.gmra.mrb[0].mxu0 %v1041
        %v2162 = vpop.f32.mrb[0].mxu0
        %v2163 = vadd.f32 0.0, %v2162
        %v2164 = vpop.f32.mrb[0].mxu0
        %2165 = vmatprep.mubr.f32.mxu0 0.0
        %2166 = vmatmul.mubr.f32.gmra.mrb[0].mxu0 %v1043
        %v2167 = vpop.f32.mrb[0].mxu0
        %v2168 = vadd.f32 0.0, %v2167
        %v2169 = vpop.f32.mrb[0].mxu0
        %2170 = vmatprep.mubr.f32.mxu0 0.0
        %2171 = vmatmul.mubr.f32.gmra.mrb[0].mxu0 %v2032
        %v2172 = vpop.f32.mrb[0].mxu0
        %v2173 = vadd.f32 0.0, %v2172
        %v2174 = vpop.f32.mrb[0].mxu0
        %2175 = vmatprep.mubr.f32.mxu0 0.0
        %2176 = vmatmul.mubr.f32.gmra.mrb[0].mxu0 %v2034
        %v2177 = vpop.f32.mrb[0].mxu0
        %v2178 = vadd.f32 0.0, %v2177
        %v2179 = vpop.f32.mrb[0].mxu0
        %2180 = vdwg.mxu0
        %v2181 = vadd.f32 %v2008, %v2103
        %v2182 = vadd.f32 %v2009, %v2108
        %v2183 = vadd.f32 %v2010, %v2113
        %v2184 = vadd.f32 %v2011, %v2118
        %v2185 = vadd.f32 %v2012, %v2123
        %v2186 = vadd.f32 %v2013, %v2128
        %v2187 = vadd.f32 %v2014, %v2133
        %v2188 = vadd.f32 %v2015, %v2138
        %v2189 = vadd.f32 %v2016, %v2143
        %v2190 = vadd.f32 %v2017, %v2148
        %v2191 = vadd.f32 %v2018, %v2153
        %v2192 = vadd.f32 %v2019, %v2158
        %v2193 = vadd.f32 %v2020, %v2163
        %v2194 = vadd.f32 %v2021, %v2168
        %v2195 = vadd.f32 %v2022, %v2173
        %v2196 = vadd.f32 %v2023, %v2178
        %v2197 = vrot.slane %v533, 3
        %v2198 = vrot.slane %v534, 3
        %v2199 = vsel %vm1206, %v2197, %v2198
        %v2200 = vrot.slane %v535, 3
        %v2201 = vsel %vm1206, %v2198, %v2200
        %s2202 = scalar_lea.vmem %s2, 128
        %v2203 = vld [vmem:[%s2202] sm:$0xff]
        %v2204 = vld [vmem:[%s2202 + $0x8] sm:$0xff]
        %v2205 = vsel %vm444, %v2199, 0
        %v2207 = vsel %vm444, %v2201, 0
        %2209 = vmatprep.subr.mxu0 0.0
        %2210 = vmatpush1.msra.mxu0 %v2203
        %2211 = vmatprep.subr.mxu0 0.0
        %2212 = vmatpush1.msra.mxu0 %v2204
        %2213 = vmatprep.subr.mxu0 0.0
        %2214 = vmatpush1.msra.mxu0 0.0
        %2215 = vmatprep.subr.mxu0 0.0
        %2216 = vmatpush1.msra.mxu0 0.0
        %2217 = vmatprep.subr.mxu0 0.0
        %2218 = vmatpush1.msra.mxu0 0.0
        %2219 = vmatprep.subr.mxu0 0.0
        %2220 = vmatpush1.msra.mxu0 0.0
        %2221 = vmatprep.subr.mxu0 0.0
        %2222 = vmatpush1.msra.mxu0 0.0
        %2223 = vmatprep.subr.mxu0 0.0
        %2224 = vmatpush1.msra.mxu0 0.0
        %2225 = vmatprep.subr.mxu0 0.0
        %2226 = vmatpush1.msra.mxu0 0.0
        %2227 = vmatprep.subr.mxu0 0.0
        %2228 = vmatpush1.msra.mxu0 0.0
        %2229 = vmatprep.subr.mxu0 0.0
        %2230 = vmatpush1.msra.mxu0 0.0
        %2231 = vmatprep.subr.mxu0 0.0
        %2232 = vmatpush1.msra.mxu0 0.0
        %2233 = vmatprep.subr.mxu0 0.0
        %2234 = vmatpush1.msra.mxu0 0.0
        %2235 = vmatprep.subr.mxu0 0.0
        %2236 = vmatpush1.msra.mxu0 0.0
        %2237 = vmatprep.subr.mxu0 0.0
        %2238 = vmatpush1.msra.mxu0 0.0
        %2239 = vmatprep.subr.mxu0 0.0
        %2240 = vmatpush1.msra.mxu0 0.0
        %2241 = vmatprep.subr.mxu0 0.0
        %2242 = vmatpush1.msra.mxu0 0.0
        %2243 = vmatprep.subr.mxu0 0.0
        %2244 = vmatpush1.msra.mxu0 0.0
        %2245 = vmatprep.subr.mxu0 0.0
        %2246 = vmatpush1.msra.mxu0 0.0
        %2247 = vmatprep.subr.mxu0 0.0
        %2248 = vmatpush1.msra.mxu0 0.0
        %2249 = vmatprep.subr.mxu0 0.0
        %2250 = vmatpush1.msra.mxu0 0.0
        %2251 = vmatprep.subr.mxu0 0.0
        %2252 = vmatpush1.msra.mxu0 0.0
        %2253 = vmatprep.subr.mxu0 0.0
        %2254 = vmatpush1.msra.mxu0 0.0
        %2255 = vmatprep.subr.mxu0 0.0
        %2256 = vmatpush1.msra.mxu0 0.0
        %2257 = vmatprep.subr.mxu0 0.0
        %2258 = vmatpush1.msra.mxu0 0.0
        %2259 = vmatprep.subr.mxu0 0.0
        %2260 = vmatpush1.msra.mxu0 0.0
        %2261 = vmatprep.subr.mxu0 0.0
        %2262 = vmatpush1.msra.mxu0 0.0
        %2263 = vmatprep.subr.mxu0 0.0
        %2264 = vmatpush1.msra.mxu0 0.0
        %2265 = vmatprep.subr.mxu0 0.0
        %2266 = vmatpush1.msra.mxu0 0.0
        %2267 = vmatprep.subr.mxu0 0.0
        %2268 = vmatpush1.msra.mxu0 0.0
        %2269 = vmatprep.subr.mxu0 0.0
        %2270 = vmatpush1.msra.mxu0 0.0
        %2271 = vmatprep.subr.mxu0 0.0
        %2272 = vmatpush1.msra.mxu0 0.0
        %2273 = vmatprep.mubr.f32.mxu0 0.0
        %2274 = vmatmul.mubr.f32.gmra.mrb[0].mxu0 %v1254
        %v2275 = vpop.f32.mrb[0].mxu0
        %v2276 = vadd.f32 0.0, %v2275
        %v2277 = vpop.f32.mrb[0].mxu0
        %2278 = vmatprep.mubr.f32.mxu0 0.0
        %2279 = vmatmul.mubr.f32.gmra.mrb[0].mxu0 %v1256
        %v2280 = vpop.f32.mrb[0].mxu0
        %v2281 = vadd.f32 0.0, %v2280
        %v2282 = vpop.f32.mrb[0].mxu0
        %2283 = vmatprep.mubr.f32.mxu0 0.0
        %2284 = vmatmul.mubr.f32.gmra.mrb[0].mxu0 %v1258
        %v2285 = vpop.f32.mrb[0].mxu0
        %v2286 = vadd.f32 0.0, %v2285
        %v2287 = vpop.f32.mrb[0].mxu0
        %2288 = vmatprep.mubr.f32.mxu0 0.0
        %2289 = vmatmul.mubr.f32.gmra.mrb[0].mxu0 %v1260
        %v2290 = vpop.f32.mrb[0].mxu0
        %v2291 = vadd.f32 0.0, %v2290
        %v2292 = vpop.f32.mrb[0].mxu0
        %2293 = vmatprep.mubr.f32.mxu0 0.0
        %2294 = vmatmul.mubr.f32.gmra.mrb[0].mxu0 %v1262
        %v2295 = vpop.f32.mrb[0].mxu0
        %v2296 = vadd.f32 0.0, %v2295
        %v2297 = vpop.f32.mrb[0].mxu0
        %2298 = vmatprep.mubr.f32.mxu0 0.0
        %2299 = vmatmul.mubr.f32.gmra.mrb[0].mxu0 %v1264
        %v2300 = vpop.f32.mrb[0].mxu0
        %v2301 = vadd.f32 0.0, %v2300
        %v2302 = vpop.f32.mrb[0].mxu0
        %2303 = vmatprep.mubr.f32.mxu0 0.0
        %2304 = vmatmul.mubr.f32.gmra.mrb[0].mxu0 %v1266
        %v2305 = vpop.f32.mrb[0].mxu0
        %v2306 = vadd.f32 0.0, %v2305
        %v2307 = vpop.f32.mrb[0].mxu0
        %2308 = vmatprep.mubr.f32.mxu0 0.0
        %2309 = vmatmul.mubr.f32.gmra.mrb[0].mxu0 %v1268
        %v2310 = vpop.f32.mrb[0].mxu0
        %v2311 = vadd.f32 0.0, %v2310
        %v2312 = vpop.f32.mrb[0].mxu0
        %2313 = vmatprep.mubr.f32.mxu0 0.0
        %2314 = vmatmul.mubr.f32.gmra.mrb[0].mxu0 %v1270
        %v2315 = vpop.f32.mrb[0].mxu0
        %v2316 = vadd.f32 0.0, %v2315
        %v2317 = vpop.f32.mrb[0].mxu0
        %2318 = vmatprep.mubr.f32.mxu0 0.0
        %2319 = vmatmul.mubr.f32.gmra.mrb[0].mxu0 %v1272
        %v2320 = vpop.f32.mrb[0].mxu0
        %v2321 = vadd.f32 0.0, %v2320
        %v2322 = vpop.f32.mrb[0].mxu0
        %2323 = vmatprep.mubr.f32.mxu0 0.0
        %2324 = vmatmul.mubr.f32.gmra.mrb[0].mxu0 %v1274
        %v2325 = vpop.f32.mrb[0].mxu0
        %v2326 = vadd.f32 0.0, %v2325
        %v2327 = vpop.f32.mrb[0].mxu0
        %2328 = vmatprep.mubr.f32.mxu0 0.0
        %2329 = vmatmul.mubr.f32.gmra.mrb[0].mxu0 %v1276
        %v2330 = vpop.f32.mrb[0].mxu0
        %v2331 = vadd.f32 0.0, %v2330
        %v2332 = vpop.f32.mrb[0].mxu0
        %2333 = vmatprep.mubr.f32.mxu0 0.0
        %2334 = vmatmul.mubr.f32.gmra.mrb[0].mxu0 %v1278
        %v2335 = vpop.f32.mrb[0].mxu0
        %v2336 = vadd.f32 0.0, %v2335
        %v2337 = vpop.f32.mrb[0].mxu0
        %2338 = vmatprep.mubr.f32.mxu0 0.0
        %2339 = vmatmul.mubr.f32.gmra.mrb[0].mxu0 %v1280
        %v2340 = vpop.f32.mrb[0].mxu0
        %v2341 = vadd.f32 0.0, %v2340
        %v2342 = vpop.f32.mrb[0].mxu0
        %2343 = vmatprep.mubr.f32.mxu0 0.0
        %2344 = vmatmul.mubr.f32.gmra.mrb[0].mxu0 %v2205
        %v2345 = vpop.f32.mrb[0].mxu0
        %v2346 = vadd.f32 0.0, %v2345
        %v2347 = vpop.f32.mrb[0].mxu0
        %2348 = vmatprep.mubr.f32.mxu0 0.0
        %2349 = vmatmul.mubr.f32.gmra.mrb[0].mxu0 %v2207
        %v2350 = vpop.f32.mrb[0].mxu0
        %v2351 = vadd.f32 0.0, %v2350
        %v2352 = vpop.f32.mrb[0].mxu0
        %2353 = vdwg.mxu0
        %v2354 = vadd.f32 %v2181, %v2276
        %v2355 = vadd.f32 %v2182, %v2281
        %v2356 = vadd.f32 %v2183, %v2286
        %v2357 = vadd.f32 %v2184, %v2291
        %v2358 = vadd.f32 %v2185, %v2296
        %v2359 = vadd.f32 %v2186, %v2301
        %v2360 = vadd.f32 %v2187, %v2306
        %v2361 = vadd.f32 %v2188, %v2311
        %v2362 = vadd.f32 %v2189, %v2316
        %v2363 = vadd.f32 %v2190, %v2321
        %v2364 = vadd.f32 %v2191, %v2326
        %v2365 = vadd.f32 %v2192, %v2331
        %v2366 = vadd.f32 %v2193, %v2336
        %v2367 = vadd.f32 %v2194, %v2341
        %v2368 = vadd.f32 %v2195, %v2346
        %v2369 = vadd.f32 %v2196, %v2351
        %v2370 = vrot.slane %v533, 4
        %v2371 = vrot.slane %v534, 4
        %v2372 = vsel %vm1443, %v2370, %v2371
        %v2373 = vrot.slane %v535, 4
        %v2374 = vsel %vm1443, %v2371, %v2373
        %s2375 = scalar_lea.vmem %s2, 144
        %v2376 = vld [vmem:[%s2375] sm:$0xff]
        %v2377 = vld [vmem:[%s2375 + $0x8] sm:$0xff]
        %v2378 = vsel %vm444, %v2372, 0
        %v2380 = vsel %vm444, %v2374, 0
        %2382 = vmatprep.subr.mxu0 0.0
        %2383 = vmatpush1.msra.mxu0 %v2376
        %2384 = vmatprep.subr.mxu0 0.0
        %2385 = vmatpush1.msra.mxu0 %v2377
        %2386 = vmatprep.subr.mxu0 0.0
        %2387 = vmatpush1.msra.mxu0 0.0
        %2388 = vmatprep.subr.mxu0 0.0
        %2389 = vmatpush1.msra.mxu0 0.0
        %2390 = vmatprep.subr.mxu0 0.0
        %2391 = vmatpush1.msra.mxu0 0.0
        %2392 = vmatprep.subr.mxu0 0.0
        %2393 = vmatpush1.msra.mxu0 0.0
        %2394 = vmatprep.subr.mxu0 0.0
        %2395 = vmatpush1.msra.mxu0 0.0
        %2396 = vmatprep.subr.mxu0 0.0
        %2397 = vmatpush1.msra.mxu0 0.0
        %2398 = vmatprep.subr.mxu0 0.0
        %2399 = vmatpush1.msra.mxu0 0.0
        %2400 = vmatprep.subr.mxu0 0.0
        %2401 = vmatpush1.msra.mxu0 0.0
        %2402 = vmatprep.subr.mxu0 0.0
        %2403 = vmatpush1.msra.mxu0 0.0
        %2404 = vmatprep.subr.mxu0 0.0
        %2405 = vmatpush1.msra.mxu0 0.0
        %2406 = vmatprep.subr.mxu0 0.0
        %2407 = vmatpush1.msra.mxu0 0.0
        %2408 = vmatprep.subr.mxu0 0.0
        %2409 = vmatpush1.msra.mxu0 0.0
        %2410 = vmatprep.subr.mxu0 0.0
        %2411 = vmatpush1.msra.mxu0 0.0
        %2412 = vmatprep.subr.mxu0 0.0
        %2413 = vmatpush1.msra.mxu0 0.0
        %2414 = vmatprep.subr.mxu0 0.0
        %2415 = vmatpush1.msra.mxu0 0.0
        %2416 = vmatprep.subr.mxu0 0.0
        %2417 = vmatpush1.msra.mxu0 0.0
        %2418 = vmatprep.subr.mxu0 0.0
        %2419 = vmatpush1.msra.mxu0 0.0
        %2420 = vmatprep.subr.mxu0 0.0
        %2421 = vmatpush1.msra.mxu0 0.0
        %2422 = vmatprep.subr.mxu0 0.0
        %2423 = vmatpush1.msra.mxu0 0.0
        %2424 = vmatprep.subr.mxu0 0.0
        %2425 = vmatpush1.msra.mxu0 0.0
        %2426 = vmatprep.subr.mxu0 0.0
        %2427 = vmatpush1.msra.mxu0 0.0
        %2428 = vmatprep.subr.mxu0 0.0
        %2429 = vmatpush1.msra.mxu0 0.0
        %2430 = vmatprep.subr.mxu0 0.0
        %2431 = vmatpush1.msra.mxu0 0.0
        %2432 = vmatprep.subr.mxu0 0.0
        %2433 = vmatpush1.msra.mxu0 0.0
        %2434 = vmatprep.subr.mxu0 0.0
        %2435 = vmatpush1.msra.mxu0 0.0
        %2436 = vmatprep.subr.mxu0 0.0
        %2437 = vmatpush1.msra.mxu0 0.0
        %2438 = vmatprep.subr.mxu0 0.0
        %2439 = vmatpush1.msra.mxu0 0.0
        %2440 = vmatprep.subr.mxu0 0.0
        %2441 = vmatpush1.msra.mxu0 0.0
        %2442 = vmatprep.subr.mxu0 0.0
        %2443 = vmatpush1.msra.mxu0 0.0
        %2444 = vmatprep.subr.mxu0 0.0
        %2445 = vmatpush1.msra.mxu0 0.0
        %2446 = vmatprep.mubr.f32.mxu0 0.0
        %2447 = vmatmul.mubr.f32.gmra.mrb[0].mxu0 %v1491
        %v2448 = vpop.f32.mrb[0].mxu0
        %v2449 = vadd.f32 0.0, %v2448
        %v2450 = vpop.f32.mrb[0].mxu0
        %2451 = vmatprep.mubr.f32.mxu0 0.0
        %2452 = vmatmul.mubr.f32.gmra.mrb[0].mxu0 %v1493
        %v2453 = vpop.f32.mrb[0].mxu0
        %v2454 = vadd.f32 0.0, %v2453
        %v2455 = vpop.f32.mrb[0].mxu0
        %2456 = vmatprep.mubr.f32.mxu0 0.0
        %2457 = vmatmul.mubr.f32.gmra.mrb[0].mxu0 %v1495
        %v2458 = vpop.f32.mrb[0].mxu0
        %v2459 = vadd.f32 0.0, %v2458
        %v2460 = vpop.f32.mrb[0].mxu0
        %2461 = vmatprep.mubr.f32.mxu0 0.0
        %2462 = vmatmul.mubr.f32.gmra.mrb[0].mxu0 %v1497
        %v2463 = vpop.f32.mrb[0].mxu0
        %v2464 = vadd.f32 0.0, %v2463
        %v2465 = vpop.f32.mrb[0].mxu0
        %2466 = vmatprep.mubr.f32.mxu0 0.0
        %2467 = vmatmul.mubr.f32.gmra.mrb[0].mxu0 %v1499
        %v2468 = vpop.f32.mrb[0].mxu0
        %v2469 = vadd.f32 0.0, %v2468
        %v2470 = vpop.f32.mrb[0].mxu0
        %2471 = vmatprep.mubr.f32.mxu0 0.0
        %2472 = vmatmul.mubr.f32.gmra.mrb[0].mxu0 %v1501
        %v2473 = vpop.f32.mrb[0].mxu0
        %v2474 = vadd.f32 0.0, %v2473
        %v2475 = vpop.f32.mrb[0].mxu0
        %2476 = vmatprep.mubr.f32.mxu0 0.0
        %2477 = vmatmul.mubr.f32.gmra.mrb[0].mxu0 %v1503
        %v2478 = vpop.f32.mrb[0].mxu0
        %v2479 = vadd.f32 0.0, %v2478
        %v2480 = vpop.f32.mrb[0].mxu0
        %2481 = vmatprep.mubr.f32.mxu0 0.0
        %2482 = vmatmul.mubr.f32.gmra.mrb[0].mxu0 %v1505
        %v2483 = vpop.f32.mrb[0].mxu0
        %v2484 = vadd.f32 0.0, %v2483
        %v2485 = vpop.f32.mrb[0].mxu0
        %2486 = vmatprep.mubr.f32.mxu0 0.0
        %2487 = vmatmul.mubr.f32.gmra.mrb[0].mxu0 %v1507
        %v2488 = vpop.f32.mrb[0].mxu0
        %v2489 = vadd.f32 0.0, %v2488
        %v2490 = vpop.f32.mrb[0].mxu0
        %2491 = vmatprep.mubr.f32.mxu0 0.0
        %2492 = vmatmul.mubr.f32.gmra.mrb[0].mxu0 %v1509
        %v2493 = vpop.f32.mrb[0].mxu0
        %v2494 = vadd.f32 0.0, %v2493
        %v2495 = vpop.f32.mrb[0].mxu0
        %2496 = vmatprep.mubr.f32.mxu0 0.0
        %2497 = vmatmul.mubr.f32.gmra.mrb[0].mxu0 %v1511
        %v2498 = vpop.f32.mrb[0].mxu0
        %v2499 = vadd.f32 0.0, %v2498
        %v2500 = vpop.f32.mrb[0].mxu0
        %2501 = vmatprep.mubr.f32.mxu0 0.0
        %2502 = vmatmul.mubr.f32.gmra.mrb[0].mxu0 %v1513
        %v2503 = vpop.f32.mrb[0].mxu0
        %v2504 = vadd.f32 0.0, %v2503
        %v2505 = vpop.f32.mrb[0].mxu0
        %2506 = vmatprep.mubr.f32.mxu0 0.0
        %2507 = vmatmul.mubr.f32.gmra.mrb[0].mxu0 %v1515
        %v2508 = vpop.f32.mrb[0].mxu0
        %v2509 = vadd.f32 0.0, %v2508
        %v2510 = vpop.f32.mrb[0].mxu0
        %2511 = vmatprep.mubr.f32.mxu0 0.0
        %2512 = vmatmul.mubr.f32.gmra.mrb[0].mxu0 %v1517
        %v2513 = vpop.f32.mrb[0].mxu0
        %v2514 = vadd.f32 0.0, %v2513
        %v2515 = vpop.f32.mrb[0].mxu0
        %2516 = vmatprep.mubr.f32.mxu0 0.0
        %2517 = vmatmul.mubr.f32.gmra.mrb[0].mxu0 %v2378
        %v2518 = vpop.f32.mrb[0].mxu0
        %v2519 = vadd.f32 0.0, %v2518
        %v2520 = vpop.f32.mrb[0].mxu0
        %2521 = vmatprep.mubr.f32.mxu0 0.0
        %2522 = vmatmul.mubr.f32.gmra.mrb[0].mxu0 %v2380
        %v2523 = vpop.f32.mrb[0].mxu0
        %v2524 = vadd.f32 0.0, %v2523
        %v2525 = vpop.f32.mrb[0].mxu0
        %2526 = vdwg.mxu0
        %v2527 = vadd.f32 %v2354, %v2449
        %v2528 = vadd.f32 %v2355, %v2454
        %v2529 = vadd.f32 %v2356, %v2459
        %v2530 = vadd.f32 %v2357, %v2464
        %v2531 = vadd.f32 %v2358, %v2469
        %v2532 = vadd.f32 %v2359, %v2474
        %v2533 = vadd.f32 %v2360, %v2479
        %v2534 = vadd.f32 %v2361, %v2484
        %v2535 = vadd.f32 %v2362, %v2489
        %v2536 = vadd.f32 %v2363, %v2494
        %v2537 = vadd.f32 %v2364, %v2499
        %v2538 = vadd.f32 %v2365, %v2504
        %v2539 = vadd.f32 %v2366, %v2509
        %v2540 = vadd.f32 %v2367, %v2514
        %v2541 = vadd.f32 %v2368, %v2519
        %v2542 = vadd.f32 %v2369, %v2524
        %s2543 = scalar_lea.vmem %s2, 160
        %v2544 = vld [vmem:[%s2543] sm:$0xff]
        %v2545 = vld [vmem:[%s2543 + $0x8] sm:$0xff]
        %v2547 = vsel %vm444, %v536, 0
        %v2550 = vsel %vm444, %v537, 0
        %2552 = vmatprep.subr.mxu0 0.0
        %2553 = vmatpush1.msra.mxu0 %v2544
        %2554 = vmatprep.subr.mxu0 0.0
        %2555 = vmatpush1.msra.mxu0 %v2545
        %2556 = vmatprep.subr.mxu0 0.0
        %2557 = vmatpush1.msra.mxu0 0.0
        %2558 = vmatprep.subr.mxu0 0.0
        %2559 = vmatpush1.msra.mxu0 0.0
        %2560 = vmatprep.subr.mxu0 0.0
        %2561 = vmatpush1.msra.mxu0 0.0
        %2562 = vmatprep.subr.mxu0 0.0
        %2563 = vmatpush1.msra.mxu0 0.0
        %2564 = vmatprep.subr.mxu0 0.0
        %2565 = vmatpush1.msra.mxu0 0.0
        %2566 = vmatprep.subr.mxu0 0.0
        %2567 = vmatpush1.msra.mxu0 0.0
        %2568 = vmatprep.subr.mxu0 0.0
        %2569 = vmatpush1.msra.mxu0 0.0
        %2570 = vmatprep.subr.mxu0 0.0
        %2571 = vmatpush1.msra.mxu0 0.0
        %2572 = vmatprep.subr.mxu0 0.0
        %2573 = vmatpush1.msra.mxu0 0.0
        %2574 = vmatprep.subr.mxu0 0.0
        %2575 = vmatpush1.msra.mxu0 0.0
        %2576 = vmatprep.subr.mxu0 0.0
        %2577 = vmatpush1.msra.mxu0 0.0
        %2578 = vmatprep.subr.mxu0 0.0
        %2579 = vmatpush1.msra.mxu0 0.0
        %2580 = vmatprep.subr.mxu0 0.0
        %2581 = vmatpush1.msra.mxu0 0.0
        %2582 = vmatprep.subr.mxu0 0.0
        %2583 = vmatpush1.msra.mxu0 0.0
        %2584 = vmatprep.subr.mxu0 0.0
        %2585 = vmatpush1.msra.mxu0 0.0
        %2586 = vmatprep.subr.mxu0 0.0
        %2587 = vmatpush1.msra.mxu0 0.0
        %2588 = vmatprep.subr.mxu0 0.0
        %2589 = vmatpush1.msra.mxu0 0.0
        %2590 = vmatprep.subr.mxu0 0.0
        %2591 = vmatpush1.msra.mxu0 0.0
        %2592 = vmatprep.subr.mxu0 0.0
        %2593 = vmatpush1.msra.mxu0 0.0
        %2594 = vmatprep.subr.mxu0 0.0
        %2595 = vmatpush1.msra.mxu0 0.0
        %2596 = vmatprep.subr.mxu0 0.0
        %2597 = vmatpush1.msra.mxu0 0.0
        %2598 = vmatprep.subr.mxu0 0.0
        %2599 = vmatpush1.msra.mxu0 0.0
        %2600 = vmatprep.subr.mxu0 0.0
        %2601 = vmatpush1.msra.mxu0 0.0
        %2602 = vmatprep.subr.mxu0 0.0
        %2603 = vmatpush1.msra.mxu0 0.0
        %2604 = vmatprep.subr.mxu0 0.0
        %2605 = vmatpush1.msra.mxu0 0.0
        %2606 = vmatprep.subr.mxu0 0.0
        %2607 = vmatpush1.msra.mxu0 0.0
        %2608 = vmatprep.subr.mxu0 0.0
        %2609 = vmatpush1.msra.mxu0 0.0
        %2610 = vmatprep.subr.mxu0 0.0
        %2611 = vmatpush1.msra.mxu0 0.0
        %2612 = vmatprep.subr.mxu0 0.0
        %2613 = vmatpush1.msra.mxu0 0.0
        %2614 = vmatprep.subr.mxu0 0.0
        %2615 = vmatpush1.msra.mxu0 0.0
        %2616 = vmatprep.mubr.f32.mxu0 0.0
        %2617 = vmatmul.mubr.f32.gmra.mrb[0].mxu0 %v800
        %v2618 = vpop.f32.mrb[0].mxu0
        %v2619 = vadd.f32 0.0, %v2618
        %v2620 = vpop.f32.mrb[0].mxu0
        %2621 = vmatprep.mubr.f32.mxu0 0.0
        %2622 = vmatmul.mubr.f32.gmra.mrb[0].mxu0 %v802
        %v2623 = vpop.f32.mrb[0].mxu0
        %v2624 = vadd.f32 0.0, %v2623
        %v2625 = vpop.f32.mrb[0].mxu0
        %2626 = vmatprep.mubr.f32.mxu0 0.0
        %2627 = vmatmul.mubr.f32.gmra.mrb[0].mxu0 %v804
        %v2628 = vpop.f32.mrb[0].mxu0
        %v2629 = vadd.f32 0.0, %v2628
        %v2630 = vpop.f32.mrb[0].mxu0
        %2631 = vmatprep.mubr.f32.mxu0 0.0
        %2632 = vmatmul.mubr.f32.gmra.mrb[0].mxu0 %v806
        %v2633 = vpop.f32.mrb[0].mxu0
        %v2634 = vadd.f32 0.0, %v2633
        %v2635 = vpop.f32.mrb[0].mxu0
        %2636 = vmatprep.mubr.f32.mxu0 0.0
        %2637 = vmatmul.mubr.f32.gmra.mrb[0].mxu0 %v808
        %v2638 = vpop.f32.mrb[0].mxu0
        %v2639 = vadd.f32 0.0, %v2638
        %v2640 = vpop.f32.mrb[0].mxu0
        %2641 = vmatprep.mubr.f32.mxu0 0.0
        %2642 = vmatmul.mubr.f32.gmra.mrb[0].mxu0 %v810
        %v2643 = vpop.f32.mrb[0].mxu0
        %v2644 = vadd.f32 0.0, %v2643
        %v2645 = vpop.f32.mrb[0].mxu0
        %2646 = vmatprep.mubr.f32.mxu0 0.0
        %2647 = vmatmul.mubr.f32.gmra.mrb[0].mxu0 %v812
        %v2648 = vpop.f32.mrb[0].mxu0
        %v2649 = vadd.f32 0.0, %v2648
        %v2650 = vpop.f32.mrb[0].mxu0
        %2651 = vmatprep.mubr.f32.mxu0 0.0
        %2652 = vmatmul.mubr.f32.gmra.mrb[0].mxu0 %v814
        %v2653 = vpop.f32.mrb[0].mxu0
        %v2654 = vadd.f32 0.0, %v2653
        %v2655 = vpop.f32.mrb[0].mxu0
        %2656 = vmatprep.mubr.f32.mxu0 0.0
        %2657 = vmatmul.mubr.f32.gmra.mrb[0].mxu0 %v816
        %v2658 = vpop.f32.mrb[0].mxu0
        %v2659 = vadd.f32 0.0, %v2658
        %v2660 = vpop.f32.mrb[0].mxu0
        %2661 = vmatprep.mubr.f32.mxu0 0.0
        %2662 = vmatmul.mubr.f32.gmra.mrb[0].mxu0 %v818
        %v2663 = vpop.f32.mrb[0].mxu0
        %v2664 = vadd.f32 0.0, %v2663
        %v2665 = vpop.f32.mrb[0].mxu0
        %2666 = vmatprep.mubr.f32.mxu0 0.0
        %2667 = vmatmul.mubr.f32.gmra.mrb[0].mxu0 %v820
        %v2668 = vpop.f32.mrb[0].mxu0
        %v2669 = vadd.f32 0.0, %v2668
        %v2670 = vpop.f32.mrb[0].mxu0
        %2671 = vmatprep.mubr.f32.mxu0 0.0
        %2672 = vmatmul.mubr.f32.gmra.mrb[0].mxu0 %v822
        %v2673 = vpop.f32.mrb[0].mxu0
        %v2674 = vadd.f32 0.0, %v2673
        %v2675 = vpop.f32.mrb[0].mxu0
        %2676 = vmatprep.mubr.f32.mxu0 0.0
        %2677 = vmatmul.mubr.f32.gmra.mrb[0].mxu0 %v1684
        %v2678 = vpop.f32.mrb[0].mxu0
        %v2679 = vadd.f32 0.0, %v2678
        %v2680 = vpop.f32.mrb[0].mxu0
        %2681 = vmatprep.mubr.f32.mxu0 0.0
        %2682 = vmatmul.mubr.f32.gmra.mrb[0].mxu0 %v1687
        %v2683 = vpop.f32.mrb[0].mxu0
        %v2684 = vadd.f32 0.0, %v2683
        %v2685 = vpop.f32.mrb[0].mxu0
        %2686 = vmatprep.mubr.f32.mxu0 0.0
        %2687 = vmatmul.mubr.f32.gmra.mrb[0].mxu0 %v2547
        %v2688 = vpop.f32.mrb[0].mxu0
        %v2689 = vadd.f32 0.0, %v2688
        %v2690 = vpop.f32.mrb[0].mxu0
        %2691 = vmatprep.mubr.f32.mxu0 0.0
        %2692 = vmatmul.mubr.f32.gmra.mrb[0].mxu0 %v2550
        %v2693 = vpop.f32.mrb[0].mxu0
        %v2694 = vadd.f32 0.0, %v2693
        %v2695 = vpop.f32.mrb[0].mxu0
        %2696 = vdwg.mxu0
        %v2697 = vadd.f32 %v2527, %v2619
        %v2698 = vadd.f32 %v2528, %v2624
        %v2699 = vadd.f32 %v2529, %v2629
        %v2700 = vadd.f32 %v2530, %v2634
        %v2701 = vadd.f32 %v2531, %v2639
        %v2702 = vadd.f32 %v2532, %v2644
        %v2703 = vadd.f32 %v2533, %v2649
        %v2704 = vadd.f32 %v2534, %v2654
        %v2705 = vadd.f32 %v2535, %v2659
        %v2706 = vadd.f32 %v2536, %v2664
        %v2707 = vadd.f32 %v2537, %v2669
        %v2708 = vadd.f32 %v2538, %v2674
        %v2709 = vadd.f32 %v2539, %v2679
        %v2710 = vadd.f32 %v2540, %v2684
        %v2711 = vadd.f32 %v2541, %v2689
        %v2712 = vadd.f32 %v2542, %v2694
        %v2714 = vrot.slane %v536, 1
        %v2715 = vrot.slane %v537, 1
        %v2716 = vsel %vm571, %v2714, %v2715
        %v2717 = vrot.slane %v538, 1
        %v2718 = vsel %vm571, %v2715, %v2717
        %s2719 = scalar_lea.vmem %s2, 176
        %v2720 = vld [vmem:[%s2719] sm:$0xff]
        %v2721 = vld [vmem:[%s2719 + $0x8] sm:$0xff]
        %v2722 = vsel %vm444, %v2716, 0
        %v2724 = vsel %vm444, %v2718, 0
        %2726 = vmatprep.subr.mxu0 0.0
        %2727 = vmatpush1.msra.mxu0 %v2720
        %2728 = vmatprep.subr.mxu0 0.0
        %2729 = vmatpush1.msra.mxu0 %v2721
        %2730 = vmatprep.subr.mxu0 0.0
        %2731 = vmatpush1.msra.mxu0 0.0
        %2732 = vmatprep.subr.mxu0 0.0
        %2733 = vmatpush1.msra.mxu0 0.0
        %2734 = vmatprep.subr.mxu0 0.0
        %2735 = vmatpush1.msra.mxu0 0.0
        %2736 = vmatprep.subr.mxu0 0.0
        %2737 = vmatpush1.msra.mxu0 0.0
        %2738 = vmatprep.subr.mxu0 0.0
        %2739 = vmatpush1.msra.mxu0 0.0
        %2740 = vmatprep.subr.mxu0 0.0
        %2741 = vmatpush1.msra.mxu0 0.0
        %2742 = vmatprep.subr.mxu0 0.0
        %2743 = vmatpush1.msra.mxu0 0.0
        %2744 = vmatprep.subr.mxu0 0.0
        %2745 = vmatpush1.msra.mxu0 0.0
        %2746 = vmatprep.subr.mxu0 0.0
        %2747 = vmatpush1.msra.mxu0 0.0
        %2748 = vmatprep.subr.mxu0 0.0
        %2749 = vmatpush1.msra.mxu0 0.0
        %2750 = vmatprep.subr.mxu0 0.0
        %2751 = vmatpush1.msra.mxu0 0.0
        %2752 = vmatprep.subr.mxu0 0.0
        %2753 = vmatpush1.msra.mxu0 0.0
        %2754 = vmatprep.subr.mxu0 0.0
        %2755 = vmatpush1.msra.mxu0 0.0
        %2756 = vmatprep.subr.mxu0 0.0
        %2757 = vmatpush1.msra.mxu0 0.0
        %2758 = vmatprep.subr.mxu0 0.0
        %2759 = vmatpush1.msra.mxu0 0.0
        %2760 = vmatprep.subr.mxu0 0.0
        %2761 = vmatpush1.msra.mxu0 0.0
        %2762 = vmatprep.subr.mxu0 0.0
        %2763 = vmatpush1.msra.mxu0 0.0
        %2764 = vmatprep.subr.mxu0 0.0
        %2765 = vmatpush1.msra.mxu0 0.0
        %2766 = vmatprep.subr.mxu0 0.0
        %2767 = vmatpush1.msra.mxu0 0.0
        %2768 = vmatprep.subr.mxu0 0.0
        %2769 = vmatpush1.msra.mxu0 0.0
        %2770 = vmatprep.subr.mxu0 0.0
        %2771 = vmatpush1.msra.mxu0 0.0
        %2772 = vmatprep.subr.mxu0 0.0
        %2773 = vmatpush1.msra.mxu0 0.0
        %2774 = vmatprep.subr.mxu0 0.0
        %2775 = vmatpush1.msra.mxu0 0.0
        %2776 = vmatprep.subr.mxu0 0.0
        %2777 = vmatpush1.msra.mxu0 0.0
        %2778 = vmatprep.subr.mxu0 0.0
        %2779 = vmatpush1.msra.mxu0 0.0
        %2780 = vmatprep.subr.mxu0 0.0
        %2781 = vmatpush1.msra.mxu0 0.0
        %2782 = vmatprep.subr.mxu0 0.0
        %2783 = vmatpush1.msra.mxu0 0.0
        %2784 = vmatprep.subr.mxu0 0.0
        %2785 = vmatpush1.msra.mxu0 0.0
        %2786 = vmatprep.subr.mxu0 0.0
        %2787 = vmatpush1.msra.mxu0 0.0
        %2788 = vmatprep.subr.mxu0 0.0
        %2789 = vmatpush1.msra.mxu0 0.0
        %2790 = vmatprep.mubr.f32.mxu0 0.0
        %2791 = vmatmul.mubr.f32.gmra.mrb[0].mxu0 %v623
        %v2792 = vpop.f32.mrb[0].mxu0
        %v2793 = vadd.f32 0.0, %v2792
        %v2794 = vpop.f32.mrb[0].mxu0
        %2795 = vmatprep.mubr.f32.mxu0 0.0
        %2796 = vmatmul.mubr.f32.gmra.mrb[0].mxu0 %v625
        %v2797 = vpop.f32.mrb[0].mxu0
        %v2798 = vadd.f32 0.0, %v2797
        %v2799 = vpop.f32.mrb[0].mxu0
        %2800 = vmatprep.mubr.f32.mxu0 0.0
        %2801 = vmatmul.mubr.f32.gmra.mrb[0].mxu0 %v627
        %v2802 = vpop.f32.mrb[0].mxu0
        %v2803 = vadd.f32 0.0, %v2802
        %v2804 = vpop.f32.mrb[0].mxu0
        %2805 = vmatprep.mubr.f32.mxu0 0.0
        %2806 = vmatmul.mubr.f32.gmra.mrb[0].mxu0 %v629
        %v2807 = vpop.f32.mrb[0].mxu0
        %v2808 = vadd.f32 0.0, %v2807
        %v2809 = vpop.f32.mrb[0].mxu0
        %2810 = vmatprep.mubr.f32.mxu0 0.0
        %2811 = vmatmul.mubr.f32.gmra.mrb[0].mxu0 %v631
        %v2812 = vpop.f32.mrb[0].mxu0
        %v2813 = vadd.f32 0.0, %v2812
        %v2814 = vpop.f32.mrb[0].mxu0
        %2815 = vmatprep.mubr.f32.mxu0 0.0
        %2816 = vmatmul.mubr.f32.gmra.mrb[0].mxu0 %v633
        %v2817 = vpop.f32.mrb[0].mxu0
        %v2818 = vadd.f32 0.0, %v2817
        %v2819 = vpop.f32.mrb[0].mxu0
        %2820 = vmatprep.mubr.f32.mxu0 0.0
        %2821 = vmatmul.mubr.f32.gmra.mrb[0].mxu0 %v635
        %v2822 = vpop.f32.mrb[0].mxu0
        %v2823 = vadd.f32 0.0, %v2822
        %v2824 = vpop.f32.mrb[0].mxu0
        %2825 = vmatprep.mubr.f32.mxu0 0.0
        %2826 = vmatmul.mubr.f32.gmra.mrb[0].mxu0 %v637
        %v2827 = vpop.f32.mrb[0].mxu0
        %v2828 = vadd.f32 0.0, %v2827
        %v2829 = vpop.f32.mrb[0].mxu0
        %2830 = vmatprep.mubr.f32.mxu0 0.0
        %2831 = vmatmul.mubr.f32.gmra.mrb[0].mxu0 %v639
        %v2832 = vpop.f32.mrb[0].mxu0
        %v2833 = vadd.f32 0.0, %v2832
        %v2834 = vpop.f32.mrb[0].mxu0
        %2835 = vmatprep.mubr.f32.mxu0 0.0
        %2836 = vmatmul.mubr.f32.gmra.mrb[0].mxu0 %v641
        %v2837 = vpop.f32.mrb[0].mxu0
        %v2838 = vadd.f32 0.0, %v2837
        %v2839 = vpop.f32.mrb[0].mxu0
        %2840 = vmatprep.mubr.f32.mxu0 0.0
        %2841 = vmatmul.mubr.f32.gmra.mrb[0].mxu0 %v643
        %v2842 = vpop.f32.mrb[0].mxu0
        %v2843 = vadd.f32 0.0, %v2842
        %v2844 = vpop.f32.mrb[0].mxu0
        %2845 = vmatprep.mubr.f32.mxu0 0.0
        %2846 = vmatmul.mubr.f32.gmra.mrb[0].mxu0 %v645
        %v2847 = vpop.f32.mrb[0].mxu0
        %v2848 = vadd.f32 0.0, %v2847
        %v2849 = vpop.f32.mrb[0].mxu0
        %2850 = vmatprep.mubr.f32.mxu0 0.0
        %2851 = vmatmul.mubr.f32.gmra.mrb[0].mxu0 %v1859
        %v2852 = vpop.f32.mrb[0].mxu0
        %v2853 = vadd.f32 0.0, %v2852
        %v2854 = vpop.f32.mrb[0].mxu0
        %2855 = vmatprep.mubr.f32.mxu0 0.0
        %2856 = vmatmul.mubr.f32.gmra.mrb[0].mxu0 %v1861
        %v2857 = vpop.f32.mrb[0].mxu0
        %v2858 = vadd.f32 0.0, %v2857
        %v2859 = vpop.f32.mrb[0].mxu0
        %2860 = vmatprep.mubr.f32.mxu0 0.0
        %2861 = vmatmul.mubr.f32.gmra.mrb[0].mxu0 %v2722
        %v2862 = vpop.f32.mrb[0].mxu0
        %v2863 = vadd.f32 0.0, %v2862
        %v2864 = vpop.f32.mrb[0].mxu0
        %2865 = vmatprep.mubr.f32.mxu0 0.0
        %2866 = vmatmul.mubr.f32.gmra.mrb[0].mxu0 %v2724
        %v2867 = vpop.f32.mrb[0].mxu0
        %v2868 = vadd.f32 0.0, %v2867
        %v2869 = vpop.f32.mrb[0].mxu0
        %2870 = vdwg.mxu0
        %v2871 = vadd.f32 %v2697, %v2793
        %v2872 = vadd.f32 %v2698, %v2798
        %v2873 = vadd.f32 %v2699, %v2803
        %v2874 = vadd.f32 %v2700, %v2808
        %v2875 = vadd.f32 %v2701, %v2813
        %v2876 = vadd.f32 %v2702, %v2818
        %v2877 = vadd.f32 %v2703, %v2823
        %v2878 = vadd.f32 %v2704, %v2828
        %v2879 = vadd.f32 %v2705, %v2833
        %v2880 = vadd.f32 %v2706, %v2838
        %v2881 = vadd.f32 %v2707, %v2843
        %v2882 = vadd.f32 %v2708, %v2848
        %v2883 = vadd.f32 %v2709, %v2853
        %v2884 = vadd.f32 %v2710, %v2858
        %v2885 = vadd.f32 %v2711, %v2863
        %v2886 = vadd.f32 %v2712, %v2868
        %v2887 = vrot.slane %v536, 2
        %v2888 = vrot.slane %v537, 2
        %v2889 = vsel %vm969, %v2887, %v2888
        %v2890 = vrot.slane %v538, 2
        %v2891 = vsel %vm969, %v2888, %v2890
        %s2892 = scalar_lea.vmem %s2, 192
        %v2893 = vld [vmem:[%s2892] sm:$0xff]
        %v2894 = vld [vmem:[%s2892 + $0x8] sm:$0xff]
        %v2895 = vsel %vm444, %v2889, 0
        %v2897 = vsel %vm444, %v2891, 0
        %2899 = vmatprep.subr.mxu0 0.0
        %2900 = vmatpush1.msra.mxu0 %v2893
        %2901 = vmatprep.subr.mxu0 0.0
        %2902 = vmatpush1.msra.mxu0 %v2894
        %2903 = vmatprep.subr.mxu0 0.0
        %2904 = vmatpush1.msra.mxu0 0.0
        %2905 = vmatprep.subr.mxu0 0.0
        %2906 = vmatpush1.msra.mxu0 0.0
        %2907 = vmatprep.subr.mxu0 0.0
        %2908 = vmatpush1.msra.mxu0 0.0
        %2909 = vmatprep.subr.mxu0 0.0
        %2910 = vmatpush1.msra.mxu0 0.0
        %2911 = vmatprep.subr.mxu0 0.0
        %2912 = vmatpush1.msra.mxu0 0.0
        %2913 = vmatprep.subr.mxu0 0.0
        %2914 = vmatpush1.msra.mxu0 0.0
        %2915 = vmatprep.subr.mxu0 0.0
        %2916 = vmatpush1.msra.mxu0 0.0
        %2917 = vmatprep.subr.mxu0 0.0
        %2918 = vmatpush1.msra.mxu0 0.0
        %2919 = vmatprep.subr.mxu0 0.0
        %2920 = vmatpush1.msra.mxu0 0.0
        %2921 = vmatprep.subr.mxu0 0.0
        %2922 = vmatpush1.msra.mxu0 0.0
        %2923 = vmatprep.subr.mxu0 0.0
        %2924 = vmatpush1.msra.mxu0 0.0
        %2925 = vmatprep.subr.mxu0 0.0
        %2926 = vmatpush1.msra.mxu0 0.0
        %2927 = vmatprep.subr.mxu0 0.0
        %2928 = vmatpush1.msra.mxu0 0.0
        %2929 = vmatprep.subr.mxu0 0.0
        %2930 = vmatpush1.msra.mxu0 0.0
        %2931 = vmatprep.subr.mxu0 0.0
        %2932 = vmatpush1.msra.mxu0 0.0
        %2933 = vmatprep.subr.mxu0 0.0
        %2934 = vmatpush1.msra.mxu0 0.0
        %2935 = vmatprep.subr.mxu0 0.0
        %2936 = vmatpush1.msra.mxu0 0.0
        %2937 = vmatprep.subr.mxu0 0.0
        %2938 = vmatpush1.msra.mxu0 0.0
        %2939 = vmatprep.subr.mxu0 0.0
        %2940 = vmatpush1.msra.mxu0 0.0
        %2941 = vmatprep.subr.mxu0 0.0
        %2942 = vmatpush1.msra.mxu0 0.0
        %2943 = vmatprep.subr.mxu0 0.0
        %2944 = vmatpush1.msra.mxu0 0.0
        %2945 = vmatprep.subr.mxu0 0.0
        %2946 = vmatpush1.msra.mxu0 0.0
        %2947 = vmatprep.subr.mxu0 0.0
        %2948 = vmatpush1.msra.mxu0 0.0
        %2949 = vmatprep.subr.mxu0 0.0
        %2950 = vmatpush1.msra.mxu0 0.0
        %2951 = vmatprep.subr.mxu0 0.0
        %2952 = vmatpush1.msra.mxu0 0.0
        %2953 = vmatprep.subr.mxu0 0.0
        %2954 = vmatpush1.msra.mxu0 0.0
        %2955 = vmatprep.subr.mxu0 0.0
        %2956 = vmatpush1.msra.mxu0 0.0
        %2957 = vmatprep.subr.mxu0 0.0
        %2958 = vmatpush1.msra.mxu0 0.0
        %2959 = vmatprep.subr.mxu0 0.0
        %2960 = vmatpush1.msra.mxu0 0.0
        %2961 = vmatprep.subr.mxu0 0.0
        %2962 = vmatpush1.msra.mxu0 0.0
        %2963 = vmatprep.mubr.f32.mxu0 0.0
        %2964 = vmatmul.mubr.f32.gmra.mrb[0].mxu0 %v1021
        %v2965 = vpop.f32.mrb[0].mxu0
        %v2966 = vadd.f32 0.0, %v2965
        %v2967 = vpop.f32.mrb[0].mxu0
        %2968 = vmatprep.mubr.f32.mxu0 0.0
        %2969 = vmatmul.mubr.f32.gmra.mrb[0].mxu0 %v1023
        %v2970 = vpop.f32.mrb[0].mxu0
        %v2971 = vadd.f32 0.0, %v2970
        %v2972 = vpop.f32.mrb[0].mxu0
        %2973 = vmatprep.mubr.f32.mxu0 0.0
        %2974 = vmatmul.mubr.f32.gmra.mrb[0].mxu0 %v1025
        %v2975 = vpop.f32.mrb[0].mxu0
        %v2976 = vadd.f32 0.0, %v2975
        %v2977 = vpop.f32.mrb[0].mxu0
        %2978 = vmatprep.mubr.f32.mxu0 0.0
        %2979 = vmatmul.mubr.f32.gmra.mrb[0].mxu0 %v1027
        %v2980 = vpop.f32.mrb[0].mxu0
        %v2981 = vadd.f32 0.0, %v2980
        %v2982 = vpop.f32.mrb[0].mxu0
        %2983 = vmatprep.mubr.f32.mxu0 0.0
        %2984 = vmatmul.mubr.f32.gmra.mrb[0].mxu0 %v1029
        %v2985 = vpop.f32.mrb[0].mxu0
        %v2986 = vadd.f32 0.0, %v2985
        %v2987 = vpop.f32.mrb[0].mxu0
        %2988 = vmatprep.mubr.f32.mxu0 0.0
        %2989 = vmatmul.mubr.f32.gmra.mrb[0].mxu0 %v1031
        %v2990 = vpop.f32.mrb[0].mxu0
        %v2991 = vadd.f32 0.0, %v2990
        %v2992 = vpop.f32.mrb[0].mxu0
        %2993 = vmatprep.mubr.f32.mxu0 0.0
        %2994 = vmatmul.mubr.f32.gmra.mrb[0].mxu0 %v1033
        %v2995 = vpop.f32.mrb[0].mxu0
        %v2996 = vadd.f32 0.0, %v2995
        %v2997 = vpop.f32.mrb[0].mxu0
        %2998 = vmatprep.mubr.f32.mxu0 0.0
        %2999 = vmatmul.mubr.f32.gmra.mrb[0].mxu0 %v1035
        %v3000 = vpop.f32.mrb[0].mxu0
        %v3001 = vadd.f32 0.0, %v3000
        %v3002 = vpop.f32.mrb[0].mxu0
        %3003 = vmatprep.mubr.f32.mxu0 0.0
        %3004 = vmatmul.mubr.f32.gmra.mrb[0].mxu0 %v1037
        %v3005 = vpop.f32.mrb[0].mxu0
        %v3006 = vadd.f32 0.0, %v3005
        %v3007 = vpop.f32.mrb[0].mxu0
        %3008 = vmatprep.mubr.f32.mxu0 0.0
        %3009 = vmatmul.mubr.f32.gmra.mrb[0].mxu0 %v1039
        %v3010 = vpop.f32.mrb[0].mxu0
        %v3011 = vadd.f32 0.0, %v3010
        %v3012 = vpop.f32.mrb[0].mxu0
        %3013 = vmatprep.mubr.f32.mxu0 0.0
        %3014 = vmatmul.mubr.f32.gmra.mrb[0].mxu0 %v1041
        %v3015 = vpop.f32.mrb[0].mxu0
        %v3016 = vadd.f32 0.0, %v3015
        %v3017 = vpop.f32.mrb[0].mxu0
        %3018 = vmatprep.mubr.f32.mxu0 0.0
        %3019 = vmatmul.mubr.f32.gmra.mrb[0].mxu0 %v1043
        %v3020 = vpop.f32.mrb[0].mxu0
        %v3021 = vadd.f32 0.0, %v3020
        %v3022 = vpop.f32.mrb[0].mxu0
        %3023 = vmatprep.mubr.f32.mxu0 0.0
        %3024 = vmatmul.mubr.f32.gmra.mrb[0].mxu0 %v2032
        %v3025 = vpop.f32.mrb[0].mxu0
        %v3026 = vadd.f32 0.0, %v3025
        %v3027 = vpop.f32.mrb[0].mxu0
        %3028 = vmatprep.mubr.f32.mxu0 0.0
        %3029 = vmatmul.mubr.f32.gmra.mrb[0].mxu0 %v2034
        %v3030 = vpop.f32.mrb[0].mxu0
        %v3031 = vadd.f32 0.0, %v3030
        %v3032 = vpop.f32.mrb[0].mxu0
        %3033 = vmatprep.mubr.f32.mxu0 0.0
        %3034 = vmatmul.mubr.f32.gmra.mrb[0].mxu0 %v2895
        %v3035 = vpop.f32.mrb[0].mxu0
        %v3036 = vadd.f32 0.0, %v3035
        %v3037 = vpop.f32.mrb[0].mxu0
        %3038 = vmatprep.mubr.f32.mxu0 0.0
        %3039 = vmatmul.mubr.f32.gmra.mrb[0].mxu0 %v2897
        %v3040 = vpop.f32.mrb[0].mxu0
        %v3041 = vadd.f32 0.0, %v3040
        %v3042 = vpop.f32.mrb[0].mxu0
        %3043 = vdwg.mxu0
        %v3044 = vadd.f32 %v2871, %v2966
        %v3045 = vadd.f32 %v2872, %v2971
        %v3046 = vadd.f32 %v2873, %v2976
        %v3047 = vadd.f32 %v2874, %v2981
        %v3048 = vadd.f32 %v2875, %v2986
        %v3049 = vadd.f32 %v2876, %v2991
        %v3050 = vadd.f32 %v2877, %v2996
        %v3051 = vadd.f32 %v2878, %v3001
        %v3052 = vadd.f32 %v2879, %v3006
        %v3053 = vadd.f32 %v2880, %v3011
        %v3054 = vadd.f32 %v2881, %v3016
        %v3055 = vadd.f32 %v2882, %v3021
        %v3056 = vadd.f32 %v2883, %v3026
        %v3057 = vadd.f32 %v2884, %v3031
        %v3058 = vadd.f32 %v2885, %v3036
        %v3059 = vadd.f32 %v2886, %v3041
        %v3060 = vrot.slane %v536, 3
        %v3061 = vrot.slane %v537, 3
        %v3062 = vsel %vm1206, %v3060, %v3061
        %v3063 = vrot.slane %v538, 3
        %v3064 = vsel %vm1206, %v3061, %v3063
        %s3065 = scalar_lea.vmem %s2, 208
        %v3066 = vld [vmem:[%s3065] sm:$0xff]
        %v3067 = vld [vmem:[%s3065 + $0x8] sm:$0xff]
        %v3068 = vsel %vm444, %v3062, 0
        %v3070 = vsel %vm444, %v3064, 0
        %3072 = vmatprep.subr.mxu0 0.0
        %3073 = vmatpush1.msra.mxu0 %v3066
        %3074 = vmatprep.subr.mxu0 0.0
        %3075 = vmatpush1.msra.mxu0 %v3067
        %3076 = vmatprep.subr.mxu0 0.0
        %3077 = vmatpush1.msra.mxu0 0.0
        %3078 = vmatprep.subr.mxu0 0.0
        %3079 = vmatpush1.msra.mxu0 0.0
        %3080 = vmatprep.subr.mxu0 0.0
        %3081 = vmatpush1.msra.mxu0 0.0
        %3082 = vmatprep.subr.mxu0 0.0
        %3083 = vmatpush1.msra.mxu0 0.0
        %3084 = vmatprep.subr.mxu0 0.0
        %3085 = vmatpush1.msra.mxu0 0.0
        %3086 = vmatprep.subr.mxu0 0.0
        %3087 = vmatpush1.msra.mxu0 0.0
        %3088 = vmatprep.subr.mxu0 0.0
        %3089 = vmatpush1.msra.mxu0 0.0
        %3090 = vmatprep.subr.mxu0 0.0
        %3091 = vmatpush1.msra.mxu0 0.0
        %3092 = vmatprep.subr.mxu0 0.0
        %3093 = vmatpush1.msra.mxu0 0.0
        %3094 = vmatprep.subr.mxu0 0.0
        %3095 = vmatpush1.msra.mxu0 0.0
        %3096 = vmatprep.subr.mxu0 0.0
        %3097 = vmatpush1.msra.mxu0 0.0
        %3098 = vmatprep.subr.mxu0 0.0
        %3099 = vmatpush1.msra.mxu0 0.0
        %3100 = vmatprep.subr.mxu0 0.0
        %3101 = vmatpush1.msra.mxu0 0.0
        %3102 = vmatprep.subr.mxu0 0.0
        %3103 = vmatpush1.msra.mxu0 0.0
        %3104 = vmatprep.subr.mxu0 0.0
        %3105 = vmatpush1.msra.mxu0 0.0
        %3106 = vmatprep.subr.mxu0 0.0
        %3107 = vmatpush1.msra.mxu0 0.0
        %3108 = vmatprep.subr.mxu0 0.0
        %3109 = vmatpush1.msra.mxu0 0.0
        %3110 = vmatprep.subr.mxu0 0.0
        %3111 = vmatpush1.msra.mxu0 0.0
        %3112 = vmatprep.subr.mxu0 0.0
        %3113 = vmatpush1.msra.mxu0 0.0
        %3114 = vmatprep.subr.mxu0 0.0
        %3115 = vmatpush1.msra.mxu0 0.0
        %3116 = vmatprep.subr.mxu0 0.0
        %3117 = vmatpush1.msra.mxu0 0.0
        %3118 = vmatprep.subr.mxu0 0.0
        %3119 = vmatpush1.msra.mxu0 0.0
        %3120 = vmatprep.subr.mxu0 0.0
        %3121 = vmatpush1.msra.mxu0 0.0
        %3122 = vmatprep.subr.mxu0 0.0
        %3123 = vmatpush1.msra.mxu0 0.0
        %3124 = vmatprep.subr.mxu0 0.0
        %3125 = vmatpush1.msra.mxu0 0.0
        %3126 = vmatprep.subr.mxu0 0.0
        %3127 = vmatpush1.msra.mxu0 0.0
        %3128 = vmatprep.subr.mxu0 0.0
        %3129 = vmatpush1.msra.mxu0 0.0
        %3130 = vmatprep.subr.mxu0 0.0
        %3131 = vmatpush1.msra.mxu0 0.0
        %3132 = vmatprep.subr.mxu0 0.0
        %3133 = vmatpush1.msra.mxu0 0.0
        %3134 = vmatprep.subr.mxu0 0.0
        %3135 = vmatpush1.msra.mxu0 0.0
        %3136 = vmatprep.mubr.f32.mxu0 0.0
        %3137 = vmatmul.mubr.f32.gmra.mrb[0].mxu0 %v1258
        %v3138 = vpop.f32.mrb[0].mxu0
        %v3139 = vadd.f32 0.0, %v3138
        %v3140 = vpop.f32.mrb[0].mxu0
        %3141 = vmatprep.mubr.f32.mxu0 0.0
        %3142 = vmatmul.mubr.f32.gmra.mrb[0].mxu0 %v1260
        %v3143 = vpop.f32.mrb[0].mxu0
        %v3144 = vadd.f32 0.0, %v3143
        %v3145 = vpop.f32.mrb[0].mxu0
        %3146 = vmatprep.mubr.f32.mxu0 0.0
        %3147 = vmatmul.mubr.f32.gmra.mrb[0].mxu0 %v1262
        %v3148 = vpop.f32.mrb[0].mxu0
        %v3149 = vadd.f32 0.0, %v3148
        %v3150 = vpop.f32.mrb[0].mxu0
        %3151 = vmatprep.mubr.f32.mxu0 0.0
        %3152 = vmatmul.mubr.f32.gmra.mrb[0].mxu0 %v1264
        %v3153 = vpop.f32.mrb[0].mxu0
        %v3154 = vadd.f32 0.0, %v3153
        %v3155 = vpop.f32.mrb[0].mxu0
        %3156 = vmatprep.mubr.f32.mxu0 0.0
        %3157 = vmatmul.mubr.f32.gmra.mrb[0].mxu0 %v1266
        %v3158 = vpop.f32.mrb[0].mxu0
        %v3159 = vadd.f32 0.0, %v3158
        %v3160 = vpop.f32.mrb[0].mxu0
        %3161 = vmatprep.mubr.f32.mxu0 0.0
        %3162 = vmatmul.mubr.f32.gmra.mrb[0].mxu0 %v1268
        %v3163 = vpop.f32.mrb[0].mxu0
        %v3164 = vadd.f32 0.0, %v3163
        %v3165 = vpop.f32.mrb[0].mxu0
        %3166 = vmatprep.mubr.f32.mxu0 0.0
        %3167 = vmatmul.mubr.f32.gmra.mrb[0].mxu0 %v1270
        %v3168 = vpop.f32.mrb[0].mxu0
        %v3169 = vadd.f32 0.0, %v3168
        %v3170 = vpop.f32.mrb[0].mxu0
        %3171 = vmatprep.mubr.f32.mxu0 0.0
        %3172 = vmatmul.mubr.f32.gmra.mrb[0].mxu0 %v1272
        %v3173 = vpop.f32.mrb[0].mxu0
        %v3174 = vadd.f32 0.0, %v3173
        %v3175 = vpop.f32.mrb[0].mxu0
        %3176 = vmatprep.mubr.f32.mxu0 0.0
        %3177 = vmatmul.mubr.f32.gmra.mrb[0].mxu0 %v1274
        %v3178 = vpop.f32.mrb[0].mxu0
        %v3179 = vadd.f32 0.0, %v3178
        %v3180 = vpop.f32.mrb[0].mxu0
        %3181 = vmatprep.mubr.f32.mxu0 0.0
        %3182 = vmatmul.mubr.f32.gmra.mrb[0].mxu0 %v1276
        %v3183 = vpop.f32.mrb[0].mxu0
        %v3184 = vadd.f32 0.0, %v3183
        %v3185 = vpop.f32.mrb[0].mxu0
        %3186 = vmatprep.mubr.f32.mxu0 0.0
        %3187 = vmatmul.mubr.f32.gmra.mrb[0].mxu0 %v1278
        %v3188 = vpop.f32.mrb[0].mxu0
        %v3189 = vadd.f32 0.0, %v3188
        %v3190 = vpop.f32.mrb[0].mxu0
        %3191 = vmatprep.mubr.f32.mxu0 0.0
        %3192 = vmatmul.mubr.f32.gmra.mrb[0].mxu0 %v1280
        %v3193 = vpop.f32.mrb[0].mxu0
        %v3194 = vadd.f32 0.0, %v3193
        %v3195 = vpop.f32.mrb[0].mxu0
        %3196 = vmatprep.mubr.f32.mxu0 0.0
        %3197 = vmatmul.mubr.f32.gmra.mrb[0].mxu0 %v2205
        %v3198 = vpop.f32.mrb[0].mxu0
        %v3199 = vadd.f32 0.0, %v3198
        %v3200 = vpop.f32.mrb[0].mxu0
        %3201 = vmatprep.mubr.f32.mxu0 0.0
        %3202 = vmatmul.mubr.f32.gmra.mrb[0].mxu0 %v2207
        %v3203 = vpop.f32.mrb[0].mxu0
        %v3204 = vadd.f32 0.0, %v3203
        %v3205 = vpop.f32.mrb[0].mxu0
        %3206 = vmatprep.mubr.f32.mxu0 0.0
        %3207 = vmatmul.mubr.f32.gmra.mrb[0].mxu0 %v3068
        %v3208 = vpop.f32.mrb[0].mxu0
        %v3209 = vadd.f32 0.0, %v3208
        %v3210 = vpop.f32.mrb[0].mxu0
        %3211 = vmatprep.mubr.f32.mxu0 0.0
        %3212 = vmatmul.mubr.f32.gmra.mrb[0].mxu0 %v3070
        %v3213 = vpop.f32.mrb[0].mxu0
        %v3214 = vadd.f32 0.0, %v3213
        %v3215 = vpop.f32.mrb[0].mxu0
        %3216 = vdwg.mxu0
        %v3217 = vadd.f32 %v3044, %v3139
        %v3218 = vadd.f32 %v3045, %v3144
        %v3219 = vadd.f32 %v3046, %v3149
        %v3220 = vadd.f32 %v3047, %v3154
        %v3221 = vadd.f32 %v3048, %v3159
        %v3222 = vadd.f32 %v3049, %v3164
        %v3223 = vadd.f32 %v3050, %v3169
        %v3224 = vadd.f32 %v3051, %v3174
        %v3225 = vadd.f32 %v3052, %v3179
        %v3226 = vadd.f32 %v3053, %v3184
        %v3227 = vadd.f32 %v3054, %v3189
        %v3228 = vadd.f32 %v3055, %v3194
        %v3229 = vadd.f32 %v3056, %v3199
        %v3230 = vadd.f32 %v3057, %v3204
        %v3231 = vadd.f32 %v3058, %v3209
        %v3232 = vadd.f32 %v3059, %v3214
        %v3233 = vrot.slane %v536, 4
        %v3234 = vrot.slane %v537, 4
        %v3235 = vsel %vm1443, %v3233, %v3234
        %v3236 = vrot.slane %v538, 4
        %v3237 = vsel %vm1443, %v3234, %v3236
        %s3238 = scalar_lea.vmem %s2, 224
        %v3239 = vld [vmem:[%s3238] sm:$0xff]
        %v3240 = vld [vmem:[%s3238 + $0x8] sm:$0xff]
        %v3241 = vsel %vm444, %v3235, 0
        %v3243 = vsel %vm444, %v3237, 0
        %3245 = vmatprep.subr.mxu0 0.0
        %3246 = vmatpush1.msra.mxu0 %v3239
        %3247 = vmatprep.subr.mxu0 0.0
        %3248 = vmatpush1.msra.mxu0 %v3240
        %3249 = vmatprep.subr.mxu0 0.0
        %3250 = vmatpush1.msra.mxu0 0.0
        %3251 = vmatprep.subr.mxu0 0.0
        %3252 = vmatpush1.msra.mxu0 0.0
        %3253 = vmatprep.subr.mxu0 0.0
        %3254 = vmatpush1.msra.mxu0 0.0
        %3255 = vmatprep.subr.mxu0 0.0
        %3256 = vmatpush1.msra.mxu0 0.0
        %3257 = vmatprep.subr.mxu0 0.0
        %3258 = vmatpush1.msra.mxu0 0.0
        %3259 = vmatprep.subr.mxu0 0.0
        %3260 = vmatpush1.msra.mxu0 0.0
        %3261 = vmatprep.subr.mxu0 0.0
        %3262 = vmatpush1.msra.mxu0 0.0
        %3263 = vmatprep.subr.mxu0 0.0
        %3264 = vmatpush1.msra.mxu0 0.0
        %3265 = vmatprep.subr.mxu0 0.0
        %3266 = vmatpush1.msra.mxu0 0.0
        %3267 = vmatprep.subr.mxu0 0.0
        %3268 = vmatpush1.msra.mxu0 0.0
        %3269 = vmatprep.subr.mxu0 0.0
        %3270 = vmatpush1.msra.mxu0 0.0
        %3271 = vmatprep.subr.mxu0 0.0
        %3272 = vmatpush1.msra.mxu0 0.0
        %3273 = vmatprep.subr.mxu0 0.0
        %3274 = vmatpush1.msra.mxu0 0.0
        %3275 = vmatprep.subr.mxu0 0.0
        %3276 = vmatpush1.msra.mxu0 0.0
        %3277 = vmatprep.subr.mxu0 0.0
        %3278 = vmatpush1.msra.mxu0 0.0
        %3279 = vmatprep.subr.mxu0 0.0
        %3280 = vmatpush1.msra.mxu0 0.0
        %3281 = vmatprep.subr.mxu0 0.0
        %3282 = vmatpush1.msra.mxu0 0.0
        %3283 = vmatprep.subr.mxu0 0.0
        %3284 = vmatpush1.msra.mxu0 0.0
        %3285 = vmatprep.subr.mxu0 0.0
        %3286 = vmatpush1.msra.mxu0 0.0
        %3287 = vmatprep.subr.mxu0 0.0
        %3288 = vmatpush1.msra.mxu0 0.0
        %3289 = vmatprep.subr.mxu0 0.0
        %3290 = vmatpush1.msra.mxu0 0.0
        %3291 = vmatprep.subr.mxu0 0.0
        %3292 = vmatpush1.msra.mxu0 0.0
        %3293 = vmatprep.subr.mxu0 0.0
        %3294 = vmatpush1.msra.mxu0 0.0
        %3295 = vmatprep.subr.mxu0 0.0
        %3296 = vmatpush1.msra.mxu0 0.0
        %3297 = vmatprep.subr.mxu0 0.0
        %3298 = vmatpush1.msra.mxu0 0.0
        %3299 = vmatprep.subr.mxu0 0.0
        %3300 = vmatpush1.msra.mxu0 0.0
        %3301 = vmatprep.subr.mxu0 0.0
        %3302 = vmatpush1.msra.mxu0 0.0
        %3303 = vmatprep.subr.mxu0 0.0
        %3304 = vmatpush1.msra.mxu0 0.0
        %3305 = vmatprep.subr.mxu0 0.0
        %3306 = vmatpush1.msra.mxu0 0.0
        %3307 = vmatprep.subr.mxu0 0.0
        %3308 = vmatpush1.msra.mxu0 0.0
        %3309 = vmatprep.mubr.f32.mxu0 0.0
        %3310 = vmatmul.mubr.f32.gmra.mrb[0].mxu0 %v1495
        %v3311 = vpop.f32.mrb[0].mxu0
        %v3312 = vadd.f32 0.0, %v3311
        %v3313 = vpop.f32.mrb[0].mxu0
        %3314 = vmatprep.mubr.f32.mxu0 0.0
        %3315 = vmatmul.mubr.f32.gmra.mrb[0].mxu0 %v1497
        %v3316 = vpop.f32.mrb[0].mxu0
        %v3317 = vadd.f32 0.0, %v3316
        %v3318 = vpop.f32.mrb[0].mxu0
        %3319 = vmatprep.mubr.f32.mxu0 0.0
        %3320 = vmatmul.mubr.f32.gmra.mrb[0].mxu0 %v1499
        %v3321 = vpop.f32.mrb[0].mxu0
        %v3322 = vadd.f32 0.0, %v3321
        %v3323 = vpop.f32.mrb[0].mxu0
        %3324 = vmatprep.mubr.f32.mxu0 0.0
        %3325 = vmatmul.mubr.f32.gmra.mrb[0].mxu0 %v1501
        %v3326 = vpop.f32.mrb[0].mxu0
        %v3327 = vadd.f32 0.0, %v3326
        %v3328 = vpop.f32.mrb[0].mxu0
        %3329 = vmatprep.mubr.f32.mxu0 0.0
        %3330 = vmatmul.mubr.f32.gmra.mrb[0].mxu0 %v1503
        %v3331 = vpop.f32.mrb[0].mxu0
        %v3332 = vadd.f32 0.0, %v3331
        %v3333 = vpop.f32.mrb[0].mxu0
        %3334 = vmatprep.mubr.f32.mxu0 0.0
        %3335 = vmatmul.mubr.f32.gmra.mrb[0].mxu0 %v1505
        %v3336 = vpop.f32.mrb[0].mxu0
        %v3337 = vadd.f32 0.0, %v3336
        %v3338 = vpop.f32.mrb[0].mxu0
        %3339 = vmatprep.mubr.f32.mxu0 0.0
        %3340 = vmatmul.mubr.f32.gmra.mrb[0].mxu0 %v1507
        %v3341 = vpop.f32.mrb[0].mxu0
        %v3342 = vadd.f32 0.0, %v3341
        %v3343 = vpop.f32.mrb[0].mxu0
        %3344 = vmatprep.mubr.f32.mxu0 0.0
        %3345 = vmatmul.mubr.f32.gmra.mrb[0].mxu0 %v1509
        %v3346 = vpop.f32.mrb[0].mxu0
        %v3347 = vadd.f32 0.0, %v3346
        %v3348 = vpop.f32.mrb[0].mxu0
        %3349 = vmatprep.mubr.f32.mxu0 0.0
        %3350 = vmatmul.mubr.f32.gmra.mrb[0].mxu0 %v1511
        %v3351 = vpop.f32.mrb[0].mxu0
        %v3352 = vadd.f32 0.0, %v3351
        %v3353 = vpop.f32.mrb[0].mxu0
        %3354 = vmatprep.mubr.f32.mxu0 0.0
        %3355 = vmatmul.mubr.f32.gmra.mrb[0].mxu0 %v1513
        %v3356 = vpop.f32.mrb[0].mxu0
        %v3357 = vadd.f32 0.0, %v3356
        %v3358 = vpop.f32.mrb[0].mxu0
        %3359 = vmatprep.mubr.f32.mxu0 0.0
        %3360 = vmatmul.mubr.f32.gmra.mrb[0].mxu0 %v1515
        %v3361 = vpop.f32.mrb[0].mxu0
        %v3362 = vadd.f32 0.0, %v3361
        %v3363 = vpop.f32.mrb[0].mxu0
        %3364 = vmatprep.mubr.f32.mxu0 0.0
        %3365 = vmatmul.mubr.f32.gmra.mrb[0].mxu0 %v1517
        %v3366 = vpop.f32.mrb[0].mxu0
        %v3367 = vadd.f32 0.0, %v3366
        %v3368 = vpop.f32.mrb[0].mxu0
        %3369 = vmatprep.mubr.f32.mxu0 0.0
        %3370 = vmatmul.mubr.f32.gmra.mrb[0].mxu0 %v2378
        %v3371 = vpop.f32.mrb[0].mxu0
        %v3372 = vadd.f32 0.0, %v3371
        %v3373 = vpop.f32.mrb[0].mxu0
        %3374 = vmatprep.mubr.f32.mxu0 0.0
        %3375 = vmatmul.mubr.f32.gmra.mrb[0].mxu0 %v2380
        %v3376 = vpop.f32.mrb[0].mxu0
        %v3377 = vadd.f32 0.0, %v3376
        %v3378 = vpop.f32.mrb[0].mxu0
        %3379 = vmatprep.mubr.f32.mxu0 0.0
        %3380 = vmatmul.mubr.f32.gmra.mrb[0].mxu0 %v3241
        %v3381 = vpop.f32.mrb[0].mxu0
        %v3382 = vadd.f32 0.0, %v3381
        %v3383 = vpop.f32.mrb[0].mxu0
        %3384 = vmatprep.mubr.f32.mxu0 0.0
        %3385 = vmatmul.mubr.f32.gmra.mrb[0].mxu0 %v3243
        %v3386 = vpop.f32.mrb[0].mxu0
        %v3387 = vadd.f32 0.0, %v3386
        %v3388 = vpop.f32.mrb[0].mxu0
        %3389 = vdwg.mxu0
        %v3390 = vadd.f32 %v3217, %v3312
        %v3391 = vadd.f32 %v3218, %v3317
        %v3392 = vadd.f32 %v3219, %v3322
        %v3393 = vadd.f32 %v3220, %v3327
        %v3394 = vadd.f32 %v3221, %v3332
        %v3395 = vadd.f32 %v3222, %v3337
        %v3396 = vadd.f32 %v3223, %v3342
        %v3397 = vadd.f32 %v3224, %v3347
        %v3398 = vadd.f32 %v3225, %v3352
        %v3399 = vadd.f32 %v3226, %v3357
        %v3400 = vadd.f32 %v3227, %v3362
        %v3401 = vadd.f32 %v3228, %v3367
        %v3402 = vadd.f32 %v3229, %v3372
        %v3403 = vadd.f32 %v3230, %v3377
        %v3404 = vadd.f32 %v3231, %v3382
        %v3405 = vadd.f32 %v3232, %v3387
        %s3406 = scalar_lea.vmem %s2, 240
        %v3407 = vld [vmem:[%s3406] sm:$0xff]
        %v3408 = vld [vmem:[%s3406 + $0x8] sm:$0xff]
        %v3410 = vsel %vm444, %v539, 0
        %v3413 = vsel %vm444, %v540, 0
        %3415 = vmatprep.subr.mxu0 0.0
        %3416 = vmatpush1.msra.mxu0 %v3407
        %3417 = vmatprep.subr.mxu0 0.0
        %3418 = vmatpush1.msra.mxu0 %v3408
        %3419 = vmatprep.subr.mxu0 0.0
        %3420 = vmatpush1.msra.mxu0 0.0
        %3421 = vmatprep.subr.mxu0 0.0
        %3422 = vmatpush1.msra.mxu0 0.0
        %3423 = vmatprep.subr.mxu0 0.0
        %3424 = vmatpush1.msra.mxu0 0.0
        %3425 = vmatprep.subr.mxu0 0.0
        %3426 = vmatpush1.msra.mxu0 0.0
        %3427 = vmatprep.subr.mxu0 0.0
        %3428 = vmatpush1.msra.mxu0 0.0
        %3429 = vmatprep.subr.mxu0 0.0
        %3430 = vmatpush1.msra.mxu0 0.0
        %3431 = vmatprep.subr.mxu0 0.0
        %3432 = vmatpush1.msra.mxu0 0.0
        %3433 = vmatprep.subr.mxu0 0.0
        %3434 = vmatpush1.msra.mxu0 0.0
        %3435 = vmatprep.subr.mxu0 0.0
        %3436 = vmatpush1.msra.mxu0 0.0
        %3437 = vmatprep.subr.mxu0 0.0
        %3438 = vmatpush1.msra.mxu0 0.0
        %3439 = vmatprep.subr.mxu0 0.0
        %3440 = vmatpush1.msra.mxu0 0.0
        %3441 = vmatprep.subr.mxu0 0.0
        %3442 = vmatpush1.msra.mxu0 0.0
        %3443 = vmatprep.subr.mxu0 0.0
        %3444 = vmatpush1.msra.mxu0 0.0
        %3445 = vmatprep.subr.mxu0 0.0
        %3446 = vmatpush1.msra.mxu0 0.0
        %3447 = vmatprep.subr.mxu0 0.0
        %3448 = vmatpush1.msra.mxu0 0.0
        %3449 = vmatprep.subr.mxu0 0.0
        %3450 = vmatpush1.msra.mxu0 0.0
        %3451 = vmatprep.subr.mxu0 0.0
        %3452 = vmatpush1.msra.mxu0 0.0
        %3453 = vmatprep.subr.mxu0 0.0
        %3454 = vmatpush1.msra.mxu0 0.0
        %3455 = vmatprep.subr.mxu0 0.0
        %3456 = vmatpush1.msra.mxu0 0.0
        %3457 = vmatprep.subr.mxu0 0.0
        %3458 = vmatpush1.msra.mxu0 0.0
        %3459 = vmatprep.subr.mxu0 0.0
        %3460 = vmatpush1.msra.mxu0 0.0
        %3461 = vmatprep.subr.mxu0 0.0
        %3462 = vmatpush1.msra.mxu0 0.0
        %3463 = vmatprep.subr.mxu0 0.0
        %3464 = vmatpush1.msra.mxu0 0.0
        %3465 = vmatprep.subr.mxu0 0.0
        %3466 = vmatpush1.msra.mxu0 0.0
        %3467 = vmatprep.subr.mxu0 0.0
        %3468 = vmatpush1.msra.mxu0 0.0
        %3469 = vmatprep.subr.mxu0 0.0
        %3470 = vmatpush1.msra.mxu0 0.0
        %3471 = vmatprep.subr.mxu0 0.0
        %3472 = vmatpush1.msra.mxu0 0.0
        %3473 = vmatprep.subr.mxu0 0.0
        %3474 = vmatpush1.msra.mxu0 0.0
        %3475 = vmatprep.subr.mxu0 0.0
        %3476 = vmatpush1.msra.mxu0 0.0
        %3477 = vmatprep.subr.mxu0 0.0
        %3478 = vmatpush1.msra.mxu0 0.0
        %3479 = vmatprep.mubr.f32.mxu0 0.0
        %3480 = vmatmul.mubr.f32.gmra.mrb[0].mxu0 %v804
        %v3481 = vpop.f32.mrb[0].mxu0
        %v3482 = vadd.f32 0.0, %v3481
        %v3483 = vpop.f32.mrb[0].mxu0
        %3484 = vmatprep.mubr.f32.mxu0 0.0
        %3485 = vmatmul.mubr.f32.gmra.mrb[0].mxu0 %v806
        %v3486 = vpop.f32.mrb[0].mxu0
        %v3487 = vadd.f32 0.0, %v3486
        %v3488 = vpop.f32.mrb[0].mxu0
        %3489 = vmatprep.mubr.f32.mxu0 0.0
        %3490 = vmatmul.mubr.f32.gmra.mrb[0].mxu0 %v808
        %v3491 = vpop.f32.mrb[0].mxu0
        %v3492 = vadd.f32 0.0, %v3491
        %v3493 = vpop.f32.mrb[0].mxu0
        %3494 = vmatprep.mubr.f32.mxu0 0.0
        %3495 = vmatmul.mubr.f32.gmra.mrb[0].mxu0 %v810
        %v3496 = vpop.f32.mrb[0].mxu0
        %v3497 = vadd.f32 0.0, %v3496
        %v3498 = vpop.f32.mrb[0].mxu0
        %3499 = vmatprep.mubr.f32.mxu0 0.0
        %3500 = vmatmul.mubr.f32.gmra.mrb[0].mxu0 %v812
        %v3501 = vpop.f32.mrb[0].mxu0
        %v3502 = vadd.f32 0.0, %v3501
        %v3503 = vpop.f32.mrb[0].mxu0
        %3504 = vmatprep.mubr.f32.mxu0 0.0
        %3505 = vmatmul.mubr.f32.gmra.mrb[0].mxu0 %v814
        %v3506 = vpop.f32.mrb[0].mxu0
        %v3507 = vadd.f32 0.0, %v3506
        %v3508 = vpop.f32.mrb[0].mxu0
        %3509 = vmatprep.mubr.f32.mxu0 0.0
        %3510 = vmatmul.mubr.f32.gmra.mrb[0].mxu0 %v816
        %v3511 = vpop.f32.mrb[0].mxu0
        %v3512 = vadd.f32 0.0, %v3511
        %v3513 = vpop.f32.mrb[0].mxu0
        %3514 = vmatprep.mubr.f32.mxu0 0.0
        %3515 = vmatmul.mubr.f32.gmra.mrb[0].mxu0 %v818
        %v3516 = vpop.f32.mrb[0].mxu0
        %v3517 = vadd.f32 0.0, %v3516
        %v3518 = vpop.f32.mrb[0].mxu0
        %3519 = vmatprep.mubr.f32.mxu0 0.0
        %3520 = vmatmul.mubr.f32.gmra.mrb[0].mxu0 %v820
        %v3521 = vpop.f32.mrb[0].mxu0
        %v3522 = vadd.f32 0.0, %v3521
        %v3523 = vpop.f32.mrb[0].mxu0
        %3524 = vmatprep.mubr.f32.mxu0 0.0
        %3525 = vmatmul.mubr.f32.gmra.mrb[0].mxu0 %v822
        %v3526 = vpop.f32.mrb[0].mxu0
        %v3527 = vadd.f32 0.0, %v3526
        %v3528 = vpop.f32.mrb[0].mxu0
        %3529 = vmatprep.mubr.f32.mxu0 0.0
        %3530 = vmatmul.mubr.f32.gmra.mrb[0].mxu0 %v1684
        %v3531 = vpop.f32.mrb[0].mxu0
        %v3532 = vadd.f32 0.0, %v3531
        %v3533 = vpop.f32.mrb[0].mxu0
        %3534 = vmatprep.mubr.f32.mxu0 0.0
        %3535 = vmatmul.mubr.f32.gmra.mrb[0].mxu0 %v1687
        %v3536 = vpop.f32.mrb[0].mxu0
        %v3537 = vadd.f32 0.0, %v3536
        %v3538 = vpop.f32.mrb[0].mxu0
        %3539 = vmatprep.mubr.f32.mxu0 0.0
        %3540 = vmatmul.mubr.f32.gmra.mrb[0].mxu0 %v2547
        %v3541 = vpop.f32.mrb[0].mxu0
        %v3542 = vadd.f32 0.0, %v3541
        %v3543 = vpop.f32.mrb[0].mxu0
        %3544 = vmatprep.mubr.f32.mxu0 0.0
        %3545 = vmatmul.mubr.f32.gmra.mrb[0].mxu0 %v2550
        %v3546 = vpop.f32.mrb[0].mxu0
        %v3547 = vadd.f32 0.0, %v3546
        %v3548 = vpop.f32.mrb[0].mxu0
        %3549 = vmatprep.mubr.f32.mxu0 0.0
        %3550 = vmatmul.mubr.f32.gmra.mrb[0].mxu0 %v3410
        %v3551 = vpop.f32.mrb[0].mxu0
        %v3552 = vadd.f32 0.0, %v3551
        %v3553 = vpop.f32.mrb[0].mxu0
        %3554 = vmatprep.mubr.f32.mxu0 0.0
        %3555 = vmatmul.mubr.f32.gmra.mrb[0].mxu0 %v3413
        %v3556 = vpop.f32.mrb[0].mxu0
        %v3557 = vadd.f32 0.0, %v3556
        %v3558 = vpop.f32.mrb[0].mxu0
        %3559 = vdwg.mxu0
        %v3560 = vadd.f32 %v3390, %v3482
        %v3561 = vadd.f32 %v3391, %v3487
        %v3562 = vadd.f32 %v3392, %v3492
        %v3563 = vadd.f32 %v3393, %v3497
        %v3564 = vadd.f32 %v3394, %v3502
        %v3565 = vadd.f32 %v3395, %v3507
        %v3566 = vadd.f32 %v3396, %v3512
        %v3567 = vadd.f32 %v3397, %v3517
        %v3568 = vadd.f32 %v3398, %v3522
        %v3569 = vadd.f32 %v3399, %v3527
        %v3570 = vadd.f32 %v3400, %v3532
        %v3571 = vadd.f32 %v3401, %v3537
        %v3572 = vadd.f32 %v3402, %v3542
        %v3573 = vadd.f32 %v3403, %v3547
        %v3574 = vadd.f32 %v3404, %v3552
        %v3575 = vadd.f32 %v3405, %v3557
        %v3577 = vrot.slane %v539, 1
        %v3578 = vrot.slane %v540, 1
        %v3579 = vsel %vm571, %v3577, %v3578
        %v3580 = vrot.slane %v541, 1
        %v3581 = vsel %vm571, %v3578, %v3580
        %s3582 = scalar_lea.vmem %s2, 256
        %v3583 = vld [vmem:[%s3582] sm:$0xff]
        %v3584 = vld [vmem:[%s3582 + $0x8] sm:$0xff]
        %v3585 = vsel %vm444, %v3579, 0
        %v3587 = vsel %vm444, %v3581, 0
        %3589 = vmatprep.subr.mxu0 0.0
        %3590 = vmatpush1.msra.mxu0 %v3583
        %3591 = vmatprep.subr.mxu0 0.0
        %3592 = vmatpush1.msra.mxu0 %v3584
        %3593 = vmatprep.subr.mxu0 0.0
        %3594 = vmatpush1.msra.mxu0 0.0
        %3595 = vmatprep.subr.mxu0 0.0
        %3596 = vmatpush1.msra.mxu0 0.0
        %3597 = vmatprep.subr.mxu0 0.0
        %3598 = vmatpush1.msra.mxu0 0.0
        %3599 = vmatprep.subr.mxu0 0.0
        %3600 = vmatpush1.msra.mxu0 0.0
        %3601 = vmatprep.subr.mxu0 0.0
        %3602 = vmatpush1.msra.mxu0 0.0
        %3603 = vmatprep.subr.mxu0 0.0
        %3604 = vmatpush1.msra.mxu0 0.0
        %3605 = vmatprep.subr.mxu0 0.0
        %3606 = vmatpush1.msra.mxu0 0.0
        %3607 = vmatprep.subr.mxu0 0.0
        %3608 = vmatpush1.msra.mxu0 0.0
        %3609 = vmatprep.subr.mxu0 0.0
        %3610 = vmatpush1.msra.mxu0 0.0
        %3611 = vmatprep.subr.mxu0 0.0
        %3612 = vmatpush1.msra.mxu0 0.0
        %3613 = vmatprep.subr.mxu0 0.0
        %3614 = vmatpush1.msra.mxu0 0.0
        %3615 = vmatprep.subr.mxu0 0.0
        %3616 = vmatpush1.msra.mxu0 0.0
        %3617 = vmatprep.subr.mxu0 0.0
        %3618 = vmatpush1.msra.mxu0 0.0
        %3619 = vmatprep.subr.mxu0 0.0
        %3620 = vmatpush1.msra.mxu0 0.0
        %3621 = vmatprep.subr.mxu0 0.0
        %3622 = vmatpush1.msra.mxu0 0.0
        %3623 = vmatprep.subr.mxu0 0.0
        %3624 = vmatpush1.msra.mxu0 0.0
        %3625 = vmatprep.subr.mxu0 0.0
        %3626 = vmatpush1.msra.mxu0 0.0
        %3627 = vmatprep.subr.mxu0 0.0
        %3628 = vmatpush1.msra.mxu0 0.0
        %3629 = vmatprep.subr.mxu0 0.0
        %3630 = vmatpush1.msra.mxu0 0.0
        %3631 = vmatprep.subr.mxu0 0.0
        %3632 = vmatpush1.msra.mxu0 0.0
        %3633 = vmatprep.subr.mxu0 0.0
        %3634 = vmatpush1.msra.mxu0 0.0
        %3635 = vmatprep.subr.mxu0 0.0
        %3636 = vmatpush1.msra.mxu0 0.0
        %3637 = vmatprep.subr.mxu0 0.0
        %3638 = vmatpush1.msra.mxu0 0.0
        %3639 = vmatprep.subr.mxu0 0.0
        %3640 = vmatpush1.msra.mxu0 0.0
        %3641 = vmatprep.subr.mxu0 0.0
        %3642 = vmatpush1.msra.mxu0 0.0
        %3643 = vmatprep.subr.mxu0 0.0
        %3644 = vmatpush1.msra.mxu0 0.0
        %3645 = vmatprep.subr.mxu0 0.0
        %3646 = vmatpush1.msra.mxu0 0.0
        %3647 = vmatprep.subr.mxu0 0.0
        %3648 = vmatpush1.msra.mxu0 0.0
        %3649 = vmatprep.subr.mxu0 0.0
        %3650 = vmatpush1.msra.mxu0 0.0
        %3651 = vmatprep.subr.mxu0 0.0
        %3652 = vmatpush1.msra.mxu0 0.0
        %3653 = vmatprep.mubr.f32.mxu0 0.0
        %3654 = vmatmul.mubr.f32.gmra.mrb[0].mxu0 %v627
        %v3655 = vpop.f32.mrb[0].mxu0
        %v3656 = vadd.f32 0.0, %v3655
        %v3657 = vpop.f32.mrb[0].mxu0
        %3658 = vmatprep.mubr.f32.mxu0 0.0
        %3659 = vmatmul.mubr.f32.gmra.mrb[0].mxu0 %v629
        %v3660 = vpop.f32.mrb[0].mxu0
        %v3661 = vadd.f32 0.0, %v3660
        %v3662 = vpop.f32.mrb[0].mxu0
        %3663 = vmatprep.mubr.f32.mxu0 0.0
        %3664 = vmatmul.mubr.f32.gmra.mrb[0].mxu0 %v631
        %v3665 = vpop.f32.mrb[0].mxu0
        %v3666 = vadd.f32 0.0, %v3665
        %v3667 = vpop.f32.mrb[0].mxu0
        %3668 = vmatprep.mubr.f32.mxu0 0.0
        %3669 = vmatmul.mubr.f32.gmra.mrb[0].mxu0 %v633
        %v3670 = vpop.f32.mrb[0].mxu0
        %v3671 = vadd.f32 0.0, %v3670
        %v3672 = vpop.f32.mrb[0].mxu0
        %3673 = vmatprep.mubr.f32.mxu0 0.0
        %3674 = vmatmul.mubr.f32.gmra.mrb[0].mxu0 %v635
        %v3675 = vpop.f32.mrb[0].mxu0
        %v3676 = vadd.f32 0.0, %v3675
        %v3677 = vpop.f32.mrb[0].mxu0
        %3678 = vmatprep.mubr.f32.mxu0 0.0
        %3679 = vmatmul.mubr.f32.gmra.mrb[0].mxu0 %v637
        %v3680 = vpop.f32.mrb[0].mxu0
        %v3681 = vadd.f32 0.0, %v3680
        %v3682 = vpop.f32.mrb[0].mxu0
        %3683 = vmatprep.mubr.f32.mxu0 0.0
        %3684 = vmatmul.mubr.f32.gmra.mrb[0].mxu0 %v639
        %v3685 = vpop.f32.mrb[0].mxu0
        %v3686 = vadd.f32 0.0, %v3685
        %v3687 = vpop.f32.mrb[0].mxu0
        %3688 = vmatprep.mubr.f32.mxu0 0.0
        %3689 = vmatmul.mubr.f32.gmra.mrb[0].mxu0 %v641
        %v3690 = vpop.f32.mrb[0].mxu0
        %v3691 = vadd.f32 0.0, %v3690
        %v3692 = vpop.f32.mrb[0].mxu0
        %3693 = vmatprep.mubr.f32.mxu0 0.0
        %3694 = vmatmul.mubr.f32.gmra.mrb[0].mxu0 %v643
        %v3695 = vpop.f32.mrb[0].mxu0
        %v3696 = vadd.f32 0.0, %v3695
        %v3697 = vpop.f32.mrb[0].mxu0
        %3698 = vmatprep.mubr.f32.mxu0 0.0
        %3699 = vmatmul.mubr.f32.gmra.mrb[0].mxu0 %v645
        %v3700 = vpop.f32.mrb[0].mxu0
        %v3701 = vadd.f32 0.0, %v3700
        %v3702 = vpop.f32.mrb[0].mxu0
        %3703 = vmatprep.mubr.f32.mxu0 0.0
        %3704 = vmatmul.mubr.f32.gmra.mrb[0].mxu0 %v1859
        %v3705 = vpop.f32.mrb[0].mxu0
        %v3706 = vadd.f32 0.0, %v3705
        %v3707 = vpop.f32.mrb[0].mxu0
        %3708 = vmatprep.mubr.f32.mxu0 0.0
        %3709 = vmatmul.mubr.f32.gmra.mrb[0].mxu0 %v1861
        %v3710 = vpop.f32.mrb[0].mxu0
        %v3711 = vadd.f32 0.0, %v3710
        %v3712 = vpop.f32.mrb[0].mxu0
        %3713 = vmatprep.mubr.f32.mxu0 0.0
        %3714 = vmatmul.mubr.f32.gmra.mrb[0].mxu0 %v2722
        %v3715 = vpop.f32.mrb[0].mxu0
        %v3716 = vadd.f32 0.0, %v3715
        %v3717 = vpop.f32.mrb[0].mxu0
        %3718 = vmatprep.mubr.f32.mxu0 0.0
        %3719 = vmatmul.mubr.f32.gmra.mrb[0].mxu0 %v2724
        %v3720 = vpop.f32.mrb[0].mxu0
        %v3721 = vadd.f32 0.0, %v3720
        %v3722 = vpop.f32.mrb[0].mxu0
        %3723 = vmatprep.mubr.f32.mxu0 0.0
        %3724 = vmatmul.mubr.f32.gmra.mrb[0].mxu0 %v3585
        %v3725 = vpop.f32.mrb[0].mxu0
        %v3726 = vadd.f32 0.0, %v3725
        %v3727 = vpop.f32.mrb[0].mxu0
        %3728 = vmatprep.mubr.f32.mxu0 0.0
        %3729 = vmatmul.mubr.f32.gmra.mrb[0].mxu0 %v3587
        %v3730 = vpop.f32.mrb[0].mxu0
        %v3731 = vadd.f32 0.0, %v3730
        %v3732 = vpop.f32.mrb[0].mxu0
        %3733 = vdwg.mxu0
        %v3734 = vadd.f32 %v3560, %v3656
        %v3735 = vadd.f32 %v3561, %v3661
        %v3736 = vadd.f32 %v3562, %v3666
        %v3737 = vadd.f32 %v3563, %v3671
        %v3738 = vadd.f32 %v3564, %v3676
        %v3739 = vadd.f32 %v3565, %v3681
        %v3740 = vadd.f32 %v3566, %v3686
        %v3741 = vadd.f32 %v3567, %v3691
        %v3742 = vadd.f32 %v3568, %v3696
        %v3743 = vadd.f32 %v3569, %v3701
        %v3744 = vadd.f32 %v3570, %v3706
        %v3745 = vadd.f32 %v3571, %v3711
        %v3746 = vadd.f32 %v3572, %v3716
        %v3747 = vadd.f32 %v3573, %v3721
        %v3748 = vadd.f32 %v3574, %v3726
        %v3749 = vadd.f32 %v3575, %v3731
        %v3750 = vrot.slane %v539, 2
        %v3751 = vrot.slane %v540, 2
        %v3752 = vsel %vm969, %v3750, %v3751
        %v3753 = vrot.slane %v541, 2
        %v3754 = vsel %vm969, %v3751, %v3753
        %s3755 = scalar_lea.vmem %s2, 272
        %v3756 = vld [vmem:[%s3755] sm:$0xff]
        %v3757 = vld [vmem:[%s3755 + $0x8] sm:$0xff]
        %v3758 = vsel %vm444, %v3752, 0
        %v3760 = vsel %vm444, %v3754, 0
        %3762 = vmatprep.subr.mxu0 0.0
        %3763 = vmatpush1.msra.mxu0 %v3756
        %3764 = vmatprep.subr.mxu0 0.0
        %3765 = vmatpush1.msra.mxu0 %v3757
        %3766 = vmatprep.subr.mxu0 0.0
        %3767 = vmatpush1.msra.mxu0 0.0
        %3768 = vmatprep.subr.mxu0 0.0
        %3769 = vmatpush1.msra.mxu0 0.0
        %3770 = vmatprep.subr.mxu0 0.0
        %3771 = vmatpush1.msra.mxu0 0.0
        %3772 = vmatprep.subr.mxu0 0.0
        %3773 = vmatpush1.msra.mxu0 0.0
        %3774 = vmatprep.subr.mxu0 0.0
        %3775 = vmatpush1.msra.mxu0 0.0
        %3776 = vmatprep.subr.mxu0 0.0
        %3777 = vmatpush1.msra.mxu0 0.0
        %3778 = vmatprep.subr.mxu0 0.0
        %3779 = vmatpush1.msra.mxu0 0.0
        %3780 = vmatprep.subr.mxu0 0.0
        %3781 = vmatpush1.msra.mxu0 0.0
        %3782 = vmatprep.subr.mxu0 0.0
        %3783 = vmatpush1.msra.mxu0 0.0
        %3784 = vmatprep.subr.mxu0 0.0
        %3785 = vmatpush1.msra.mxu0 0.0
        %3786 = vmatprep.subr.mxu0 0.0
        %3787 = vmatpush1.msra.mxu0 0.0
        %3788 = vmatprep.subr.mxu0 0.0
        %3789 = vmatpush1.msra.mxu0 0.0
        %3790 = vmatprep.subr.mxu0 0.0
        %3791 = vmatpush1.msra.mxu0 0.0
        %3792 = vmatprep.subr.mxu0 0.0
        %3793 = vmatpush1.msra.mxu0 0.0
        %3794 = vmatprep.subr.mxu0 0.0
        %3795 = vmatpush1.msra.mxu0 0.0
        %3796 = vmatprep.subr.mxu0 0.0
        %3797 = vmatpush1.msra.mxu0 0.0
        %3798 = vmatprep.subr.mxu0 0.0
        %3799 = vmatpush1.msra.mxu0 0.0
        %3800 = vmatprep.subr.mxu0 0.0
        %3801 = vmatpush1.msra.mxu0 0.0
        %3802 = vmatprep.subr.mxu0 0.0
        %3803 = vmatpush1.msra.mxu0 0.0
        %3804 = vmatprep.subr.mxu0 0.0
        %3805 = vmatpush1.msra.mxu0 0.0
        %3806 = vmatprep.subr.mxu0 0.0
        %3807 = vmatpush1.msra.mxu0 0.0
        %3808 = vmatprep.subr.mxu0 0.0
        %3809 = vmatpush1.msra.mxu0 0.0
        %3810 = vmatprep.subr.mxu0 0.0
        %3811 = vmatpush1.msra.mxu0 0.0
        %3812 = vmatprep.subr.mxu0 0.0
        %3813 = vmatpush1.msra.mxu0 0.0
        %3814 = vmatprep.subr.mxu0 0.0
        %3815 = vmatpush1.msra.mxu0 0.0
        %3816 = vmatprep.subr.mxu0 0.0
        %3817 = vmatpush1.msra.mxu0 0.0
        %3818 = vmatprep.subr.mxu0 0.0
        %3819 = vmatpush1.msra.mxu0 0.0
        %3820 = vmatprep.subr.mxu0 0.0
        %3821 = vmatpush1.msra.mxu0 0.0
        %3822 = vmatprep.subr.mxu0 0.0
        %3823 = vmatpush1.msra.mxu0 0.0
        %3824 = vmatprep.subr.mxu0 0.0
        %3825 = vmatpush1.msra.mxu0 0.0
        %3826 = vmatprep.mubr.f32.mxu0 0.0
        %3827 = vmatmul.mubr.f32.gmra.mrb[0].mxu0 %v1025
        %v3828 = vpop.f32.mrb[0].mxu0
        %v3829 = vadd.f32 0.0, %v3828
        %v3830 = vpop.f32.mrb[0].mxu0
        %3831 = vmatprep.mubr.f32.mxu0 0.0
        %3832 = vmatmul.mubr.f32.gmra.mrb[0].mxu0 %v1027
        %v3833 = vpop.f32.mrb[0].mxu0
        %v3834 = vadd.f32 0.0, %v3833
        %v3835 = vpop.f32.mrb[0].mxu0
        %3836 = vmatprep.mubr.f32.mxu0 0.0
        %3837 = vmatmul.mubr.f32.gmra.mrb[0].mxu0 %v1029
        %v3838 = vpop.f32.mrb[0].mxu0
        %v3839 = vadd.f32 0.0, %v3838
        %v3840 = vpop.f32.mrb[0].mxu0
        %3841 = vmatprep.mubr.f32.mxu0 0.0
        %3842 = vmatmul.mubr.f32.gmra.mrb[0].mxu0 %v1031
        %v3843 = vpop.f32.mrb[0].mxu0
        %v3844 = vadd.f32 0.0, %v3843
        %v3845 = vpop.f32.mrb[0].mxu0
        %3846 = vmatprep.mubr.f32.mxu0 0.0
        %3847 = vmatmul.mubr.f32.gmra.mrb[0].mxu0 %v1033
        %v3848 = vpop.f32.mrb[0].mxu0
        %v3849 = vadd.f32 0.0, %v3848
        %v3850 = vpop.f32.mrb[0].mxu0
        %3851 = vmatprep.mubr.f32.mxu0 0.0
        %3852 = vmatmul.mubr.f32.gmra.mrb[0].mxu0 %v1035
        %v3853 = vpop.f32.mrb[0].mxu0
        %v3854 = vadd.f32 0.0, %v3853
        %v3855 = vpop.f32.mrb[0].mxu0
        %3856 = vmatprep.mubr.f32.mxu0 0.0
        %3857 = vmatmul.mubr.f32.gmra.mrb[0].mxu0 %v1037
        %v3858 = vpop.f32.mrb[0].mxu0
        %v3859 = vadd.f32 0.0, %v3858
        %v3860 = vpop.f32.mrb[0].mxu0
        %3861 = vmatprep.mubr.f32.mxu0 0.0
        %3862 = vmatmul.mubr.f32.gmra.mrb[0].mxu0 %v1039
        %v3863 = vpop.f32.mrb[0].mxu0
        %v3864 = vadd.f32 0.0, %v3863
        %v3865 = vpop.f32.mrb[0].mxu0
        %3866 = vmatprep.mubr.f32.mxu0 0.0
        %3867 = vmatmul.mubr.f32.gmra.mrb[0].mxu0 %v1041
        %v3868 = vpop.f32.mrb[0].mxu0
        %v3869 = vadd.f32 0.0, %v3868
        %v3870 = vpop.f32.mrb[0].mxu0
        %3871 = vmatprep.mubr.f32.mxu0 0.0
        %3872 = vmatmul.mubr.f32.gmra.mrb[0].mxu0 %v1043
        %v3873 = vpop.f32.mrb[0].mxu0
        %v3874 = vadd.f32 0.0, %v3873
        %v3875 = vpop.f32.mrb[0].mxu0
        %3876 = vmatprep.mubr.f32.mxu0 0.0
        %3877 = vmatmul.mubr.f32.gmra.mrb[0].mxu0 %v2032
        %v3878 = vpop.f32.mrb[0].mxu0
        %v3879 = vadd.f32 0.0, %v3878
        %v3880 = vpop.f32.mrb[0].mxu0
        %3881 = vmatprep.mubr.f32.mxu0 0.0
        %3882 = vmatmul.mubr.f32.gmra.mrb[0].mxu0 %v2034
        %v3883 = vpop.f32.mrb[0].mxu0
        %v3884 = vadd.f32 0.0, %v3883
        %v3885 = vpop.f32.mrb[0].mxu0
        %3886 = vmatprep.mubr.f32.mxu0 0.0
        %3887 = vmatmul.mubr.f32.gmra.mrb[0].mxu0 %v2895
        %v3888 = vpop.f32.mrb[0].mxu0
        %v3889 = vadd.f32 0.0, %v3888
        %v3890 = vpop.f32.mrb[0].mxu0
        %3891 = vmatprep.mubr.f32.mxu0 0.0
        %3892 = vmatmul.mubr.f32.gmra.mrb[0].mxu0 %v2897
        %v3893 = vpop.f32.mrb[0].mxu0
        %v3894 = vadd.f32 0.0, %v3893
        %v3895 = vpop.f32.mrb[0].mxu0
        %3896 = vmatprep.mubr.f32.mxu0 0.0
        %3897 = vmatmul.mubr.f32.gmra.mrb[0].mxu0 %v3758
        %v3898 = vpop.f32.mrb[0].mxu0
        %v3899 = vadd.f32 0.0, %v3898
        %v3900 = vpop.f32.mrb[0].mxu0
        %3901 = vmatprep.mubr.f32.mxu0 0.0
        %3902 = vmatmul.mubr.f32.gmra.mrb[0].mxu0 %v3760
        %v3903 = vpop.f32.mrb[0].mxu0
        %v3904 = vadd.f32 0.0, %v3903
        %v3905 = vpop.f32.mrb[0].mxu0
        %3906 = vdwg.mxu0
        %v3907 = vadd.f32 %v3734, %v3829
        %v3908 = vadd.f32 %v3735, %v3834
        %v3909 = vadd.f32 %v3736, %v3839
        %v3910 = vadd.f32 %v3737, %v3844
        %v3911 = vadd.f32 %v3738, %v3849
        %v3912 = vadd.f32 %v3739, %v3854
        %v3913 = vadd.f32 %v3740, %v3859
        %v3914 = vadd.f32 %v3741, %v3864
        %v3915 = vadd.f32 %v3742, %v3869
        %v3916 = vadd.f32 %v3743, %v3874
        %v3917 = vadd.f32 %v3744, %v3879
        %v3918 = vadd.f32 %v3745, %v3884
        %v3919 = vadd.f32 %v3746, %v3889
        %v3920 = vadd.f32 %v3747, %v3894
        %v3921 = vadd.f32 %v3748, %v3899
        %v3922 = vadd.f32 %v3749, %v3904
        %v3923 = vrot.slane %v539, 3
        %v3924 = vrot.slane %v540, 3
        %v3925 = vsel %vm1206, %v3923, %v3924
        %v3926 = vrot.slane %v541, 3
        %v3927 = vsel %vm1206, %v3924, %v3926
        %s3928 = scalar_lea.vmem %s2, 288
        %v3929 = vld [vmem:[%s3928] sm:$0xff]
        %v3930 = vld [vmem:[%s3928 + $0x8] sm:$0xff]
        %v3931 = vsel %vm444, %v3925, 0
        %v3933 = vsel %vm444, %v3927, 0
        %3935 = vmatprep.subr.mxu0 0.0
        %3936 = vmatpush1.msra.mxu0 %v3929
        %3937 = vmatprep.subr.mxu0 0.0
        %3938 = vmatpush1.msra.mxu0 %v3930
        %3939 = vmatprep.subr.mxu0 0.0
        %3940 = vmatpush1.msra.mxu0 0.0
        %3941 = vmatprep.subr.mxu0 0.0
        %3942 = vmatpush1.msra.mxu0 0.0
        %3943 = vmatprep.subr.mxu0 0.0
        %3944 = vmatpush1.msra.mxu0 0.0
        %3945 = vmatprep.subr.mxu0 0.0
        %3946 = vmatpush1.msra.mxu0 0.0
        %3947 = vmatprep.subr.mxu0 0.0
        %3948 = vmatpush1.msra.mxu0 0.0
        %3949 = vmatprep.subr.mxu0 0.0
        %3950 = vmatpush1.msra.mxu0 0.0
        %3951 = vmatprep.subr.mxu0 0.0
        %3952 = vmatpush1.msra.mxu0 0.0
        %3953 = vmatprep.subr.mxu0 0.0
        %3954 = vmatpush1.msra.mxu0 0.0
        %3955 = vmatprep.subr.mxu0 0.0
        %3956 = vmatpush1.msra.mxu0 0.0
        %3957 = vmatprep.subr.mxu0 0.0
        %3958 = vmatpush1.msra.mxu0 0.0
        %3959 = vmatprep.subr.mxu0 0.0
        %3960 = vmatpush1.msra.mxu0 0.0
        %3961 = vmatprep.subr.mxu0 0.0
        %3962 = vmatpush1.msra.mxu0 0.0
        %3963 = vmatprep.subr.mxu0 0.0
        %3964 = vmatpush1.msra.mxu0 0.0
        %3965 = vmatprep.subr.mxu0 0.0
        %3966 = vmatpush1.msra.mxu0 0.0
        %3967 = vmatprep.subr.mxu0 0.0
        %3968 = vmatpush1.msra.mxu0 0.0
        %3969 = vmatprep.subr.mxu0 0.0
        %3970 = vmatpush1.msra.mxu0 0.0
        %3971 = vmatprep.subr.mxu0 0.0
        %3972 = vmatpush1.msra.mxu0 0.0
        %3973 = vmatprep.subr.mxu0 0.0
        %3974 = vmatpush1.msra.mxu0 0.0
        %3975 = vmatprep.subr.mxu0 0.0
        %3976 = vmatpush1.msra.mxu0 0.0
        %3977 = vmatprep.subr.mxu0 0.0
        %3978 = vmatpush1.msra.mxu0 0.0
        %3979 = vmatprep.subr.mxu0 0.0
        %3980 = vmatpush1.msra.mxu0 0.0
        %3981 = vmatprep.subr.mxu0 0.0
        %3982 = vmatpush1.msra.mxu0 0.0
        %3983 = vmatprep.subr.mxu0 0.0
        %3984 = vmatpush1.msra.mxu0 0.0
        %3985 = vmatprep.subr.mxu0 0.0
        %3986 = vmatpush1.msra.mxu0 0.0
        %3987 = vmatprep.subr.mxu0 0.0
        %3988 = vmatpush1.msra.mxu0 0.0
        %3989 = vmatprep.subr.mxu0 0.0
        %3990 = vmatpush1.msra.mxu0 0.0
        %3991 = vmatprep.subr.mxu0 0.0
        %3992 = vmatpush1.msra.mxu0 0.0
        %3993 = vmatprep.subr.mxu0 0.0
        %3994 = vmatpush1.msra.mxu0 0.0
        %3995 = vmatprep.subr.mxu0 0.0
        %3996 = vmatpush1.msra.mxu0 0.0
        %3997 = vmatprep.subr.mxu0 0.0
        %3998 = vmatpush1.msra.mxu0 0.0
        %3999 = vmatprep.mubr.f32.mxu0 0.0
        %4000 = vmatmul.mubr.f32.gmra.mrb[0].mxu0 %v1262
        %v4001 = vpop.f32.mrb[0].mxu0
        %v4002 = vadd.f32 0.0, %v4001
        %v4003 = vpop.f32.mrb[0].mxu0
        %4004 = vmatprep.mubr.f32.mxu0 0.0
        %4005 = vmatmul.mubr.f32.gmra.mrb[0].mxu0 %v1264
        %v4006 = vpop.f32.mrb[0].mxu0
        %v4007 = vadd.f32 0.0, %v4006
        %v4008 = vpop.f32.mrb[0].mxu0
        %4009 = vmatprep.mubr.f32.mxu0 0.0
        %4010 = vmatmul.mubr.f32.gmra.mrb[0].mxu0 %v1266
        %v4011 = vpop.f32.mrb[0].mxu0
        %v4012 = vadd.f32 0.0, %v4011
        %v4013 = vpop.f32.mrb[0].mxu0
        %4014 = vmatprep.mubr.f32.mxu0 0.0
        %4015 = vmatmul.mubr.f32.gmra.mrb[0].mxu0 %v1268
        %v4016 = vpop.f32.mrb[0].mxu0
        %v4017 = vadd.f32 0.0, %v4016
        %v4018 = vpop.f32.mrb[0].mxu0
        %4019 = vmatprep.mubr.f32.mxu0 0.0
        %4020 = vmatmul.mubr.f32.gmra.mrb[0].mxu0 %v1270
        %v4021 = vpop.f32.mrb[0].mxu0
        %v4022 = vadd.f32 0.0, %v4021
        %v4023 = vpop.f32.mrb[0].mxu0
        %4024 = vmatprep.mubr.f32.mxu0 0.0
        %4025 = vmatmul.mubr.f32.gmra.mrb[0].mxu0 %v1272
        %v4026 = vpop.f32.mrb[0].mxu0
        %v4027 = vadd.f32 0.0, %v4026
        %v4028 = vpop.f32.mrb[0].mxu0
        %4029 = vmatprep.mubr.f32.mxu0 0.0
        %4030 = vmatmul.mubr.f32.gmra.mrb[0].mxu0 %v1274
        %v4031 = vpop.f32.mrb[0].mxu0
        %v4032 = vadd.f32 0.0, %v4031
        %v4033 = vpop.f32.mrb[0].mxu0
        %4034 = vmatprep.mubr.f32.mxu0 0.0
        %4035 = vmatmul.mubr.f32.gmra.mrb[0].mxu0 %v1276
        %v4036 = vpop.f32.mrb[0].mxu0
        %v4037 = vadd.f32 0.0, %v4036
        %v4038 = vpop.f32.mrb[0].mxu0
        %4039 = vmatprep.mubr.f32.mxu0 0.0
        %4040 = vmatmul.mubr.f32.gmra.mrb[0].mxu0 %v1278
        %v4041 = vpop.f32.mrb[0].mxu0
        %v4042 = vadd.f32 0.0, %v4041
        %v4043 = vpop.f32.mrb[0].mxu0
        %4044 = vmatprep.mubr.f32.mxu0 0.0
        %4045 = vmatmul.mubr.f32.gmra.mrb[0].mxu0 %v1280
        %v4046 = vpop.f32.mrb[0].mxu0
        %v4047 = vadd.f32 0.0, %v4046
        %v4048 = vpop.f32.mrb[0].mxu0
        %4049 = vmatprep.mubr.f32.mxu0 0.0
        %4050 = vmatmul.mubr.f32.gmra.mrb[0].mxu0 %v2205
        %v4051 = vpop.f32.mrb[0].mxu0
        %v4052 = vadd.f32 0.0, %v4051
        %v4053 = vpop.f32.mrb[0].mxu0
        %4054 = vmatprep.mubr.f32.mxu0 0.0
        %4055 = vmatmul.mubr.f32.gmra.mrb[0].mxu0 %v2207
        %v4056 = vpop.f32.mrb[0].mxu0
        %v4057 = vadd.f32 0.0, %v4056
        %v4058 = vpop.f32.mrb[0].mxu0
        %4059 = vmatprep.mubr.f32.mxu0 0.0
        %4060 = vmatmul.mubr.f32.gmra.mrb[0].mxu0 %v3068
        %v4061 = vpop.f32.mrb[0].mxu0
        %v4062 = vadd.f32 0.0, %v4061
        %v4063 = vpop.f32.mrb[0].mxu0
        %4064 = vmatprep.mubr.f32.mxu0 0.0
        %4065 = vmatmul.mubr.f32.gmra.mrb[0].mxu0 %v3070
        %v4066 = vpop.f32.mrb[0].mxu0
        %v4067 = vadd.f32 0.0, %v4066
        %v4068 = vpop.f32.mrb[0].mxu0
        %4069 = vmatprep.mubr.f32.mxu0 0.0
        %4070 = vmatmul.mubr.f32.gmra.mrb[0].mxu0 %v3931
        %v4071 = vpop.f32.mrb[0].mxu0
        %v4072 = vadd.f32 0.0, %v4071
        %v4073 = vpop.f32.mrb[0].mxu0
        %4074 = vmatprep.mubr.f32.mxu0 0.0
        %4075 = vmatmul.mubr.f32.gmra.mrb[0].mxu0 %v3933
        %v4076 = vpop.f32.mrb[0].mxu0
        %v4077 = vadd.f32 0.0, %v4076
        %v4078 = vpop.f32.mrb[0].mxu0
        %4079 = vdwg.mxu0
        %v4080 = vadd.f32 %v3907, %v4002
        %v4081 = vadd.f32 %v3908, %v4007
        %v4082 = vadd.f32 %v3909, %v4012
        %v4083 = vadd.f32 %v3910, %v4017
        %v4084 = vadd.f32 %v3911, %v4022
        %v4085 = vadd.f32 %v3912, %v4027
        %v4086 = vadd.f32 %v3913, %v4032
        %v4087 = vadd.f32 %v3914, %v4037
        %v4088 = vadd.f32 %v3915, %v4042
        %v4089 = vadd.f32 %v3916, %v4047
        %v4090 = vadd.f32 %v3917, %v4052
        %v4091 = vadd.f32 %v3918, %v4057
        %v4092 = vadd.f32 %v3919, %v4062
        %v4093 = vadd.f32 %v3920, %v4067
        %v4094 = vadd.f32 %v3921, %v4072
        %v4095 = vadd.f32 %v3922, %v4077
        %v4096 = vrot.slane %v539, 4
        %v4097 = vrot.slane %v540, 4
        %v4098 = vsel %vm1443, %v4096, %v4097
        %v4099 = vrot.slane %v541, 4
        %v4100 = vsel %vm1443, %v4097, %v4099
        %s4101 = scalar_lea.vmem %s2, 304
        %v4102 = vld [vmem:[%s4101] sm:$0xff]
        %v4103 = vld [vmem:[%s4101 + $0x8] sm:$0xff]
        %v4104 = vsel %vm444, %v4098, 0
        %v4106 = vsel %vm444, %v4100, 0
        %4108 = vmatprep.subr.mxu0 0.0
        %4109 = vmatpush1.msra.mxu0 %v4102
        %4110 = vmatprep.subr.mxu0 0.0
        %4111 = vmatpush1.msra.mxu0 %v4103
        %4112 = vmatprep.subr.mxu0 0.0
        %4113 = vmatpush1.msra.mxu0 0.0
        %4114 = vmatprep.subr.mxu0 0.0
        %4115 = vmatpush1.msra.mxu0 0.0
        %4116 = vmatprep.subr.mxu0 0.0
        %4117 = vmatpush1.msra.mxu0 0.0
        %4118 = vmatprep.subr.mxu0 0.0
        %4119 = vmatpush1.msra.mxu0 0.0
        %4120 = vmatprep.subr.mxu0 0.0
        %4121 = vmatpush1.msra.mxu0 0.0
        %4122 = vmatprep.subr.mxu0 0.0
        %4123 = vmatpush1.msra.mxu0 0.0
        %4124 = vmatprep.subr.mxu0 0.0
        %4125 = vmatpush1.msra.mxu0 0.0
        %4126 = vmatprep.subr.mxu0 0.0
        %4127 = vmatpush1.msra.mxu0 0.0
        %4128 = vmatprep.subr.mxu0 0.0
        %4129 = vmatpush1.msra.mxu0 0.0
        %4130 = vmatprep.subr.mxu0 0.0
        %4131 = vmatpush1.msra.mxu0 0.0
        %4132 = vmatprep.subr.mxu0 0.0
        %4133 = vmatpush1.msra.mxu0 0.0
        %4134 = vmatprep.subr.mxu0 0.0
        %4135 = vmatpush1.msra.mxu0 0.0
        %4136 = vmatprep.subr.mxu0 0.0
        %4137 = vmatpush1.msra.mxu0 0.0
        %4138 = vmatprep.subr.mxu0 0.0
        %4139 = vmatpush1.msra.mxu0 0.0
        %4140 = vmatprep.subr.mxu0 0.0
        %4141 = vmatpush1.msra.mxu0 0.0
        %4142 = vmatprep.subr.mxu0 0.0
        %4143 = vmatpush1.msra.mxu0 0.0
        %4144 = vmatprep.subr.mxu0 0.0
        %4145 = vmatpush1.msra.mxu0 0.0
        %4146 = vmatprep.subr.mxu0 0.0
        %4147 = vmatpush1.msra.mxu0 0.0
        %4148 = vmatprep.subr.mxu0 0.0
        %4149 = vmatpush1.msra.mxu0 0.0
        %4150 = vmatprep.subr.mxu0 0.0
        %4151 = vmatpush1.msra.mxu0 0.0
        %4152 = vmatprep.subr.mxu0 0.0
        %4153 = vmatpush1.msra.mxu0 0.0
        %4154 = vmatprep.subr.mxu0 0.0
        %4155 = vmatpush1.msra.mxu0 0.0
        %4156 = vmatprep.subr.mxu0 0.0
        %4157 = vmatpush1.msra.mxu0 0.0
        %4158 = vmatprep.subr.mxu0 0.0
        %4159 = vmatpush1.msra.mxu0 0.0
        %4160 = vmatprep.subr.mxu0 0.0
        %4161 = vmatpush1.msra.mxu0 0.0
        %4162 = vmatprep.subr.mxu0 0.0
        %4163 = vmatpush1.msra.mxu0 0.0
        %4164 = vmatprep.subr.mxu0 0.0
        %4165 = vmatpush1.msra.mxu0 0.0
        %4166 = vmatprep.subr.mxu0 0.0
        %4167 = vmatpush1.msra.mxu0 0.0
        %4168 = vmatprep.subr.mxu0 0.0
        %4169 = vmatpush1.msra.mxu0 0.0
        %4170 = vmatprep.subr.mxu0 0.0
        %4171 = vmatpush1.msra.mxu0 0.0
        %4172 = vmatprep.mubr.f32.mxu0 0.0
        %4173 = vmatmul.mubr.f32.gmra.mrb[0].mxu0 %v1499
        %v4174 = vpop.f32.mrb[0].mxu0
        %v4175 = vadd.f32 0.0, %v4174
        %v4176 = vpop.f32.mrb[0].mxu0
        %4177 = vmatprep.mubr.f32.mxu0 0.0
        %4178 = vmatmul.mubr.f32.gmra.mrb[0].mxu0 %v1501
        %v4179 = vpop.f32.mrb[0].mxu0
        %v4180 = vadd.f32 0.0, %v4179
        %v4181 = vpop.f32.mrb[0].mxu0
        %4182 = vmatprep.mubr.f32.mxu0 0.0
        %4183 = vmatmul.mubr.f32.gmra.mrb[0].mxu0 %v1503
        %v4184 = vpop.f32.mrb[0].mxu0
        %v4185 = vadd.f32 0.0, %v4184
        %v4186 = vpop.f32.mrb[0].mxu0
        %4187 = vmatprep.mubr.f32.mxu0 0.0
        %4188 = vmatmul.mubr.f32.gmra.mrb[0].mxu0 %v1505
        %v4189 = vpop.f32.mrb[0].mxu0
        %v4190 = vadd.f32 0.0, %v4189
        %v4191 = vpop.f32.mrb[0].mxu0
        %4192 = vmatprep.mubr.f32.mxu0 0.0
        %4193 = vmatmul.mubr.f32.gmra.mrb[0].mxu0 %v1507
        %v4194 = vpop.f32.mrb[0].mxu0
        %v4195 = vadd.f32 0.0, %v4194
        %v4196 = vpop.f32.mrb[0].mxu0
        %4197 = vmatprep.mubr.f32.mxu0 0.0
        %4198 = vmatmul.mubr.f32.gmra.mrb[0].mxu0 %v1509
        %v4199 = vpop.f32.mrb[0].mxu0
        %v4200 = vadd.f32 0.0, %v4199
        %v4201 = vpop.f32.mrb[0].mxu0
        %4202 = vmatprep.mubr.f32.mxu0 0.0
        %4203 = vmatmul.mubr.f32.gmra.mrb[0].mxu0 %v1511
        %v4204 = vpop.f32.mrb[0].mxu0
        %v4205 = vadd.f32 0.0, %v4204
        %v4206 = vpop.f32.mrb[0].mxu0
        %4207 = vmatprep.mubr.f32.mxu0 0.0
        %4208 = vmatmul.mubr.f32.gmra.mrb[0].mxu0 %v1513
        %v4209 = vpop.f32.mrb[0].mxu0
        %v4210 = vadd.f32 0.0, %v4209
        %v4211 = vpop.f32.mrb[0].mxu0
        %4212 = vmatprep.mubr.f32.mxu0 0.0
        %4213 = vmatmul.mubr.f32.gmra.mrb[0].mxu0 %v1515
        %v4214 = vpop.f32.mrb[0].mxu0
        %v4215 = vadd.f32 0.0, %v4214
        %v4216 = vpop.f32.mrb[0].mxu0
        %4217 = vmatprep.mubr.f32.mxu0 0.0
        %4218 = vmatmul.mubr.f32.gmra.mrb[0].mxu0 %v1517
        %v4219 = vpop.f32.mrb[0].mxu0
        %v4220 = vadd.f32 0.0, %v4219
        %v4221 = vpop.f32.mrb[0].mxu0
        %4222 = vmatprep.mubr.f32.mxu0 0.0
        %4223 = vmatmul.mubr.f32.gmra.mrb[0].mxu0 %v2378
        %v4224 = vpop.f32.mrb[0].mxu0
        %v4225 = vadd.f32 0.0, %v4224
        %v4226 = vpop.f32.mrb[0].mxu0
        %4227 = vmatprep.mubr.f32.mxu0 0.0
        %4228 = vmatmul.mubr.f32.gmra.mrb[0].mxu0 %v2380
        %v4229 = vpop.f32.mrb[0].mxu0
        %v4230 = vadd.f32 0.0, %v4229
        %v4231 = vpop.f32.mrb[0].mxu0
        %4232 = vmatprep.mubr.f32.mxu0 0.0
        %4233 = vmatmul.mubr.f32.gmra.mrb[0].mxu0 %v3241
        %v4234 = vpop.f32.mrb[0].mxu0
        %v4235 = vadd.f32 0.0, %v4234
        %v4236 = vpop.f32.mrb[0].mxu0
        %4237 = vmatprep.mubr.f32.mxu0 0.0
        %4238 = vmatmul.mubr.f32.gmra.mrb[0].mxu0 %v3243
        %v4239 = vpop.f32.mrb[0].mxu0
        %v4240 = vadd.f32 0.0, %v4239
        %v4241 = vpop.f32.mrb[0].mxu0
        %4242 = vmatprep.mubr.f32.mxu0 0.0
        %4243 = vmatmul.mubr.f32.gmra.mrb[0].mxu0 %v4104
        %v4244 = vpop.f32.mrb[0].mxu0
        %v4245 = vadd.f32 0.0, %v4244
        %v4246 = vpop.f32.mrb[0].mxu0
        %4247 = vmatprep.mubr.f32.mxu0 0.0
        %4248 = vmatmul.mubr.f32.gmra.mrb[0].mxu0 %v4106
        %v4249 = vpop.f32.mrb[0].mxu0
        %v4250 = vadd.f32 0.0, %v4249
        %v4251 = vpop.f32.mrb[0].mxu0
        %4252 = vdwg.mxu0
        %v4253 = vadd.f32 %v4080, %v4175
        %v4254 = vadd.f32 %v4081, %v4180
        %v4255 = vadd.f32 %v4082, %v4185
        %v4256 = vadd.f32 %v4083, %v4190
        %v4257 = vadd.f32 %v4084, %v4195
        %v4258 = vadd.f32 %v4085, %v4200
        %v4259 = vadd.f32 %v4086, %v4205
        %v4260 = vadd.f32 %v4087, %v4210
        %v4261 = vadd.f32 %v4088, %v4215
        %v4262 = vadd.f32 %v4089, %v4220
        %v4263 = vadd.f32 %v4090, %v4225
        %v4264 = vadd.f32 %v4091, %v4230
        %v4265 = vadd.f32 %v4092, %v4235
        %v4266 = vadd.f32 %v4093, %v4240
        %v4267 = vadd.f32 %v4094, %v4245
        %v4268 = vadd.f32 %v4095, %v4250
        %s4269 = scalar_lea.vmem %s2, 320
        %v4270 = vld [vmem:[%s4269] sm:$0xff]
        %v4271 = vld [vmem:[%s4269 + $0x8] sm:$0xff]
        %v4273 = vsel %vm444, %v542, 0
        %v4276 = vsel %vm444, %v543, 0
        %4278 = vmatprep.subr.mxu0 0.0
        %4279 = vmatpush1.msra.mxu0 %v4270
        %4280 = vmatprep.subr.mxu0 0.0
        %4281 = vmatpush1.msra.mxu0 %v4271
        %4282 = vmatprep.subr.mxu0 0.0
        %4283 = vmatpush1.msra.mxu0 0.0
        %4284 = vmatprep.subr.mxu0 0.0
        %4285 = vmatpush1.msra.mxu0 0.0
        %4286 = vmatprep.subr.mxu0 0.0
        %4287 = vmatpush1.msra.mxu0 0.0
        %4288 = vmatprep.subr.mxu0 0.0
        %4289 = vmatpush1.msra.mxu0 0.0
        %4290 = vmatprep.subr.mxu0 0.0
        %4291 = vmatpush1.msra.mxu0 0.0
        %4292 = vmatprep.subr.mxu0 0.0
        %4293 = vmatpush1.msra.mxu0 0.0
        %4294 = vmatprep.subr.mxu0 0.0
        %4295 = vmatpush1.msra.mxu0 0.0
        %4296 = vmatprep.subr.mxu0 0.0
        %4297 = vmatpush1.msra.mxu0 0.0
        %4298 = vmatprep.subr.mxu0 0.0
        %4299 = vmatpush1.msra.mxu0 0.0
        %4300 = vmatprep.subr.mxu0 0.0
        %4301 = vmatpush1.msra.mxu0 0.0
        %4302 = vmatprep.subr.mxu0 0.0
        %4303 = vmatpush1.msra.mxu0 0.0
        %4304 = vmatprep.subr.mxu0 0.0
        %4305 = vmatpush1.msra.mxu0 0.0
        %4306 = vmatprep.subr.mxu0 0.0
        %4307 = vmatpush1.msra.mxu0 0.0
        %4308 = vmatprep.subr.mxu0 0.0
        %4309 = vmatpush1.msra.mxu0 0.0
        %4310 = vmatprep.subr.mxu0 0.0
        %4311 = vmatpush1.msra.mxu0 0.0
        %4312 = vmatprep.subr.mxu0 0.0
        %4313 = vmatpush1.msra.mxu0 0.0
        %4314 = vmatprep.subr.mxu0 0.0
        %4315 = vmatpush1.msra.mxu0 0.0
        %4316 = vmatprep.subr.mxu0 0.0
        %4317 = vmatpush1.msra.mxu0 0.0
        %4318 = vmatprep.subr.mxu0 0.0
        %4319 = vmatpush1.msra.mxu0 0.0
        %4320 = vmatprep.subr.mxu0 0.0
        %4321 = vmatpush1.msra.mxu0 0.0
        %4322 = vmatprep.subr.mxu0 0.0
        %4323 = vmatpush1.msra.mxu0 0.0
        %4324 = vmatprep.subr.mxu0 0.0
        %4325 = vmatpush1.msra.mxu0 0.0
        %4326 = vmatprep.subr.mxu0 0.0
        %4327 = vmatpush1.msra.mxu0 0.0
        %4328 = vmatprep.subr.mxu0 0.0
        %4329 = vmatpush1.msra.mxu0 0.0
        %4330 = vmatprep.subr.mxu0 0.0
        %4331 = vmatpush1.msra.mxu0 0.0
        %4332 = vmatprep.subr.mxu0 0.0
        %4333 = vmatpush1.msra.mxu0 0.0
        %4334 = vmatprep.subr.mxu0 0.0
        %4335 = vmatpush1.msra.mxu0 0.0
        %4336 = vmatprep.subr.mxu0 0.0
        %4337 = vmatpush1.msra.mxu0 0.0
        %4338 = vmatprep.subr.mxu0 0.0
        %4339 = vmatpush1.msra.mxu0 0.0
        %4340 = vmatprep.subr.mxu0 0.0
        %4341 = vmatpush1.msra.mxu0 0.0
        %4342 = vmatprep.mubr.f32.mxu0 0.0
        %4343 = vmatmul.mubr.f32.gmra.mrb[0].mxu0 %v808
        %v4344 = vpop.f32.mrb[0].mxu0
        %v4345 = vadd.f32 0.0, %v4344
        %v4346 = vpop.f32.mrb[0].mxu0
        %4347 = vmatprep.mubr.f32.mxu0 0.0
        %4348 = vmatmul.mubr.f32.gmra.mrb[0].mxu0 %v810
        %v4349 = vpop.f32.mrb[0].mxu0
        %v4350 = vadd.f32 0.0, %v4349
        %v4351 = vpop.f32.mrb[0].mxu0
        %4352 = vmatprep.mubr.f32.mxu0 0.0
        %4353 = vmatmul.mubr.f32.gmra.mrb[0].mxu0 %v812
        %v4354 = vpop.f32.mrb[0].mxu0
        %v4355 = vadd.f32 0.0, %v4354
        %v4356 = vpop.f32.mrb[0].mxu0
        %4357 = vmatprep.mubr.f32.mxu0 0.0
        %4358 = vmatmul.mubr.f32.gmra.mrb[0].mxu0 %v814
        %v4359 = vpop.f32.mrb[0].mxu0
        %v4360 = vadd.f32 0.0, %v4359
        %v4361 = vpop.f32.mrb[0].mxu0
        %4362 = vmatprep.mubr.f32.mxu0 0.0
        %4363 = vmatmul.mubr.f32.gmra.mrb[0].mxu0 %v816
        %v4364 = vpop.f32.mrb[0].mxu0
        %v4365 = vadd.f32 0.0, %v4364
        %v4366 = vpop.f32.mrb[0].mxu0
        %4367 = vmatprep.mubr.f32.mxu0 0.0
        %4368 = vmatmul.mubr.f32.gmra.mrb[0].mxu0 %v818
        %v4369 = vpop.f32.mrb[0].mxu0
        %v4370 = vadd.f32 0.0, %v4369
        %v4371 = vpop.f32.mrb[0].mxu0
        %4372 = vmatprep.mubr.f32.mxu0 0.0
        %4373 = vmatmul.mubr.f32.gmra.mrb[0].mxu0 %v820
        %v4374 = vpop.f32.mrb[0].mxu0
        %v4375 = vadd.f32 0.0, %v4374
        %v4376 = vpop.f32.mrb[0].mxu0
        %4377 = vmatprep.mubr.f32.mxu0 0.0
        %4378 = vmatmul.mubr.f32.gmra.mrb[0].mxu0 %v822
        %v4379 = vpop.f32.mrb[0].mxu0
        %v4380 = vadd.f32 0.0, %v4379
        %v4381 = vpop.f32.mrb[0].mxu0
        %4382 = vmatprep.mubr.f32.mxu0 0.0
        %4383 = vmatmul.mubr.f32.gmra.mrb[0].mxu0 %v1684
        %v4384 = vpop.f32.mrb[0].mxu0
        %v4385 = vadd.f32 0.0, %v4384
        %v4386 = vpop.f32.mrb[0].mxu0
        %4387 = vmatprep.mubr.f32.mxu0 0.0
        %4388 = vmatmul.mubr.f32.gmra.mrb[0].mxu0 %v1687
        %v4389 = vpop.f32.mrb[0].mxu0
        %v4390 = vadd.f32 0.0, %v4389
        %v4391 = vpop.f32.mrb[0].mxu0
        %4392 = vmatprep.mubr.f32.mxu0 0.0
        %4393 = vmatmul.mubr.f32.gmra.mrb[0].mxu0 %v2547
        %v4394 = vpop.f32.mrb[0].mxu0
        %v4395 = vadd.f32 0.0, %v4394
        %v4396 = vpop.f32.mrb[0].mxu0
        %4397 = vmatprep.mubr.f32.mxu0 0.0
        %4398 = vmatmul.mubr.f32.gmra.mrb[0].mxu0 %v2550
        %v4399 = vpop.f32.mrb[0].mxu0
        %v4400 = vadd.f32 0.0, %v4399
        %v4401 = vpop.f32.mrb[0].mxu0
        %4402 = vmatprep.mubr.f32.mxu0 0.0
        %4403 = vmatmul.mubr.f32.gmra.mrb[0].mxu0 %v3410
        %v4404 = vpop.f32.mrb[0].mxu0
        %v4405 = vadd.f32 0.0, %v4404
        %v4406 = vpop.f32.mrb[0].mxu0
        %4407 = vmatprep.mubr.f32.mxu0 0.0
        %4408 = vmatmul.mubr.f32.gmra.mrb[0].mxu0 %v3413
        %v4409 = vpop.f32.mrb[0].mxu0
        %v4410 = vadd.f32 0.0, %v4409
        %v4411 = vpop.f32.mrb[0].mxu0
        %4412 = vmatprep.mubr.f32.mxu0 0.0
        %4413 = vmatmul.mubr.f32.gmra.mrb[0].mxu0 %v4273
        %v4414 = vpop.f32.mrb[0].mxu0
        %v4415 = vadd.f32 0.0, %v4414
        %v4416 = vpop.f32.mrb[0].mxu0
        %4417 = vmatprep.mubr.f32.mxu0 0.0
        %4418 = vmatmul.mubr.f32.gmra.mrb[0].mxu0 %v4276
        %v4419 = vpop.f32.mrb[0].mxu0
        %v4420 = vadd.f32 0.0, %v4419
        %v4421 = vpop.f32.mrb[0].mxu0
        %4422 = vdwg.mxu0
        %v4423 = vadd.f32 %v4253, %v4345
        %v4424 = vadd.f32 %v4254, %v4350
        %v4425 = vadd.f32 %v4255, %v4355
        %v4426 = vadd.f32 %v4256, %v4360
        %v4427 = vadd.f32 %v4257, %v4365
        %v4428 = vadd.f32 %v4258, %v4370
        %v4429 = vadd.f32 %v4259, %v4375
        %v4430 = vadd.f32 %v4260, %v4380
        %v4431 = vadd.f32 %v4261, %v4385
        %v4432 = vadd.f32 %v4262, %v4390
        %v4433 = vadd.f32 %v4263, %v4395
        %v4434 = vadd.f32 %v4264, %v4400
        %v4435 = vadd.f32 %v4265, %v4405
        %v4436 = vadd.f32 %v4266, %v4410
        %v4437 = vadd.f32 %v4267, %v4415
        %v4438 = vadd.f32 %v4268, %v4420
        %v4440 = vrot.slane %v542, 1
        %v4441 = vrot.slane %v543, 1
        %v4442 = vsel %vm571, %v4440, %v4441
        %v4443 = vrot.slane %v544, 1
        %v4444 = vsel %vm571, %v4441, %v4443
        %s4445 = scalar_lea.vmem %s2, 336
        %v4446 = vld [vmem:[%s4445] sm:$0xff]
        %v4447 = vld [vmem:[%s4445 + $0x8] sm:$0xff]
        %v4448 = vsel %vm444, %v4442, 0
        %v4450 = vsel %vm444, %v4444, 0
        %4452 = vmatprep.subr.mxu0 0.0
        %4453 = vmatpush1.msra.mxu0 %v4446
        %4454 = vmatprep.subr.mxu0 0.0
        %4455 = vmatpush1.msra.mxu0 %v4447
        %4456 = vmatprep.subr.mxu0 0.0
        %4457 = vmatpush1.msra.mxu0 0.0
        %4458 = vmatprep.subr.mxu0 0.0
        %4459 = vmatpush1.msra.mxu0 0.0
        %4460 = vmatprep.subr.mxu0 0.0
        %4461 = vmatpush1.msra.mxu0 0.0
        %4462 = vmatprep.subr.mxu0 0.0
        %4463 = vmatpush1.msra.mxu0 0.0
        %4464 = vmatprep.subr.mxu0 0.0
        %4465 = vmatpush1.msra.mxu0 0.0
        %4466 = vmatprep.subr.mxu0 0.0
        %4467 = vmatpush1.msra.mxu0 0.0
        %4468 = vmatprep.subr.mxu0 0.0
        %4469 = vmatpush1.msra.mxu0 0.0
        %4470 = vmatprep.subr.mxu0 0.0
        %4471 = vmatpush1.msra.mxu0 0.0
        %4472 = vmatprep.subr.mxu0 0.0
        %4473 = vmatpush1.msra.mxu0 0.0
        %4474 = vmatprep.subr.mxu0 0.0
        %4475 = vmatpush1.msra.mxu0 0.0
        %4476 = vmatprep.subr.mxu0 0.0
        %4477 = vmatpush1.msra.mxu0 0.0
        %4478 = vmatprep.subr.mxu0 0.0
        %4479 = vmatpush1.msra.mxu0 0.0
        %4480 = vmatprep.subr.mxu0 0.0
        %4481 = vmatpush1.msra.mxu0 0.0
        %4482 = vmatprep.subr.mxu0 0.0
        %4483 = vmatpush1.msra.mxu0 0.0
        %4484 = vmatprep.subr.mxu0 0.0
        %4485 = vmatpush1.msra.mxu0 0.0
        %4486 = vmatprep.subr.mxu0 0.0
        %4487 = vmatpush1.msra.mxu0 0.0
        %4488 = vmatprep.subr.mxu0 0.0
        %4489 = vmatpush1.msra.mxu0 0.0
        %4490 = vmatprep.subr.mxu0 0.0
        %4491 = vmatpush1.msra.mxu0 0.0
        %4492 = vmatprep.subr.mxu0 0.0
        %4493 = vmatpush1.msra.mxu0 0.0
        %4494 = vmatprep.subr.mxu0 0.0
        %4495 = vmatpush1.msra.mxu0 0.0
        %4496 = vmatprep.subr.mxu0 0.0
        %4497 = vmatpush1.msra.mxu0 0.0
        %4498 = vmatprep.subr.mxu0 0.0
        %4499 = vmatpush1.msra.mxu0 0.0
        %4500 = vmatprep.subr.mxu0 0.0
        %4501 = vmatpush1.msra.mxu0 0.0
        %4502 = vmatprep.subr.mxu0 0.0
        %4503 = vmatpush1.msra.mxu0 0.0
        %4504 = vmatprep.subr.mxu0 0.0
        %4505 = vmatpush1.msra.mxu0 0.0
        %4506 = vmatprep.subr.mxu0 0.0
        %4507 = vmatpush1.msra.mxu0 0.0
        %4508 = vmatprep.subr.mxu0 0.0
        %4509 = vmatpush1.msra.mxu0 0.0
        %4510 = vmatprep.subr.mxu0 0.0
        %4511 = vmatpush1.msra.mxu0 0.0
        %4512 = vmatprep.subr.mxu0 0.0
        %4513 = vmatpush1.msra.mxu0 0.0
        %4514 = vmatprep.subr.mxu0 0.0
        %4515 = vmatpush1.msra.mxu0 0.0
        %4516 = vmatprep.mubr.f32.mxu0 0.0
        %4517 = vmatmul.mubr.f32.gmra.mrb[0].mxu0 %v631
        %v4518 = vpop.f32.mrb[0].mxu0
        %v4519 = vadd.f32 0.0, %v4518
        %v4520 = vpop.f32.mrb[0].mxu0
        %4521 = vmatprep.mubr.f32.mxu0 0.0
        %4522 = vmatmul.mubr.f32.gmra.mrb[0].mxu0 %v633
        %v4523 = vpop.f32.mrb[0].mxu0
        %v4524 = vadd.f32 0.0, %v4523
        %v4525 = vpop.f32.mrb[0].mxu0
        %4526 = vmatprep.mubr.f32.mxu0 0.0
        %4527 = vmatmul.mubr.f32.gmra.mrb[0].mxu0 %v635
        %v4528 = vpop.f32.mrb[0].mxu0
        %v4529 = vadd.f32 0.0, %v4528
        %v4530 = vpop.f32.mrb[0].mxu0
        %4531 = vmatprep.mubr.f32.mxu0 0.0
        %4532 = vmatmul.mubr.f32.gmra.mrb[0].mxu0 %v637
        %v4533 = vpop.f32.mrb[0].mxu0
        %v4534 = vadd.f32 0.0, %v4533
        %v4535 = vpop.f32.mrb[0].mxu0
        %4536 = vmatprep.mubr.f32.mxu0 0.0
        %4537 = vmatmul.mubr.f32.gmra.mrb[0].mxu0 %v639
        %v4538 = vpop.f32.mrb[0].mxu0
        %v4539 = vadd.f32 0.0, %v4538
        %v4540 = vpop.f32.mrb[0].mxu0
        %4541 = vmatprep.mubr.f32.mxu0 0.0
        %4542 = vmatmul.mubr.f32.gmra.mrb[0].mxu0 %v641
        %v4543 = vpop.f32.mrb[0].mxu0
        %v4544 = vadd.f32 0.0, %v4543
        %v4545 = vpop.f32.mrb[0].mxu0
        %4546 = vmatprep.mubr.f32.mxu0 0.0
        %4547 = vmatmul.mubr.f32.gmra.mrb[0].mxu0 %v643
        %v4548 = vpop.f32.mrb[0].mxu0
        %v4549 = vadd.f32 0.0, %v4548
        %v4550 = vpop.f32.mrb[0].mxu0
        %4551 = vmatprep.mubr.f32.mxu0 0.0
        %4552 = vmatmul.mubr.f32.gmra.mrb[0].mxu0 %v645
        %v4553 = vpop.f32.mrb[0].mxu0
        %v4554 = vadd.f32 0.0, %v4553
        %v4555 = vpop.f32.mrb[0].mxu0
        %4556 = vmatprep.mubr.f32.mxu0 0.0
        %4557 = vmatmul.mubr.f32.gmra.mrb[0].mxu0 %v1859
        %v4558 = vpop.f32.mrb[0].mxu0
        %v4559 = vadd.f32 0.0, %v4558
        %v4560 = vpop.f32.mrb[0].mxu0
        %4561 = vmatprep.mubr.f32.mxu0 0.0
        %4562 = vmatmul.mubr.f32.gmra.mrb[0].mxu0 %v1861
        %v4563 = vpop.f32.mrb[0].mxu0
        %v4564 = vadd.f32 0.0, %v4563
        %v4565 = vpop.f32.mrb[0].mxu0
        %4566 = vmatprep.mubr.f32.mxu0 0.0
        %4567 = vmatmul.mubr.f32.gmra.mrb[0].mxu0 %v2722
        %v4568 = vpop.f32.mrb[0].mxu0
        %v4569 = vadd.f32 0.0, %v4568
        %v4570 = vpop.f32.mrb[0].mxu0
        %4571 = vmatprep.mubr.f32.mxu0 0.0
        %4572 = vmatmul.mubr.f32.gmra.mrb[0].mxu0 %v2724
        %v4573 = vpop.f32.mrb[0].mxu0
        %v4574 = vadd.f32 0.0, %v4573
        %v4575 = vpop.f32.mrb[0].mxu0
        %4576 = vmatprep.mubr.f32.mxu0 0.0
        %4577 = vmatmul.mubr.f32.gmra.mrb[0].mxu0 %v3585
        %v4578 = vpop.f32.mrb[0].mxu0
        %v4579 = vadd.f32 0.0, %v4578
        %v4580 = vpop.f32.mrb[0].mxu0
        %4581 = vmatprep.mubr.f32.mxu0 0.0
        %4582 = vmatmul.mubr.f32.gmra.mrb[0].mxu0 %v3587
        %v4583 = vpop.f32.mrb[0].mxu0
        %v4584 = vadd.f32 0.0, %v4583
        %v4585 = vpop.f32.mrb[0].mxu0
        %4586 = vmatprep.mubr.f32.mxu0 0.0
        %4587 = vmatmul.mubr.f32.gmra.mrb[0].mxu0 %v4448
        %v4588 = vpop.f32.mrb[0].mxu0
        %v4589 = vadd.f32 0.0, %v4588
        %v4590 = vpop.f32.mrb[0].mxu0
        %4591 = vmatprep.mubr.f32.mxu0 0.0
        %4592 = vmatmul.mubr.f32.gmra.mrb[0].mxu0 %v4450
        %v4593 = vpop.f32.mrb[0].mxu0
        %v4594 = vadd.f32 0.0, %v4593
        %v4595 = vpop.f32.mrb[0].mxu0
        %4596 = vdwg.mxu0
        %v4597 = vadd.f32 %v4423, %v4519
        %v4598 = vadd.f32 %v4424, %v4524
        %v4599 = vadd.f32 %v4425, %v4529
        %v4600 = vadd.f32 %v4426, %v4534
        %v4601 = vadd.f32 %v4427, %v4539
        %v4602 = vadd.f32 %v4428, %v4544
        %v4603 = vadd.f32 %v4429, %v4549
        %v4604 = vadd.f32 %v4430, %v4554
        %v4605 = vadd.f32 %v4431, %v4559
        %v4606 = vadd.f32 %v4432, %v4564
        %v4607 = vadd.f32 %v4433, %v4569
        %v4608 = vadd.f32 %v4434, %v4574
        %v4609 = vadd.f32 %v4435, %v4579
        %v4610 = vadd.f32 %v4436, %v4584
        %v4611 = vadd.f32 %v4437, %v4589
        %v4612 = vadd.f32 %v4438, %v4594
        %v4613 = vrot.slane %v542, 2
        %v4614 = vrot.slane %v543, 2
        %v4615 = vsel %vm969, %v4613, %v4614
        %v4616 = vrot.slane %v544, 2
        %v4617 = vsel %vm969, %v4614, %v4616
        %s4618 = scalar_lea.vmem %s2, 352
        %v4619 = vld [vmem:[%s4618] sm:$0xff]
        %v4620 = vld [vmem:[%s4618 + $0x8] sm:$0xff]
        %v4621 = vsel %vm444, %v4615, 0
        %v4623 = vsel %vm444, %v4617, 0
        %4625 = vmatprep.subr.mxu0 0.0
        %4626 = vmatpush1.msra.mxu0 %v4619
        %4627 = vmatprep.subr.mxu0 0.0
        %4628 = vmatpush1.msra.mxu0 %v4620
        %4629 = vmatprep.subr.mxu0 0.0
        %4630 = vmatpush1.msra.mxu0 0.0
        %4631 = vmatprep.subr.mxu0 0.0
        %4632 = vmatpush1.msra.mxu0 0.0
        %4633 = vmatprep.subr.mxu0 0.0
        %4634 = vmatpush1.msra.mxu0 0.0
        %4635 = vmatprep.subr.mxu0 0.0
        %4636 = vmatpush1.msra.mxu0 0.0
        %4637 = vmatprep.subr.mxu0 0.0
        %4638 = vmatpush1.msra.mxu0 0.0
        %4639 = vmatprep.subr.mxu0 0.0
        %4640 = vmatpush1.msra.mxu0 0.0
        %4641 = vmatprep.subr.mxu0 0.0
        %4642 = vmatpush1.msra.mxu0 0.0
        %4643 = vmatprep.subr.mxu0 0.0
        %4644 = vmatpush1.msra.mxu0 0.0
        %4645 = vmatprep.subr.mxu0 0.0
        %4646 = vmatpush1.msra.mxu0 0.0
        %4647 = vmatprep.subr.mxu0 0.0
        %4648 = vmatpush1.msra.mxu0 0.0
        %4649 = vmatprep.subr.mxu0 0.0
        %4650 = vmatpush1.msra.mxu0 0.0
        %4651 = vmatprep.subr.mxu0 0.0
        %4652 = vmatpush1.msra.mxu0 0.0
        %4653 = vmatprep.subr.mxu0 0.0
        %4654 = vmatpush1.msra.mxu0 0.0
        %4655 = vmatprep.subr.mxu0 0.0
        %4656 = vmatpush1.msra.mxu0 0.0
        %4657 = vmatprep.subr.mxu0 0.0
        %4658 = vmatpush1.msra.mxu0 0.0
        %4659 = vmatprep.subr.mxu0 0.0
        %4660 = vmatpush1.msra.mxu0 0.0
        %4661 = vmatprep.subr.mxu0 0.0
        %4662 = vmatpush1.msra.mxu0 0.0
        %4663 = vmatprep.subr.mxu0 0.0
        %4664 = vmatpush1.msra.mxu0 0.0
        %4665 = vmatprep.subr.mxu0 0.0
        %4666 = vmatpush1.msra.mxu0 0.0
        %4667 = vmatprep.subr.mxu0 0.0
        %4668 = vmatpush1.msra.mxu0 0.0
        %4669 = vmatprep.subr.mxu0 0.0
        %4670 = vmatpush1.msra.mxu0 0.0
        %4671 = vmatprep.subr.mxu0 0.0
        %4672 = vmatpush1.msra.mxu0 0.0
        %4673 = vmatprep.subr.mxu0 0.0
        %4674 = vmatpush1.msra.mxu0 0.0
        %4675 = vmatprep.subr.mxu0 0.0
        %4676 = vmatpush1.msra.mxu0 0.0
        %4677 = vmatprep.subr.mxu0 0.0
        %4678 = vmatpush1.msra.mxu0 0.0
        %4679 = vmatprep.subr.mxu0 0.0
        %4680 = vmatpush1.msra.mxu0 0.0
        %4681 = vmatprep.subr.mxu0 0.0
        %4682 = vmatpush1.msra.mxu0 0.0
        %4683 = vmatprep.subr.mxu0 0.0
        %4684 = vmatpush1.msra.mxu0 0.0
        %4685 = vmatprep.subr.mxu0 0.0
        %4686 = vmatpush1.msra.mxu0 0.0
        %4687 = vmatprep.subr.mxu0 0.0
        %4688 = vmatpush1.msra.mxu0 0.0
        %4689 = vmatprep.mubr.f32.mxu0 0.0
        %4690 = vmatmul.mubr.f32.gmra.mrb[0].mxu0 %v1029
        %v4691 = vpop.f32.mrb[0].mxu0
        %v4692 = vadd.f32 0.0, %v4691
        %v4693 = vpop.f32.mrb[0].mxu0
        %4694 = vmatprep.mubr.f32.mxu0 0.0
        %4695 = vmatmul.mubr.f32.gmra.mrb[0].mxu0 %v1031
        %v4696 = vpop.f32.mrb[0].mxu0
        %v4697 = vadd.f32 0.0, %v4696
        %v4698 = vpop.f32.mrb[0].mxu0
        %4699 = vmatprep.mubr.f32.mxu0 0.0
        %4700 = vmatmul.mubr.f32.gmra.mrb[0].mxu0 %v1033
        %v4701 = vpop.f32.mrb[0].mxu0
        %v4702 = vadd.f32 0.0, %v4701
        %v4703 = vpop.f32.mrb[0].mxu0
        %4704 = vmatprep.mubr.f32.mxu0 0.0
        %4705 = vmatmul.mubr.f32.gmra.mrb[0].mxu0 %v1035
        %v4706 = vpop.f32.mrb[0].mxu0
        %v4707 = vadd.f32 0.0, %v4706
        %v4708 = vpop.f32.mrb[0].mxu0
        %4709 = vmatprep.mubr.f32.mxu0 0.0
        %4710 = vmatmul.mubr.f32.gmra.mrb[0].mxu0 %v1037
        %v4711 = vpop.f32.mrb[0].mxu0
        %v4712 = vadd.f32 0.0, %v4711
        %v4713 = vpop.f32.mrb[0].mxu0
        %4714 = vmatprep.mubr.f32.mxu0 0.0
        %4715 = vmatmul.mubr.f32.gmra.mrb[0].mxu0 %v1039
        %v4716 = vpop.f32.mrb[0].mxu0
        %v4717 = vadd.f32 0.0, %v4716
        %v4718 = vpop.f32.mrb[0].mxu0
        %4719 = vmatprep.mubr.f32.mxu0 0.0
        %4720 = vmatmul.mubr.f32.gmra.mrb[0].mxu0 %v1041
        %v4721 = vpop.f32.mrb[0].mxu0
        %v4722 = vadd.f32 0.0, %v4721
        %v4723 = vpop.f32.mrb[0].mxu0
        %4724 = vmatprep.mubr.f32.mxu0 0.0
        %4725 = vmatmul.mubr.f32.gmra.mrb[0].mxu0 %v1043
        %v4726 = vpop.f32.mrb[0].mxu0
        %v4727 = vadd.f32 0.0, %v4726
        %v4728 = vpop.f32.mrb[0].mxu0
        %4729 = vmatprep.mubr.f32.mxu0 0.0
        %4730 = vmatmul.mubr.f32.gmra.mrb[0].mxu0 %v2032
        %v4731 = vpop.f32.mrb[0].mxu0
        %v4732 = vadd.f32 0.0, %v4731
        %v4733 = vpop.f32.mrb[0].mxu0
        %4734 = vmatprep.mubr.f32.mxu0 0.0
        %4735 = vmatmul.mubr.f32.gmra.mrb[0].mxu0 %v2034
        %v4736 = vpop.f32.mrb[0].mxu0
        %v4737 = vadd.f32 0.0, %v4736
        %v4738 = vpop.f32.mrb[0].mxu0
        %4739 = vmatprep.mubr.f32.mxu0 0.0
        %4740 = vmatmul.mubr.f32.gmra.mrb[0].mxu0 %v2895
        %v4741 = vpop.f32.mrb[0].mxu0
        %v4742 = vadd.f32 0.0, %v4741
        %v4743 = vpop.f32.mrb[0].mxu0
        %4744 = vmatprep.mubr.f32.mxu0 0.0
        %4745 = vmatmul.mubr.f32.gmra.mrb[0].mxu0 %v2897
        %v4746 = vpop.f32.mrb[0].mxu0
        %v4747 = vadd.f32 0.0, %v4746
        %v4748 = vpop.f32.mrb[0].mxu0
        %4749 = vmatprep.mubr.f32.mxu0 0.0
        %4750 = vmatmul.mubr.f32.gmra.mrb[0].mxu0 %v3758
        %v4751 = vpop.f32.mrb[0].mxu0
        %v4752 = vadd.f32 0.0, %v4751
        %v4753 = vpop.f32.mrb[0].mxu0
        %4754 = vmatprep.mubr.f32.mxu0 0.0
        %4755 = vmatmul.mubr.f32.gmra.mrb[0].mxu0 %v3760
        %v4756 = vpop.f32.mrb[0].mxu0
        %v4757 = vadd.f32 0.0, %v4756
        %v4758 = vpop.f32.mrb[0].mxu0
        %4759 = vmatprep.mubr.f32.mxu0 0.0
        %4760 = vmatmul.mubr.f32.gmra.mrb[0].mxu0 %v4621
        %v4761 = vpop.f32.mrb[0].mxu0
        %v4762 = vadd.f32 0.0, %v4761
        %v4763 = vpop.f32.mrb[0].mxu0
        %4764 = vmatprep.mubr.f32.mxu0 0.0
        %4765 = vmatmul.mubr.f32.gmra.mrb[0].mxu0 %v4623
        %v4766 = vpop.f32.mrb[0].mxu0
        %v4767 = vadd.f32 0.0, %v4766
        %v4768 = vpop.f32.mrb[0].mxu0
        %4769 = vdwg.mxu0
        %v4770 = vadd.f32 %v4597, %v4692
        %v4771 = vadd.f32 %v4598, %v4697
        %v4772 = vadd.f32 %v4599, %v4702
        %v4773 = vadd.f32 %v4600, %v4707
        %v4774 = vadd.f32 %v4601, %v4712
        %v4775 = vadd.f32 %v4602, %v4717
        %v4776 = vadd.f32 %v4603, %v4722
        %v4777 = vadd.f32 %v4604, %v4727
        %v4778 = vadd.f32 %v4605, %v4732
        %v4779 = vadd.f32 %v4606, %v4737
        %v4780 = vadd.f32 %v4607, %v4742
        %v4781 = vadd.f32 %v4608, %v4747
        %v4782 = vadd.f32 %v4609, %v4752
        %v4783 = vadd.f32 %v4610, %v4757
        %v4784 = vadd.f32 %v4611, %v4762
        %v4785 = vadd.f32 %v4612, %v4767
        %v4786 = vrot.slane %v542, 3
        %v4787 = vrot.slane %v543, 3
        %v4788 = vsel %vm1206, %v4786, %v4787
        %v4789 = vrot.slane %v544, 3
        %v4790 = vsel %vm1206, %v4787, %v4789
        %s4791 = scalar_lea.vmem %s2, 368
        %v4792 = vld [vmem:[%s4791] sm:$0xff]
        %v4793 = vld [vmem:[%s4791 + $0x8] sm:$0xff]
        %v4794 = vsel %vm444, %v4788, 0
        %v4796 = vsel %vm444, %v4790, 0
        %4798 = vmatprep.subr.mxu0 0.0
        %4799 = vmatpush1.msra.mxu0 %v4792
        %4800 = vmatprep.subr.mxu0 0.0
        %4801 = vmatpush1.msra.mxu0 %v4793
        %4802 = vmatprep.subr.mxu0 0.0
        %4803 = vmatpush1.msra.mxu0 0.0
        %4804 = vmatprep.subr.mxu0 0.0
        %4805 = vmatpush1.msra.mxu0 0.0
        %4806 = vmatprep.subr.mxu0 0.0
        %4807 = vmatpush1.msra.mxu0 0.0
        %4808 = vmatprep.subr.mxu0 0.0
        %4809 = vmatpush1.msra.mxu0 0.0
        %4810 = vmatprep.subr.mxu0 0.0
        %4811 = vmatpush1.msra.mxu0 0.0
        %4812 = vmatprep.subr.mxu0 0.0
        %4813 = vmatpush1.msra.mxu0 0.0
        %4814 = vmatprep.subr.mxu0 0.0
        %4815 = vmatpush1.msra.mxu0 0.0
        %4816 = vmatprep.subr.mxu0 0.0
        %4817 = vmatpush1.msra.mxu0 0.0
        %4818 = vmatprep.subr.mxu0 0.0
        %4819 = vmatpush1.msra.mxu0 0.0
        %4820 = vmatprep.subr.mxu0 0.0
        %4821 = vmatpush1.msra.mxu0 0.0
        %4822 = vmatprep.subr.mxu0 0.0
        %4823 = vmatpush1.msra.mxu0 0.0
        %4824 = vmatprep.subr.mxu0 0.0
        %4825 = vmatpush1.msra.mxu0 0.0
        %4826 = vmatprep.subr.mxu0 0.0
        %4827 = vmatpush1.msra.mxu0 0.0
        %4828 = vmatprep.subr.mxu0 0.0
        %4829 = vmatpush1.msra.mxu0 0.0
        %4830 = vmatprep.subr.mxu0 0.0
        %4831 = vmatpush1.msra.mxu0 0.0
        %4832 = vmatprep.subr.mxu0 0.0
        %4833 = vmatpush1.msra.mxu0 0.0
        %4834 = vmatprep.subr.mxu0 0.0
        %4835 = vmatpush1.msra.mxu0 0.0
        %4836 = vmatprep.subr.mxu0 0.0
        %4837 = vmatpush1.msra.mxu0 0.0
        %4838 = vmatprep.subr.mxu0 0.0
        %4839 = vmatpush1.msra.mxu0 0.0
        %4840 = vmatprep.subr.mxu0 0.0
        %4841 = vmatpush1.msra.mxu0 0.0
        %4842 = vmatprep.subr.mxu0 0.0
        %4843 = vmatpush1.msra.mxu0 0.0
        %4844 = vmatprep.subr.mxu0 0.0
        %4845 = vmatpush1.msra.mxu0 0.0
        %4846 = vmatprep.subr.mxu0 0.0
        %4847 = vmatpush1.msra.mxu0 0.0
        %4848 = vmatprep.subr.mxu0 0.0
        %4849 = vmatpush1.msra.mxu0 0.0
        %4850 = vmatprep.subr.mxu0 0.0
        %4851 = vmatpush1.msra.mxu0 0.0
        %4852 = vmatprep.subr.mxu0 0.0
        %4853 = vmatpush1.msra.mxu0 0.0
        %4854 = vmatprep.subr.mxu0 0.0
        %4855 = vmatpush1.msra.mxu0 0.0
        %4856 = vmatprep.subr.mxu0 0.0
        %4857 = vmatpush1.msra.mxu0 0.0
        %4858 = vmatprep.subr.mxu0 0.0
        %4859 = vmatpush1.msra.mxu0 0.0
        %4860 = vmatprep.subr.mxu0 0.0
        %4861 = vmatpush1.msra.mxu0 0.0
        %4862 = vmatprep.mubr.f32.mxu0 0.0
        %4863 = vmatmul.mubr.f32.gmra.mrb[0].mxu0 %v1266
        %v4864 = vpop.f32.mrb[0].mxu0
        %v4865 = vadd.f32 0.0, %v4864
        %v4866 = vpop.f32.mrb[0].mxu0
        %4867 = vmatprep.mubr.f32.mxu0 0.0
        %4868 = vmatmul.mubr.f32.gmra.mrb[0].mxu0 %v1268
        %v4869 = vpop.f32.mrb[0].mxu0
        %v4870 = vadd.f32 0.0, %v4869
        %v4871 = vpop.f32.mrb[0].mxu0
        %4872 = vmatprep.mubr.f32.mxu0 0.0
        %4873 = vmatmul.mubr.f32.gmra.mrb[0].mxu0 %v1270
        %v4874 = vpop.f32.mrb[0].mxu0
        %v4875 = vadd.f32 0.0, %v4874
        %v4876 = vpop.f32.mrb[0].mxu0
        %4877 = vmatprep.mubr.f32.mxu0 0.0
        %4878 = vmatmul.mubr.f32.gmra.mrb[0].mxu0 %v1272
        %v4879 = vpop.f32.mrb[0].mxu0
        %v4880 = vadd.f32 0.0, %v4879
        %v4881 = vpop.f32.mrb[0].mxu0
        %4882 = vmatprep.mubr.f32.mxu0 0.0
        %4883 = vmatmul.mubr.f32.gmra.mrb[0].mxu0 %v1274
        %v4884 = vpop.f32.mrb[0].mxu0
        %v4885 = vadd.f32 0.0, %v4884
        %v4886 = vpop.f32.mrb[0].mxu0
        %4887 = vmatprep.mubr.f32.mxu0 0.0
        %4888 = vmatmul.mubr.f32.gmra.mrb[0].mxu0 %v1276
        %v4889 = vpop.f32.mrb[0].mxu0
        %v4890 = vadd.f32 0.0, %v4889
        %v4891 = vpop.f32.mrb[0].mxu0
        %4892 = vmatprep.mubr.f32.mxu0 0.0
        %4893 = vmatmul.mubr.f32.gmra.mrb[0].mxu0 %v1278
        %v4894 = vpop.f32.mrb[0].mxu0
        %v4895 = vadd.f32 0.0, %v4894
        %v4896 = vpop.f32.mrb[0].mxu0
        %4897 = vmatprep.mubr.f32.mxu0 0.0
        %4898 = vmatmul.mubr.f32.gmra.mrb[0].mxu0 %v1280
        %v4899 = vpop.f32.mrb[0].mxu0
        %v4900 = vadd.f32 0.0, %v4899
        %v4901 = vpop.f32.mrb[0].mxu0
        %4902 = vmatprep.mubr.f32.mxu0 0.0
        %4903 = vmatmul.mubr.f32.gmra.mrb[0].mxu0 %v2205
        %v4904 = vpop.f32.mrb[0].mxu0
        %v4905 = vadd.f32 0.0, %v4904
        %v4906 = vpop.f32.mrb[0].mxu0
        %4907 = vmatprep.mubr.f32.mxu0 0.0
        %4908 = vmatmul.mubr.f32.gmra.mrb[0].mxu0 %v2207
        %v4909 = vpop.f32.mrb[0].mxu0
        %v4910 = vadd.f32 0.0, %v4909
        %v4911 = vpop.f32.mrb[0].mxu0
        %4912 = vmatprep.mubr.f32.mxu0 0.0
        %4913 = vmatmul.mubr.f32.gmra.mrb[0].mxu0 %v3068
        %v4914 = vpop.f32.mrb[0].mxu0
        %v4915 = vadd.f32 0.0, %v4914
        %v4916 = vpop.f32.mrb[0].mxu0
        %4917 = vmatprep.mubr.f32.mxu0 0.0
        %4918 = vmatmul.mubr.f32.gmra.mrb[0].mxu0 %v3070
        %v4919 = vpop.f32.mrb[0].mxu0
        %v4920 = vadd.f32 0.0, %v4919
        %v4921 = vpop.f32.mrb[0].mxu0
        %4922 = vmatprep.mubr.f32.mxu0 0.0
        %4923 = vmatmul.mubr.f32.gmra.mrb[0].mxu0 %v3931
        %v4924 = vpop.f32.mrb[0].mxu0
        %v4925 = vadd.f32 0.0, %v4924
        %v4926 = vpop.f32.mrb[0].mxu0
        %4927 = vmatprep.mubr.f32.mxu0 0.0
        %4928 = vmatmul.mubr.f32.gmra.mrb[0].mxu0 %v3933
        %v4929 = vpop.f32.mrb[0].mxu0
        %v4930 = vadd.f32 0.0, %v4929
        %v4931 = vpop.f32.mrb[0].mxu0
        %4932 = vmatprep.mubr.f32.mxu0 0.0
        %4933 = vmatmul.mubr.f32.gmra.mrb[0].mxu0 %v4794
        %v4934 = vpop.f32.mrb[0].mxu0
        %v4935 = vadd.f32 0.0, %v4934
        %v4936 = vpop.f32.mrb[0].mxu0
        %4937 = vmatprep.mubr.f32.mxu0 0.0
        %4938 = vmatmul.mubr.f32.gmra.mrb[0].mxu0 %v4796
        %v4939 = vpop.f32.mrb[0].mxu0
        %v4940 = vadd.f32 0.0, %v4939
        %v4941 = vpop.f32.mrb[0].mxu0
        %4942 = vdwg.mxu0
        %v4943 = vadd.f32 %v4770, %v4865
        %v4944 = vadd.f32 %v4771, %v4870
        %v4945 = vadd.f32 %v4772, %v4875
        %v4946 = vadd.f32 %v4773, %v4880
        %v4947 = vadd.f32 %v4774, %v4885
        %v4948 = vadd.f32 %v4775, %v4890
        %v4949 = vadd.f32 %v4776, %v4895
        %v4950 = vadd.f32 %v4777, %v4900
        %v4951 = vadd.f32 %v4778, %v4905
        %v4952 = vadd.f32 %v4779, %v4910
        %v4953 = vadd.f32 %v4780, %v4915
        %v4954 = vadd.f32 %v4781, %v4920
        %v4955 = vadd.f32 %v4782, %v4925
        %v4956 = vadd.f32 %v4783, %v4930
        %v4957 = vadd.f32 %v4784, %v4935
        %v4958 = vadd.f32 %v4785, %v4940
        %v4959 = vrot.slane %v542, 4
        %v4960 = vrot.slane %v543, 4
        %v4961 = vsel %vm1443, %v4959, %v4960
        %v4962 = vrot.slane %v544, 4
        %v4963 = vsel %vm1443, %v4960, %v4962
        %s4964 = scalar_lea.vmem %s2, 384
        %v4965 = vld [vmem:[%s4964] sm:$0xff]
        %v4966 = vld [vmem:[%s4964 + $0x8] sm:$0xff]
        %v4967 = vsel %vm444, %v4961, 0
        %v4969 = vsel %vm444, %v4963, 0
        %4971 = vmatprep.subr.mxu0 0.0
        %4972 = vmatpush1.msra.mxu0 %v4965
        %4973 = vmatprep.subr.mxu0 0.0
        %4974 = vmatpush1.msra.mxu0 %v4966
        %4975 = vmatprep.subr.mxu0 0.0
        %4976 = vmatpush1.msra.mxu0 0.0
        %4977 = vmatprep.subr.mxu0 0.0
        %4978 = vmatpush1.msra.mxu0 0.0
        %4979 = vmatprep.subr.mxu0 0.0
        %4980 = vmatpush1.msra.mxu0 0.0
        %4981 = vmatprep.subr.mxu0 0.0
        %4982 = vmatpush1.msra.mxu0 0.0
        %4983 = vmatprep.subr.mxu0 0.0
        %4984 = vmatpush1.msra.mxu0 0.0
        %4985 = vmatprep.subr.mxu0 0.0
        %4986 = vmatpush1.msra.mxu0 0.0
        %4987 = vmatprep.subr.mxu0 0.0
        %4988 = vmatpush1.msra.mxu0 0.0
        %4989 = vmatprep.subr.mxu0 0.0
        %4990 = vmatpush1.msra.mxu0 0.0
        %4991 = vmatprep.subr.mxu0 0.0
        %4992 = vmatpush1.msra.mxu0 0.0
        %4993 = vmatprep.subr.mxu0 0.0
        %4994 = vmatpush1.msra.mxu0 0.0
        %4995 = vmatprep.subr.mxu0 0.0
        %4996 = vmatpush1.msra.mxu0 0.0
        %4997 = vmatprep.subr.mxu0 0.0
        %4998 = vmatpush1.msra.mxu0 0.0
        %4999 = vmatprep.subr.mxu0 0.0
        %5000 = vmatpush1.msra.mxu0 0.0
        %5001 = vmatprep.subr.mxu0 0.0
        %5002 = vmatpush1.msra.mxu0 0.0
        %5003 = vmatprep.subr.mxu0 0.0
        %5004 = vmatpush1.msra.mxu0 0.0
        %5005 = vmatprep.subr.mxu0 0.0
        %5006 = vmatpush1.msra.mxu0 0.0
        %5007 = vmatprep.subr.mxu0 0.0
        %5008 = vmatpush1.msra.mxu0 0.0
        %5009 = vmatprep.subr.mxu0 0.0
        %5010 = vmatpush1.msra.mxu0 0.0
        %5011 = vmatprep.subr.mxu0 0.0
        %5012 = vmatpush1.msra.mxu0 0.0
        %5013 = vmatprep.subr.mxu0 0.0
        %5014 = vmatpush1.msra.mxu0 0.0
        %5015 = vmatprep.subr.mxu0 0.0
        %5016 = vmatpush1.msra.mxu0 0.0
        %5017 = vmatprep.subr.mxu0 0.0
        %5018 = vmatpush1.msra.mxu0 0.0
        %5019 = vmatprep.subr.mxu0 0.0
        %5020 = vmatpush1.msra.mxu0 0.0
        %5021 = vmatprep.subr.mxu0 0.0
        %5022 = vmatpush1.msra.mxu0 0.0
        %5023 = vmatprep.subr.mxu0 0.0
        %5024 = vmatpush1.msra.mxu0 0.0
        %5025 = vmatprep.subr.mxu0 0.0
        %5026 = vmatpush1.msra.mxu0 0.0
        %5027 = vmatprep.subr.mxu0 0.0
        %5028 = vmatpush1.msra.mxu0 0.0
        %5029 = vmatprep.subr.mxu0 0.0
        %5030 = vmatpush1.msra.mxu0 0.0
        %5031 = vmatprep.subr.mxu0 0.0
        %5032 = vmatpush1.msra.mxu0 0.0
        %5033 = vmatprep.subr.mxu0 0.0
        %5034 = vmatpush1.msra.mxu0 0.0
        %5035 = vmatprep.mubr.f32.mxu0 0.0
        %5036 = vmatmul.mubr.f32.gmra.mrb[0].mxu0 %v1503
        %v5037 = vpop.f32.mrb[0].mxu0
        %v5038 = vadd.f32 0.0, %v5037
        %v5039 = vpop.f32.mrb[0].mxu0
        %5040 = vmatprep.mubr.f32.mxu0 0.0
        %5041 = vmatmul.mubr.f32.gmra.mrb[0].mxu0 %v1505
        %v5042 = vpop.f32.mrb[0].mxu0
        %v5043 = vadd.f32 0.0, %v5042
        %v5044 = vpop.f32.mrb[0].mxu0
        %5045 = vmatprep.mubr.f32.mxu0 0.0
        %5046 = vmatmul.mubr.f32.gmra.mrb[0].mxu0 %v1507
        %v5047 = vpop.f32.mrb[0].mxu0
        %v5048 = vadd.f32 0.0, %v5047
        %v5049 = vpop.f32.mrb[0].mxu0
        %5050 = vmatprep.mubr.f32.mxu0 0.0
        %5051 = vmatmul.mubr.f32.gmra.mrb[0].mxu0 %v1509
        %v5052 = vpop.f32.mrb[0].mxu0
        %v5053 = vadd.f32 0.0, %v5052
        %v5054 = vpop.f32.mrb[0].mxu0
        %5055 = vmatprep.mubr.f32.mxu0 0.0
        %5056 = vmatmul.mubr.f32.gmra.mrb[0].mxu0 %v1511
        %v5057 = vpop.f32.mrb[0].mxu0
        %v5058 = vadd.f32 0.0, %v5057
        %v5059 = vpop.f32.mrb[0].mxu0
        %5060 = vmatprep.mubr.f32.mxu0 0.0
        %5061 = vmatmul.mubr.f32.gmra.mrb[0].mxu0 %v1513
        %v5062 = vpop.f32.mrb[0].mxu0
        %v5063 = vadd.f32 0.0, %v5062
        %v5064 = vpop.f32.mrb[0].mxu0
        %5065 = vmatprep.mubr.f32.mxu0 0.0
        %5066 = vmatmul.mubr.f32.gmra.mrb[0].mxu0 %v1515
        %v5067 = vpop.f32.mrb[0].mxu0
        %v5068 = vadd.f32 0.0, %v5067
        %v5069 = vpop.f32.mrb[0].mxu0
        %5070 = vmatprep.mubr.f32.mxu0 0.0
        %5071 = vmatmul.mubr.f32.gmra.mrb[0].mxu0 %v1517
        %v5072 = vpop.f32.mrb[0].mxu0
        %v5073 = vadd.f32 0.0, %v5072
        %v5074 = vpop.f32.mrb[0].mxu0
        %5075 = vmatprep.mubr.f32.mxu0 0.0
        %5076 = vmatmul.mubr.f32.gmra.mrb[0].mxu0 %v2378
        %v5077 = vpop.f32.mrb[0].mxu0
        %v5078 = vadd.f32 0.0, %v5077
        %v5079 = vpop.f32.mrb[0].mxu0
        %5080 = vmatprep.mubr.f32.mxu0 0.0
        %5081 = vmatmul.mubr.f32.gmra.mrb[0].mxu0 %v2380
        %v5082 = vpop.f32.mrb[0].mxu0
        %v5083 = vadd.f32 0.0, %v5082
        %v5084 = vpop.f32.mrb[0].mxu0
        %5085 = vmatprep.mubr.f32.mxu0 0.0
        %5086 = vmatmul.mubr.f32.gmra.mrb[0].mxu0 %v3241
        %v5087 = vpop.f32.mrb[0].mxu0
        %v5088 = vadd.f32 0.0, %v5087
        %v5089 = vpop.f32.mrb[0].mxu0
        %5090 = vmatprep.mubr.f32.mxu0 0.0
        %5091 = vmatmul.mubr.f32.gmra.mrb[0].mxu0 %v3243
        %v5092 = vpop.f32.mrb[0].mxu0
        %v5093 = vadd.f32 0.0, %v5092
        %v5094 = vpop.f32.mrb[0].mxu0
        %5095 = vmatprep.mubr.f32.mxu0 0.0
        %5096 = vmatmul.mubr.f32.gmra.mrb[0].mxu0 %v4104
        %v5097 = vpop.f32.mrb[0].mxu0
        %v5098 = vadd.f32 0.0, %v5097
        %v5099 = vpop.f32.mrb[0].mxu0
        %5100 = vmatprep.mubr.f32.mxu0 0.0
        %5101 = vmatmul.mubr.f32.gmra.mrb[0].mxu0 %v4106
        %v5102 = vpop.f32.mrb[0].mxu0
        %v5103 = vadd.f32 0.0, %v5102
        %v5104 = vpop.f32.mrb[0].mxu0
        %5105 = vmatprep.mubr.f32.mxu0 0.0
        %5106 = vmatmul.mubr.f32.gmra.mrb[0].mxu0 %v4967
        %v5107 = vpop.f32.mrb[0].mxu0
        %v5108 = vadd.f32 0.0, %v5107
        %v5109 = vpop.f32.mrb[0].mxu0
        %5110 = vmatprep.mubr.f32.mxu0 0.0
        %5111 = vmatmul.mubr.f32.gmra.mrb[0].mxu0 %v4969
        %v5112 = vpop.f32.mrb[0].mxu0
        %v5113 = vadd.f32 0.0, %v5112
        %v5114 = vpop.f32.mrb[0].mxu0
        %5115 = vdwg.mxu0
        %v5116 = vadd.f32 %v4943, %v5038
        %v5117 = vadd.f32 %v4944, %v5043
        %v5118 = vadd.f32 %v4945, %v5048
        %v5119 = vadd.f32 %v4946, %v5053
        %v5120 = vadd.f32 %v4947, %v5058
        %v5121 = vadd.f32 %v4948, %v5063
        %v5122 = vadd.f32 %v4949, %v5068
        %v5123 = vadd.f32 %v4950, %v5073
        %v5124 = vadd.f32 %v4951, %v5078
        %v5125 = vadd.f32 %v4952, %v5083
        %v5126 = vadd.f32 %v4953, %v5088
        %v5127 = vadd.f32 %v4954, %v5093
        %v5128 = vadd.f32 %v4955, %v5098
        %v5129 = vadd.f32 %v4956, %v5103
        %v5130 = vadd.f32 %v4957, %v5108
        %v5131 = vadd.f32 %v4958, %v5113
        %v5132 = vld [vmem:[%s3] sm:$0x1]
        %v5134 = vlaneseq
        %v5135 = vshrl.u32 %v5134, 7
        %v5136 = vsub.s32 0, %v5135
        %v5137 = vrot.slane %v5132, %v5136
        %v5139 = vadd.f32 %v5116, %v5137
        %v5140 = vadd.f32 %v5117, %v5137
        %v5141 = vadd.f32 %v5118, %v5137
        %v5142 = vadd.f32 %v5119, %v5137
        %v5143 = vadd.f32 %v5120, %v5137
        %v5144 = vadd.f32 %v5121, %v5137
        %v5145 = vadd.f32 %v5122, %v5137
        %v5146 = vadd.f32 %v5123, %v5137
        %v5147 = vadd.f32 %v5124, %v5137
        %v5148 = vadd.f32 %v5125, %v5137
        %v5149 = vadd.f32 %v5126, %v5137
        %v5150 = vadd.f32 %v5127, %v5137
        %v5151 = vadd.f32 %v5128, %v5137
        %v5152 = vadd.f32 %v5129, %v5137
        %v5153 = vadd.f32 %v5130, %v5137
        %v5154 = vadd.f32 %v5131, %v5137
        %v5155 = vmax.f32 %v5139, 0.0
        %v5156 = vmax.f32 %v5140, 0.0
        %v5157 = vmax.f32 %v5141, 0.0
        %v5158 = vmax.f32 %v5142, 0.0
        %v5159 = vmax.f32 %v5143, 0.0
        %v5160 = vmax.f32 %v5144, 0.0
        %v5161 = vmax.f32 %v5145, 0.0
        %v5162 = vmax.f32 %v5146, 0.0
        %v5163 = vmax.f32 %v5147, 0.0
        %v5164 = vmax.f32 %v5148, 0.0
        %v5165 = vmax.f32 %v5149, 0.0
        %v5166 = vmax.f32 %v5150, 0.0
        %v5167 = vmax.f32 %v5151, 0.0
        %v5168 = vmax.f32 %v5152, 0.0
        %v5169 = vmax.f32 %v5153, 0.0
        %v5170 = vmax.f32 %v5154, 0.0
        %v5171 = vsel %vm444, %v5155, -inf
        %v5172 = vsel %vm444, %v5156, -inf
        %v5173 = vmax.f32 %v5171, %v5172
        %v5174 = vrot.slane %v5173, 4
        %v5175 = vmax.f32 %v5173, %v5174
        %v5176 = vrot.slane %v5175, 2
        %v5177 = vmax.f32 %v5175, %v5176
        %v5178 = vrot.slane %v5177, 1
        %v5179 = vmax.f32 %v5177, %v5178
        %v5180 = vsel %vm444, %v5157, -inf
        %v5181 = vsel %vm444, %v5158, -inf
        %v5182 = vmax.f32 %v5180, %v5181
        %v5183 = vrot.slane %v5182, 4
        %v5184 = vmax.f32 %v5182, %v5183
        %v5185 = vrot.slane %v5184, 2
        %v5186 = vmax.f32 %v5184, %v5185
        %v5187 = vrot.slane %v5186, 1
        %v5188 = vmax.f32 %v5186, %v5187
        %v5189 = vsel %vm444, %v5159, -inf
        %v5190 = vsel %vm444, %v5160, -inf
        %v5191 = vmax.f32 %v5189, %v5190
        %v5192 = vrot.slane %v5191, 4
        %v5193 = vmax.f32 %v5191, %v5192
        %v5194 = vrot.slane %v5193, 2
        %v5195 = vmax.f32 %v5193, %v5194
        %v5196 = vrot.slane %v5195, 1
        %v5197 = vmax.f32 %v5195, %v5196
        %v5198 = vsel %vm444, %v5161, -inf
        %v5199 = vsel %vm444, %v5162, -inf
        %v5200 = vmax.f32 %v5198, %v5199
        %v5201 = vrot.slane %v5200, 4
        %v5202 = vmax.f32 %v5200, %v5201
        %v5203 = vrot.slane %v5202, 2
        %v5204 = vmax.f32 %v5202, %v5203
        %v5205 = vrot.slane %v5204, 1
        %v5206 = vmax.f32 %v5204, %v5205
        %v5207 = vsel %vm444, %v5163, -inf
        %v5208 = vsel %vm444, %v5164, -inf
        %v5209 = vmax.f32 %v5207, %v5208
        %v5210 = vrot.slane %v5209, 4
        %v5211 = vmax.f32 %v5209, %v5210
        %v5212 = vrot.slane %v5211, 2
        %v5213 = vmax.f32 %v5211, %v5212
        %v5214 = vrot.slane %v5213, 1
        %v5215 = vmax.f32 %v5213, %v5214
        %v5216 = vsel %vm444, %v5165, -inf
        %v5217 = vsel %vm444, %v5166, -inf
        %v5218 = vmax.f32 %v5216, %v5217
        %v5219 = vrot.slane %v5218, 4
        %v5220 = vmax.f32 %v5218, %v5219
        %v5221 = vrot.slane %v5220, 2
        %v5222 = vmax.f32 %v5220, %v5221
        %v5223 = vrot.slane %v5222, 1
        %v5224 = vmax.f32 %v5222, %v5223
        %v5225 = vsel %vm444, %v5167, -inf
        %v5226 = vsel %vm444, %v5168, -inf
        %v5227 = vmax.f32 %v5225, %v5226
        %v5228 = vrot.slane %v5227, 4
        %v5229 = vmax.f32 %v5227, %v5228
        %v5230 = vrot.slane %v5229, 2
        %v5231 = vmax.f32 %v5229, %v5230
        %v5232 = vrot.slane %v5231, 1
        %v5233 = vmax.f32 %v5231, %v5232
        %v5234 = vsel %vm444, %v5169, -inf
        %v5235 = vsel %vm444, %v5170, -inf
        %v5236 = vmax.f32 %v5234, %v5235
        %v5237 = vrot.slane %v5236, 4
        %v5238 = vmax.f32 %v5236, %v5237
        %v5239 = vrot.slane %v5238, 2
        %v5240 = vmax.f32 %v5238, %v5239
        %v5241 = vrot.slane %v5240, 1
        %v5242 = vmax.f32 %v5240, %v5241
        %vm5243 = vcmask 1047936
        %5244 = vst.msk [vmem:[#allocation3] sm:$0xff] %vm5243, 0.0
        %vm5253 = vcmask 1041409
        %v5254 = vsel %vm5253, %v5188, %v5179
        %vm5255 = vcmask 1042434
        %v5256 = vsel %vm5255, %v5197, %v5254
        %vm5257 = vcmask 1043459
        %v5258 = vsel %vm5257, %v5206, %v5256
        %vm5259 = vcmask 1044484
        %v5260 = vsel %vm5259, %v5215, %v5258
        %vm5261 = vcmask 1045509
        %v5262 = vsel %vm5261, %v5224, %v5260
        %vm5263 = vcmask 1046534
        %v5264 = vsel %vm5263, %v5233, %v5262
        %vm5265 = vcmask 1047559
        %v5266 = vsel %vm5265, %v5242, %v5264
        %5268 = vst.msk [vmem:[#allocation3] sm:$0xff] %vm444, %v5266
        %v5269 = vld [vmem:[%s439] sm:$0xff]
        %5271 = vrot.lane.b32.xlu0 %v5269, 16
        %v5272 = vpop.permute.xlu0 %5271
        %vm5274 = vcmask 392320
        %5275 = vst.msk [vmem:[#allocation3] sm:$0xff] %vm5274, %v5272
        %v5276 = vld [vmem:[#allocation3] sm:$0xff]
        %v5277 = vld [vmem:[%s4] sm:$0xff]
        %v5278 = vld [vmem:[%s4 + $0x8] sm:$0xff]
        %v5279 = vld [vmem:[%s4 + $0x10] sm:$0xff]
        %v5280 = vld [vmem:[%s4 + $0x18] sm:$0xff]
        %v5281 = vld [vmem:[%s4 + $0x20] sm:$0xff]
        %v5282 = vld [vmem:[%s4 + $0x28] sm:$0xff]
        %v5283 = vld [vmem:[%s4 + $0x30] sm:$0xff]
        %v5284 = vld [vmem:[%s4 + $0x38] sm:$0xff]
        %v5285 = vld [vmem:[%s4 + $0x40] sm:$0xff]
        %v5286 = vld [vmem:[%s4 + $0x48] sm:$0xff]
        %v5287 = vld [vmem:[%s4 + $0x50] sm:$0xff]
        %v5288 = vld [vmem:[%s4 + $0x58] sm:$0xff]
        %v5289 = vld [vmem:[%s4 + $0x60] sm:$0xff]
        %v5290 = vld [vmem:[%s4 + $0x68] sm:$0xff]
        %v5291 = vld [vmem:[%s4 + $0x70] sm:$0xff]
        %v5292 = vld [vmem:[%s4 + $0x78] sm:$0xff]
        %v5293 = vld [vmem:[%s5] sm:$0x1]
        %v5295 = vlaneseq
        %v5296 = vshrl.u32 %v5295, 7
        %v5297 = vsub.s32 0, %v5296
        %v5298 = vrot.slane %v5293, %v5297
        %5300 = vmatprep.subr.mxu0 0.0
        %5301 = vmatpush1.msra.mxu0 %v5277
        %5302 = vmatprep.subr.mxu0 0.0
        %5303 = vmatpush1.msra.mxu0 %v5278
        %5304 = vmatprep.subr.mxu0 0.0
        %5305 = vmatpush1.msra.mxu0 %v5279
        %5306 = vmatprep.subr.mxu0 0.0
        %5307 = vmatpush1.msra.mxu0 %v5280
        %5308 = vmatprep.subr.mxu0 0.0
        %5309 = vmatpush1.msra.mxu0 %v5281
        %5310 = vmatprep.subr.mxu0 0.0
        %5311 = vmatpush1.msra.mxu0 %v5282
        %5312 = vmatprep.subr.mxu0 0.0
        %5313 = vmatpush1.msra.mxu0 %v5283
        %5314 = vmatprep.subr.mxu0 0.0
        %5315 = vmatpush1.msra.mxu0 %v5284
        %5316 = vmatprep.subr.mxu0 0.0
        %5317 = vmatpush1.msra.mxu0 %v5285
        %5318 = vmatprep.subr.mxu0 0.0
        %5319 = vmatpush1.msra.mxu0 %v5286
        %5320 = vmatprep.subr.mxu0 0.0
        %5321 = vmatpush1.msra.mxu0 %v5287
        %5322 = vmatprep.subr.mxu0 0.0
        %5323 = vmatpush1.msra.mxu0 %v5288
        %5324 = vmatprep.subr.mxu0 0.0
        %5325 = vmatpush1.msra.mxu0 %v5289
        %5326 = vmatprep.subr.mxu0 0.0
        %5327 = vmatpush1.msra.mxu0 %v5290
        %5328 = vmatprep.subr.mxu0 0.0
        %5329 = vmatpush1.msra.mxu0 %v5291
        %5330 = vmatprep.subr.mxu0 0.0
        %5331 = vmatpush1.msra.mxu0 %v5292
        %5332 = vmatprep.subr.mxu0 0.0
        %5333 = vmatpush1.msra.mxu0 0.0
        %5334 = vmatprep.subr.mxu0 0.0
        %5335 = vmatpush1.msra.mxu0 0.0
        %5336 = vmatprep.subr.mxu0 0.0
        %5337 = vmatpush1.msra.mxu0 0.0
        %5338 = vmatprep.subr.mxu0 0.0
        %5339 = vmatpush1.msra.mxu0 0.0
        %5340 = vmatprep.subr.mxu0 0.0
        %5341 = vmatpush1.msra.mxu0 0.0
        %5342 = vmatprep.subr.mxu0 0.0
        %5343 = vmatpush1.msra.mxu0 0.0
        %5344 = vmatprep.subr.mxu0 0.0
        %5345 = vmatpush1.msra.mxu0 0.0
        %5346 = vmatprep.subr.mxu0 0.0
        %5347 = vmatpush1.msra.mxu0 0.0
        %5348 = vmatprep.subr.mxu0 0.0
        %5349 = vmatpush1.msra.mxu0 0.0
        %5350 = vmatprep.subr.mxu0 0.0
        %5351 = vmatpush1.msra.mxu0 0.0
        %5352 = vmatprep.subr.mxu0 0.0
        %5353 = vmatpush1.msra.mxu0 0.0
        %5354 = vmatprep.subr.mxu0 0.0
        %5355 = vmatpush1.msra.mxu0 0.0
        %5356 = vmatprep.subr.mxu0 0.0
        %5357 = vmatpush1.msra.mxu0 0.0
        %5358 = vmatprep.subr.mxu0 0.0
        %5359 = vmatpush1.msra.mxu0 0.0
        %5360 = vmatprep.subr.mxu0 0.0
        %5361 = vmatpush1.msra.mxu0 0.0
        %5362 = vmatprep.subr.mxu0 0.0
        %5363 = vmatpush1.msra.mxu0 0.0
        %5364 = vmatprep.mubr.f32.mxu0 0.0
        %5365 = vmatmul.mubr.f32.gmra.mrb[0].mxu0 %v5276
        %v5366 = vpop.f32.mrb[0].mxu0
        %v5367 = vadd.f32 %v5298, %v5366
        %v5368 = vpop.f32.mrb[0].mxu0
        %5369 = vdwg.mxu0
        %v5370 = vxor.u32 %v5367, 2147483648
        %v5371 = vmul.f32 %v5370, 1.442695
        %v5372 = vpow.pop %v5371
        %v5373 = vadd.f32 %v5372, 1.0
        %v5374 = vrcp.pop %v5373
        %v5375 = vmul.f32 1.0, %v5374
        %v5376 = vld [vmem:[%s6] sm:$0xff]
        %v5377 = vld [vmem:[%s6 + $0x8] sm:$0xff]
        %v5378 = vld [vmem:[%s6 + $0x10] sm:$0xff]
        %v5379 = vld [vmem:[%s6 + $0x18] sm:$0xff]
        %v5380 = vld [vmem:[%s6 + $0x20] sm:$0xff]
        %v5381 = vld [vmem:[%s6 + $0x28] sm:$0xff]
        %v5382 = vld [vmem:[%s6 + $0x30] sm:$0xff]
        %v5383 = vld [vmem:[%s6 + $0x38] sm:$0xff]
        %v5384 = vld [vmem:[%s6 + $0x40] sm:$0xff]
        %v5385 = vld [vmem:[%s6 + $0x48] sm:$0xff]
        %v5386 = vld [vmem:[%s6 + $0x50] sm:$0xff]
        %v5387 = vld [vmem:[%s6 + $0x58] sm:$0xff]
        %v5388 = vld [vmem:[%s6 + $0x60] sm:$0xff]
        %v5389 = vld [vmem:[%s6 + $0x68] sm:$0xff]
        %v5390 = vld [vmem:[%s6 + $0x70] sm:$0xff]
        %v5391 = vld [vmem:[%s6 + $0x78] sm:$0xff]
        %v5392 = vld [vmem:[%s7] sm:$0x1]
        %v5394 = vlaneseq
        %v5395 = vshrl.u32 %v5394, 7
        %v5396 = vsub.s32 0, %v5395
        %v5397 = vrot.slane %v5392, %v5396
        %5399 = vmatprep.subr.mxu0 0.0
        %5400 = vmatpush1.msra.mxu0 %v5376
        %5401 = vmatprep.subr.mxu0 0.0
        %5402 = vmatpush1.msra.mxu0 %v5377
        %5403 = vmatprep.subr.mxu0 0.0
        %5404 = vmatpush1.msra.mxu0 %v5378
        %5405 = vmatprep.subr.mxu0 0.0
        %5406 = vmatpush1.msra.mxu0 %v5379
        %5407 = vmatprep.subr.mxu0 0.0
        %5408 = vmatpush1.msra.mxu0 %v5380
        %5409 = vmatprep.subr.mxu0 0.0
        %5410 = vmatpush1.msra.mxu0 %v5381
        %5411 = vmatprep.subr.mxu0 0.0
        %5412 = vmatpush1.msra.mxu0 %v5382
        %5413 = vmatprep.subr.mxu0 0.0
        %5414 = vmatpush1.msra.mxu0 %v5383
        %5415 = vmatprep.subr.mxu0 0.0
        %5416 = vmatpush1.msra.mxu0 %v5384
        %5417 = vmatprep.subr.mxu0 0.0
        %5418 = vmatpush1.msra.mxu0 %v5385
        %5419 = vmatprep.subr.mxu0 0.0
        %5420 = vmatpush1.msra.mxu0 %v5386
        %5421 = vmatprep.subr.mxu0 0.0
        %5422 = vmatpush1.msra.mxu0 %v5387
        %5423 = vmatprep.subr.mxu0 0.0
        %5424 = vmatpush1.msra.mxu0 %v5388
        %5425 = vmatprep.subr.mxu0 0.0
        %5426 = vmatpush1.msra.mxu0 %v5389
        %5427 = vmatprep.subr.mxu0 0.0
        %5428 = vmatpush1.msra.mxu0 %v5390
        %5429 = vmatprep.subr.mxu0 0.0
        %5430 = vmatpush1.msra.mxu0 %v5391
        %5431 = vmatprep.subr.mxu0 0.0
        %5432 = vmatpush1.msra.mxu0 0.0
        %5433 = vmatprep.subr.mxu0 0.0
        %5434 = vmatpush1.msra.mxu0 0.0
        %5435 = vmatprep.subr.mxu0 0.0
        %5436 = vmatpush1.msra.mxu0 0.0
        %5437 = vmatprep.subr.mxu0 0.0
        %5438 = vmatpush1.msra.mxu0 0.0
        %5439 = vmatprep.subr.mxu0 0.0
        %5440 = vmatpush1.msra.mxu0 0.0
        %5441 = vmatprep.subr.mxu0 0.0
        %5442 = vmatpush1.msra.mxu0 0.0
        %5443 = vmatprep.subr.mxu0 0.0
        %5444 = vmatpush1.msra.mxu0 0.0
        %5445 = vmatprep.subr.mxu0 0.0
        %5446 = vmatpush1.msra.mxu0 0.0
        %5447 = vmatprep.subr.mxu0 0.0
        %5448 = vmatpush1.msra.mxu0 0.0
        %5449 = vmatprep.subr.mxu0 0.0
        %5450 = vmatpush1.msra.mxu0 0.0
        %5451 = vmatprep.subr.mxu0 0.0
        %5452 = vmatpush1.msra.mxu0 0.0
        %5453 = vmatprep.subr.mxu0 0.0
        %5454 = vmatpush1.msra.mxu0 0.0
        %5455 = vmatprep.subr.mxu0 0.0
        %5456 = vmatpush1.msra.mxu0 0.0
        %5457 = vmatprep.subr.mxu0 0.0
        %5458 = vmatpush1.msra.mxu0 0.0
        %5459 = vmatprep.subr.mxu0 0.0
        %5460 = vmatpush1.msra.mxu0 0.0
        %5461 = vmatprep.subr.mxu0 0.0
        %5462 = vmatpush1.msra.mxu0 0.0
        %5463 = vmatprep.mubr.f32.mxu0 0.0
        %5464 = vmatmul.mubr.f32.gmra.mrb[0].mxu0 %v5276
        %v5465 = vpop.f32.mrb[0].mxu0
        %v5466 = vadd.f32 %v5397, %v5465
        %v5467 = vpop.f32.mrb[0].mxu0
        %5468 = vdwg.mxu0
        %v5469 = vmax.f32 %v5466, 0.0
        %v5470 = vmul.f32 %v5375, %v5469
        %v5471 = vsub.f32 1.0, %v5375
        %v5472 = vmul.f32 %v5471, %v5276
        %v5473 = vadd.f32 %v5470, %v5472
        %v5474 = vld [vmem:[%s8] sm:$0xff]
        %v5475 = vld [vmem:[%s8 + $0x8] sm:$0xff]
        %v5476 = vld [vmem:[%s8 + $0x10] sm:$0xff]
        %v5477 = vld [vmem:[%s8 + $0x18] sm:$0xff]
        %v5478 = vld [vmem:[%s8 + $0x20] sm:$0xff]
        %v5479 = vld [vmem:[%s8 + $0x28] sm:$0xff]
        %v5480 = vld [vmem:[%s8 + $0x30] sm:$0xff]
        %v5481 = vld [vmem:[%s8 + $0x38] sm:$0xff]
        %v5482 = vld [vmem:[%s8 + $0x40] sm:$0xff]
        %v5483 = vld [vmem:[%s8 + $0x48] sm:$0xff]
        %v5484 = vld [vmem:[%s8 + $0x50] sm:$0xff]
        %v5485 = vld [vmem:[%s8 + $0x58] sm:$0xff]
        %v5486 = vld [vmem:[%s8 + $0x60] sm:$0xff]
        %v5487 = vld [vmem:[%s8 + $0x68] sm:$0xff]
        %v5488 = vld [vmem:[%s8 + $0x70] sm:$0xff]
        %v5489 = vld [vmem:[%s8 + $0x78] sm:$0xff]
        %v5490 = vld [vmem:[%s9] sm:$0x1]
        %v5492 = vlaneseq
        %v5493 = vshrl.u32 %v5492, 7
        %v5494 = vsub.s32 0, %v5493
        %v5495 = vrot.slane %v5490, %v5494
        %5497 = vmatprep.subr.mxu0 0.0
        %5498 = vmatpush1.msra.mxu0 %v5474
        %5499 = vmatprep.subr.mxu0 0.0
        %5500 = vmatpush1.msra.mxu0 %v5475
        %5501 = vmatprep.subr.mxu0 0.0
        %5502 = vmatpush1.msra.mxu0 %v5476
        %5503 = vmatprep.subr.mxu0 0.0
        %5504 = vmatpush1.msra.mxu0 %v5477
        %5505 = vmatprep.subr.mxu0 0.0
        %5506 = vmatpush1.msra.mxu0 %v5478
        %5507 = vmatprep.subr.mxu0 0.0
        %5508 = vmatpush1.msra.mxu0 %v5479
        %5509 = vmatprep.subr.mxu0 0.0
        %5510 = vmatpush1.msra.mxu0 %v5480
        %5511 = vmatprep.subr.mxu0 0.0
        %5512 = vmatpush1.msra.mxu0 %v5481
        %5513 = vmatprep.subr.mxu0 0.0
        %5514 = vmatpush1.msra.mxu0 %v5482
        %5515 = vmatprep.subr.mxu0 0.0
        %5516 = vmatpush1.msra.mxu0 %v5483
        %5517 = vmatprep.subr.mxu0 0.0
        %5518 = vmatpush1.msra.mxu0 %v5484
        %5519 = vmatprep.subr.mxu0 0.0
        %5520 = vmatpush1.msra.mxu0 %v5485
        %5521 = vmatprep.subr.mxu0 0.0
        %5522 = vmatpush1.msra.mxu0 %v5486
        %5523 = vmatprep.subr.mxu0 0.0
        %5524 = vmatpush1.msra.mxu0 %v5487
        %5525 = vmatprep.subr.mxu0 0.0
        %5526 = vmatpush1.msra.mxu0 %v5488
        %5527 = vmatprep.subr.mxu0 0.0
        %5528 = vmatpush1.msra.mxu0 %v5489
        %5529 = vmatprep.subr.mxu0 0.0
        %5530 = vmatpush1.msra.mxu0 0.0
        %5531 = vmatprep.subr.mxu0 0.0
        %5532 = vmatpush1.msra.mxu0 0.0
        %5533 = vmatprep.subr.mxu0 0.0
        %5534 = vmatpush1.msra.mxu0 0.0
        %5535 = vmatprep.subr.mxu0 0.0
        %5536 = vmatpush1.msra.mxu0 0.0
        %5537 = vmatprep.subr.mxu0 0.0
        %5538 = vmatpush1.msra.mxu0 0.0
        %5539 = vmatprep.subr.mxu0 0.0
        %5540 = vmatpush1.msra.mxu0 0.0
        %5541 = vmatprep.subr.mxu0 0.0
        %5542 = vmatpush1.msra.mxu0 0.0
        %5543 = vmatprep.subr.mxu0 0.0
        %5544 = vmatpush1.msra.mxu0 0.0
        %5545 = vmatprep.subr.mxu0 0.0
        %5546 = vmatpush1.msra.mxu0 0.0
        %5547 = vmatprep.subr.mxu0 0.0
        %5548 = vmatpush1.msra.mxu0 0.0
        %5549 = vmatprep.subr.mxu0 0.0
        %5550 = vmatpush1.msra.mxu0 0.0
        %5551 = vmatprep.subr.mxu0 0.0
        %5552 = vmatpush1.msra.mxu0 0.0
        %5553 = vmatprep.subr.mxu0 0.0
        %5554 = vmatpush1.msra.mxu0 0.0
        %5555 = vmatprep.subr.mxu0 0.0
        %5556 = vmatpush1.msra.mxu0 0.0
        %5557 = vmatprep.subr.mxu0 0.0
        %5558 = vmatpush1.msra.mxu0 0.0
        %5559 = vmatprep.subr.mxu0 0.0
        %5560 = vmatpush1.msra.mxu0 0.0
        %5561 = vmatprep.mubr.f32.mxu0 0.0
        %5562 = vmatmul.mubr.f32.gmra.mrb[0].mxu0 %v5473
        %v5563 = vpop.f32.mrb[0].mxu0
        %v5564 = vadd.f32 %v5495, %v5563
        %v5565 = vpop.f32.mrb[0].mxu0
        %5566 = vdwg.mxu0
        %v5567 = vxor.u32 %v5564, 2147483648
        %v5568 = vmul.f32 %v5567, 1.442695
        %v5569 = vpow.pop %v5568
        %v5570 = vadd.f32 %v5569, 1.0
        %v5571 = vrcp.pop %v5570
        %v5572 = vmul.f32 1.0, %v5571
        %v5573 = vld [vmem:[#allocation4] sm:$0xff]
        %v5574 = vld [vmem:[#allocation4 + $0x8] sm:$0xff]
        %v5575 = vld [vmem:[#allocation4 + $0x10] sm:$0xff]
        %v5576 = vld [vmem:[#allocation4 + $0x18] sm:$0xff]
        %v5577 = vld [vmem:[#allocation4 + $0x20] sm:$0xff]
        %v5578 = vld [vmem:[#allocation4 + $0x28] sm:$0xff]
        %v5579 = vld [vmem:[#allocation4 + $0x30] sm:$0xff]
        %v5580 = vld [vmem:[#allocation4 + $0x38] sm:$0xff]
        %v5581 = vld [vmem:[#allocation4 + $0x40] sm:$0xff]
        %v5582 = vld [vmem:[#allocation4 + $0x48] sm:$0xff]
        %v5583 = vld [vmem:[#allocation4 + $0x50] sm:$0xff]
        %v5584 = vld [vmem:[#allocation4 + $0x58] sm:$0xff]
        %v5585 = vld [vmem:[#allocation4 + $0x60] sm:$0xff]
        %v5586 = vld [vmem:[#allocation4 + $0x68] sm:$0xff]
        %v5587 = vld [vmem:[#allocation4 + $0x70] sm:$0xff]
        %v5588 = vld [vmem:[#allocation4 + $0x78] sm:$0xff]
        %v5589 = vld [vmem:[%s11] sm:$0x1]
        %v5591 = vlaneseq
        %v5592 = vshrl.u32 %v5591, 7
        %v5593 = vsub.s32 0, %v5592
        %v5594 = vrot.slane %v5589, %v5593
        %5596 = vmatprep.subr.mxu0 0.0
        %5597 = vmatpush1.msra.mxu0 %v5573
        %5598 = vmatprep.subr.mxu0 0.0
        %5599 = vmatpush1.msra.mxu0 %v5574
        %5600 = vmatprep.subr.mxu0 0.0
        %5601 = vmatpush1.msra.mxu0 %v5575
        %5602 = vmatprep.subr.mxu0 0.0
        %5603 = vmatpush1.msra.mxu0 %v5576
        %5604 = vmatprep.subr.mxu0 0.0
        %5605 = vmatpush1.msra.mxu0 %v5577
        %5606 = vmatprep.subr.mxu0 0.0
        %5607 = vmatpush1.msra.mxu0 %v5578
        %5608 = vmatprep.subr.mxu0 0.0
        %5609 = vmatpush1.msra.mxu0 %v5579
        %5610 = vmatprep.subr.mxu0 0.0
        %5611 = vmatpush1.msra.mxu0 %v5580
        %5612 = vmatprep.subr.mxu0 0.0
        %5613 = vmatpush1.msra.mxu0 %v5581
        %5614 = vmatprep.subr.mxu0 0.0
        %5615 = vmatpush1.msra.mxu0 %v5582
        %5616 = vmatprep.subr.mxu0 0.0
        %5617 = vmatpush1.msra.mxu0 %v5583
        %5618 = vmatprep.subr.mxu0 0.0
        %5619 = vmatpush1.msra.mxu0 %v5584
        %5620 = vmatprep.subr.mxu0 0.0
        %5621 = vmatpush1.msra.mxu0 %v5585
        %5622 = vmatprep.subr.mxu0 0.0
        %5623 = vmatpush1.msra.mxu0 %v5586
        %5624 = vmatprep.subr.mxu0 0.0
        %5625 = vmatpush1.msra.mxu0 %v5587
        %5626 = vmatprep.subr.mxu0 0.0
        %5627 = vmatpush1.msra.mxu0 %v5588
        %5628 = vmatprep.subr.mxu0 0.0
        %5629 = vmatpush1.msra.mxu0 0.0
        %5630 = vmatprep.subr.mxu0 0.0
        %5631 = vmatpush1.msra.mxu0 0.0
        %5632 = vmatprep.subr.mxu0 0.0
        %5633 = vmatpush1.msra.mxu0 0.0
        %5634 = vmatprep.subr.mxu0 0.0
        %5635 = vmatpush1.msra.mxu0 0.0
        %5636 = vmatprep.subr.mxu0 0.0
        %5637 = vmatpush1.msra.mxu0 0.0
        %5638 = vmatprep.subr.mxu0 0.0
        %5639 = vmatpush1.msra.mxu0 0.0
        %5640 = vmatprep.subr.mxu0 0.0
        %5641 = vmatpush1.msra.mxu0 0.0
        %5642 = vmatprep.subr.mxu0 0.0
        %5643 = vmatpush1.msra.mxu0 0.0
        %5644 = vmatprep.subr.mxu0 0.0
        %5645 = vmatpush1.msra.mxu0 0.0
        %5646 = vmatprep.subr.mxu0 0.0
        %5647 = vmatpush1.msra.mxu0 0.0
        %5648 = vmatprep.subr.mxu0 0.0
        %5649 = vmatpush1.msra.mxu0 0.0
        %5650 = vmatprep.subr.mxu0 0.0
        %5651 = vmatpush1.msra.mxu0 0.0
        %5652 = vmatprep.subr.mxu0 0.0
        %5653 = vmatpush1.msra.mxu0 0.0
        %5654 = vmatprep.subr.mxu0 0.0
        %5655 = vmatpush1.msra.mxu0 0.0
        %5656 = vmatprep.subr.mxu0 0.0
        %5657 = vmatpush1.msra.mxu0 0.0
        %5658 = vmatprep.subr.mxu0 0.0
        %5659 = vmatpush1.msra.mxu0 0.0
        %5660 = vmatprep.mubr.f32.mxu0 0.0
        %5661 = vmatmul.mubr.f32.gmra.mrb[0].mxu0 %v5473
        %v5662 = vpop.f32.mrb[0].mxu0
        %v5663 = vadd.f32 %v5594, %v5662
        %v5664 = vpop.f32.mrb[0].mxu0
        %5665 = vdwg.mxu0
        %v5666 = vmax.f32 %v5663, 0.0
        %v5667 = vmul.f32 %v5572, %v5666
        %v5668 = vsub.f32 1.0, %v5572
        %v5669 = vmul.f32 %v5668, %v5473
        %v5670 = vadd.f32 %v5667, %v5669
        %5671 = vst [vmem:[%s443] sm:$0xff] %v5670
        %p5672 = scmp.lt.s32.totalorder %s24, 1
        %s5673 = scalar_select %p5672, %s24, 1
        %s5674 = smul.addr %s5673, 8
        %s5675 = scalar_lea.vmem %s12, %s5674
        // Predicated region
        $region73: #{embedding_forward.1} parent=67 // pred_check
          %p5676 = pneg %p304
        $region74: #{embedding_forward.1} parent=67 // pred_check_branch
          %5678 = sbr.rel (%p5676) target = $region76
        $region75: #{embedding_forward.1} parent=67 // pred_region
          _
        $region76: #{embedding_forward.1} parent=67 // pred_fallthru
          _
      $region68: #{embedding_forward.1} parent=5 // pred_fallthru
        _
      %p5679 = scmp.le.s32.totalorder 2, %s19
      // Predicated region
      $region77: #{embedding_forward.1} parent=5 // pred_check
        %p5680 = pneg %p5679
      $region78: #{embedding_forward.1} parent=5 // pred_check_branch
        %5682 = sbr.rel (%p5680) target = $region80
      $region79: #{embedding_forward.1} parent=5 // pred_region
        %s5683 = ssub.s32 %s19, 2
        // Predicated region
        $region81: #{embedding_forward.1} parent=79 // pred_check
          %p5684 = pneg %p310
        $region82: #{embedding_forward.1} parent=79 // pred_check_branch
          %5686 = sbr.rel (%p5684) target = $region84
        $region83: #{embedding_forward.1} parent=79 // pred_region
          %p5687 = scmp.lt.s32.totalorder %s25, 1
          %s5688 = scalar_select %p5687, %s25, 1
          %s5689 = smul.addr %s5688, 8
          %s5690 = scalar_lea.vmem %s12, %s5689
        $region84: #{embedding_forward.1} parent=79 // pred_fallthru
          _
      $region80: #{embedding_forward.1} parent=5 // pred_fallthru
        _
    $region6: #{embedding_forward.1} parent=1 // loop_footer
      %s23 = sadd.s32 1, %s19
    $region7: #{embedding_forward.1} parent=1 // loop_footer_branch
      %18 = sbr.rel target = $region3
    $region8: #{embedding_forward.1} parent=1 // loop_exit
      _
    %5691 = vsyncpa [#allocation5], 1
    %s5692 = scalar_lea.sflag [#allocation5], 1
    %5693 = vsyncpa %s5692, 1

</llo_original>
